<compile_context>
chip_gen: v5e
topology: v5e:2x2
jax: 0.10.0
libtpu: 0.0.40
codegen_flags: <defaults>
</compile_context>

<pallas_src>
import functools

import jax
import jax.numpy as jnp
from jax.experimental import pallas as pl
from jax.experimental.pallas import tpu as pltpu


# ---------------------------------------------------------------------------
# Capability probes (tiny kernels, run once; graceful fallback on failure).
# ---------------------------------------------------------------------------

@functools.lru_cache(maxsize=None)
def _lane_concat_supported():
    """Unaligned concatenation along the minor (lane) axis inside a kernel."""
    def k(a_ref, b_ref, c_ref, o_ref):
        o_ref[...] = jnp.concatenate([a_ref[...], b_ref[...], c_ref[...]], axis=-1)

    try:
        a = jnp.full((1, 8, 16, 4), 1.0, jnp.float32)
        b = jnp.full((1, 8, 16, 4), 2.0, jnp.float32)
        c = jnp.full((1, 8, 16, 4), 3.0, jnp.float32)
        out = pl.pallas_call(
            k, out_shape=jax.ShapeDtypeStruct((1, 8, 16, 12), jnp.float32))(a, b, c)
        ref = jnp.concatenate([a, b, c], axis=-1)
        return bool(jnp.allclose(out, ref))
    except Exception:
        return False


@functools.lru_cache(maxsize=None)
def _element_halo_supported():
    """Overlapping (halo) windows via pl.Element offsets on the H block dim."""
    def k(x_ref, o_ref):
        o_ref[...] = x_ref[:, :8]

    try:
        x = jnp.arange(2 * 18 * 8 * 128, dtype=jnp.float32).reshape(2, 18, 8, 128)
        out = pl.pallas_call(
            k,
            out_shape=jax.ShapeDtypeStruct((2, 16, 8, 128), jnp.float32),
            grid=(2, 2),
            in_specs=[pl.BlockSpec((1, pl.Element(10), 8, 128),
                                   lambda n, h: (n, h * 8, 0, 0))],
            out_specs=pl.BlockSpec((1, 8, 8, 128), lambda n, h: (n, h, 0, 0)),
        )(x)
        return bool(jnp.allclose(out, x[:, :16]))
    except Exception:
        return False


# ---------------------------------------------------------------------------
# Fused EqualizedLRConv2d (3x3, stride 1, 'same') + LeakyReLU + PixelNorm kernel
# ---------------------------------------------------------------------------

def _conv_act_pn_kernel(x_ref, w_ref, b_ref, o_ref, *, tile_h, W, KH, KW, Cout,
                        fold_taps, use_pixel_norm, negative_slope, eps):
    # x_ref: (1, tile_h+KH-1, W+KW-1, Cin)  zero-padded activation slab (+ H halo)
    # w_ref: (KH*KW*Cin, Cout) if fold_taps else (KH, KW, Cin, Cout); eq-LR scale folded in
    # b_ref: (1, Cout)
    # o_ref: (1, tile_h, W, Cout)
    bias = b_ref[...].astype(jnp.float32)[None, None]          # (1, 1, 1, Cout)
    w = w_ref[...]

    if fold_taps:
        # im2col along channels: one MXU dot with K = KH*KW*Cin instead of
        # KH*KW tiny-K dots (Cin << 128 would leave the MXU K dim ~97% idle).
        taps = [x_ref[:, kh:kh + tile_h, kw:kw + W, :]          # shifted loads off the ref
                for kh in range(KH) for kw in range(KW)]
        lhs = jnp.concatenate(taps, axis=-1)                    # (1, th, W, KH*KW*Cin)
        acc = jax.lax.dot_general(
            lhs, w, dimension_numbers=(((3,), (0,)), ((), ())),
            preferred_element_type=jnp.float32) + bias
    else:
        # General path: per-tap dots (K = Cin already fills the MXU for Cin >= 128).
        acc = jnp.broadcast_to(bias, (1, tile_h, W, Cout))      # bias-initialized accumulator
        for kh in range(KH):
            for kw in range(KW):
                patch = x_ref[:, kh:kh + tile_h, kw:kw + W, :]  # shifted load, no copy of x
                acc = acc + jax.lax.dot_general(
                    patch, w[kh, kw],
                    dimension_numbers=(((3,), (0,)), ((), ())),
                    preferred_element_type=jnp.float32)

    # Fused epilogue: LeakyReLU(0.2) then PixelNorm over channels (lane axis).
    acc = jnp.where(acc > 0, acc, negative_slope * acc)
    if use_pixel_norm:
        acc = acc * jax.lax.rsqrt(jnp.mean(acc * acc, axis=-1, keepdims=True) + eps)
    o_ref[...] = acc.astype(o_ref.dtype)


def _pick_tile_h(H, W, Cin, Cout, itemsize, vmem_budget=8 * 1024 * 1024):
    """Largest divisor of H whose double-buffered in/out blocks fit the budget
    (conservative enough for v7x's 64 MiB VMEM; v5e/v6e have 128 MiB)."""
    for th in range(H, 0, -1):
        if H % th:
            continue
        x_blk = (th + 2) * (W + 2) * Cin * itemsize
        o_blk = th * W * Cout * itemsize
        if 2 * (x_blk + o_blk) <= vmem_budget:
            return th
    return 1


def _eqlr_conv_act_pn(x_nhwc, w_oihw, bias, *, gain=2, use_pixel_norm=True,
                      tile_h=None, negative_slope=0.2, eps=1e-8):
    """One ConvBlock stage (NHWC): EqualizedLRConv2d -> LeakyReLU -> PixelNorm."""
    N, H, W, Cin = x_nhwc.shape
    Cout, Cin_w, KH, KW = w_oihw.shape
    assert Cin_w == Cin and KH % 2 == 1 and KW % 2 == 1  # stride 1, 'same' padding

    # Equalized LR: conv(x * scale, w) == conv(x, w * scale). Fold the scale into
    # the (tiny) weights so the kernel never touches a scaled f32 copy of x.
    scale = (gain / (Cin * KH * KW)) ** 0.5
    w_hwio = (jnp.transpose(w_oihw, (2, 3, 1, 0)) * scale).astype(x_nhwc.dtype)

    fold_taps = (KH * KW * Cin <= 256) and _lane_concat_supported()
    w_k = w_hwio.reshape(KH * KW * Cin, Cout) if fold_taps else w_hwio
    b_2d = bias.reshape(1, Cout)

    itemsize = jnp.dtype(x_nhwc.dtype).itemsize
    if tile_h is None:
        tile_h = _pick_tile_h(H, W, Cin, Cout, itemsize)
    if tile_h < H and not _element_halo_supported():
        tile_h = H                       # fallback: whole H per block (still gridded over N)
    assert H % tile_h == 0, "tile_h must divide H"
    n_h = H // tile_h

    # Zero-pad spatial dims once ('same' conv). NOTE: for very large activations
    # this extra HBM pass could be removed by masking edge taps in-kernel.
    x_pad = jnp.pad(x_nhwc, ((0, 0), (KH // 2, KH // 2), (KW // 2, KW // 2), (0, 0)))

    kernel = functools.partial(
        _conv_act_pn_kernel, tile_h=tile_h, W=W, KH=KH, KW=KW, Cout=Cout,
        fold_taps=fold_taps, use_pixel_norm=use_pixel_norm,
        negative_slope=negative_slope, eps=eps)

    # Input block carries a (KH-1)-row halo -> element-offset indexing on H;
    # W and Cin stay full per block (last two dims = full array dims).
    if n_h > 1:
        x_spec = pl.BlockSpec(
            (1, pl.Element(tile_h + KH - 1), W + KW - 1, Cin),
            lambda n, h: (n, h * tile_h, 0, 0))
    else:
        x_spec = pl.BlockSpec(
            (1, H + KH - 1, W + KW - 1, Cin), lambda n, h: (n, 0, 0, 0))
    w_spec = pl.BlockSpec(w_k.shape, lambda n, h: (0,) * w_k.ndim)
    b_spec = pl.BlockSpec((1, Cout), lambda n, h: (0, 0))
    o_spec = pl.BlockSpec((1, tile_h, W, Cout), lambda n, h: (n, h, 0, 0))
    # NOTE: for realistic GAN widths (Cout >= 128) the output tile is lane-dense;
    # at Cout=8 the writeback is masked (unavoidable without padding channels).

    return pl.pallas_call(
        kernel,
        out_shape=jax.ShapeDtypeStruct((N, H, W, Cout), x_nhwc.dtype),
        grid=(N, n_h),
        in_specs=[x_spec, w_spec, b_spec],
        out_specs=o_spec,
        compiler_params=pltpu.CompilerParams(
            # Every grid step writes a disjoint output tile -> megacore-parallel on v7x.
            dimension_semantics=("parallel", "parallel"),
            vmem_limit_bytes=32 * 1024 * 1024),
    )(x_pad, w_k, b_2d)


# ---------------------------------------------------------------------------
# ConvBlock forward (NCHW in / NCHW out, like the PyTorch module)
# ---------------------------------------------------------------------------

def conv_block_forward(x_nchw, w1, b1, w2, b2, *, use_pixel_norm=True, gain=2,
                       tile_h=None):
    x = jnp.transpose(x_nchw, (0, 2, 3, 1))      # NCHW -> NHWC, once per block
    x = _eqlr_conv_act_pn(x, w1, b1, gain=gain, use_pixel_norm=use_pixel_norm,
                          tile_h=tile_h)
    x = _eqlr_conv_act_pn(x, w2, b2, gain=gain, use_pixel_norm=use_pixel_norm,
                          tile_h=tile_h)
    return jnp.transpose(x, (0, 3, 1, 2))        # NHWC -> NCHW


if __name__ == "__main__":
    key = jax.random.PRNGKey(0)
    kx, kw1, kw2, kb1, kb2 = jax.random.split(key, 5)

    N, Cin, H, W = 2, 4, 16, 16
    Cout, K = 8, 3
    gain = 2

    x = jax.random.normal(kx, (N, Cin, H, W), dtype=jnp.float32)
    w1 = jax.random.normal(kw1, (Cout, Cin, K, K), dtype=jnp.float32)
    w2 = jax.random.normal(kw2, (Cout, Cout, K, K), dtype=jnp.float32)
    # Module initializes biases to zero; use small random biases so the bias path
    # is exercised numerically (forward semantics are identical).
    b1 = 0.1 * jax.random.normal(kb1, (Cout,), dtype=jnp.float32)
    b2 = 0.1 * jax.random.normal(kb2, (Cout,), dtype=jnp.float32)

    # Warm the capability probes eagerly (outside jit) so the jitted forward
    # picks the fast paths with concrete booleans.
    _lane_concat_supported()
    _element_halo_supported()

    fwd = jax.jit(functools.partial(conv_block_forward, use_pixel_norm=True,
                                    gain=gain, tile_h=8))
    out = jax.block_until_ready(fwd(x, w1, b1, w2, b2))
    assert out.shape == (N, Cout, H, W)

    # Pure-JAX reference mirroring the PyTorch ConvBlock forward.
    def _ref_eqlr_conv(z, w, b):
        s = (gain / (w.shape[1] * w.shape[2] * w.shape[3])) ** 0.5
        y = jax.lax.conv_general_dilated(
            z * s, w, window_strides=(1, 1), padding="SAME",
            dimension_numbers=("NCHW", "OIHW", "NCHW"),
            precision=jax.lax.Precision.HIGHEST)
        return y + b[None, :, None, None]

    def _ref_block(z):
        act = lambda t: jnp.where(t > 0, t, 0.2 * t)
        pnorm = lambda t: t / jnp.sqrt(jnp.mean(t * t, axis=1, keepdims=True) + 1e-8)
        t = pnorm(act(_ref_eqlr_conv(z, w1, b1)))
        t = pnorm(act(_ref_eqlr_conv(t, w2, b2)))
        return t

    ref = _ref_block(x)
    err = float(jnp.max(jnp.abs(out - ref)))
    assert err < 2e-3, f"mismatch vs reference ConvBlock (max abs err {err})"
    print("KERNEL_OK")
</pallas_src>

<mosaic_0001>
module attributes {stable_mosaic.version = 11 : i64} {
  func.func @k(%arg0: memref<1x8x16x4xf32, #tpu.memory_space<vmem>>, %arg1: memref<1x8x16x4xf32, #tpu.memory_space<vmem>>, %arg2: memref<1x8x16x4xf32, #tpu.memory_space<vmem>>, %arg3: memref<1x8x16x12xf32, #tpu.memory_space<vmem>>) attributes {dimension_semantics = [], scalar_prefetch = 0 : i64, scratch_operands = 0 : i64, tpu.core_type = #tpu.core_type<tc>} {
    %c0 = arith.constant 0 : index
    %c0_0 = arith.constant 0 : index
    %c0_1 = arith.constant 0 : index
    %c0_2 = arith.constant 0 : index
    %0 = vector.load %arg0[%c0, %c0_0, %c0_1, %c0_2] : memref<1x8x16x4xf32, #tpu.memory_space<vmem>>, vector<1x8x16x4xf32>
    %c0_3 = arith.constant 0 : index
    %c0_4 = arith.constant 0 : index
    %c0_5 = arith.constant 0 : index
    %c0_6 = arith.constant 0 : index
    %1 = vector.load %arg1[%c0_3, %c0_4, %c0_5, %c0_6] : memref<1x8x16x4xf32, #tpu.memory_space<vmem>>, vector<1x8x16x4xf32>
    %c0_7 = arith.constant 0 : index
    %c0_8 = arith.constant 0 : index
    %c0_9 = arith.constant 0 : index
    %c0_10 = arith.constant 0 : index
    %2 = vector.load %arg2[%c0_7, %c0_8, %c0_9, %c0_10] : memref<1x8x16x4xf32, #tpu.memory_space<vmem>>, vector<1x8x16x4xf32>
    %3 = tpu.concatenate %0, %1, %2 in 3 : vector<1x8x16x4xf32>, vector<1x8x16x4xf32>, vector<1x8x16x4xf32> -> vector<1x8x16x12xf32>
    %c0_11 = arith.constant 0 : index
    %c0_12 = arith.constant 0 : index
    %c0_13 = arith.constant 0 : index
    %c0_14 = arith.constant 0 : index
    %4 = vector.load %arg3[%c0_11, %c0_12, %c0_13, %c0_14] : memref<1x8x16x12xf32, #tpu.memory_space<vmem>>, vector<1x8x16x12xf32>
    tpu.vector_store %arg3[%c0_11, %c0_12, %c0_13, %c0_14], %3 {strides = array<i32>} : memref<1x8x16x12xf32, #tpu.memory_space<vmem>>, vector<1x8x16x12xf32>,
    return
  }
}

module attributes {stable_mosaic.version = 11 : i64} {
  func.func @_conv_act_pn_kernel(%arg0: i32, %arg1: i32, %arg2: memref<1x18x18x4xf32, #tpu.memory_space<vmem>>, %arg3: memref<3x3x4x8xf32, #tpu.memory_space<vmem>>, %arg4: memref<1x8xf32, #tpu.memory_space<vmem>>, %arg5: memref<1x16x16x8xf32, #tpu.memory_space<vmem>>) attributes {dimension_semantics = [#tpu.dimension_semantics<parallel>, #tpu.dimension_semantics<parallel>], iteration_bounds = array<i64: 2, 1>, scalar_prefetch = 0 : i64, scratch_operands = 0 : i64, tpu.core_type = #tpu.core_type<tc>, window_params = [{transform_indices = @transform_0, window_bounds = array<i64: 1, 18, 18, 4>}, {pipeline_mode = #tpu.pipeline_mode<synchronous>, transform_indices = @transform_1, window_bounds = array<i64: 3, 3, 4, 8>}, {pipeline_mode = #tpu.pipeline_mode<synchronous>, transform_indices = @transform_2, window_bounds = array<i64: 1, 8>}, {transform_indices = @transform_3, window_bounds = array<i64: 1, 16, 16, 8>}]} {
    %c0 = arith.constant 0 : index
    %c0_0 = arith.constant 0 : index
    %0 = vector.load %arg4[%c0, %c0_0] : memref<1x8xf32, #tpu.memory_space<vmem>>, vector<1x8xf32>
    %1 = vector.shape_cast %0 : vector<1x8xf32> to vector<1x1x1x8xf32>
    %c0_1 = arith.constant 0 : index
    %c0_2 = arith.constant 0 : index
    %c0_3 = arith.constant 0 : index
    %c0_4 = arith.constant 0 : index
    %2 = vector.load %arg3[%c0_1, %c0_2, %c0_3, %c0_4] : memref<3x3x4x8xf32, #tpu.memory_space<vmem>>, vector<3x3x4x8xf32>
    %3 = vector.shape_cast %1 : vector<1x1x1x8xf32> to vector<1x1x1x8xf32>
    %4 = vector.broadcast %3 : vector<1x1x1x8xf32> to vector<1x16x16x8xf32>
    %c0_5 = arith.constant 0 : index
    %c0_6 = arith.constant 0 : index
    %c0_7 = arith.constant 0 : index
    %c0_8 = arith.constant 0 : index
    %5 = vector.load %arg2[%c0_5, %c0_6, %c0_7, %c0_8] : memref<1x18x18x4xf32, #tpu.memory_space<vmem>>, vector<1x16x16x4xf32>
    %6 = vector.extract_strided_slice %2 {offsets = [0, 0, 0, 0], sizes = [1, 1, 4, 8], strides = [1, 1, 1, 1]} : vector<3x3x4x8xf32> to vector<1x1x4x8xf32>
    %7 = vector.shape_cast %6 : vector<1x1x4x8xf32> to vector<4x8xf32>
    %cst = arith.constant dense<0.000000e+00> : vector<1x16x16x8xf32>
    %8 = tpu.matmul %5, %7, %cst {dimension_numbers = #tpu.dot_dimension_numbers<[3], [0], [0, 1, 2], [1], [0, 0, 0, 1, 0, 2, 1, 1], [], []>} : vector<1x16x16x4xf32>, vector<4x8xf32>, vector<1x16x16x8xf32> -> vector<1x16x16x8xf32>
    %9 = arith.addf %4, %8 : vector<1x16x16x8xf32>
    %c0_9 = arith.constant 0 : index
    %c0_10 = arith.constant 0 : index
    %c1 = arith.constant 1 : index
    %c0_11 = arith.constant 0 : index
    %10 = vector.load %arg2[%c0_9, %c0_10, %c1, %c0_11] : memref<1x18x18x4xf32, #tpu.memory_space<vmem>>, vector<1x16x16x4xf32>
    %11 = vector.extract_strided_slice %2 {offsets = [0, 1, 0, 0], sizes = [1, 1, 4, 8], strides = [1, 1, 1, 1]} : vector<3x3x4x8xf32> to vector<1x1x4x8xf32>
    %12 = vector.shape_cast %11 : vector<1x1x4x8xf32> to vector<4x8xf32>
    %cst_12 = arith.constant dense<0.000000e+00> : vector<1x16x16x8xf32>
    %13 = tpu.matmul %10, %12, %cst_12 {dimension_numbers = #tpu.dot_dimension_numbers<[3], [0], [0, 1, 2], [1], [0, 0, 0, 1, 0, 2, 1, 1], [], []>} : vector<1x16x16x4xf32>, vector<4x8xf32>, vector<1x16x16x8xf32> -> vector<1x16x16x8xf32>
    %14 = arith.addf %9, %13 : vector<1x16x16x8xf32>
    %c0_13 = arith.constant 0 : index
    %c0_14 = arith.constant 0 : index
    %c2 = arith.constant 2 : index
    %c0_15 = arith.constant 0 : index
    %15 = vector.load %arg2[%c0_13, %c0_14, %c2, %c0_15] : memref<1x18x18x4xf32, #tpu.memory_space<vmem>>, vector<1x16x16x4xf32>
    %16 = vector.extract_strided_slice %2 {offsets = [0, 2, 0, 0], sizes = [1, 1, 4, 8], strides = [1, 1, 1, 1]} : vector<3x3x4x8xf32> to vector<1x1x4x8xf32>
    %17 = vector.shape_cast %16 : vector<1x1x4x8xf32> to vector<4x8xf32>
    %cst_16 = arith.constant dense<0.000000e+00> : vector<1x16x16x8xf32>
    %18 = tpu.matmul %15, %17, %cst_16 {dimension_numbers = #tpu.dot_dimension_numbers<[3], [0], [0, 1, 2], [1], [0, 0, 0, 1, 0, 2, 1, 1], [], []>} : vector<1x16x16x4xf32>, vector<4x8xf32>, vector<1x16x16x8xf32> -> vector<1x16x16x8xf32>
    %19 = arith.addf %14, %18 : vector<1x16x16x8xf32>
    %c0_17 = arith.constant 0 : index
    %c1_18 = arith.constant 1 : index
    %c0_19 = arith.constant 0 : index
    %c0_20 = arith.constant 0 : index
    %20 = vector.load %arg2[%c0_17, %c1_18, %c0_19, %c0_20] : memref<1x18x18x4xf32, #tpu.memory_space<vmem>>, vector<1x16x16x4xf32>
    %21 = vector.extract_strided_slice %2 {offsets = [1, 0, 0, 0], sizes = [1, 1, 4, 8], strides = [1, 1, 1, 1]} : vector<3x3x4x8xf32> to vector<1x1x4x8xf32>
    %22 = vector.shape_cast %21 : vector<1x1x4x8xf32> to vector<4x8xf32>
    %cst_21 = arith.constant dense<0.000000e+00> : vector<1x16x16x8xf32>
    %23 = tpu.matmul %20, %22, %cst_21 {dimension_numbers = #tpu.dot_dimension_numbers<[3], [0], [0, 1, 2], [1], [0, 0, 0, 1, 0, 2, 1, 1], [], []>} : vector<1x16x16x4xf32>, vector<4x8xf32>, vector<1x16x16x8xf32> -> vector<1x16x16x8xf32>
    %24 = arith.addf %19, %23 : vector<1x16x16x8xf32>
    %c0_22 = arith.constant 0 : index
    %c1_23 = arith.constant 1 : index
    %c1_24 = arith.constant 1 : index
    %c0_25 = arith.constant 0 : index
    %25 = vector.load %arg2[%c0_22, %c1_23, %c1_24, %c0_25] : memref<1x18x18x4xf32, #tpu.memory_space<vmem>>, vector<1x16x16x4xf32>
    %26 = vector.extract_strided_slice %2 {offsets = [1, 1, 0, 0], sizes = [1, 1, 4, 8], strides = [1, 1, 1, 1]} : vector<3x3x4x8xf32> to vector<1x1x4x8xf32>
    %27 = vector.shape_cast %26 : vector<1x1x4x8xf32> to vector<4x8xf32>
    %cst_26 = arith.constant dense<0.000000e+00> : vector<1x16x16x8xf32>
    %28 = tpu.matmul %25, %27, %cst_26 {dimension_numbers = #tpu.dot_dimension_numbers<[3], [0], [0, 1, 2], [1], [0, 0, 0, 1, 0, 2, 1, 1], [], []>} : vector<1x16x16x4xf32>, vector<4x8xf32>, vector<1x16x16x8xf32> -> vector<1x16x16x8xf32>
    %29 = arith.addf %24, %28 : vector<1x16x16x8xf32>
    %c0_27 = arith.constant 0 : index
    %c1_28 = arith.constant 1 : index
    %c2_29 = arith.constant 2 : index
    %c0_30 = arith.constant 0 : index
    %30 = vector.load %arg2[%c0_27, %c1_28, %c2_29, %c0_30] : memref<1x18x18x4xf32, #tpu.memory_space<vmem>>, vector<1x16x16x4xf32>
    %31 = vector.extract_strided_slice %2 {offsets = [1, 2, 0, 0], sizes = [1, 1, 4, 8], strides = [1, 1, 1, 1]} : vector<3x3x4x8xf32> to vector<1x1x4x8xf32>
    %32 = vector.shape_cast %31 : vector<1x1x4x8xf32> to vector<4x8xf32>
    %cst_31 = arith.constant dense<0.000000e+00> : vector<1x16x16x8xf32>
    %33 = tpu.matmul %30, %32, %cst_31 {dimension_numbers = #tpu.dot_dimension_numbers<[3], [0], [0, 1, 2], [1], [0, 0, 0, 1, 0, 2, 1, 1], [], []>} : vector<1x16x16x4xf32>, vector<4x8xf32>, vector<1x16x16x8xf32> -> vector<1x16x16x8xf32>
    %34 = arith.addf %29, %33 : vector<1x16x16x8xf32>
    %c0_32 = arith.constant 0 : index
    %c2_33 = arith.constant 2 : index
    %c0_34 = arith.constant 0 : index
    %c0_35 = arith.constant 0 : index
    %35 = vector.load %arg2[%c0_32, %c2_33, %c0_34, %c0_35] : memref<1x18x18x4xf32, #tpu.memory_space<vmem>>, vector<1x16x16x4xf32>
    %36 = vector.extract_strided_slice %2 {offsets = [2, 0, 0, 0], sizes = [1, 1, 4, 8], strides = [1, 1, 1, 1]} : vector<3x3x4x8xf32> to vector<1x1x4x8xf32>
    %37 = vector.shape_cast %36 : vector<1x1x4x8xf32> to vector<4x8xf32>
    %cst_36 = arith.constant dense<0.000000e+00> : vector<1x16x16x8xf32>
    %38 = tpu.matmul %35, %37, %cst_36 {dimension_numbers = #tpu.dot_dimension_numbers<[3], [0], [0, 1, 2], [1], [0, 0, 0, 1, 0, 2, 1, 1], [], []>} : vector<1x16x16x4xf32>, vector<4x8xf32>, vector<1x16x16x8xf32> -> vector<1x16x16x8xf32>
    %39 = arith.addf %34, %38 : vector<1x16x16x8xf32>
    %c0_37 = arith.constant 0 : index
    %c2_38 = arith.constant 2 : index
    %c1_39 = arith.constant 1 : index
    %c0_40 = arith.constant 0 : index
    %40 = vector.load %arg2[%c0_37, %c2_38, %c1_39, %c0_40] : memref<1x18x18x4xf32, #tpu.memory_space<vmem>>, vector<1x16x16x4xf32>
    %41 = vector.extract_strided_slice %2 {offsets = [2, 1, 0, 0], sizes = [1, 1, 4, 8], strides = [1, 1, 1, 1]} : vector<3x3x4x8xf32> to vector<1x1x4x8xf32>
    %42 = vector.shape_cast %41 : vector<1x1x4x8xf32> to vector<4x8xf32>
    %cst_41 = arith.constant dense<0.000000e+00> : vector<1x16x16x8xf32>
    %43 = tpu.matmul %40, %42, %cst_41 {dimension_numbers = #tpu.dot_dimension_numbers<[3], [0], [0, 1, 2], [1], [0, 0, 0, 1, 0, 2, 1, 1], [], []>} : vector<1x16x16x4xf32>, vector<4x8xf32>, vector<1x16x16x8xf32> -> vector<1x16x16x8xf32>
    %44 = arith.addf %39, %43 : vector<1x16x16x8xf32>
    %c0_42 = arith.constant 0 : index
    %c2_43 = arith.constant 2 : index
    %c2_44 = arith.constant 2 : index
    %c0_45 = arith.constant 0 : index
    %45 = vector.load %arg2[%c0_42, %c2_43, %c2_44, %c0_45] : memref<1x18x18x4xf32, #tpu.memory_space<vmem>>, vector<1x16x16x4xf32>
    %46 = vector.extract_strided_slice %2 {offsets = [2, 2, 0, 0], sizes = [1, 1, 4, 8], strides = [1, 1, 1, 1]} : vector<3x3x4x8xf32> to vector<1x1x4x8xf32>
    %47 = vector.shape_cast %46 : vector<1x1x4x8xf32> to vector<4x8xf32>
    %cst_46 = arith.constant dense<0.000000e+00> : vector<1x16x16x8xf32>
    %48 = tpu.matmul %45, %47, %cst_46 {dimension_numbers = #tpu.dot_dimension_numbers<[3], [0], [0, 1, 2], [1], [0, 0, 0, 1, 0, 2, 1, 1], [], []>} : vector<1x16x16x4xf32>, vector<4x8xf32>, vector<1x16x16x8xf32> -> vector<1x16x16x8xf32>
    %49 = arith.addf %44, %48 : vector<1x16x16x8xf32>
    %cst_47 = arith.constant 0.000000e+00 : f32
    %50 = vector.broadcast %cst_47 : f32 to vector<1x16x16x8xf32>
    %51 = arith.cmpf ogt, %49, %50 : vector<1x16x16x8xf32>
    %cst_48 = arith.constant 2.000000e-01 : f32
    %52 = vector.broadcast %cst_48 : f32 to vector<1x16x16x8xf32>
    %53 = arith.mulf %52, %49 : vector<1x16x16x8xf32>
    %54 = arith.select %51, %49, %53 : vector<1x16x16x8xi1>, vector<1x16x16x8xf32>
    %55 = arith.mulf %54, %54 : vector<1x16x16x8xf32>
    %cst_49 = arith.constant dense<0.000000e+00> : vector<1x16x16xf32>
    %56 = vector.multi_reduction <add>, %55, %cst_49 [3] : vector<1x16x16x8xf32> to vector<1x16x16xf32>
    %57 = vector.shape_cast %56 : vector<1x16x16xf32> to vector<1x16x16x1xf32>
    %cst_50 = arith.constant 8.000000e+00 : f32
    %58 = vector.broadcast %cst_50 : f32 to vector<1x16x16x1xf32>
    %59 = arith.divf %57, %58 : vector<1x16x16x1xf32>
    %cst_51 = arith.constant 9.99999993E-9 : f32
    %60 = vector.broadcast %cst_51 : f32 to vector<1x16x16x1xf32>
    %61 = arith.addf %59, %60 : vector<1x16x16x1xf32>
    %62 = math.rsqrt %61 : vector<1x16x16x1xf32>
    %63 = vector.broadcast %62 : vector<1x16x16x1xf32> to vector<1x16x16x8xf32>
    %64 = arith.mulf %54, %63 : vector<1x16x16x8xf32>
    %c0_52 = arith.constant 0 : index
    %c0_53 = arith.constant 0 : index
    %c0_54 = arith.constant 0 : index
    %c0_55 = arith.constant 0 : index
    %65 = vector.load %arg5[%c0_52, %c0_53, %c0_54, %c0_55] : memref<1x16x16x8xf32, #tpu.memory_space<vmem>>, vector<1x16x16x8xf32>
    tpu.vector_store %arg5[%c0_52, %c0_53, %c0_54, %c0_55], %64 {strides = array<i32>} : memref<1x16x16x8xf32, #tpu.memory_space<vmem>>, vector<1x16x16x8xf32>,
    return
  }
  func.func @transform_0(%arg0: i32, %arg1: i32) -> (i32, i32, i32, i32) {
    %c0_i32 = arith.constant 0 : i32
    %c0_i32_0 = arith.constant 0 : i32
    %c0_i32_1 = arith.constant 0 : i32
    %c0_i32_2 = arith.constant 0 : i32
    return %arg0, %c0_i32, %c0_i32_0, %c0_i32_1 : i32, i32, i32, i32
  }
  func.func @transform_1(%arg0: i32, %arg1: i32) -> (i32, i32, i32, i32) {
    %c0_i32 = arith.constant 0 : i32
    %c0_i32_0 = arith.constant 0 : i32
    %c0_i32_1 = arith.constant 0 : i32
    %c0_i32_2 = arith.constant 0 : i32
    %c0_i32_3 = arith.constant 0 : i32
    return %c0_i32, %c0_i32_0, %c0_i32_1, %c0_i32_2 : i32, i32, i32, i32
  }
  func.func @transform_2(%arg0: i32, %arg1: i32) -> (i32, i32) {
    %c0_i32 = arith.constant 0 : i32
    %c0_i32_0 = arith.constant 0 : i32
    %c0_i32_1 = arith.constant 0 : i32
    return %c0_i32, %c0_i32_0 : i32, i32
  }
  func.func @transform_3(%arg0: i32, %arg1: i32) -> (i32, i32, i32, i32) {
    %c0_i32 = arith.constant 0 : i32
    %c0_i32_0 = arith.constant 0 : i32
    %c0_i32_1 = arith.constant 0 : i32
    return %arg0, %arg1, %c0_i32, %c0_i32_0 : i32, i32, i32, i32
  }
}

module attributes {stable_mosaic.version = 11 : i64} {
  func.func @_conv_act_pn_kernel(%arg0: i32, %arg1: i32, %arg2: memref<1x18x18x8xf32, #tpu.memory_space<vmem>>, %arg3: memref<3x3x8x8xf32, #tpu.memory_space<vmem>>, %arg4: memref<1x8xf32, #tpu.memory_space<vmem>>, %arg5: memref<1x16x16x8xf32, #tpu.memory_space<vmem>>) attributes {dimension_semantics = [#tpu.dimension_semantics<parallel>, #tpu.dimension_semantics<parallel>], iteration_bounds = array<i64: 2, 1>, scalar_prefetch = 0 : i64, scratch_operands = 0 : i64, tpu.core_type = #tpu.core_type<tc>, window_params = [{transform_indices = @transform_0, window_bounds = array<i64: 1, 18, 18, 8>}, {pipeline_mode = #tpu.pipeline_mode<synchronous>, transform_indices = @transform_1, window_bounds = array<i64: 3, 3, 8, 8>}, {pipeline_mode = #tpu.pipeline_mode<synchronous>, transform_indices = @transform_2, window_bounds = array<i64: 1, 8>}, {transform_indices = @transform_3, window_bounds = array<i64: 1, 16, 16, 8>}]} {
    %c0 = arith.constant 0 : index
    %c0_0 = arith.constant 0 : index
    %0 = vector.load %arg4[%c0, %c0_0] : memref<1x8xf32, #tpu.memory_space<vmem>>, vector<1x8xf32>
    %1 = vector.shape_cast %0 : vector<1x8xf32> to vector<1x1x1x8xf32>
    %c0_1 = arith.constant 0 : index
    %c0_2 = arith.constant 0 : index
    %c0_3 = arith.constant 0 : index
    %c0_4 = arith.constant 0 : index
    %2 = vector.load %arg3[%c0_1, %c0_2, %c0_3, %c0_4] : memref<3x3x8x8xf32, #tpu.memory_space<vmem>>, vector<3x3x8x8xf32>
    %3 = vector.shape_cast %1 : vector<1x1x1x8xf32> to vector<1x1x1x8xf32>
    %4 = vector.broadcast %3 : vector<1x1x1x8xf32> to vector<1x16x16x8xf32>
    %c0_5 = arith.constant 0 : index
    %c0_6 = arith.constant 0 : index
    %c0_7 = arith.constant 0 : index
    %c0_8 = arith.constant 0 : index
    %5 = vector.load %arg2[%c0_5, %c0_6, %c0_7, %c0_8] : memref<1x18x18x8xf32, #tpu.memory_space<vmem>>, vector<1x16x16x8xf32>
    %6 = vector.extract_strided_slice %2 {offsets = [0, 0, 0, 0], sizes = [1, 1, 8, 8], strides = [1, 1, 1, 1]} : vector<3x3x8x8xf32> to vector<1x1x8x8xf32>
    %7 = vector.shape_cast %6 : vector<1x1x8x8xf32> to vector<8x8xf32>
    %cst = arith.constant dense<0.000000e+00> : vector<1x16x16x8xf32>
    %8 = tpu.matmul %5, %7, %cst {dimension_numbers = #tpu.dot_dimension_numbers<[3], [0], [0, 1, 2], [1], [0, 0, 0, 1, 0, 2, 1, 1], [], []>} : vector<1x16x16x8xf32>, vector<8x8xf32>, vector<1x16x16x8xf32> -> vector<1x16x16x8xf32>
    %9 = arith.addf %4, %8 : vector<1x16x16x8xf32>
    %c0_9 = arith.constant 0 : index
    %c0_10 = arith.constant 0 : index
    %c1 = arith.constant 1 : index
    %c0_11 = arith.constant 0 : index
    %10 = vector.load %arg2[%c0_9, %c0_10, %c1, %c0_11] : memref<1x18x18x8xf32, #tpu.memory_space<vmem>>, vector<1x16x16x8xf32>
    %11 = vector.extract_strided_slice %2 {offsets = [0, 1, 0, 0], sizes = [1, 1, 8, 8], strides = [1, 1, 1, 1]} : vector<3x3x8x8xf32> to vector<1x1x8x8xf32>
    %12 = vector.shape_cast %11 : vector<1x1x8x8xf32> to vector<8x8xf32>
    %cst_12 = arith.constant dense<0.000000e+00> : vector<1x16x16x8xf32>
    %13 = tpu.matmul %10, %12, %cst_12 {dimension_numbers = #tpu.dot_dimension_numbers<[3], [0], [0, 1, 2], [1], [0, 0, 0, 1, 0, 2, 1, 1], [], []>} : vector<1x16x16x8xf32>, vector<8x8xf32>, vector<1x16x16x8xf32> -> vector<1x16x16x8xf32>
    %14 = arith.addf %9, %13 : vector<1x16x16x8xf32>
    %c0_13 = arith.constant 0 : index
    %c0_14 = arith.constant 0 : index
    %c2 = arith.constant 2 : index
    %c0_15 = arith.constant 0 : index
    %15 = vector.load %arg2[%c0_13, %c0_14, %c2, %c0_15] : memref<1x18x18x8xf32, #tpu.memory_space<vmem>>, vector<1x16x16x8xf32>
    %16 = vector.extract_strided_slice %2 {offsets = [0, 2, 0, 0], sizes = [1, 1, 8, 8], strides = [1, 1, 1, 1]} : vector<3x3x8x8xf32> to vector<1x1x8x8xf32>
    %17 = vector.shape_cast %16 : vector<1x1x8x8xf32> to vector<8x8xf32>
    %cst_16 = arith.constant dense<0.000000e+00> : vector<1x16x16x8xf32>
    %18 = tpu.matmul %15, %17, %cst_16 {dimension_numbers = #tpu.dot_dimension_numbers<[3], [0], [0, 1, 2], [1], [0, 0, 0, 1, 0, 2, 1, 1], [], []>} : vector<1x16x16x8xf32>, vector<8x8xf32>, vector<1x16x16x8xf32> -> vector<1x16x16x8xf32>
    %19 = arith.addf %14, %18 : vector<1x16x16x8xf32>
    %c0_17 = arith.constant 0 : index
    %c1_18 = arith.constant 1 : index
    %c0_19 = arith.constant 0 : index
    %c0_20 = arith.constant 0 : index
    %20 = vector.load %arg2[%c0_17, %c1_18, %c0_19, %c0_20] : memref<1x18x18x8xf32, #tpu.memory_space<vmem>>, vector<1x16x16x8xf32>
    %21 = vector.extract_strided_slice %2 {offsets = [1, 0, 0, 0], sizes = [1, 1, 8, 8], strides = [1, 1, 1, 1]} : vector<3x3x8x8xf32> to vector<1x1x8x8xf32>
    %22 = vector.shape_cast %21 : vector<1x1x8x8xf32> to vector<8x8xf32>
    %cst_21 = arith.constant dense<0.000000e+00> : vector<1x16x16x8xf32>
    %23 = tpu.matmul %20, %22, %cst_21 {dimension_numbers = #tpu.dot_dimension_numbers<[3], [0], [0, 1, 2], [1], [0, 0, 0, 1, 0, 2, 1, 1], [], []>} : vector<1x16x16x8xf32>, vector<8x8xf32>, vector<1x16x16x8xf32> -> vector<1x16x16x8xf32>
    %24 = arith.addf %19, %23 : vector<1x16x16x8xf32>
    %c0_22 = arith.constant 0 : index
    %c1_23 = arith.constant 1 : index
    %c1_24 = arith.constant 1 : index
    %c0_25 = arith.constant 0 : index
    %25 = vector.load %arg2[%c0_22, %c1_23, %c1_24, %c0_25] : memref<1x18x18x8xf32, #tpu.memory_space<vmem>>, vector<1x16x16x8xf32>
    %26 = vector.extract_strided_slice %2 {offsets = [1, 1, 0, 0], sizes = [1, 1, 8, 8], strides = [1, 1, 1, 1]} : vector<3x3x8x8xf32> to vector<1x1x8x8xf32>
    %27 = vector.shape_cast %26 : vector<1x1x8x8xf32> to vector<8x8xf32>
    %cst_26 = arith.constant dense<0.000000e+00> : vector<1x16x16x8xf32>
    %28 = tpu.matmul %25, %27, %cst_26 {dimension_numbers = #tpu.dot_dimension_numbers<[3], [0], [0, 1, 2], [1], [0, 0, 0, 1, 0, 2, 1, 1], [], []>} : vector<1x16x16x8xf32>, vector<8x8xf32>, vector<1x16x16x8xf32> -> vector<1x16x16x8xf32>
    %29 = arith.addf %24, %28 : vector<1x16x16x8xf32>
    %c0_27 = arith.constant 0 : index
    %c1_28 = arith.constant 1 : index
    %c2_29 = arith.constant 2 : index
    %c0_30 = arith.constant 0 : index
    %30 = vector.load %arg2[%c0_27, %c1_28, %c2_29, %c0_30] : memref<1x18x18x8xf32, #tpu.memory_space<vmem>>, vector<1x16x16x8xf32>
    %31 = vector.extract_strided_slice %2 {offsets = [1, 2, 0, 0], sizes = [1, 1, 8, 8], strides = [1, 1, 1, 1]} : vector<3x3x8x8xf32> to vector<1x1x8x8xf32>
    %32 = vector.shape_cast %31 : vector<1x1x8x8xf32> to vector<8x8xf32>
    %cst_31 = arith.constant dense<0.000000e+00> : vector<1x16x16x8xf32>
    %33 = tpu.matmul %30, %32, %cst_31 {dimension_numbers = #tpu.dot_dimension_numbers<[3], [0], [0, 1, 2], [1], [0, 0, 0, 1, 0, 2, 1, 1], [], []>} : vector<1x16x16x8xf32>, vector<8x8xf32>, vector<1x16x16x8xf32> -> vector<1x16x16x8xf32>
    %34 = arith.addf %29, %33 : vector<1x16x16x8xf32>
    %c0_32 = arith.constant 0 : index
    %c2_33 = arith.constant 2 : index
    %c0_34 = arith.constant 0 : index
    %c0_35 = arith.constant 0 : index
    %35 = vector.load %arg2[%c0_32, %c2_33, %c0_34, %c0_35] : memref<1x18x18x8xf32, #tpu.memory_space<vmem>>, vector<1x16x16x8xf32>
    %36 = vector.extract_strided_slice %2 {offsets = [2, 0, 0, 0], sizes = [1, 1, 8, 8], strides = [1, 1, 1, 1]} : vector<3x3x8x8xf32> to vector<1x1x8x8xf32>
    %37 = vector.shape_cast %36 : vector<1x1x8x8xf32> to vector<8x8xf32>
    %cst_36 = arith.constant dense<0.000000e+00> : vector<1x16x16x8xf32>
    %38 = tpu.matmul %35, %37, %cst_36 {dimension_numbers = #tpu.dot_dimension_numbers<[3], [0], [0, 1, 2], [1], [0, 0, 0, 1, 0, 2, 1, 1], [], []>} : vector<1x16x16x8xf32>, vector<8x8xf32>, vector<1x16x16x8xf32> -> vector<1x16x16x8xf32>
    %39 = arith.addf %34, %38 : vector<1x16x16x8xf32>
    %c0_37 = arith.constant 0 : index
    %c2_38 = arith.constant 2 : index
    %c1_39 = arith.constant 1 : index
    %c0_40 = arith.constant 0 : index
    %40 = vector.load %arg2[%c0_37, %c2_38, %c1_39, %c0_40] : memref<1x18x18x8xf32, #tpu.memory_space<vmem>>, vector<1x16x16x8xf32>
    %41 = vector.extract_strided_slice %2 {offsets = [2, 1, 0, 0], sizes = [1, 1, 8, 8], strides = [1, 1, 1, 1]} : vector<3x3x8x8xf32> to vector<1x1x8x8xf32>
    %42 = vector.shape_cast %41 : vector<1x1x8x8xf32> to vector<8x8xf32>
    %cst_41 = arith.constant dense<0.000000e+00> : vector<1x16x16x8xf32>
    %43 = tpu.matmul %40, %42, %cst_41 {dimension_numbers = #tpu.dot_dimension_numbers<[3], [0], [0, 1, 2], [1], [0, 0, 0, 1, 0, 2, 1, 1], [], []>} : vector<1x16x16x8xf32>, vector<8x8xf32>, vector<1x16x16x8xf32> -> vector<1x16x16x8xf32>
    %44 = arith.addf %39, %43 : vector<1x16x16x8xf32>
    %c0_42 = arith.constant 0 : index
    %c2_43 = arith.constant 2 : index
    %c2_44 = arith.constant 2 : index
    %c0_45 = arith.constant 0 : index
    %45 = vector.load %arg2[%c0_42, %c2_43, %c2_44, %c0_45] : memref<1x18x18x8xf32, #tpu.memory_space<vmem>>, vector<1x16x16x8xf32>
    %46 = vector.extract_strided_slice %2 {offsets = [2, 2, 0, 0], sizes = [1, 1, 8, 8], strides = [1, 1, 1, 1]} : vector<3x3x8x8xf32> to vector<1x1x8x8xf32>
    %47 = vector.shape_cast %46 : vector<1x1x8x8xf32> to vector<8x8xf32>
    %cst_46 = arith.constant dense<0.000000e+00> : vector<1x16x16x8xf32>
    %48 = tpu.matmul %45, %47, %cst_46 {dimension_numbers = #tpu.dot_dimension_numbers<[3], [0], [0, 1, 2], [1], [0, 0, 0, 1, 0, 2, 1, 1], [], []>} : vector<1x16x16x8xf32>, vector<8x8xf32>, vector<1x16x16x8xf32> -> vector<1x16x16x8xf32>
    %49 = arith.addf %44, %48 : vector<1x16x16x8xf32>
    %cst_47 = arith.constant 0.000000e+00 : f32
    %50 = vector.broadcast %cst_47 : f32 to vector<1x16x16x8xf32>
    %51 = arith.cmpf ogt, %49, %50 : vector<1x16x16x8xf32>
    %cst_48 = arith.constant 2.000000e-01 : f32
    %52 = vector.broadcast %cst_48 : f32 to vector<1x16x16x8xf32>
    %53 = arith.mulf %52, %49 : vector<1x16x16x8xf32>
    %54 = arith.select %51, %49, %53 : vector<1x16x16x8xi1>, vector<1x16x16x8xf32>
    %55 = arith.mulf %54, %54 : vector<1x16x16x8xf32>
    %cst_49 = arith.constant dense<0.000000e+00> : vector<1x16x16xf32>
    %56 = vector.multi_reduction <add>, %55, %cst_49 [3] : vector<1x16x16x8xf32> to vector<1x16x16xf32>
    %57 = vector.shape_cast %56 : vector<1x16x16xf32> to vector<1x16x16x1xf32>
    %cst_50 = arith.constant 8.000000e+00 : f32
    %58 = vector.broadcast %cst_50 : f32 to vector<1x16x16x1xf32>
    %59 = arith.divf %57, %58 : vector<1x16x16x1xf32>
    %cst_51 = arith.constant 9.99999993E-9 : f32
    %60 = vector.broadcast %cst_51 : f32 to vector<1x16x16x1xf32>
    %61 = arith.addf %59, %60 : vector<1x16x16x1xf32>
    %62 = math.rsqrt %61 : vector<1x16x16x1xf32>
    %63 = vector.broadcast %62 : vector<1x16x16x1xf32> to vector<1x16x16x8xf32>
    %64 = arith.mulf %54, %63 : vector<1x16x16x8xf32>
    %c0_52 = arith.constant 0 : index
    %c0_53 = arith.constant 0 : index
    %c0_54 = arith.constant 0 : index
    %c0_55 = arith.constant 0 : index
    %65 = vector.load %arg5[%c0_52, %c0_53, %c0_54, %c0_55] : memref<1x16x16x8xf32, #tpu.memory_space<vmem>>, vector<1x16x16x8xf32>
    tpu.vector_store %arg5[%c0_52, %c0_53, %c0_54, %c0_55], %64 {strides = array<i32>} : memref<1x16x16x8xf32, #tpu.memory_space<vmem>>, vector<1x16x16x8xf32>,
    return
  }
  func.func @transform_0(%arg0: i32, %arg1: i32) -> (i32, i32, i32, i32) {
    %c0_i32 = arith.constant 0 : i32
    %c0_i32_0 = arith.constant 0 : i32
    %c0_i32_1 = arith.constant 0 : i32
    %c0_i32_2 = arith.constant 0 : i32
    return %arg0, %c0_i32, %c0_i32_0, %c0_i32_1 : i32, i32, i32, i32
  }
  func.func @transform_1(%arg0: i32, %arg1: i32) -> (i32, i32, i32, i32) {
    %c0_i32 = arith.constant 0 : i32
    %c0_i32_0 = arith.constant 0 : i32
    %c0_i32_1 = arith.constant 0 : i32
    %c0_i32_2 = arith.constant 0 : i32
    %c0_i32_3 = arith.constant 0 : i32
    return %c0_i32, %c0_i32_0, %c0_i32_1, %c0_i32_2 : i32, i32, i32, i32
  }
  func.func @transform_2(%arg0: i32, %arg1: i32) -> (i32, i32) {
    %c0_i32 = arith.constant 0 : i32
    %c0_i32_0 = arith.constant 0 : i32
    %c0_i32_1 = arith.constant 0 : i32
    return %c0_i32, %c0_i32_0 : i32, i32
  }
  func.func @transform_3(%arg0: i32, %arg1: i32) -> (i32, i32, i32, i32) {
    %c0_i32 = arith.constant 0 : i32
    %c0_i32_0 = arith.constant 0 : i32
    %c0_i32_1 = arith.constant 0 : i32
    return %arg0, %arg1, %c0_i32, %c0_i32_0 : i32, i32, i32, i32
  }
}

</mosaic_0001>

<llo_original>
// kernel: tpu_custom_call.1
$region0: #{tpu_custom_call.1}
  #allocation0 [shape = 'u32[]', space=smem, size = 0x4, offset = 0x4, fixed_abs, tag = 'smem constant byte address 0x4 - core index']
  #allocation1 [shape = 'u32[72,128]{1,0:T(1,128)}', space=vmem, size = 0x9000, scoped, tag = 'internal scratch']
  %s0 = inlined_call_operand.vmem [shape: f32[1,8,16,4], index: 0, kind: input, shape index: {}]
  %s1 = inlined_call_operand.vmem [shape: f32[1,8,16,4], index: 1, kind: input, shape index: {}]
  %s2 = inlined_call_operand.vmem [shape: f32[1,8,16,4], index: 2, kind: input, shape index: {}]
  %s3 = inlined_call_operand.vmem [shape: f32[1,8,16,12], index: 3, kind: output, shape index: {}]
  %s4 = sld [smem:[#allocation0]]
  $region22: #{tpu_custom_call.1} parent=0
    _
  %s6 = ssub.s32 1, %s4
  %s7 = scalar_select 0, %s6, %s4
  // Predicated region
  $region2: #{tpu_custom_call.1} parent=0 // pred_check
    _
  $region3: #{tpu_custom_call.1} parent=0 // pred_check_branch
    %9 = sbr.rel (0) target = $region5
  $region4: #{tpu_custom_call.1} parent=0 // pred_region
    _
  $region5: #{tpu_custom_call.1} parent=0 // pred_fallthru
    _
  // Predicated region
  $region6: #{tpu_custom_call.1} parent=0 // pred_check
    _
  $region7: #{tpu_custom_call.1} parent=0 // pred_check_branch
    %11 = sbr.rel (0) target = $region9
  $region8: #{tpu_custom_call.1} parent=0 // pred_region
    _
  $region9: #{tpu_custom_call.1} parent=0 // pred_fallthru
    _
  // Predicated region
  $region10: #{tpu_custom_call.1} parent=0 // pred_check
    _
  $region11: #{tpu_custom_call.1} parent=0 // pred_check_branch
    %13 = sbr.rel (0) target = $region13
  $region12: #{tpu_custom_call.1} parent=0 // pred_region
    _
  $region13: #{tpu_custom_call.1} parent=0 // pred_fallthru
    _
  %v14 = vld [vmem:[%s0] sm:$0xff]
  %v15 = vld [vmem:[%s0 + $0x8] sm:$0xff]
  %v16 = vld [vmem:[%s0 + $0x10] sm:$0xff]
  %v17 = vld [vmem:[%s0 + $0x18] sm:$0xff]
  %v18 = vld [vmem:[%s0 + $0x20] sm:$0xff]
  %v19 = vld [vmem:[%s0 + $0x28] sm:$0xff]
  %v20 = vld [vmem:[%s0 + $0x30] sm:$0xff]
  %v21 = vld [vmem:[%s0 + $0x38] sm:$0xff]
  %v22 = vld [vmem:[%s0 + $0x40] sm:$0xff]
  %v23 = vld [vmem:[%s0 + $0x48] sm:$0xff]
  %v24 = vld [vmem:[%s0 + $0x50] sm:$0xff]
  %v25 = vld [vmem:[%s0 + $0x58] sm:$0xff]
  %v26 = vld [vmem:[%s0 + $0x60] sm:$0xff]
  %v27 = vld [vmem:[%s0 + $0x68] sm:$0xff]
  %v28 = vld [vmem:[%s0 + $0x70] sm:$0xff]
  %v29 = vld [vmem:[%s0 + $0x78] sm:$0xff]
  %v30 = vld [vmem:[%s1] sm:$0xff]
  %v31 = vld [vmem:[%s1 + $0x8] sm:$0xff]
  %v32 = vld [vmem:[%s1 + $0x10] sm:$0xff]
  %v33 = vld [vmem:[%s1 + $0x18] sm:$0xff]
  %v34 = vld [vmem:[%s1 + $0x20] sm:$0xff]
  %v35 = vld [vmem:[%s1 + $0x28] sm:$0xff]
  %v36 = vld [vmem:[%s1 + $0x30] sm:$0xff]
  %v37 = vld [vmem:[%s1 + $0x38] sm:$0xff]
  %v38 = vld [vmem:[%s1 + $0x40] sm:$0xff]
  %v39 = vld [vmem:[%s1 + $0x48] sm:$0xff]
  %v40 = vld [vmem:[%s1 + $0x50] sm:$0xff]
  %v41 = vld [vmem:[%s1 + $0x58] sm:$0xff]
  %v42 = vld [vmem:[%s1 + $0x60] sm:$0xff]
  %v43 = vld [vmem:[%s1 + $0x68] sm:$0xff]
  %v44 = vld [vmem:[%s1 + $0x70] sm:$0xff]
  %v45 = vld [vmem:[%s1 + $0x78] sm:$0xff]
  %v46 = vld [vmem:[%s2] sm:$0xff]
  %v47 = vld [vmem:[%s2 + $0x8] sm:$0xff]
  %v48 = vld [vmem:[%s2 + $0x10] sm:$0xff]
  %v49 = vld [vmem:[%s2 + $0x18] sm:$0xff]
  %v50 = vld [vmem:[%s2 + $0x20] sm:$0xff]
  %v51 = vld [vmem:[%s2 + $0x28] sm:$0xff]
  %v52 = vld [vmem:[%s2 + $0x30] sm:$0xff]
  %v53 = vld [vmem:[%s2 + $0x38] sm:$0xff]
  %v54 = vld [vmem:[%s2 + $0x40] sm:$0xff]
  %v55 = vld [vmem:[%s2 + $0x48] sm:$0xff]
  %v56 = vld [vmem:[%s2 + $0x50] sm:$0xff]
  %v57 = vld [vmem:[%s2 + $0x58] sm:$0xff]
  %v58 = vld [vmem:[%s2 + $0x60] sm:$0xff]
  %v59 = vld [vmem:[%s2 + $0x68] sm:$0xff]
  %v60 = vld [vmem:[%s2 + $0x70] sm:$0xff]
  %v61 = vld [vmem:[%s2 + $0x78] sm:$0xff]
  %78 = vrot.lane.b32.xlu0 %v30, 4
  %v79 = vpop.permute.xlu0 %78
  %80 = vrot.lane.b32.xlu0 %v31, 4
  %v81 = vpop.permute.xlu0 %80
  %82 = vrot.lane.b32.xlu0 %v32, 4
  %v83 = vpop.permute.xlu0 %82
  %84 = vrot.lane.b32.xlu0 %v33, 4
  %v85 = vpop.permute.xlu0 %84
  %86 = vrot.lane.b32.xlu0 %v34, 4
  %v87 = vpop.permute.xlu0 %86
  %88 = vrot.lane.b32.xlu0 %v35, 4
  %v89 = vpop.permute.xlu0 %88
  %90 = vrot.lane.b32.xlu0 %v36, 4
  %v91 = vpop.permute.xlu0 %90
  %92 = vrot.lane.b32.xlu0 %v37, 4
  %v93 = vpop.permute.xlu0 %92
  %94 = vrot.lane.b32.xlu0 %v38, 4
  %v95 = vpop.permute.xlu0 %94
  %96 = vrot.lane.b32.xlu0 %v39, 4
  %v97 = vpop.permute.xlu0 %96
  %98 = vrot.lane.b32.xlu0 %v40, 4
  %v99 = vpop.permute.xlu0 %98
  %100 = vrot.lane.b32.xlu0 %v41, 4
  %v101 = vpop.permute.xlu0 %100
  %102 = vrot.lane.b32.xlu0 %v42, 4
  %v103 = vpop.permute.xlu0 %102
  %104 = vrot.lane.b32.xlu0 %v43, 4
  %v105 = vpop.permute.xlu0 %104
  %106 = vrot.lane.b32.xlu0 %v44, 4
  %v107 = vpop.permute.xlu0 %106
  %108 = vrot.lane.b32.xlu0 %v45, 4
  %v109 = vpop.permute.xlu0 %108
  %142 = vrot.lane.b32.xlu0 %v46, 8
  %v143 = vpop.permute.xlu0 %142
  %144 = vrot.lane.b32.xlu0 %v47, 8
  %v145 = vpop.permute.xlu0 %144
  %146 = vrot.lane.b32.xlu0 %v48, 8
  %v147 = vpop.permute.xlu0 %146
  %148 = vrot.lane.b32.xlu0 %v49, 8
  %v149 = vpop.permute.xlu0 %148
  %150 = vrot.lane.b32.xlu0 %v50, 8
  %v151 = vpop.permute.xlu0 %150
  %152 = vrot.lane.b32.xlu0 %v51, 8
  %v153 = vpop.permute.xlu0 %152
  %154 = vrot.lane.b32.xlu0 %v52, 8
  %v155 = vpop.permute.xlu0 %154
  %156 = vrot.lane.b32.xlu0 %v53, 8
  %v157 = vpop.permute.xlu0 %156
  %158 = vrot.lane.b32.xlu0 %v54, 8
  %v159 = vpop.permute.xlu0 %158
  %160 = vrot.lane.b32.xlu0 %v55, 8
  %v161 = vpop.permute.xlu0 %160
  %162 = vrot.lane.b32.xlu0 %v56, 8
  %v163 = vpop.permute.xlu0 %162
  %164 = vrot.lane.b32.xlu0 %v57, 8
  %v165 = vpop.permute.xlu0 %164
  %166 = vrot.lane.b32.xlu0 %v58, 8
  %v167 = vpop.permute.xlu0 %166
  %168 = vrot.lane.b32.xlu0 %v59, 8
  %v169 = vpop.permute.xlu0 %168
  %170 = vrot.lane.b32.xlu0 %v60, 8
  %v171 = vpop.permute.xlu0 %170
  %172 = vrot.lane.b32.xlu0 %v61, 8
  %v173 = vpop.permute.xlu0 %172
  %vm190 = vcmask 31744
  %v191 = vsel %vm190, %v14, %v79
  %v192 = vsel %vm190, %v15, %v81
  %v193 = vsel %vm190, %v16, %v83
  %v194 = vsel %vm190, %v17, %v85
  %v195 = vsel %vm190, %v18, %v87
  %v196 = vsel %vm190, %v19, %v89
  %v197 = vsel %vm190, %v20, %v91
  %v198 = vsel %vm190, %v21, %v93
  %v199 = vsel %vm190, %v22, %v95
  %v200 = vsel %vm190, %v23, %v97
  %v201 = vsel %vm190, %v24, %v99
  %v202 = vsel %vm190, %v25, %v101
  %v203 = vsel %vm190, %v26, %v103
  %v204 = vsel %vm190, %v27, %v105
  %v205 = vsel %vm190, %v28, %v107
  %v206 = vsel %vm190, %v29, %v109
  %vm207 = vcmask 64512
  %v208 = vsel %vm207, %v191, %v143
  %v209 = vsel %vm207, %v192, %v145
  %v210 = vsel %vm207, %v193, %v147
  %v211 = vsel %vm207, %v194, %v149
  %v212 = vsel %vm207, %v195, %v151
  %v213 = vsel %vm207, %v196, %v153
  %v214 = vsel %vm207, %v197, %v155
  %v215 = vsel %vm207, %v198, %v157
  %v216 = vsel %vm207, %v199, %v159
  %v217 = vsel %vm207, %v200, %v161
  %v218 = vsel %vm207, %v201, %v163
  %v219 = vsel %vm207, %v202, %v165
  %v220 = vsel %vm207, %v203, %v167
  %v221 = vsel %vm207, %v204, %v169
  %v222 = vsel %vm207, %v205, %v171
  %v223 = vsel %vm207, %v206, %v173
  %vm224 = vcmask 97280
  %225 = vst.msk [vmem:[%s3] sm:$0xff] %vm224, %v208
  %226 = vst.msk [vmem:[%s3 + $0x8] sm:$0xff] %vm224, %v209
  %227 = vst.msk [vmem:[%s3 + $0x10] sm:$0xff] %vm224, %v210
  %228 = vst.msk [vmem:[%s3 + $0x18] sm:$0xff] %vm224, %v211
  %229 = vst.msk [vmem:[%s3 + $0x20] sm:$0xff] %vm224, %v212
  %230 = vst.msk [vmem:[%s3 + $0x28] sm:$0xff] %vm224, %v213
  %231 = vst.msk [vmem:[%s3 + $0x30] sm:$0xff] %vm224, %v214
  %232 = vst.msk [vmem:[%s3 + $0x38] sm:$0xff] %vm224, %v215
  %233 = vst.msk [vmem:[%s3 + $0x40] sm:$0xff] %vm224, %v216
  %234 = vst.msk [vmem:[%s3 + $0x48] sm:$0xff] %vm224, %v217
  %235 = vst.msk [vmem:[%s3 + $0x50] sm:$0xff] %vm224, %v218
  %236 = vst.msk [vmem:[%s3 + $0x58] sm:$0xff] %vm224, %v219
  %237 = vst.msk [vmem:[%s3 + $0x60] sm:$0xff] %vm224, %v220
  %238 = vst.msk [vmem:[%s3 + $0x68] sm:$0xff] %vm224, %v221
  %239 = vst.msk [vmem:[%s3 + $0x70] sm:$0xff] %vm224, %v222
  %240 = vst.msk [vmem:[%s3 + $0x78] sm:$0xff] %vm224, %v223
  // Predicated region
  $region14: #{tpu_custom_call.1} parent=0 // pred_check
    _
  $region15: #{tpu_custom_call.1} parent=0 // pred_check_branch
    %242 = sbr.rel (0) target = $region17
  $region16: #{tpu_custom_call.1} parent=0 // pred_region
    _
  $region17: #{tpu_custom_call.1} parent=0 // pred_fallthru
    _
  // Predicated region
  $region18: #{tpu_custom_call.1} parent=0 // pred_check
    _
  $region19: #{tpu_custom_call.1} parent=0 // pred_check_branch
    %244 = sbr.rel (0) target = $region21
  $region20: #{tpu_custom_call.1} parent=0 // pred_region
    _
  $region21: #{tpu_custom_call.1} parent=0 // pred_fallthru
    _

// kernel: conv_block_forward.2
$region0: #{conv_block_forward.2}
  #allocation0 [shape = 'u32[]', space=smem, size = 0x4, offset = 0x4, fixed_abs, tag = 'smem constant byte address 0x4 - core index']
  #allocation1 [shape = 'u32[72,128]{1,0:T(1,128)}', space=vmem, size = 0x9000, scoped, tag = 'internal scratch']
  %s0 = inlined_call_operand.vmem [shape: f32[2,18,18,4], index: 0, kind: input, shape index: {}]
  %s1 = inlined_call_operand.vmem [shape: f32[3,3,4,8], index: 1, kind: input, shape index: {}]
  %s2 = inlined_call_operand.vmem [shape: f32[1,8], index: 2, kind: input, shape index: {}]
  %s3 = inlined_call_operand.vmem [shape: f32[2,16,16,8], index: 3, kind: output, shape index: {}]
  %s4 = sld [smem:[#allocation0]]
  $region45: #{conv_block_forward.2} parent=0
    _
  %s6 = ssub.s32 1, %s4
  %s7 = scalar_select 0, %s6, %s4
  loop: start=0, step=1, limit=4
  $region2: #{conv_block_forward.2} parent=0 // loop_pre_header
    _
  $region3: #{conv_block_forward.2} parent=0 // loop_header
    %s9 = sphi 0, %s13
    %p10 = scmp.ge.s32.totalorder %s9, 4
    %s16 = sphi 0, %s28
    %s17 = sphi 0, %s24
    %s18 = sphi 0, %s16
    %s19 = sphi 0, %s17
    %s20 = sphi 0, %s18
    %s21 = sphi 0, %s19
    %s31 = sphi 0, %s33
    %s34 = sphi 0, %s31
    %s35 = sphi 0, %s34
    %s51 = sphi 0, %s35
    %s55 = sphi 0, %s55
    %s57 = sphi 0, %s55
    %s58 = sphi 0, %s57
    %s72 = sphi 0, %s58
    %s76 = sphi 0, %s76
    %s78 = sphi 0, %s76
    %s79 = sphi 0, %s78
    %s93 = sphi 0, %s79
    %s101 = sphi 0, %s103
    %s104 = sphi 0, %s101
    %s105 = sphi 0, %s104
    %s121 = sphi 0, %s105
  $region4: #{conv_block_forward.2} parent=0 // loop_header_branch
    %12 = sbr.rel (%p10) target = $region8
  $region5: #{conv_block_forward.2} parent=0 // loop_body
    %s14 = ssub.s32 %s9, 1
    %s15 = ssub.s32 %s9, 2
    %s22 = sadd.s32 1, %s17
    %p23 = scmp.ge.s32.totalorder %s22, 1
    %s24 = scalar_select %p23, 0, %s22
    %s25 = sadd.s32 1, %s16
    %s26 = scalar_select %p23, %s25, %s16
    %p27 = scmp.ge.s32.totalorder %s26, 2
    %s28 = scalar_select %p27, 0, %s26
    %s29 = ssub.s32 %s16, %s28
    %p30 = scmp.eq.s32.totalorder %s29, 0
    %s32 = sadd.s32 %s31, 1
    %s33 = scalar_select %p30, %s31, %s32
    %p36 = pneg %p30
    %p37 = scmp.eq.s32.totalorder %s9, 1
    %p38 = por %p36, %p37
    %p39 = scmp.ne.s32.totalorder %s31, %s34
    %p40 = scmp.eq.s32.totalorder %s9, 0
    %p41 = por %p39, %p40
    %p42 = scmp.ne.s32.totalorder %s31, %s34
    %p43 = scmp.eq.s32.totalorder %s14, 1
    %p44 = por %p42, %p43
    %p45 = scmp.ne.s32.totalorder %s34, %s35
    %p46 = scmp.eq.s32.totalorder %s14, 0
    %p47 = por %p45, %p46
    %p48 = scmp.ne.s32.totalorder %s34, %s35
    %p49 = scmp.eq.s32.totalorder %s15, 1
    %p50 = por %p48, %p49
    %p52 = scmp.ne.s32.totalorder %s35, %s51
    %p53 = scmp.eq.s32.totalorder %s15, 0
    %p54 = por %p52, %p53
    %s56 = sadd.s32 %s55, 1
    %p59 = scmp.eq.s32.totalorder %s9, 1
    %p60 = scmp.ne.s32.totalorder %s55, %s57
    %p61 = scmp.eq.s32.totalorder %s9, 0
    %p62 = por %p60, %p61
    %p63 = scmp.ne.s32.totalorder %s55, %s57
    %p64 = scmp.eq.s32.totalorder %s14, 1
    %p65 = por %p63, %p64
    %p66 = scmp.ne.s32.totalorder %s57, %s58
    %p67 = scmp.eq.s32.totalorder %s14, 0
    %p68 = por %p66, %p67
    %p69 = scmp.ne.s32.totalorder %s57, %s58
    %p70 = scmp.eq.s32.totalorder %s15, 1
    %p71 = por %p69, %p70
    %p73 = scmp.ne.s32.totalorder %s58, %s72
    %p74 = scmp.eq.s32.totalorder %s15, 0
    %p75 = por %p73, %p74
    %s77 = sadd.s32 %s76, 1
    %p80 = scmp.eq.s32.totalorder %s9, 1
    %p81 = scmp.ne.s32.totalorder %s76, %s78
    %p82 = scmp.eq.s32.totalorder %s9, 0
    %p83 = por %p81, %p82
    %p84 = scmp.ne.s32.totalorder %s76, %s78
    %p85 = scmp.eq.s32.totalorder %s14, 1
    %p86 = por %p84, %p85
    %p87 = scmp.ne.s32.totalorder %s78, %s79
    %p88 = scmp.eq.s32.totalorder %s14, 0
    %p89 = por %p87, %p88
    %p90 = scmp.ne.s32.totalorder %s78, %s79
    %p91 = scmp.eq.s32.totalorder %s15, 1
    %p92 = por %p90, %p91
    %p94 = scmp.ne.s32.totalorder %s79, %s93
    %p95 = scmp.eq.s32.totalorder %s15, 0
    %p96 = por %p94, %p95
    %s97 = ssub.s32 %s16, %s28
    %s98 = ssub.s32 %s17, %s24
    %s99 = sor.u32 %s97, %s98
    %p100 = scmp.eq.s32.totalorder %s99, 0
    %s102 = sadd.s32 %s101, 1
    %s103 = scalar_select %p100, %s101, %s102
    %p106 = pneg %p100
    %p107 = scmp.eq.s32.totalorder %s9, 1
    %p108 = por %p106, %p107
    %p109 = scmp.ne.s32.totalorder %s101, %s104
    %p110 = scmp.eq.s32.totalorder %s9, 0
    %p111 = por %p109, %p110
    %p112 = scmp.ne.s32.totalorder %s101, %s104
    %p113 = scmp.eq.s32.totalorder %s14, 1
    %p114 = por %p112, %p113
    %p115 = scmp.ne.s32.totalorder %s104, %s105
    %p116 = scmp.eq.s32.totalorder %s14, 0
    %p117 = por %p115, %p116
    %p118 = scmp.ne.s32.totalorder %s104, %s105
    %p119 = scmp.eq.s32.totalorder %s15, 1
    %p120 = por %p118, %p119
    %p122 = scmp.ne.s32.totalorder %s105, %s121
    %p123 = scmp.eq.s32.totalorder %s15, 0
    %p124 = por %p122, %p123
    %p125 = scmp.le.s32.totalorder 1, %s9
    %p126 = scmp.lt.s32.totalorder %s9, 3
    %p127 = pnand %p125, %p126
    %p128 = pneg %p127
    // Predicated region
    $region9: #{conv_block_forward.2} parent=5 // pred_check
      _
    $region10: #{conv_block_forward.2} parent=5 // pred_check_branch
      %130 = sbr.rel (%p127) target = $region12
    $region11: #{conv_block_forward.2} parent=5 // pred_region
      %s131 = ssub.s32 %s9, 1
      // Predicated region
      $region13: #{conv_block_forward.2} parent=11 // pred_check
        %p132 = pneg %p68
      $region14: #{conv_block_forward.2} parent=11 // pred_check_branch
        %134 = sbr.rel (%p132) target = $region16
      $region15: #{conv_block_forward.2} parent=11 // pred_region
        _
      $region16: #{conv_block_forward.2} parent=11 // pred_fallthru
        _
      // Predicated region
      $region17: #{conv_block_forward.2} parent=11 // pred_check
        %p135 = pneg %p89
      $region18: #{conv_block_forward.2} parent=11 // pred_check_branch
        %137 = sbr.rel (%p135) target = $region20
      $region19: #{conv_block_forward.2} parent=11 // pred_region
        _
      $region20: #{conv_block_forward.2} parent=11 // pred_fallthru
        _
    $region12: #{conv_block_forward.2} parent=5 // pred_fallthru
      _
    %p138 = scmp.lt.s32.totalorder %s9, 2
    // Predicated region
    $region21: #{conv_block_forward.2} parent=5 // pred_check
      %p139 = pneg %p138
    $region22: #{conv_block_forward.2} parent=5 // pred_check_branch
      %141 = sbr.rel (%p139) target = $region24
    $region23: #{conv_block_forward.2} parent=5 // pred_region
      // Predicated region
      $region25: #{conv_block_forward.2} parent=23 // pred_check
        %p142 = pneg %p41
      $region26: #{conv_block_forward.2} parent=23 // pred_check_branch
        %144 = sbr.rel (%p142) target = $region28
      $region27: #{conv_block_forward.2} parent=23 // pred_region
        %p145 = scmp.lt.s32.totalorder %s16, 1
        %s146 = scalar_select %p145, %s16, 1
        %s147 = smul.addr %s146, 54
        %s148 = smul.addr %s147, 8
        %s149 = scalar_lea.vmem %s0, %s148
      $region28: #{conv_block_forward.2} parent=23 // pred_fallthru
        _
    $region24: #{conv_block_forward.2} parent=5 // pred_fallthru
      _
    %p150 = scmp.le.s32.totalorder 1, %s9
    %p151 = scmp.lt.s32.totalorder %s9, 3
    %p152 = pnand %p150, %p151
    %p153 = pneg %p152
    // Predicated region
    $region29: #{conv_block_forward.2} parent=5 // pred_check
      _
    $region30: #{conv_block_forward.2} parent=5 // pred_check_branch
      %155 = sbr.rel (%p152) target = $region32
    $region31: #{conv_block_forward.2} parent=5 // pred_region
      %s156 = ssub.s32 %s9, 1
      %p157 = scmp.lt.s32.totalorder %s18, 1
      %s158 = scalar_select %p157, %s18, 1
      %s159 = smul.addr %s158, 54
      %s160 = smul.addr %s159, 8
      %s161 = scalar_lea.vmem %s0, %s160
      %p162 = pneg %p47
      %p163 = pneg %p44
      %p164 = pneg %p68
      %p165 = pneg %p65
      %p166 = pneg %p89
      %p167 = pneg %p86
      %p168 = pneg %p117
      %p169 = pneg %p114
      %s170 = smul.u32 16, %s19
      %p171 = scmp.lt.s32.totalorder %s18, 1
      %s172 = scalar_select %p171, %s18, 1
      %p173 = scmp.lt.s32.totalorder %s170, 15
      %s174 = scalar_select %p173, %s170, 15
      %s175 = smul.addr %s174, 2
      %s176 = smul.addr %s172, 32
      %s177 = sadd.s32 %s175, %s176
      %s178 = smul.addr %s177, 8
      %s179 = scalar_lea.vmem %s3, %s178
      %p180 = scmp.lt.s32.totalorder %s18, 1
      %s181 = scalar_select %p180, %s18, 1
      %s182 = smul.addr %s181, 54
      %s183 = smul.addr %s182, 8
      %s184 = scalar_lea.vmem %s0, %s183
      %s185 = smul.u32 16, %s19
      %p186 = scmp.lt.s32.totalorder %s18, 1
      %s187 = scalar_select %p186, %s18, 1
      %p188 = scmp.lt.s32.totalorder %s185, 15
      %s189 = scalar_select %p188, %s185, 15
      %s190 = smul.addr %s189, 2
      %s191 = smul.addr %s187, 32
      %s192 = sadd.s32 %s190, %s191
      %s193 = smul.addr %s192, 8
      %s194 = scalar_lea.vmem %s3, %s193
      %s195 = smul.u32 16, %s19
      %v196 = vld [vmem:[%s2] sm:$0x1]
      %v197 = vld [vmem:[%s1] sm:$0xf]
      %v198 = vld [vmem:[%s1 + $0x4] sm:$0xf]
      %v199 = vld [vmem:[%s1 + $0x8] sm:$0xf]
      %v200 = vld [vmem:[%s1 + $0xc] sm:$0xf]
      %v201 = vld [vmem:[%s1 + $0x10] sm:$0xf]
      %v202 = vld [vmem:[%s1 + $0x14] sm:$0xf]
      %v203 = vld [vmem:[%s1 + $0x18] sm:$0xf]
      %v204 = vld [vmem:[%s1 + $0x1c] sm:$0xf]
      %v205 = vld [vmem:[%s1 + $0x20] sm:$0xf]
      %v207 = vperm.slane %v196, 0
      %v209 = vld [vmem:[%s184] sm:$0xff]
      %v210 = vld [vmem:[%s184 + $0x8] sm:$0xff]
      %v211 = vld [vmem:[%s184 + $0x18] sm:$0xff]
      %v212 = vld [vmem:[%s184 + $0x20] sm:$0xff]
      %v213 = vld [vmem:[%s184 + $0x30] sm:$0xff]
      %v214 = vld [vmem:[%s184 + $0x38] sm:$0xff]
      %v215 = vld [vmem:[%s184 + $0x48] sm:$0xff]
      %v216 = vld [vmem:[%s184 + $0x50] sm:$0xff]
      %v217 = vld [vmem:[%s184 + $0x60] sm:$0xff]
      %v218 = vld [vmem:[%s184 + $0x68] sm:$0xff]
      %v219 = vld [vmem:[%s184 + $0x78] sm:$0xff]
      %v220 = vld [vmem:[%s184 + $0x80] sm:$0xff]
      %v221 = vld [vmem:[%s184 + $0x90] sm:$0xff]
      %v222 = vld [vmem:[%s184 + $0x98] sm:$0xff]
      %v223 = vld [vmem:[%s184 + $0xa8] sm:$0xff]
      %v224 = vld [vmem:[%s184 + $0xb0] sm:$0xff]
      %v225 = vld [vmem:[%s184 + $0xc0] sm:$0xff]
      %v226 = vld [vmem:[%s184 + $0xc8] sm:$0xff]
      %v227 = vld [vmem:[%s184 + $0xd8] sm:$0xff]
      %v228 = vld [vmem:[%s184 + $0xe0] sm:$0xff]
      %v229 = vld [vmem:[%s184 + $0xf0] sm:$0xff]
      %v230 = vld [vmem:[%s184 + $0xf8] sm:$0xff]
      %v231 = vld [vmem:[%s184 + $0x108] sm:$0xff]
      %v232 = vld [vmem:[%s184 + $0x110] sm:$0xff]
      %v233 = vld [vmem:[%s184 + $0x120] sm:$0xff]
      %v234 = vld [vmem:[%s184 + $0x128] sm:$0xff]
      %v235 = vld [vmem:[%s184 + $0x138] sm:$0xff]
      %v236 = vld [vmem:[%s184 + $0x140] sm:$0xff]
      %v237 = vld [vmem:[%s184 + $0x150] sm:$0xff]
      %v238 = vld [vmem:[%s184 + $0x158] sm:$0xff]
      %v239 = vld [vmem:[%s184 + $0x168] sm:$0xff]
      %v240 = vld [vmem:[%s184 + $0x170] sm:$0xff]
      %vm241 = vcmask 31744
      %v243 = vsel %vm241, %v209, 0
      %v246 = vsel %vm241, %v210, 0
      %v249 = vsel %vm241, %v211, 0
      %v252 = vsel %vm241, %v212, 0
      %v255 = vsel %vm241, %v213, 0
      %v258 = vsel %vm241, %v214, 0
      %v261 = vsel %vm241, %v215, 0
      %v264 = vsel %vm241, %v216, 0
      %v267 = vsel %vm241, %v217, 0
      %v270 = vsel %vm241, %v218, 0
      %v273 = vsel %vm241, %v219, 0
      %v276 = vsel %vm241, %v220, 0
      %v279 = vsel %vm241, %v221, 0
      %v282 = vsel %vm241, %v222, 0
      %v285 = vsel %vm241, %v223, 0
      %v288 = vsel %vm241, %v224, 0
      %v291 = vsel %vm241, %v225, 0
      %v294 = vsel %vm241, %v226, 0
      %v297 = vsel %vm241, %v227, 0
      %v300 = vsel %vm241, %v228, 0
      %v303 = vsel %vm241, %v229, 0
      %v306 = vsel %vm241, %v230, 0
      %v309 = vsel %vm241, %v231, 0
      %v312 = vsel %vm241, %v232, 0
      %v315 = vsel %vm241, %v233, 0
      %v318 = vsel %vm241, %v234, 0
      %v321 = vsel %vm241, %v235, 0
      %v324 = vsel %vm241, %v236, 0
      %v327 = vsel %vm241, %v237, 0
      %v330 = vsel %vm241, %v238, 0
      %v333 = vsel %vm241, %v239, 0
      %v336 = vsel %vm241, %v240, 0
      %vm338 = vcmask 1043456
      %v340 = vsel %vm338, %v197, 0
      %342 = vmatpush.msra.mxu0 0.0
      %343 = vmatpush.msra.mxu0 0.0
      %344 = vmatpush.msra.mxu0 0.0
      %345 = vmatpush.msra.mxu0 0.0
      %346 = vmatpush.msra.mxu0 0.0
      %347 = vmatpush.msra.mxu0 0.0
      %348 = vmatpush.msra.mxu0 0.0
      %349 = vmatpush.msra.mxu0 0.0
      %350 = vmatpush.msra.mxu0 0.0
      %351 = vmatpush.msra.mxu0 0.0
      %352 = vmatpush.msra.mxu0 0.0
      %353 = vmatpush.msra.mxu0 0.0
      %354 = vmatpush.msra.mxu0 0.0
      %355 = vmatpush.msra.mxu0 0.0
      %356 = vmatpush.msra.mxu0 0.0
      %357 = vmatpush.msra.mxu0 %v340
      %358 = vmatmul.f32.gmra.mxu0 %v243
      %v359 = vpop.f32.mrf.mxu0
      %v360 = vadd.f32 0.0, %v359
      %361 = vmatmul.f32.gmra.mxu0 %v246
      %v362 = vpop.f32.mrf.mxu0
      %v363 = vadd.f32 0.0, %v362
      %364 = vmatmul.f32.gmra.mxu0 %v249
      %v365 = vpop.f32.mrf.mxu0
      %v366 = vadd.f32 0.0, %v365
      %367 = vmatmul.f32.gmra.mxu0 %v252
      %v368 = vpop.f32.mrf.mxu0
      %v369 = vadd.f32 0.0, %v368
      %370 = vmatmul.f32.gmra.mxu0 %v255
      %v371 = vpop.f32.mrf.mxu0
      %v372 = vadd.f32 0.0, %v371
      %373 = vmatmul.f32.gmra.mxu0 %v258
      %v374 = vpop.f32.mrf.mxu0
      %v375 = vadd.f32 0.0, %v374
      %376 = vmatmul.f32.gmra.mxu0 %v261
      %v377 = vpop.f32.mrf.mxu0
      %v378 = vadd.f32 0.0, %v377
      %379 = vmatmul.f32.gmra.mxu0 %v264
      %v380 = vpop.f32.mrf.mxu0
      %v381 = vadd.f32 0.0, %v380
      %382 = vmatmul.f32.gmra.mxu0 %v267
      %v383 = vpop.f32.mrf.mxu0
      %v384 = vadd.f32 0.0, %v383
      %385 = vmatmul.f32.gmra.mxu0 %v270
      %v386 = vpop.f32.mrf.mxu0
      %v387 = vadd.f32 0.0, %v386
      %388 = vmatmul.f32.gmra.mxu0 %v273
      %v389 = vpop.f32.mrf.mxu0
      %v390 = vadd.f32 0.0, %v389
      %391 = vmatmul.f32.gmra.mxu0 %v276
      %v392 = vpop.f32.mrf.mxu0
      %v393 = vadd.f32 0.0, %v392
      %394 = vmatmul.f32.gmra.mxu0 %v279
      %v395 = vpop.f32.mrf.mxu0
      %v396 = vadd.f32 0.0, %v395
      %397 = vmatmul.f32.gmra.mxu0 %v282
      %v398 = vpop.f32.mrf.mxu0
      %v399 = vadd.f32 0.0, %v398
      %400 = vmatmul.f32.gmra.mxu0 %v285
      %v401 = vpop.f32.mrf.mxu0
      %v402 = vadd.f32 0.0, %v401
      %403 = vmatmul.f32.gmra.mxu0 %v288
      %v404 = vpop.f32.mrf.mxu0
      %v405 = vadd.f32 0.0, %v404
      %406 = vmatmul.f32.gmra.mxu0 %v291
      %v407 = vpop.f32.mrf.mxu0
      %v408 = vadd.f32 0.0, %v407
      %409 = vmatmul.f32.gmra.mxu0 %v294
      %v410 = vpop.f32.mrf.mxu0
      %v411 = vadd.f32 0.0, %v410
      %412 = vmatmul.f32.gmra.mxu0 %v297
      %v413 = vpop.f32.mrf.mxu0
      %v414 = vadd.f32 0.0, %v413
      %415 = vmatmul.f32.gmra.mxu0 %v300
      %v416 = vpop.f32.mrf.mxu0
      %v417 = vadd.f32 0.0, %v416
      %418 = vmatmul.f32.gmra.mxu0 %v303
      %v419 = vpop.f32.mrf.mxu0
      %v420 = vadd.f32 0.0, %v419
      %421 = vmatmul.f32.gmra.mxu0 %v306
      %v422 = vpop.f32.mrf.mxu0
      %v423 = vadd.f32 0.0, %v422
      %424 = vmatmul.f32.gmra.mxu0 %v309
      %v425 = vpop.f32.mrf.mxu0
      %v426 = vadd.f32 0.0, %v425
      %427 = vmatmul.f32.gmra.mxu0 %v312
      %v428 = vpop.f32.mrf.mxu0
      %v429 = vadd.f32 0.0, %v428
      %430 = vmatmul.f32.gmra.mxu0 %v315
      %v431 = vpop.f32.mrf.mxu0
      %v432 = vadd.f32 0.0, %v431
      %433 = vmatmul.f32.gmra.mxu0 %v318
      %v434 = vpop.f32.mrf.mxu0
      %v435 = vadd.f32 0.0, %v434
      %436 = vmatmul.f32.gmra.mxu0 %v321
      %v437 = vpop.f32.mrf.mxu0
      %v438 = vadd.f32 0.0, %v437
      %439 = vmatmul.f32.gmra.mxu0 %v324
      %v440 = vpop.f32.mrf.mxu0
      %v441 = vadd.f32 0.0, %v440
      %442 = vmatmul.f32.gmra.mxu0 %v327
      %v443 = vpop.f32.mrf.mxu0
      %v444 = vadd.f32 0.0, %v443
      %445 = vmatmul.f32.gmra.mxu0 %v330
      %v446 = vpop.f32.mrf.mxu0
      %v447 = vadd.f32 0.0, %v446
      %448 = vmatmul.f32.gmra.mxu0 %v333
      %v449 = vpop.f32.mrf.mxu0
      %v450 = vadd.f32 0.0, %v449
      %451 = vmatmul.f32.gmra.mxu0 %v336
      %v452 = vpop.f32.mrf.mxu0
      %v453 = vadd.f32 0.0, %v452
      %454 = vdwg.mxu0
      %v455 = vadd.f32 %v207, %v360
      %v456 = vadd.f32 %v207, %v363
      %v457 = vadd.f32 %v207, %v366
      %v458 = vadd.f32 %v207, %v369
      %v459 = vadd.f32 %v207, %v372
      %v460 = vadd.f32 %v207, %v375
      %v461 = vadd.f32 %v207, %v378
      %v462 = vadd.f32 %v207, %v381
      %v463 = vadd.f32 %v207, %v384
      %v464 = vadd.f32 %v207, %v387
      %v465 = vadd.f32 %v207, %v390
      %v466 = vadd.f32 %v207, %v393
      %v467 = vadd.f32 %v207, %v396
      %v468 = vadd.f32 %v207, %v399
      %v469 = vadd.f32 %v207, %v402
      %v470 = vadd.f32 %v207, %v405
      %v471 = vadd.f32 %v207, %v408
      %v472 = vadd.f32 %v207, %v411
      %v473 = vadd.f32 %v207, %v414
      %v474 = vadd.f32 %v207, %v417
      %v475 = vadd.f32 %v207, %v420
      %v476 = vadd.f32 %v207, %v423
      %v477 = vadd.f32 %v207, %v426
      %v478 = vadd.f32 %v207, %v429
      %v479 = vadd.f32 %v207, %v432
      %v480 = vadd.f32 %v207, %v435
      %v481 = vadd.f32 %v207, %v438
      %v482 = vadd.f32 %v207, %v441
      %v483 = vadd.f32 %v207, %v444
      %v484 = vadd.f32 %v207, %v447
      %v485 = vadd.f32 %v207, %v450
      %v486 = vadd.f32 %v207, %v453
      %v487 = vld [vmem:[%s184 + $0x1] sm:$0xff]
      %v488 = vld [vmem:[%s184 + $0x9] sm:$0xff]
      %v489 = vld [vmem:[%s184 + $0x19] sm:$0xff]
      %v490 = vld [vmem:[%s184 + $0x21] sm:$0xff]
      %v491 = vld [vmem:[%s184 + $0x31] sm:$0xff]
      %v492 = vld [vmem:[%s184 + $0x39] sm:$0xff]
      %v493 = vld [vmem:[%s184 + $0x49] sm:$0xff]
      %v494 = vld [vmem:[%s184 + $0x51] sm:$0xff]
      %v495 = vld [vmem:[%s184 + $0x61] sm:$0xff]
      %v496 = vld [vmem:[%s184 + $0x69] sm:$0xff]
      %v497 = vld [vmem:[%s184 + $0x79] sm:$0xff]
      %v498 = vld [vmem:[%s184 + $0x81] sm:$0xff]
      %v499 = vld [vmem:[%s184 + $0x91] sm:$0xff]
      %v500 = vld [vmem:[%s184 + $0x99] sm:$0xff]
      %v501 = vld [vmem:[%s184 + $0xa9] sm:$0xff]
      %v502 = vld [vmem:[%s184 + $0xb1] sm:$0xff]
      %v503 = vld [vmem:[%s184 + $0xc1] sm:$0xff]
      %v504 = vld [vmem:[%s184 + $0xc9] sm:$0xff]
      %v505 = vld [vmem:[%s184 + $0xd9] sm:$0xff]
      %v506 = vld [vmem:[%s184 + $0xe1] sm:$0xff]
      %v507 = vld [vmem:[%s184 + $0xf1] sm:$0xff]
      %v508 = vld [vmem:[%s184 + $0xf9] sm:$0xff]
      %v509 = vld [vmem:[%s184 + $0x109] sm:$0xff]
      %v510 = vld [vmem:[%s184 + $0x111] sm:$0xff]
      %v511 = vld [vmem:[%s184 + $0x121] sm:$0xff]
      %v512 = vld [vmem:[%s184 + $0x129] sm:$0xff]
      %v513 = vld [vmem:[%s184 + $0x139] sm:$0xff]
      %v514 = vld [vmem:[%s184 + $0x141] sm:$0xff]
      %v515 = vld [vmem:[%s184 + $0x151] sm:$0xff]
      %v516 = vld [vmem:[%s184 + $0x159] sm:$0xff]
      %v517 = vld [vmem:[%s184 + $0x169] sm:$0xff]
      %v518 = vld [vmem:[%s184 + $0x171] sm:$0xff]
      %v520 = vsel %vm241, %v487, 0
      %v523 = vsel %vm241, %v488, 0
      %v526 = vsel %vm241, %v489, 0
      %v529 = vsel %vm241, %v490, 0
      %v532 = vsel %vm241, %v491, 0
      %v535 = vsel %vm241, %v492, 0
      %v538 = vsel %vm241, %v493, 0
      %v541 = vsel %vm241, %v494, 0
      %v544 = vsel %vm241, %v495, 0
      %v547 = vsel %vm241, %v496, 0
      %v550 = vsel %vm241, %v497, 0
      %v553 = vsel %vm241, %v498, 0
      %v556 = vsel %vm241, %v499, 0
      %v559 = vsel %vm241, %v500, 0
      %v562 = vsel %vm241, %v501, 0
      %v565 = vsel %vm241, %v502, 0
      %v568 = vsel %vm241, %v503, 0
      %v571 = vsel %vm241, %v504, 0
      %v574 = vsel %vm241, %v505, 0
      %v577 = vsel %vm241, %v506, 0
      %v580 = vsel %vm241, %v507, 0
      %v583 = vsel %vm241, %v508, 0
      %v586 = vsel %vm241, %v509, 0
      %v589 = vsel %vm241, %v510, 0
      %v592 = vsel %vm241, %v511, 0
      %v595 = vsel %vm241, %v512, 0
      %v598 = vsel %vm241, %v513, 0
      %v601 = vsel %vm241, %v514, 0
      %v604 = vsel %vm241, %v515, 0
      %v607 = vsel %vm241, %v516, 0
      %v610 = vsel %vm241, %v517, 0
      %v613 = vsel %vm241, %v518, 0
      %v616 = vsel %vm338, %v198, 0
      %618 = vmatpush.msra.mxu0 0.0
      %619 = vmatpush.msra.mxu0 0.0
      %620 = vmatpush.msra.mxu0 0.0
      %621 = vmatpush.msra.mxu0 0.0
      %622 = vmatpush.msra.mxu0 0.0
      %623 = vmatpush.msra.mxu0 0.0
      %624 = vmatpush.msra.mxu0 0.0
      %625 = vmatpush.msra.mxu0 0.0
      %626 = vmatpush.msra.mxu0 0.0
      %627 = vmatpush.msra.mxu0 0.0
      %628 = vmatpush.msra.mxu0 0.0
      %629 = vmatpush.msra.mxu0 0.0
      %630 = vmatpush.msra.mxu0 0.0
      %631 = vmatpush.msra.mxu0 0.0
      %632 = vmatpush.msra.mxu0 0.0
      %633 = vmatpush.msra.mxu0 %v616
      %634 = vmatmul.f32.gmra.mxu0 %v520
      %v635 = vpop.f32.mrf.mxu0
      %v636 = vadd.f32 0.0, %v635
      %637 = vmatmul.f32.gmra.mxu0 %v523
      %v638 = vpop.f32.mrf.mxu0
      %v639 = vadd.f32 0.0, %v638
      %640 = vmatmul.f32.gmra.mxu0 %v526
      %v641 = vpop.f32.mrf.mxu0
      %v642 = vadd.f32 0.0, %v641
      %643 = vmatmul.f32.gmra.mxu0 %v529
      %v644 = vpop.f32.mrf.mxu0
      %v645 = vadd.f32 0.0, %v644
      %646 = vmatmul.f32.gmra.mxu0 %v532
      %v647 = vpop.f32.mrf.mxu0
      %v648 = vadd.f32 0.0, %v647
      %649 = vmatmul.f32.gmra.mxu0 %v535
      %v650 = vpop.f32.mrf.mxu0
      %v651 = vadd.f32 0.0, %v650
      %652 = vmatmul.f32.gmra.mxu0 %v538
      %v653 = vpop.f32.mrf.mxu0
      %v654 = vadd.f32 0.0, %v653
      %655 = vmatmul.f32.gmra.mxu0 %v541
      %v656 = vpop.f32.mrf.mxu0
      %v657 = vadd.f32 0.0, %v656
      %658 = vmatmul.f32.gmra.mxu0 %v544
      %v659 = vpop.f32.mrf.mxu0
      %v660 = vadd.f32 0.0, %v659
      %661 = vmatmul.f32.gmra.mxu0 %v547
      %v662 = vpop.f32.mrf.mxu0
      %v663 = vadd.f32 0.0, %v662
      %664 = vmatmul.f32.gmra.mxu0 %v550
      %v665 = vpop.f32.mrf.mxu0
      %v666 = vadd.f32 0.0, %v665
      %667 = vmatmul.f32.gmra.mxu0 %v553
      %v668 = vpop.f32.mrf.mxu0
      %v669 = vadd.f32 0.0, %v668
      %670 = vmatmul.f32.gmra.mxu0 %v556
      %v671 = vpop.f32.mrf.mxu0
      %v672 = vadd.f32 0.0, %v671
      %673 = vmatmul.f32.gmra.mxu0 %v559
      %v674 = vpop.f32.mrf.mxu0
      %v675 = vadd.f32 0.0, %v674
      %676 = vmatmul.f32.gmra.mxu0 %v562
      %v677 = vpop.f32.mrf.mxu0
      %v678 = vadd.f32 0.0, %v677
      %679 = vmatmul.f32.gmra.mxu0 %v565
      %v680 = vpop.f32.mrf.mxu0
      %v681 = vadd.f32 0.0, %v680
      %682 = vmatmul.f32.gmra.mxu0 %v568
      %v683 = vpop.f32.mrf.mxu0
      %v684 = vadd.f32 0.0, %v683
      %685 = vmatmul.f32.gmra.mxu0 %v571
      %v686 = vpop.f32.mrf.mxu0
      %v687 = vadd.f32 0.0, %v686
      %688 = vmatmul.f32.gmra.mxu0 %v574
      %v689 = vpop.f32.mrf.mxu0
      %v690 = vadd.f32 0.0, %v689
      %691 = vmatmul.f32.gmra.mxu0 %v577
      %v692 = vpop.f32.mrf.mxu0
      %v693 = vadd.f32 0.0, %v692
      %694 = vmatmul.f32.gmra.mxu0 %v580
      %v695 = vpop.f32.mrf.mxu0
      %v696 = vadd.f32 0.0, %v695
      %697 = vmatmul.f32.gmra.mxu0 %v583
      %v698 = vpop.f32.mrf.mxu0
      %v699 = vadd.f32 0.0, %v698
      %700 = vmatmul.f32.gmra.mxu0 %v586
      %v701 = vpop.f32.mrf.mxu0
      %v702 = vadd.f32 0.0, %v701
      %703 = vmatmul.f32.gmra.mxu0 %v589
      %v704 = vpop.f32.mrf.mxu0
      %v705 = vadd.f32 0.0, %v704
      %706 = vmatmul.f32.gmra.mxu0 %v592
      %v707 = vpop.f32.mrf.mxu0
      %v708 = vadd.f32 0.0, %v707
      %709 = vmatmul.f32.gmra.mxu0 %v595
      %v710 = vpop.f32.mrf.mxu0
      %v711 = vadd.f32 0.0, %v710
      %712 = vmatmul.f32.gmra.mxu0 %v598
      %v713 = vpop.f32.mrf.mxu0
      %v714 = vadd.f32 0.0, %v713
      %715 = vmatmul.f32.gmra.mxu0 %v601
      %v716 = vpop.f32.mrf.mxu0
      %v717 = vadd.f32 0.0, %v716
      %718 = vmatmul.f32.gmra.mxu0 %v604
      %v719 = vpop.f32.mrf.mxu0
      %v720 = vadd.f32 0.0, %v719
      %721 = vmatmul.f32.gmra.mxu0 %v607
      %v722 = vpop.f32.mrf.mxu0
      %v723 = vadd.f32 0.0, %v722
      %724 = vmatmul.f32.gmra.mxu0 %v610
      %v725 = vpop.f32.mrf.mxu0
      %v726 = vadd.f32 0.0, %v725
      %727 = vmatmul.f32.gmra.mxu0 %v613
      %v728 = vpop.f32.mrf.mxu0
      %v729 = vadd.f32 0.0, %v728
      %730 = vdwg.mxu0
      %v731 = vadd.f32 %v455, %v636
      %v732 = vadd.f32 %v456, %v639
      %v733 = vadd.f32 %v457, %v642
      %v734 = vadd.f32 %v458, %v645
      %v735 = vadd.f32 %v459, %v648
      %v736 = vadd.f32 %v460, %v651
      %v737 = vadd.f32 %v461, %v654
      %v738 = vadd.f32 %v462, %v657
      %v739 = vadd.f32 %v463, %v660
      %v740 = vadd.f32 %v464, %v663
      %v741 = vadd.f32 %v465, %v666
      %v742 = vadd.f32 %v466, %v669
      %v743 = vadd.f32 %v467, %v672
      %v744 = vadd.f32 %v468, %v675
      %v745 = vadd.f32 %v469, %v678
      %v746 = vadd.f32 %v470, %v681
      %v747 = vadd.f32 %v471, %v684
      %v748 = vadd.f32 %v472, %v687
      %v749 = vadd.f32 %v473, %v690
      %v750 = vadd.f32 %v474, %v693
      %v751 = vadd.f32 %v475, %v696
      %v752 = vadd.f32 %v476, %v699
      %v753 = vadd.f32 %v477, %v702
      %v754 = vadd.f32 %v478, %v705
      %v755 = vadd.f32 %v479, %v708
      %v756 = vadd.f32 %v480, %v711
      %v757 = vadd.f32 %v481, %v714
      %v758 = vadd.f32 %v482, %v717
      %v759 = vadd.f32 %v483, %v720
      %v760 = vadd.f32 %v484, %v723
      %v761 = vadd.f32 %v485, %v726
      %v762 = vadd.f32 %v486, %v729
      %v763 = vld [vmem:[%s184 + $0x2] sm:$0xff]
      %v764 = vld [vmem:[%s184 + $0xa] sm:$0xff]
      %v765 = vld [vmem:[%s184 + $0x1a] sm:$0xff]
      %v766 = vld [vmem:[%s184 + $0x22] sm:$0xff]
      %v767 = vld [vmem:[%s184 + $0x32] sm:$0xff]
      %v768 = vld [vmem:[%s184 + $0x3a] sm:$0xff]
      %v769 = vld [vmem:[%s184 + $0x4a] sm:$0xff]
      %v770 = vld [vmem:[%s184 + $0x52] sm:$0xff]
      %v771 = vld [vmem:[%s184 + $0x62] sm:$0xff]
      %v772 = vld [vmem:[%s184 + $0x6a] sm:$0xff]
      %v773 = vld [vmem:[%s184 + $0x7a] sm:$0xff]
      %v774 = vld [vmem:[%s184 + $0x82] sm:$0xff]
      %v775 = vld [vmem:[%s184 + $0x92] sm:$0xff]
      %v776 = vld [vmem:[%s184 + $0x9a] sm:$0xff]
      %v777 = vld [vmem:[%s184 + $0xaa] sm:$0xff]
      %v778 = vld [vmem:[%s184 + $0xb2] sm:$0xff]
      %v779 = vld [vmem:[%s184 + $0xc2] sm:$0xff]
      %v780 = vld [vmem:[%s184 + $0xca] sm:$0xff]
      %v781 = vld [vmem:[%s184 + $0xda] sm:$0xff]
      %v782 = vld [vmem:[%s184 + $0xe2] sm:$0xff]
      %v783 = vld [vmem:[%s184 + $0xf2] sm:$0xff]
      %v784 = vld [vmem:[%s184 + $0xfa] sm:$0xff]
      %v785 = vld [vmem:[%s184 + $0x10a] sm:$0xff]
      %v786 = vld [vmem:[%s184 + $0x112] sm:$0xff]
      %v787 = vld [vmem:[%s184 + $0x122] sm:$0xff]
      %v788 = vld [vmem:[%s184 + $0x12a] sm:$0xff]
      %v789 = vld [vmem:[%s184 + $0x13a] sm:$0xff]
      %v790 = vld [vmem:[%s184 + $0x142] sm:$0xff]
      %v791 = vld [vmem:[%s184 + $0x152] sm:$0xff]
      %v792 = vld [vmem:[%s184 + $0x15a] sm:$0xff]
      %v793 = vld [vmem:[%s184 + $0x16a] sm:$0xff]
      %v794 = vld [vmem:[%s184 + $0x172] sm:$0xff]
      %v796 = vsel %vm241, %v763, 0
      %v799 = vsel %vm241, %v764, 0
      %v802 = vsel %vm241, %v765, 0
      %v805 = vsel %vm241, %v766, 0
      %v808 = vsel %vm241, %v767, 0
      %v811 = vsel %vm241, %v768, 0
      %v814 = vsel %vm241, %v769, 0
      %v817 = vsel %vm241, %v770, 0
      %v820 = vsel %vm241, %v771, 0
      %v823 = vsel %vm241, %v772, 0
      %v826 = vsel %vm241, %v773, 0
      %v829 = vsel %vm241, %v774, 0
      %v832 = vsel %vm241, %v775, 0
      %v835 = vsel %vm241, %v776, 0
      %v838 = vsel %vm241, %v777, 0
      %v841 = vsel %vm241, %v778, 0
      %v844 = vsel %vm241, %v779, 0
      %v847 = vsel %vm241, %v780, 0
      %v850 = vsel %vm241, %v781, 0
      %v853 = vsel %vm241, %v782, 0
      %v856 = vsel %vm241, %v783, 0
      %v859 = vsel %vm241, %v784, 0
      %v862 = vsel %vm241, %v785, 0
      %v865 = vsel %vm241, %v786, 0
      %v868 = vsel %vm241, %v787, 0
      %v871 = vsel %vm241, %v788, 0
      %v874 = vsel %vm241, %v789, 0
      %v877 = vsel %vm241, %v790, 0
      %v880 = vsel %vm241, %v791, 0
      %v883 = vsel %vm241, %v792, 0
      %v886 = vsel %vm241, %v793, 0
      %v889 = vsel %vm241, %v794, 0
      %v892 = vsel %vm338, %v199, 0
      %894 = vmatpush.msra.mxu0 0.0
      %895 = vmatpush.msra.mxu0 0.0
      %896 = vmatpush.msra.mxu0 0.0
      %897 = vmatpush.msra.mxu0 0.0
      %898 = vmatpush.msra.mxu0 0.0
      %899 = vmatpush.msra.mxu0 0.0
      %900 = vmatpush.msra.mxu0 0.0
      %901 = vmatpush.msra.mxu0 0.0
      %902 = vmatpush.msra.mxu0 0.0
      %903 = vmatpush.msra.mxu0 0.0
      %904 = vmatpush.msra.mxu0 0.0
      %905 = vmatpush.msra.mxu0 0.0
      %906 = vmatpush.msra.mxu0 0.0
      %907 = vmatpush.msra.mxu0 0.0
      %908 = vmatpush.msra.mxu0 0.0
      %909 = vmatpush.msra.mxu0 %v892
      %910 = vmatmul.f32.gmra.mxu0 %v796
      %v911 = vpop.f32.mrf.mxu0
      %v912 = vadd.f32 0.0, %v911
      %913 = vmatmul.f32.gmra.mxu0 %v799
      %v914 = vpop.f32.mrf.mxu0
      %v915 = vadd.f32 0.0, %v914
      %916 = vmatmul.f32.gmra.mxu0 %v802
      %v917 = vpop.f32.mrf.mxu0
      %v918 = vadd.f32 0.0, %v917
      %919 = vmatmul.f32.gmra.mxu0 %v805
      %v920 = vpop.f32.mrf.mxu0
      %v921 = vadd.f32 0.0, %v920
      %922 = vmatmul.f32.gmra.mxu0 %v808
      %v923 = vpop.f32.mrf.mxu0
      %v924 = vadd.f32 0.0, %v923
      %925 = vmatmul.f32.gmra.mxu0 %v811
      %v926 = vpop.f32.mrf.mxu0
      %v927 = vadd.f32 0.0, %v926
      %928 = vmatmul.f32.gmra.mxu0 %v814
      %v929 = vpop.f32.mrf.mxu0
      %v930 = vadd.f32 0.0, %v929
      %931 = vmatmul.f32.gmra.mxu0 %v817
      %v932 = vpop.f32.mrf.mxu0
      %v933 = vadd.f32 0.0, %v932
      %934 = vmatmul.f32.gmra.mxu0 %v820
      %v935 = vpop.f32.mrf.mxu0
      %v936 = vadd.f32 0.0, %v935
      %937 = vmatmul.f32.gmra.mxu0 %v823
      %v938 = vpop.f32.mrf.mxu0
      %v939 = vadd.f32 0.0, %v938
      %940 = vmatmul.f32.gmra.mxu0 %v826
      %v941 = vpop.f32.mrf.mxu0
      %v942 = vadd.f32 0.0, %v941
      %943 = vmatmul.f32.gmra.mxu0 %v829
      %v944 = vpop.f32.mrf.mxu0
      %v945 = vadd.f32 0.0, %v944
      %946 = vmatmul.f32.gmra.mxu0 %v832
      %v947 = vpop.f32.mrf.mxu0
      %v948 = vadd.f32 0.0, %v947
      %949 = vmatmul.f32.gmra.mxu0 %v835
      %v950 = vpop.f32.mrf.mxu0
      %v951 = vadd.f32 0.0, %v950
      %952 = vmatmul.f32.gmra.mxu0 %v838
      %v953 = vpop.f32.mrf.mxu0
      %v954 = vadd.f32 0.0, %v953
      %955 = vmatmul.f32.gmra.mxu0 %v841
      %v956 = vpop.f32.mrf.mxu0
      %v957 = vadd.f32 0.0, %v956
      %958 = vmatmul.f32.gmra.mxu0 %v844
      %v959 = vpop.f32.mrf.mxu0
      %v960 = vadd.f32 0.0, %v959
      %961 = vmatmul.f32.gmra.mxu0 %v847
      %v962 = vpop.f32.mrf.mxu0
      %v963 = vadd.f32 0.0, %v962
      %964 = vmatmul.f32.gmra.mxu0 %v850
      %v965 = vpop.f32.mrf.mxu0
      %v966 = vadd.f32 0.0, %v965
      %967 = vmatmul.f32.gmra.mxu0 %v853
      %v968 = vpop.f32.mrf.mxu0
      %v969 = vadd.f32 0.0, %v968
      %970 = vmatmul.f32.gmra.mxu0 %v856
      %v971 = vpop.f32.mrf.mxu0
      %v972 = vadd.f32 0.0, %v971
      %973 = vmatmul.f32.gmra.mxu0 %v859
      %v974 = vpop.f32.mrf.mxu0
      %v975 = vadd.f32 0.0, %v974
      %976 = vmatmul.f32.gmra.mxu0 %v862
      %v977 = vpop.f32.mrf.mxu0
      %v978 = vadd.f32 0.0, %v977
      %979 = vmatmul.f32.gmra.mxu0 %v865
      %v980 = vpop.f32.mrf.mxu0
      %v981 = vadd.f32 0.0, %v980
      %982 = vmatmul.f32.gmra.mxu0 %v868
      %v983 = vpop.f32.mrf.mxu0
      %v984 = vadd.f32 0.0, %v983
      %985 = vmatmul.f32.gmra.mxu0 %v871
      %v986 = vpop.f32.mrf.mxu0
      %v987 = vadd.f32 0.0, %v986
      %988 = vmatmul.f32.gmra.mxu0 %v874
      %v989 = vpop.f32.mrf.mxu0
      %v990 = vadd.f32 0.0, %v989
      %991 = vmatmul.f32.gmra.mxu0 %v877
      %v992 = vpop.f32.mrf.mxu0
      %v993 = vadd.f32 0.0, %v992
      %994 = vmatmul.f32.gmra.mxu0 %v880
      %v995 = vpop.f32.mrf.mxu0
      %v996 = vadd.f32 0.0, %v995
      %997 = vmatmul.f32.gmra.mxu0 %v883
      %v998 = vpop.f32.mrf.mxu0
      %v999 = vadd.f32 0.0, %v998
      %1000 = vmatmul.f32.gmra.mxu0 %v886
      %v1001 = vpop.f32.mrf.mxu0
      %v1002 = vadd.f32 0.0, %v1001
      %1003 = vmatmul.f32.gmra.mxu0 %v889
      %v1004 = vpop.f32.mrf.mxu0
      %v1005 = vadd.f32 0.0, %v1004
      %1006 = vdwg.mxu0
      %v1007 = vadd.f32 %v731, %v912
      %v1008 = vadd.f32 %v732, %v915
      %v1009 = vadd.f32 %v733, %v918
      %v1010 = vadd.f32 %v734, %v921
      %v1011 = vadd.f32 %v735, %v924
      %v1012 = vadd.f32 %v736, %v927
      %v1013 = vadd.f32 %v737, %v930
      %v1014 = vadd.f32 %v738, %v933
      %v1015 = vadd.f32 %v739, %v936
      %v1016 = vadd.f32 %v740, %v939
      %v1017 = vadd.f32 %v741, %v942
      %v1018 = vadd.f32 %v742, %v945
      %v1019 = vadd.f32 %v743, %v948
      %v1020 = vadd.f32 %v744, %v951
      %v1021 = vadd.f32 %v745, %v954
      %v1022 = vadd.f32 %v746, %v957
      %v1023 = vadd.f32 %v747, %v960
      %v1024 = vadd.f32 %v748, %v963
      %v1025 = vadd.f32 %v749, %v966
      %v1026 = vadd.f32 %v750, %v969
      %v1027 = vadd.f32 %v751, %v972
      %v1028 = vadd.f32 %v752, %v975
      %v1029 = vadd.f32 %v753, %v978
      %v1030 = vadd.f32 %v754, %v981
      %v1031 = vadd.f32 %v755, %v984
      %v1032 = vadd.f32 %v756, %v987
      %v1033 = vadd.f32 %v757, %v990
      %v1034 = vadd.f32 %v758, %v993
      %v1035 = vadd.f32 %v759, %v996
      %v1036 = vadd.f32 %v760, %v999
      %v1037 = vadd.f32 %v761, %v1002
      %v1038 = vadd.f32 %v762, %v1005
      %s1039 = scalar_lea.vmem %s184, 24
      %v1040 = vld [vmem:[%s1039] sm:$0xff]
      %v1041 = vld [vmem:[%s1039 + $0x8] sm:$0xff]
      %v1042 = vld [vmem:[%s1039 + $0x18] sm:$0xff]
      %v1043 = vld [vmem:[%s1039 + $0x20] sm:$0xff]
      %v1044 = vld [vmem:[%s1039 + $0x30] sm:$0xff]
      %v1045 = vld [vmem:[%s1039 + $0x38] sm:$0xff]
      %v1046 = vld [vmem:[%s1039 + $0x48] sm:$0xff]
      %v1047 = vld [vmem:[%s1039 + $0x50] sm:$0xff]
      %v1048 = vld [vmem:[%s1039 + $0x60] sm:$0xff]
      %v1049 = vld [vmem:[%s1039 + $0x68] sm:$0xff]
      %v1050 = vld [vmem:[%s1039 + $0x78] sm:$0xff]
      %v1051 = vld [vmem:[%s1039 + $0x80] sm:$0xff]
      %v1052 = vld [vmem:[%s1039 + $0x90] sm:$0xff]
      %v1053 = vld [vmem:[%s1039 + $0x98] sm:$0xff]
      %v1054 = vld [vmem:[%s1039 + $0xa8] sm:$0xff]
      %v1055 = vld [vmem:[%s1039 + $0xb0] sm:$0xff]
      %v1056 = vld [vmem:[%s1039 + $0xc0] sm:$0xff]
      %v1057 = vld [vmem:[%s1039 + $0xc8] sm:$0xff]
      %v1058 = vld [vmem:[%s1039 + $0xd8] sm:$0xff]
      %v1059 = vld [vmem:[%s1039 + $0xe0] sm:$0xff]
      %v1060 = vld [vmem:[%s1039 + $0xf0] sm:$0xff]
      %v1061 = vld [vmem:[%s1039 + $0xf8] sm:$0xff]
      %v1062 = vld [vmem:[%s1039 + $0x108] sm:$0xff]
      %v1063 = vld [vmem:[%s1039 + $0x110] sm:$0xff]
      %v1064 = vld [vmem:[%s1039 + $0x120] sm:$0xff]
      %v1065 = vld [vmem:[%s1039 + $0x128] sm:$0xff]
      %v1066 = vld [vmem:[%s1039 + $0x138] sm:$0xff]
      %v1067 = vld [vmem:[%s1039 + $0x140] sm:$0xff]
      %v1068 = vld [vmem:[%s1039 + $0x150] sm:$0xff]
      %v1069 = vld [vmem:[%s1039 + $0x158] sm:$0xff]
      %v1070 = vld [vmem:[%s1039 + $0x168] sm:$0xff]
      %v1071 = vld [vmem:[%s1039 + $0x170] sm:$0xff]
      %v1073 = vsel %vm241, %v1040, 0
      %v1076 = vsel %vm241, %v1041, 0
      %v1079 = vsel %vm241, %v1042, 0
      %v1082 = vsel %vm241, %v1043, 0
      %v1085 = vsel %vm241, %v1044, 0
      %v1088 = vsel %vm241, %v1045, 0
      %v1091 = vsel %vm241, %v1046, 0
      %v1094 = vsel %vm241, %v1047, 0
      %v1097 = vsel %vm241, %v1048, 0
      %v1100 = vsel %vm241, %v1049, 0
      %v1103 = vsel %vm241, %v1050, 0
      %v1106 = vsel %vm241, %v1051, 0
      %v1109 = vsel %vm241, %v1052, 0
      %v1112 = vsel %vm241, %v1053, 0
      %v1115 = vsel %vm241, %v1054, 0
      %v1118 = vsel %vm241, %v1055, 0
      %v1121 = vsel %vm241, %v1056, 0
      %v1124 = vsel %vm241, %v1057, 0
      %v1127 = vsel %vm241, %v1058, 0
      %v1130 = vsel %vm241, %v1059, 0
      %v1133 = vsel %vm241, %v1060, 0
      %v1136 = vsel %vm241, %v1061, 0
      %v1139 = vsel %vm241, %v1062, 0
      %v1142 = vsel %vm241, %v1063, 0
      %v1145 = vsel %vm241, %v1064, 0
      %v1148 = vsel %vm241, %v1065, 0
      %v1151 = vsel %vm241, %v1066, 0
      %v1154 = vsel %vm241, %v1067, 0
      %v1157 = vsel %vm241, %v1068, 0
      %v1160 = vsel %vm241, %v1069, 0
      %v1163 = vsel %vm241, %v1070, 0
      %v1166 = vsel %vm241, %v1071, 0
      %v1169 = vsel %vm338, %v200, 0
      %1171 = vmatpush.msra.mxu0 0.0
      %1172 = vmatpush.msra.mxu0 0.0
      %1173 = vmatpush.msra.mxu0 0.0
      %1174 = vmatpush.msra.mxu0 0.0
      %1175 = vmatpush.msra.mxu0 0.0
      %1176 = vmatpush.msra.mxu0 0.0
      %1177 = vmatpush.msra.mxu0 0.0
      %1178 = vmatpush.msra.mxu0 0.0
      %1179 = vmatpush.msra.mxu0 0.0
      %1180 = vmatpush.msra.mxu0 0.0
      %1181 = vmatpush.msra.mxu0 0.0
      %1182 = vmatpush.msra.mxu0 0.0
      %1183 = vmatpush.msra.mxu0 0.0
      %1184 = vmatpush.msra.mxu0 0.0
      %1185 = vmatpush.msra.mxu0 0.0
      %1186 = vmatpush.msra.mxu0 %v1169
      %1187 = vmatmul.f32.gmra.mxu0 %v1073
      %v1188 = vpop.f32.mrf.mxu0
      %v1189 = vadd.f32 0.0, %v1188
      %1190 = vmatmul.f32.gmra.mxu0 %v1076
      %v1191 = vpop.f32.mrf.mxu0
      %v1192 = vadd.f32 0.0, %v1191
      %1193 = vmatmul.f32.gmra.mxu0 %v1079
      %v1194 = vpop.f32.mrf.mxu0
      %v1195 = vadd.f32 0.0, %v1194
      %1196 = vmatmul.f32.gmra.mxu0 %v1082
      %v1197 = vpop.f32.mrf.mxu0
      %v1198 = vadd.f32 0.0, %v1197
      %1199 = vmatmul.f32.gmra.mxu0 %v1085
      %v1200 = vpop.f32.mrf.mxu0
      %v1201 = vadd.f32 0.0, %v1200
      %1202 = vmatmul.f32.gmra.mxu0 %v1088
      %v1203 = vpop.f32.mrf.mxu0
      %v1204 = vadd.f32 0.0, %v1203
      %1205 = vmatmul.f32.gmra.mxu0 %v1091
      %v1206 = vpop.f32.mrf.mxu0
      %v1207 = vadd.f32 0.0, %v1206
      %1208 = vmatmul.f32.gmra.mxu0 %v1094
      %v1209 = vpop.f32.mrf.mxu0
      %v1210 = vadd.f32 0.0, %v1209
      %1211 = vmatmul.f32.gmra.mxu0 %v1097
      %v1212 = vpop.f32.mrf.mxu0
      %v1213 = vadd.f32 0.0, %v1212
      %1214 = vmatmul.f32.gmra.mxu0 %v1100
      %v1215 = vpop.f32.mrf.mxu0
      %v1216 = vadd.f32 0.0, %v1215
      %1217 = vmatmul.f32.gmra.mxu0 %v1103
      %v1218 = vpop.f32.mrf.mxu0
      %v1219 = vadd.f32 0.0, %v1218
      %1220 = vmatmul.f32.gmra.mxu0 %v1106
      %v1221 = vpop.f32.mrf.mxu0
      %v1222 = vadd.f32 0.0, %v1221
      %1223 = vmatmul.f32.gmra.mxu0 %v1109
      %v1224 = vpop.f32.mrf.mxu0
      %v1225 = vadd.f32 0.0, %v1224
      %1226 = vmatmul.f32.gmra.mxu0 %v1112
      %v1227 = vpop.f32.mrf.mxu0
      %v1228 = vadd.f32 0.0, %v1227
      %1229 = vmatmul.f32.gmra.mxu0 %v1115
      %v1230 = vpop.f32.mrf.mxu0
      %v1231 = vadd.f32 0.0, %v1230
      %1232 = vmatmul.f32.gmra.mxu0 %v1118
      %v1233 = vpop.f32.mrf.mxu0
      %v1234 = vadd.f32 0.0, %v1233
      %1235 = vmatmul.f32.gmra.mxu0 %v1121
      %v1236 = vpop.f32.mrf.mxu0
      %v1237 = vadd.f32 0.0, %v1236
      %1238 = vmatmul.f32.gmra.mxu0 %v1124
      %v1239 = vpop.f32.mrf.mxu0
      %v1240 = vadd.f32 0.0, %v1239
      %1241 = vmatmul.f32.gmra.mxu0 %v1127
      %v1242 = vpop.f32.mrf.mxu0
      %v1243 = vadd.f32 0.0, %v1242
      %1244 = vmatmul.f32.gmra.mxu0 %v1130
      %v1245 = vpop.f32.mrf.mxu0
      %v1246 = vadd.f32 0.0, %v1245
      %1247 = vmatmul.f32.gmra.mxu0 %v1133
      %v1248 = vpop.f32.mrf.mxu0
      %v1249 = vadd.f32 0.0, %v1248
      %1250 = vmatmul.f32.gmra.mxu0 %v1136
      %v1251 = vpop.f32.mrf.mxu0
      %v1252 = vadd.f32 0.0, %v1251
      %1253 = vmatmul.f32.gmra.mxu0 %v1139
      %v1254 = vpop.f32.mrf.mxu0
      %v1255 = vadd.f32 0.0, %v1254
      %1256 = vmatmul.f32.gmra.mxu0 %v1142
      %v1257 = vpop.f32.mrf.mxu0
      %v1258 = vadd.f32 0.0, %v1257
      %1259 = vmatmul.f32.gmra.mxu0 %v1145
      %v1260 = vpop.f32.mrf.mxu0
      %v1261 = vadd.f32 0.0, %v1260
      %1262 = vmatmul.f32.gmra.mxu0 %v1148
      %v1263 = vpop.f32.mrf.mxu0
      %v1264 = vadd.f32 0.0, %v1263
      %1265 = vmatmul.f32.gmra.mxu0 %v1151
      %v1266 = vpop.f32.mrf.mxu0
      %v1267 = vadd.f32 0.0, %v1266
      %1268 = vmatmul.f32.gmra.mxu0 %v1154
      %v1269 = vpop.f32.mrf.mxu0
      %v1270 = vadd.f32 0.0, %v1269
      %1271 = vmatmul.f32.gmra.mxu0 %v1157
      %v1272 = vpop.f32.mrf.mxu0
      %v1273 = vadd.f32 0.0, %v1272
      %1274 = vmatmul.f32.gmra.mxu0 %v1160
      %v1275 = vpop.f32.mrf.mxu0
      %v1276 = vadd.f32 0.0, %v1275
      %1277 = vmatmul.f32.gmra.mxu0 %v1163
      %v1278 = vpop.f32.mrf.mxu0
      %v1279 = vadd.f32 0.0, %v1278
      %1280 = vmatmul.f32.gmra.mxu0 %v1166
      %v1281 = vpop.f32.mrf.mxu0
      %v1282 = vadd.f32 0.0, %v1281
      %1283 = vdwg.mxu0
      %v1284 = vadd.f32 %v1007, %v1189
      %v1285 = vadd.f32 %v1008, %v1192
      %v1286 = vadd.f32 %v1009, %v1195
      %v1287 = vadd.f32 %v1010, %v1198
      %v1288 = vadd.f32 %v1011, %v1201
      %v1289 = vadd.f32 %v1012, %v1204
      %v1290 = vadd.f32 %v1013, %v1207
      %v1291 = vadd.f32 %v1014, %v1210
      %v1292 = vadd.f32 %v1015, %v1213
      %v1293 = vadd.f32 %v1016, %v1216
      %v1294 = vadd.f32 %v1017, %v1219
      %v1295 = vadd.f32 %v1018, %v1222
      %v1296 = vadd.f32 %v1019, %v1225
      %v1297 = vadd.f32 %v1020, %v1228
      %v1298 = vadd.f32 %v1021, %v1231
      %v1299 = vadd.f32 %v1022, %v1234
      %v1300 = vadd.f32 %v1023, %v1237
      %v1301 = vadd.f32 %v1024, %v1240
      %v1302 = vadd.f32 %v1025, %v1243
      %v1303 = vadd.f32 %v1026, %v1246
      %v1304 = vadd.f32 %v1027, %v1249
      %v1305 = vadd.f32 %v1028, %v1252
      %v1306 = vadd.f32 %v1029, %v1255
      %v1307 = vadd.f32 %v1030, %v1258
      %v1308 = vadd.f32 %v1031, %v1261
      %v1309 = vadd.f32 %v1032, %v1264
      %v1310 = vadd.f32 %v1033, %v1267
      %v1311 = vadd.f32 %v1034, %v1270
      %v1312 = vadd.f32 %v1035, %v1273
      %v1313 = vadd.f32 %v1036, %v1276
      %v1314 = vadd.f32 %v1037, %v1279
      %v1315 = vadd.f32 %v1038, %v1282
      %v1316 = vld [vmem:[%s1039 + $0x1] sm:$0xff]
      %v1317 = vld [vmem:[%s1039 + $0x9] sm:$0xff]
      %v1318 = vld [vmem:[%s1039 + $0x19] sm:$0xff]
      %v1319 = vld [vmem:[%s1039 + $0x21] sm:$0xff]
      %v1320 = vld [vmem:[%s1039 + $0x31] sm:$0xff]
      %v1321 = vld [vmem:[%s1039 + $0x39] sm:$0xff]
      %v1322 = vld [vmem:[%s1039 + $0x49] sm:$0xff]
      %v1323 = vld [vmem:[%s1039 + $0x51] sm:$0xff]
      %v1324 = vld [vmem:[%s1039 + $0x61] sm:$0xff]
      %v1325 = vld [vmem:[%s1039 + $0x69] sm:$0xff]
      %v1326 = vld [vmem:[%s1039 + $0x79] sm:$0xff]
      %v1327 = vld [vmem:[%s1039 + $0x81] sm:$0xff]
      %v1328 = vld [vmem:[%s1039 + $0x91] sm:$0xff]
      %v1329 = vld [vmem:[%s1039 + $0x99] sm:$0xff]
      %v1330 = vld [vmem:[%s1039 + $0xa9] sm:$0xff]
      %v1331 = vld [vmem:[%s1039 + $0xb1] sm:$0xff]
      %v1332 = vld [vmem:[%s1039 + $0xc1] sm:$0xff]
      %v1333 = vld [vmem:[%s1039 + $0xc9] sm:$0xff]
      %v1334 = vld [vmem:[%s1039 + $0xd9] sm:$0xff]
      %v1335 = vld [vmem:[%s1039 + $0xe1] sm:$0xff]
      %v1336 = vld [vmem:[%s1039 + $0xf1] sm:$0xff]
      %v1337 = vld [vmem:[%s1039 + $0xf9] sm:$0xff]
      %v1338 = vld [vmem:[%s1039 + $0x109] sm:$0xff]
      %v1339 = vld [vmem:[%s1039 + $0x111] sm:$0xff]
      %v1340 = vld [vmem:[%s1039 + $0x121] sm:$0xff]
      %v1341 = vld [vmem:[%s1039 + $0x129] sm:$0xff]
      %v1342 = vld [vmem:[%s1039 + $0x139] sm:$0xff]
      %v1343 = vld [vmem:[%s1039 + $0x141] sm:$0xff]
      %v1344 = vld [vmem:[%s1039 + $0x151] sm:$0xff]
      %v1345 = vld [vmem:[%s1039 + $0x159] sm:$0xff]
      %v1346 = vld [vmem:[%s1039 + $0x169] sm:$0xff]
      %v1347 = vld [vmem:[%s1039 + $0x171] sm:$0xff]
      %v1349 = vsel %vm241, %v1316, 0
      %v1352 = vsel %vm241, %v1317, 0
      %v1355 = vsel %vm241, %v1318, 0
      %v1358 = vsel %vm241, %v1319, 0
      %v1361 = vsel %vm241, %v1320, 0
      %v1364 = vsel %vm241, %v1321, 0
      %v1367 = vsel %vm241, %v1322, 0
      %v1370 = vsel %vm241, %v1323, 0
      %v1373 = vsel %vm241, %v1324, 0
      %v1376 = vsel %vm241, %v1325, 0
      %v1379 = vsel %vm241, %v1326, 0
      %v1382 = vsel %vm241, %v1327, 0
      %v1385 = vsel %vm241, %v1328, 0
      %v1388 = vsel %vm241, %v1329, 0
      %v1391 = vsel %vm241, %v1330, 0
      %v1394 = vsel %vm241, %v1331, 0
      %v1397 = vsel %vm241, %v1332, 0
      %v1400 = vsel %vm241, %v1333, 0
      %v1403 = vsel %vm241, %v1334, 0
      %v1406 = vsel %vm241, %v1335, 0
      %v1409 = vsel %vm241, %v1336, 0
      %v1412 = vsel %vm241, %v1337, 0
      %v1415 = vsel %vm241, %v1338, 0
      %v1418 = vsel %vm241, %v1339, 0
      %v1421 = vsel %vm241, %v1340, 0
      %v1424 = vsel %vm241, %v1341, 0
      %v1427 = vsel %vm241, %v1342, 0
      %v1430 = vsel %vm241, %v1343, 0
      %v1433 = vsel %vm241, %v1344, 0
      %v1436 = vsel %vm241, %v1345, 0
      %v1439 = vsel %vm241, %v1346, 0
      %v1442 = vsel %vm241, %v1347, 0
      %v1445 = vsel %vm338, %v201, 0
      %1447 = vmatpush.msra.mxu0 0.0
      %1448 = vmatpush.msra.mxu0 0.0
      %1449 = vmatpush.msra.mxu0 0.0
      %1450 = vmatpush.msra.mxu0 0.0
      %1451 = vmatpush.msra.mxu0 0.0
      %1452 = vmatpush.msra.mxu0 0.0
      %1453 = vmatpush.msra.mxu0 0.0
      %1454 = vmatpush.msra.mxu0 0.0
      %1455 = vmatpush.msra.mxu0 0.0
      %1456 = vmatpush.msra.mxu0 0.0
      %1457 = vmatpush.msra.mxu0 0.0
      %1458 = vmatpush.msra.mxu0 0.0
      %1459 = vmatpush.msra.mxu0 0.0
      %1460 = vmatpush.msra.mxu0 0.0
      %1461 = vmatpush.msra.mxu0 0.0
      %1462 = vmatpush.msra.mxu0 %v1445
      %1463 = vmatmul.f32.gmra.mxu0 %v1349
      %v1464 = vpop.f32.mrf.mxu0
      %v1465 = vadd.f32 0.0, %v1464
      %1466 = vmatmul.f32.gmra.mxu0 %v1352
      %v1467 = vpop.f32.mrf.mxu0
      %v1468 = vadd.f32 0.0, %v1467
      %1469 = vmatmul.f32.gmra.mxu0 %v1355
      %v1470 = vpop.f32.mrf.mxu0
      %v1471 = vadd.f32 0.0, %v1470
      %1472 = vmatmul.f32.gmra.mxu0 %v1358
      %v1473 = vpop.f32.mrf.mxu0
      %v1474 = vadd.f32 0.0, %v1473
      %1475 = vmatmul.f32.gmra.mxu0 %v1361
      %v1476 = vpop.f32.mrf.mxu0
      %v1477 = vadd.f32 0.0, %v1476
      %1478 = vmatmul.f32.gmra.mxu0 %v1364
      %v1479 = vpop.f32.mrf.mxu0
      %v1480 = vadd.f32 0.0, %v1479
      %1481 = vmatmul.f32.gmra.mxu0 %v1367
      %v1482 = vpop.f32.mrf.mxu0
      %v1483 = vadd.f32 0.0, %v1482
      %1484 = vmatmul.f32.gmra.mxu0 %v1370
      %v1485 = vpop.f32.mrf.mxu0
      %v1486 = vadd.f32 0.0, %v1485
      %1487 = vmatmul.f32.gmra.mxu0 %v1373
      %v1488 = vpop.f32.mrf.mxu0
      %v1489 = vadd.f32 0.0, %v1488
      %1490 = vmatmul.f32.gmra.mxu0 %v1376
      %v1491 = vpop.f32.mrf.mxu0
      %v1492 = vadd.f32 0.0, %v1491
      %1493 = vmatmul.f32.gmra.mxu0 %v1379
      %v1494 = vpop.f32.mrf.mxu0
      %v1495 = vadd.f32 0.0, %v1494
      %1496 = vmatmul.f32.gmra.mxu0 %v1382
      %v1497 = vpop.f32.mrf.mxu0
      %v1498 = vadd.f32 0.0, %v1497
      %1499 = vmatmul.f32.gmra.mxu0 %v1385
      %v1500 = vpop.f32.mrf.mxu0
      %v1501 = vadd.f32 0.0, %v1500
      %1502 = vmatmul.f32.gmra.mxu0 %v1388
      %v1503 = vpop.f32.mrf.mxu0
      %v1504 = vadd.f32 0.0, %v1503
      %1505 = vmatmul.f32.gmra.mxu0 %v1391
      %v1506 = vpop.f32.mrf.mxu0
      %v1507 = vadd.f32 0.0, %v1506
      %1508 = vmatmul.f32.gmra.mxu0 %v1394
      %v1509 = vpop.f32.mrf.mxu0
      %v1510 = vadd.f32 0.0, %v1509
      %1511 = vmatmul.f32.gmra.mxu0 %v1397
      %v1512 = vpop.f32.mrf.mxu0
      %v1513 = vadd.f32 0.0, %v1512
      %1514 = vmatmul.f32.gmra.mxu0 %v1400
      %v1515 = vpop.f32.mrf.mxu0
      %v1516 = vadd.f32 0.0, %v1515
      %1517 = vmatmul.f32.gmra.mxu0 %v1403
      %v1518 = vpop.f32.mrf.mxu0
      %v1519 = vadd.f32 0.0, %v1518
      %1520 = vmatmul.f32.gmra.mxu0 %v1406
      %v1521 = vpop.f32.mrf.mxu0
      %v1522 = vadd.f32 0.0, %v1521
      %1523 = vmatmul.f32.gmra.mxu0 %v1409
      %v1524 = vpop.f32.mrf.mxu0
      %v1525 = vadd.f32 0.0, %v1524
      %1526 = vmatmul.f32.gmra.mxu0 %v1412
      %v1527 = vpop.f32.mrf.mxu0
      %v1528 = vadd.f32 0.0, %v1527
      %1529 = vmatmul.f32.gmra.mxu0 %v1415
      %v1530 = vpop.f32.mrf.mxu0
      %v1531 = vadd.f32 0.0, %v1530
      %1532 = vmatmul.f32.gmra.mxu0 %v1418
      %v1533 = vpop.f32.mrf.mxu0
      %v1534 = vadd.f32 0.0, %v1533
      %1535 = vmatmul.f32.gmra.mxu0 %v1421
      %v1536 = vpop.f32.mrf.mxu0
      %v1537 = vadd.f32 0.0, %v1536
      %1538 = vmatmul.f32.gmra.mxu0 %v1424
      %v1539 = vpop.f32.mrf.mxu0
      %v1540 = vadd.f32 0.0, %v1539
      %1541 = vmatmul.f32.gmra.mxu0 %v1427
      %v1542 = vpop.f32.mrf.mxu0
      %v1543 = vadd.f32 0.0, %v1542
      %1544 = vmatmul.f32.gmra.mxu0 %v1430
      %v1545 = vpop.f32.mrf.mxu0
      %v1546 = vadd.f32 0.0, %v1545
      %1547 = vmatmul.f32.gmra.mxu0 %v1433
      %v1548 = vpop.f32.mrf.mxu0
      %v1549 = vadd.f32 0.0, %v1548
      %1550 = vmatmul.f32.gmra.mxu0 %v1436
      %v1551 = vpop.f32.mrf.mxu0
      %v1552 = vadd.f32 0.0, %v1551
      %1553 = vmatmul.f32.gmra.mxu0 %v1439
      %v1554 = vpop.f32.mrf.mxu0
      %v1555 = vadd.f32 0.0, %v1554
      %1556 = vmatmul.f32.gmra.mxu0 %v1442
      %v1557 = vpop.f32.mrf.mxu0
      %v1558 = vadd.f32 0.0, %v1557
      %1559 = vdwg.mxu0
      %v1560 = vadd.f32 %v1284, %v1465
      %v1561 = vadd.f32 %v1285, %v1468
      %v1562 = vadd.f32 %v1286, %v1471
      %v1563 = vadd.f32 %v1287, %v1474
      %v1564 = vadd.f32 %v1288, %v1477
      %v1565 = vadd.f32 %v1289, %v1480
      %v1566 = vadd.f32 %v1290, %v1483
      %v1567 = vadd.f32 %v1291, %v1486
      %v1568 = vadd.f32 %v1292, %v1489
      %v1569 = vadd.f32 %v1293, %v1492
      %v1570 = vadd.f32 %v1294, %v1495
      %v1571 = vadd.f32 %v1295, %v1498
      %v1572 = vadd.f32 %v1296, %v1501
      %v1573 = vadd.f32 %v1297, %v1504
      %v1574 = vadd.f32 %v1298, %v1507
      %v1575 = vadd.f32 %v1299, %v1510
      %v1576 = vadd.f32 %v1300, %v1513
      %v1577 = vadd.f32 %v1301, %v1516
      %v1578 = vadd.f32 %v1302, %v1519
      %v1579 = vadd.f32 %v1303, %v1522
      %v1580 = vadd.f32 %v1304, %v1525
      %v1581 = vadd.f32 %v1305, %v1528
      %v1582 = vadd.f32 %v1306, %v1531
      %v1583 = vadd.f32 %v1307, %v1534
      %v1584 = vadd.f32 %v1308, %v1537
      %v1585 = vadd.f32 %v1309, %v1540
      %v1586 = vadd.f32 %v1310, %v1543
      %v1587 = vadd.f32 %v1311, %v1546
      %v1588 = vadd.f32 %v1312, %v1549
      %v1589 = vadd.f32 %v1313, %v1552
      %v1590 = vadd.f32 %v1314, %v1555
      %v1591 = vadd.f32 %v1315, %v1558
      %v1592 = vld [vmem:[%s1039 + $0x2] sm:$0xff]
      %v1593 = vld [vmem:[%s1039 + $0xa] sm:$0xff]
      %v1594 = vld [vmem:[%s1039 + $0x1a] sm:$0xff]
      %v1595 = vld [vmem:[%s1039 + $0x22] sm:$0xff]
      %v1596 = vld [vmem:[%s1039 + $0x32] sm:$0xff]
      %v1597 = vld [vmem:[%s1039 + $0x3a] sm:$0xff]
      %v1598 = vld [vmem:[%s1039 + $0x4a] sm:$0xff]
      %v1599 = vld [vmem:[%s1039 + $0x52] sm:$0xff]
      %v1600 = vld [vmem:[%s1039 + $0x62] sm:$0xff]
      %v1601 = vld [vmem:[%s1039 + $0x6a] sm:$0xff]
      %v1602 = vld [vmem:[%s1039 + $0x7a] sm:$0xff]
      %v1603 = vld [vmem:[%s1039 + $0x82] sm:$0xff]
      %v1604 = vld [vmem:[%s1039 + $0x92] sm:$0xff]
      %v1605 = vld [vmem:[%s1039 + $0x9a] sm:$0xff]
      %v1606 = vld [vmem:[%s1039 + $0xaa] sm:$0xff]
      %v1607 = vld [vmem:[%s1039 + $0xb2] sm:$0xff]
      %v1608 = vld [vmem:[%s1039 + $0xc2] sm:$0xff]
      %v1609 = vld [vmem:[%s1039 + $0xca] sm:$0xff]
      %v1610 = vld [vmem:[%s1039 + $0xda] sm:$0xff]
      %v1611 = vld [vmem:[%s1039 + $0xe2] sm:$0xff]
      %v1612 = vld [vmem:[%s1039 + $0xf2] sm:$0xff]
      %v1613 = vld [vmem:[%s1039 + $0xfa] sm:$0xff]
      %v1614 = vld [vmem:[%s1039 + $0x10a] sm:$0xff]
      %v1615 = vld [vmem:[%s1039 + $0x112] sm:$0xff]
      %v1616 = vld [vmem:[%s1039 + $0x122] sm:$0xff]
      %v1617 = vld [vmem:[%s1039 + $0x12a] sm:$0xff]
      %v1618 = vld [vmem:[%s1039 + $0x13a] sm:$0xff]
      %v1619 = vld [vmem:[%s1039 + $0x142] sm:$0xff]
      %v1620 = vld [vmem:[%s1039 + $0x152] sm:$0xff]
      %v1621 = vld [vmem:[%s1039 + $0x15a] sm:$0xff]
      %v1622 = vld [vmem:[%s1039 + $0x16a] sm:$0xff]
      %v1623 = vld [vmem:[%s1039 + $0x172] sm:$0xff]
      %v1625 = vsel %vm241, %v1592, 0
      %v1628 = vsel %vm241, %v1593, 0
      %v1631 = vsel %vm241, %v1594, 0
      %v1634 = vsel %vm241, %v1595, 0
      %v1637 = vsel %vm241, %v1596, 0
      %v1640 = vsel %vm241, %v1597, 0
      %v1643 = vsel %vm241, %v1598, 0
      %v1646 = vsel %vm241, %v1599, 0
      %v1649 = vsel %vm241, %v1600, 0
      %v1652 = vsel %vm241, %v1601, 0
      %v1655 = vsel %vm241, %v1602, 0
      %v1658 = vsel %vm241, %v1603, 0
      %v1661 = vsel %vm241, %v1604, 0
      %v1664 = vsel %vm241, %v1605, 0
      %v1667 = vsel %vm241, %v1606, 0
      %v1670 = vsel %vm241, %v1607, 0
      %v1673 = vsel %vm241, %v1608, 0
      %v1676 = vsel %vm241, %v1609, 0
      %v1679 = vsel %vm241, %v1610, 0
      %v1682 = vsel %vm241, %v1611, 0
      %v1685 = vsel %vm241, %v1612, 0
      %v1688 = vsel %vm241, %v1613, 0
      %v1691 = vsel %vm241, %v1614, 0
      %v1694 = vsel %vm241, %v1615, 0
      %v1697 = vsel %vm241, %v1616, 0
      %v1700 = vsel %vm241, %v1617, 0
      %v1703 = vsel %vm241, %v1618, 0
      %v1706 = vsel %vm241, %v1619, 0
      %v1709 = vsel %vm241, %v1620, 0
      %v1712 = vsel %vm241, %v1621, 0
      %v1715 = vsel %vm241, %v1622, 0
      %v1718 = vsel %vm241, %v1623, 0
      %v1721 = vsel %vm338, %v202, 0
      %1723 = vmatpush.msra.mxu0 0.0
      %1724 = vmatpush.msra.mxu0 0.0
      %1725 = vmatpush.msra.mxu0 0.0
      %1726 = vmatpush.msra.mxu0 0.0
      %1727 = vmatpush.msra.mxu0 0.0
      %1728 = vmatpush.msra.mxu0 0.0
      %1729 = vmatpush.msra.mxu0 0.0
      %1730 = vmatpush.msra.mxu0 0.0
      %1731 = vmatpush.msra.mxu0 0.0
      %1732 = vmatpush.msra.mxu0 0.0
      %1733 = vmatpush.msra.mxu0 0.0
      %1734 = vmatpush.msra.mxu0 0.0
      %1735 = vmatpush.msra.mxu0 0.0
      %1736 = vmatpush.msra.mxu0 0.0
      %1737 = vmatpush.msra.mxu0 0.0
      %1738 = vmatpush.msra.mxu0 %v1721
      %1739 = vmatmul.f32.gmra.mxu0 %v1625
      %v1740 = vpop.f32.mrf.mxu0
      %v1741 = vadd.f32 0.0, %v1740
      %1742 = vmatmul.f32.gmra.mxu0 %v1628
      %v1743 = vpop.f32.mrf.mxu0
      %v1744 = vadd.f32 0.0, %v1743
      %1745 = vmatmul.f32.gmra.mxu0 %v1631
      %v1746 = vpop.f32.mrf.mxu0
      %v1747 = vadd.f32 0.0, %v1746
      %1748 = vmatmul.f32.gmra.mxu0 %v1634
      %v1749 = vpop.f32.mrf.mxu0
      %v1750 = vadd.f32 0.0, %v1749
      %1751 = vmatmul.f32.gmra.mxu0 %v1637
      %v1752 = vpop.f32.mrf.mxu0
      %v1753 = vadd.f32 0.0, %v1752
      %1754 = vmatmul.f32.gmra.mxu0 %v1640
      %v1755 = vpop.f32.mrf.mxu0
      %v1756 = vadd.f32 0.0, %v1755
      %1757 = vmatmul.f32.gmra.mxu0 %v1643
      %v1758 = vpop.f32.mrf.mxu0
      %v1759 = vadd.f32 0.0, %v1758
      %1760 = vmatmul.f32.gmra.mxu0 %v1646
      %v1761 = vpop.f32.mrf.mxu0
      %v1762 = vadd.f32 0.0, %v1761
      %1763 = vmatmul.f32.gmra.mxu0 %v1649
      %v1764 = vpop.f32.mrf.mxu0
      %v1765 = vadd.f32 0.0, %v1764
      %1766 = vmatmul.f32.gmra.mxu0 %v1652
      %v1767 = vpop.f32.mrf.mxu0
      %v1768 = vadd.f32 0.0, %v1767
      %1769 = vmatmul.f32.gmra.mxu0 %v1655
      %v1770 = vpop.f32.mrf.mxu0
      %v1771 = vadd.f32 0.0, %v1770
      %1772 = vmatmul.f32.gmra.mxu0 %v1658
      %v1773 = vpop.f32.mrf.mxu0
      %v1774 = vadd.f32 0.0, %v1773
      %1775 = vmatmul.f32.gmra.mxu0 %v1661
      %v1776 = vpop.f32.mrf.mxu0
      %v1777 = vadd.f32 0.0, %v1776
      %1778 = vmatmul.f32.gmra.mxu0 %v1664
      %v1779 = vpop.f32.mrf.mxu0
      %v1780 = vadd.f32 0.0, %v1779
      %1781 = vmatmul.f32.gmra.mxu0 %v1667
      %v1782 = vpop.f32.mrf.mxu0
      %v1783 = vadd.f32 0.0, %v1782
      %1784 = vmatmul.f32.gmra.mxu0 %v1670
      %v1785 = vpop.f32.mrf.mxu0
      %v1786 = vadd.f32 0.0, %v1785
      %1787 = vmatmul.f32.gmra.mxu0 %v1673
      %v1788 = vpop.f32.mrf.mxu0
      %v1789 = vadd.f32 0.0, %v1788
      %1790 = vmatmul.f32.gmra.mxu0 %v1676
      %v1791 = vpop.f32.mrf.mxu0
      %v1792 = vadd.f32 0.0, %v1791
      %1793 = vmatmul.f32.gmra.mxu0 %v1679
      %v1794 = vpop.f32.mrf.mxu0
      %v1795 = vadd.f32 0.0, %v1794
      %1796 = vmatmul.f32.gmra.mxu0 %v1682
      %v1797 = vpop.f32.mrf.mxu0
      %v1798 = vadd.f32 0.0, %v1797
      %1799 = vmatmul.f32.gmra.mxu0 %v1685
      %v1800 = vpop.f32.mrf.mxu0
      %v1801 = vadd.f32 0.0, %v1800
      %1802 = vmatmul.f32.gmra.mxu0 %v1688
      %v1803 = vpop.f32.mrf.mxu0
      %v1804 = vadd.f32 0.0, %v1803
      %1805 = vmatmul.f32.gmra.mxu0 %v1691
      %v1806 = vpop.f32.mrf.mxu0
      %v1807 = vadd.f32 0.0, %v1806
      %1808 = vmatmul.f32.gmra.mxu0 %v1694
      %v1809 = vpop.f32.mrf.mxu0
      %v1810 = vadd.f32 0.0, %v1809
      %1811 = vmatmul.f32.gmra.mxu0 %v1697
      %v1812 = vpop.f32.mrf.mxu0
      %v1813 = vadd.f32 0.0, %v1812
      %1814 = vmatmul.f32.gmra.mxu0 %v1700
      %v1815 = vpop.f32.mrf.mxu0
      %v1816 = vadd.f32 0.0, %v1815
      %1817 = vmatmul.f32.gmra.mxu0 %v1703
      %v1818 = vpop.f32.mrf.mxu0
      %v1819 = vadd.f32 0.0, %v1818
      %1820 = vmatmul.f32.gmra.mxu0 %v1706
      %v1821 = vpop.f32.mrf.mxu0
      %v1822 = vadd.f32 0.0, %v1821
      %1823 = vmatmul.f32.gmra.mxu0 %v1709
      %v1824 = vpop.f32.mrf.mxu0
      %v1825 = vadd.f32 0.0, %v1824
      %1826 = vmatmul.f32.gmra.mxu0 %v1712
      %v1827 = vpop.f32.mrf.mxu0
      %v1828 = vadd.f32 0.0, %v1827
      %1829 = vmatmul.f32.gmra.mxu0 %v1715
      %v1830 = vpop.f32.mrf.mxu0
      %v1831 = vadd.f32 0.0, %v1830
      %1832 = vmatmul.f32.gmra.mxu0 %v1718
      %v1833 = vpop.f32.mrf.mxu0
      %v1834 = vadd.f32 0.0, %v1833
      %1835 = vdwg.mxu0
      %v1836 = vadd.f32 %v1560, %v1741
      %v1837 = vadd.f32 %v1561, %v1744
      %v1838 = vadd.f32 %v1562, %v1747
      %v1839 = vadd.f32 %v1563, %v1750
      %v1840 = vadd.f32 %v1564, %v1753
      %v1841 = vadd.f32 %v1565, %v1756
      %v1842 = vadd.f32 %v1566, %v1759
      %v1843 = vadd.f32 %v1567, %v1762
      %v1844 = vadd.f32 %v1568, %v1765
      %v1845 = vadd.f32 %v1569, %v1768
      %v1846 = vadd.f32 %v1570, %v1771
      %v1847 = vadd.f32 %v1571, %v1774
      %v1848 = vadd.f32 %v1572, %v1777
      %v1849 = vadd.f32 %v1573, %v1780
      %v1850 = vadd.f32 %v1574, %v1783
      %v1851 = vadd.f32 %v1575, %v1786
      %v1852 = vadd.f32 %v1576, %v1789
      %v1853 = vadd.f32 %v1577, %v1792
      %v1854 = vadd.f32 %v1578, %v1795
      %v1855 = vadd.f32 %v1579, %v1798
      %v1856 = vadd.f32 %v1580, %v1801
      %v1857 = vadd.f32 %v1581, %v1804
      %v1858 = vadd.f32 %v1582, %v1807
      %v1859 = vadd.f32 %v1583, %v1810
      %v1860 = vadd.f32 %v1584, %v1813
      %v1861 = vadd.f32 %v1585, %v1816
      %v1862 = vadd.f32 %v1586, %v1819
      %v1863 = vadd.f32 %v1587, %v1822
      %v1864 = vadd.f32 %v1588, %v1825
      %v1865 = vadd.f32 %v1589, %v1828
      %v1866 = vadd.f32 %v1590, %v1831
      %v1867 = vadd.f32 %v1591, %v1834
      %s1868 = scalar_lea.vmem %s184, 48
      %v1869 = vld [vmem:[%s1868] sm:$0xff]
      %v1870 = vld [vmem:[%s1868 + $0x8] sm:$0xff]
      %v1871 = vld [vmem:[%s1868 + $0x18] sm:$0xff]
      %v1872 = vld [vmem:[%s1868 + $0x20] sm:$0xff]
      %v1873 = vld [vmem:[%s1868 + $0x30] sm:$0xff]
      %v1874 = vld [vmem:[%s1868 + $0x38] sm:$0xff]
      %v1875 = vld [vmem:[%s1868 + $0x48] sm:$0xff]
      %v1876 = vld [vmem:[%s1868 + $0x50] sm:$0xff]
      %v1877 = vld [vmem:[%s1868 + $0x60] sm:$0xff]
      %v1878 = vld [vmem:[%s1868 + $0x68] sm:$0xff]
      %v1879 = vld [vmem:[%s1868 + $0x78] sm:$0xff]
      %v1880 = vld [vmem:[%s1868 + $0x80] sm:$0xff]
      %v1881 = vld [vmem:[%s1868 + $0x90] sm:$0xff]
      %v1882 = vld [vmem:[%s1868 + $0x98] sm:$0xff]
      %v1883 = vld [vmem:[%s1868 + $0xa8] sm:$0xff]
      %v1884 = vld [vmem:[%s1868 + $0xb0] sm:$0xff]
      %v1885 = vld [vmem:[%s1868 + $0xc0] sm:$0xff]
      %v1886 = vld [vmem:[%s1868 + $0xc8] sm:$0xff]
      %v1887 = vld [vmem:[%s1868 + $0xd8] sm:$0xff]
      %v1888 = vld [vmem:[%s1868 + $0xe0] sm:$0xff]
      %v1889 = vld [vmem:[%s1868 + $0xf0] sm:$0xff]
      %v1890 = vld [vmem:[%s1868 + $0xf8] sm:$0xff]
      %v1891 = vld [vmem:[%s1868 + $0x108] sm:$0xff]
      %v1892 = vld [vmem:[%s1868 + $0x110] sm:$0xff]
      %v1893 = vld [vmem:[%s1868 + $0x120] sm:$0xff]
      %v1894 = vld [vmem:[%s1868 + $0x128] sm:$0xff]
      %v1895 = vld [vmem:[%s1868 + $0x138] sm:$0xff]
      %v1896 = vld [vmem:[%s1868 + $0x140] sm:$0xff]
      %v1897 = vld [vmem:[%s1868 + $0x150] sm:$0xff]
      %v1898 = vld [vmem:[%s1868 + $0x158] sm:$0xff]
      %v1899 = vld [vmem:[%s1868 + $0x168] sm:$0xff]
      %v1900 = vld [vmem:[%s1868 + $0x170] sm:$0xff]
      %v1902 = vsel %vm241, %v1869, 0
      %v1905 = vsel %vm241, %v1870, 0
      %v1908 = vsel %vm241, %v1871, 0
      %v1911 = vsel %vm241, %v1872, 0
      %v1914 = vsel %vm241, %v1873, 0
      %v1917 = vsel %vm241, %v1874, 0
      %v1920 = vsel %vm241, %v1875, 0
      %v1923 = vsel %vm241, %v1876, 0
      %v1926 = vsel %vm241, %v1877, 0
      %v1929 = vsel %vm241, %v1878, 0
      %v1932 = vsel %vm241, %v1879, 0
      %v1935 = vsel %vm241, %v1880, 0
      %v1938 = vsel %vm241, %v1881, 0
      %v1941 = vsel %vm241, %v1882, 0
      %v1944 = vsel %vm241, %v1883, 0
      %v1947 = vsel %vm241, %v1884, 0
      %v1950 = vsel %vm241, %v1885, 0
      %v1953 = vsel %vm241, %v1886, 0
      %v1956 = vsel %vm241, %v1887, 0
      %v1959 = vsel %vm241, %v1888, 0
      %v1962 = vsel %vm241, %v1889, 0
      %v1965 = vsel %vm241, %v1890, 0
      %v1968 = vsel %vm241, %v1891, 0
      %v1971 = vsel %vm241, %v1892, 0
      %v1974 = vsel %vm241, %v1893, 0
      %v1977 = vsel %vm241, %v1894, 0
      %v1980 = vsel %vm241, %v1895, 0
      %v1983 = vsel %vm241, %v1896, 0
      %v1986 = vsel %vm241, %v1897, 0
      %v1989 = vsel %vm241, %v1898, 0
      %v1992 = vsel %vm241, %v1899, 0
      %v1995 = vsel %vm241, %v1900, 0
      %v1998 = vsel %vm338, %v203, 0
      %2000 = vmatpush.msra.mxu0 0.0
      %2001 = vmatpush.msra.mxu0 0.0
      %2002 = vmatpush.msra.mxu0 0.0
      %2003 = vmatpush.msra.mxu0 0.0
      %2004 = vmatpush.msra.mxu0 0.0
      %2005 = vmatpush.msra.mxu0 0.0
      %2006 = vmatpush.msra.mxu0 0.0
      %2007 = vmatpush.msra.mxu0 0.0
      %2008 = vmatpush.msra.mxu0 0.0
      %2009 = vmatpush.msra.mxu0 0.0
      %2010 = vmatpush.msra.mxu0 0.0
      %2011 = vmatpush.msra.mxu0 0.0
      %2012 = vmatpush.msra.mxu0 0.0
      %2013 = vmatpush.msra.mxu0 0.0
      %2014 = vmatpush.msra.mxu0 0.0
      %2015 = vmatpush.msra.mxu0 %v1998
      %2016 = vmatmul.f32.gmra.mxu0 %v1902
      %v2017 = vpop.f32.mrf.mxu0
      %v2018 = vadd.f32 0.0, %v2017
      %2019 = vmatmul.f32.gmra.mxu0 %v1905
      %v2020 = vpop.f32.mrf.mxu0
      %v2021 = vadd.f32 0.0, %v2020
      %2022 = vmatmul.f32.gmra.mxu0 %v1908
      %v2023 = vpop.f32.mrf.mxu0
      %v2024 = vadd.f32 0.0, %v2023
      %2025 = vmatmul.f32.gmra.mxu0 %v1911
      %v2026 = vpop.f32.mrf.mxu0
      %v2027 = vadd.f32 0.0, %v2026
      %2028 = vmatmul.f32.gmra.mxu0 %v1914
      %v2029 = vpop.f32.mrf.mxu0
      %v2030 = vadd.f32 0.0, %v2029
      %2031 = vmatmul.f32.gmra.mxu0 %v1917
      %v2032 = vpop.f32.mrf.mxu0
      %v2033 = vadd.f32 0.0, %v2032
      %2034 = vmatmul.f32.gmra.mxu0 %v1920
      %v2035 = vpop.f32.mrf.mxu0
      %v2036 = vadd.f32 0.0, %v2035
      %2037 = vmatmul.f32.gmra.mxu0 %v1923
      %v2038 = vpop.f32.mrf.mxu0
      %v2039 = vadd.f32 0.0, %v2038
      %2040 = vmatmul.f32.gmra.mxu0 %v1926
      %v2041 = vpop.f32.mrf.mxu0
      %v2042 = vadd.f32 0.0, %v2041
      %2043 = vmatmul.f32.gmra.mxu0 %v1929
      %v2044 = vpop.f32.mrf.mxu0
      %v2045 = vadd.f32 0.0, %v2044
      %2046 = vmatmul.f32.gmra.mxu0 %v1932
      %v2047 = vpop.f32.mrf.mxu0
      %v2048 = vadd.f32 0.0, %v2047
      %2049 = vmatmul.f32.gmra.mxu0 %v1935
      %v2050 = vpop.f32.mrf.mxu0
      %v2051 = vadd.f32 0.0, %v2050
      %2052 = vmatmul.f32.gmra.mxu0 %v1938
      %v2053 = vpop.f32.mrf.mxu0
      %v2054 = vadd.f32 0.0, %v2053
      %2055 = vmatmul.f32.gmra.mxu0 %v1941
      %v2056 = vpop.f32.mrf.mxu0
      %v2057 = vadd.f32 0.0, %v2056
      %2058 = vmatmul.f32.gmra.mxu0 %v1944
      %v2059 = vpop.f32.mrf.mxu0
      %v2060 = vadd.f32 0.0, %v2059
      %2061 = vmatmul.f32.gmra.mxu0 %v1947
      %v2062 = vpop.f32.mrf.mxu0
      %v2063 = vadd.f32 0.0, %v2062
      %2064 = vmatmul.f32.gmra.mxu0 %v1950
      %v2065 = vpop.f32.mrf.mxu0
      %v2066 = vadd.f32 0.0, %v2065
      %2067 = vmatmul.f32.gmra.mxu0 %v1953
      %v2068 = vpop.f32.mrf.mxu0
      %v2069 = vadd.f32 0.0, %v2068
      %2070 = vmatmul.f32.gmra.mxu0 %v1956
      %v2071 = vpop.f32.mrf.mxu0
      %v2072 = vadd.f32 0.0, %v2071
      %2073 = vmatmul.f32.gmra.mxu0 %v1959
      %v2074 = vpop.f32.mrf.mxu0
      %v2075 = vadd.f32 0.0, %v2074
      %2076 = vmatmul.f32.gmra.mxu0 %v1962
      %v2077 = vpop.f32.mrf.mxu0
      %v2078 = vadd.f32 0.0, %v2077
      %2079 = vmatmul.f32.gmra.mxu0 %v1965
      %v2080 = vpop.f32.mrf.mxu0
      %v2081 = vadd.f32 0.0, %v2080
      %2082 = vmatmul.f32.gmra.mxu0 %v1968
      %v2083 = vpop.f32.mrf.mxu0
      %v2084 = vadd.f32 0.0, %v2083
      %2085 = vmatmul.f32.gmra.mxu0 %v1971
      %v2086 = vpop.f32.mrf.mxu0
      %v2087 = vadd.f32 0.0, %v2086
      %2088 = vmatmul.f32.gmra.mxu0 %v1974
      %v2089 = vpop.f32.mrf.mxu0
      %v2090 = vadd.f32 0.0, %v2089
      %2091 = vmatmul.f32.gmra.mxu0 %v1977
      %v2092 = vpop.f32.mrf.mxu0
      %v2093 = vadd.f32 0.0, %v2092
      %2094 = vmatmul.f32.gmra.mxu0 %v1980
      %v2095 = vpop.f32.mrf.mxu0
      %v2096 = vadd.f32 0.0, %v2095
      %2097 = vmatmul.f32.gmra.mxu0 %v1983
      %v2098 = vpop.f32.mrf.mxu0
      %v2099 = vadd.f32 0.0, %v2098
      %2100 = vmatmul.f32.gmra.mxu0 %v1986
      %v2101 = vpop.f32.mrf.mxu0
      %v2102 = vadd.f32 0.0, %v2101
      %2103 = vmatmul.f32.gmra.mxu0 %v1989
      %v2104 = vpop.f32.mrf.mxu0
      %v2105 = vadd.f32 0.0, %v2104
      %2106 = vmatmul.f32.gmra.mxu0 %v1992
      %v2107 = vpop.f32.mrf.mxu0
      %v2108 = vadd.f32 0.0, %v2107
      %2109 = vmatmul.f32.gmra.mxu0 %v1995
      %v2110 = vpop.f32.mrf.mxu0
      %v2111 = vadd.f32 0.0, %v2110
      %2112 = vdwg.mxu0
      %v2113 = vadd.f32 %v1836, %v2018
      %v2114 = vadd.f32 %v1837, %v2021
      %v2115 = vadd.f32 %v1838, %v2024
      %v2116 = vadd.f32 %v1839, %v2027
      %v2117 = vadd.f32 %v1840, %v2030
      %v2118 = vadd.f32 %v1841, %v2033
      %v2119 = vadd.f32 %v1842, %v2036
      %v2120 = vadd.f32 %v1843, %v2039
      %v2121 = vadd.f32 %v1844, %v2042
      %v2122 = vadd.f32 %v1845, %v2045
      %v2123 = vadd.f32 %v1846, %v2048
      %v2124 = vadd.f32 %v1847, %v2051
      %v2125 = vadd.f32 %v1848, %v2054
      %v2126 = vadd.f32 %v1849, %v2057
      %v2127 = vadd.f32 %v1850, %v2060
      %v2128 = vadd.f32 %v1851, %v2063
      %v2129 = vadd.f32 %v1852, %v2066
      %v2130 = vadd.f32 %v1853, %v2069
      %v2131 = vadd.f32 %v1854, %v2072
      %v2132 = vadd.f32 %v1855, %v2075
      %v2133 = vadd.f32 %v1856, %v2078
      %v2134 = vadd.f32 %v1857, %v2081
      %v2135 = vadd.f32 %v1858, %v2084
      %v2136 = vadd.f32 %v1859, %v2087
      %v2137 = vadd.f32 %v1860, %v2090
      %v2138 = vadd.f32 %v1861, %v2093
      %v2139 = vadd.f32 %v1862, %v2096
      %v2140 = vadd.f32 %v1863, %v2099
      %v2141 = vadd.f32 %v1864, %v2102
      %v2142 = vadd.f32 %v1865, %v2105
      %v2143 = vadd.f32 %v1866, %v2108
      %v2144 = vadd.f32 %v1867, %v2111
      %v2145 = vld [vmem:[%s1868 + $0x1] sm:$0xff]
      %v2146 = vld [vmem:[%s1868 + $0x9] sm:$0xff]
      %v2147 = vld [vmem:[%s1868 + $0x19] sm:$0xff]
      %v2148 = vld [vmem:[%s1868 + $0x21] sm:$0xff]
      %v2149 = vld [vmem:[%s1868 + $0x31] sm:$0xff]
      %v2150 = vld [vmem:[%s1868 + $0x39] sm:$0xff]
      %v2151 = vld [vmem:[%s1868 + $0x49] sm:$0xff]
      %v2152 = vld [vmem:[%s1868 + $0x51] sm:$0xff]
      %v2153 = vld [vmem:[%s1868 + $0x61] sm:$0xff]
      %v2154 = vld [vmem:[%s1868 + $0x69] sm:$0xff]
      %v2155 = vld [vmem:[%s1868 + $0x79] sm:$0xff]
      %v2156 = vld [vmem:[%s1868 + $0x81] sm:$0xff]
      %v2157 = vld [vmem:[%s1868 + $0x91] sm:$0xff]
      %v2158 = vld [vmem:[%s1868 + $0x99] sm:$0xff]
      %v2159 = vld [vmem:[%s1868 + $0xa9] sm:$0xff]
      %v2160 = vld [vmem:[%s1868 + $0xb1] sm:$0xff]
      %v2161 = vld [vmem:[%s1868 + $0xc1] sm:$0xff]
      %v2162 = vld [vmem:[%s1868 + $0xc9] sm:$0xff]
      %v2163 = vld [vmem:[%s1868 + $0xd9] sm:$0xff]
      %v2164 = vld [vmem:[%s1868 + $0xe1] sm:$0xff]
      %v2165 = vld [vmem:[%s1868 + $0xf1] sm:$0xff]
      %v2166 = vld [vmem:[%s1868 + $0xf9] sm:$0xff]
      %v2167 = vld [vmem:[%s1868 + $0x109] sm:$0xff]
      %v2168 = vld [vmem:[%s1868 + $0x111] sm:$0xff]
      %v2169 = vld [vmem:[%s1868 + $0x121] sm:$0xff]
      %v2170 = vld [vmem:[%s1868 + $0x129] sm:$0xff]
      %v2171 = vld [vmem:[%s1868 + $0x139] sm:$0xff]
      %v2172 = vld [vmem:[%s1868 + $0x141] sm:$0xff]
      %v2173 = vld [vmem:[%s1868 + $0x151] sm:$0xff]
      %v2174 = vld [vmem:[%s1868 + $0x159] sm:$0xff]
      %v2175 = vld [vmem:[%s1868 + $0x169] sm:$0xff]
      %v2176 = vld [vmem:[%s1868 + $0x171] sm:$0xff]
      %v2178 = vsel %vm241, %v2145, 0
      %v2181 = vsel %vm241, %v2146, 0
      %v2184 = vsel %vm241, %v2147, 0
      %v2187 = vsel %vm241, %v2148, 0
      %v2190 = vsel %vm241, %v2149, 0
      %v2193 = vsel %vm241, %v2150, 0
      %v2196 = vsel %vm241, %v2151, 0
      %v2199 = vsel %vm241, %v2152, 0
      %v2202 = vsel %vm241, %v2153, 0
      %v2205 = vsel %vm241, %v2154, 0
      %v2208 = vsel %vm241, %v2155, 0
      %v2211 = vsel %vm241, %v2156, 0
      %v2214 = vsel %vm241, %v2157, 0
      %v2217 = vsel %vm241, %v2158, 0
      %v2220 = vsel %vm241, %v2159, 0
      %v2223 = vsel %vm241, %v2160, 0
      %v2226 = vsel %vm241, %v2161, 0
      %v2229 = vsel %vm241, %v2162, 0
      %v2232 = vsel %vm241, %v2163, 0
      %v2235 = vsel %vm241, %v2164, 0
      %v2238 = vsel %vm241, %v2165, 0
      %v2241 = vsel %vm241, %v2166, 0
      %v2244 = vsel %vm241, %v2167, 0
      %v2247 = vsel %vm241, %v2168, 0
      %v2250 = vsel %vm241, %v2169, 0
      %v2253 = vsel %vm241, %v2170, 0
      %v2256 = vsel %vm241, %v2171, 0
      %v2259 = vsel %vm241, %v2172, 0
      %v2262 = vsel %vm241, %v2173, 0
      %v2265 = vsel %vm241, %v2174, 0
      %v2268 = vsel %vm241, %v2175, 0
      %v2271 = vsel %vm241, %v2176, 0
      %v2274 = vsel %vm338, %v204, 0
      %2276 = vmatpush.msra.mxu0 0.0
      %2277 = vmatpush.msra.mxu0 0.0
      %2278 = vmatpush.msra.mxu0 0.0
      %2279 = vmatpush.msra.mxu0 0.0
      %2280 = vmatpush.msra.mxu0 0.0
      %2281 = vmatpush.msra.mxu0 0.0
      %2282 = vmatpush.msra.mxu0 0.0
      %2283 = vmatpush.msra.mxu0 0.0
      %2284 = vmatpush.msra.mxu0 0.0
      %2285 = vmatpush.msra.mxu0 0.0
      %2286 = vmatpush.msra.mxu0 0.0
      %2287 = vmatpush.msra.mxu0 0.0
      %2288 = vmatpush.msra.mxu0 0.0
      %2289 = vmatpush.msra.mxu0 0.0
      %2290 = vmatpush.msra.mxu0 0.0
      %2291 = vmatpush.msra.mxu0 %v2274
      %2292 = vmatmul.f32.gmra.mxu0 %v2178
      %v2293 = vpop.f32.mrf.mxu0
      %v2294 = vadd.f32 0.0, %v2293
      %2295 = vmatmul.f32.gmra.mxu0 %v2181
      %v2296 = vpop.f32.mrf.mxu0
      %v2297 = vadd.f32 0.0, %v2296
      %2298 = vmatmul.f32.gmra.mxu0 %v2184
      %v2299 = vpop.f32.mrf.mxu0
      %v2300 = vadd.f32 0.0, %v2299
      %2301 = vmatmul.f32.gmra.mxu0 %v2187
      %v2302 = vpop.f32.mrf.mxu0
      %v2303 = vadd.f32 0.0, %v2302
      %2304 = vmatmul.f32.gmra.mxu0 %v2190
      %v2305 = vpop.f32.mrf.mxu0
      %v2306 = vadd.f32 0.0, %v2305
      %2307 = vmatmul.f32.gmra.mxu0 %v2193
      %v2308 = vpop.f32.mrf.mxu0
      %v2309 = vadd.f32 0.0, %v2308
      %2310 = vmatmul.f32.gmra.mxu0 %v2196
      %v2311 = vpop.f32.mrf.mxu0
      %v2312 = vadd.f32 0.0, %v2311
      %2313 = vmatmul.f32.gmra.mxu0 %v2199
      %v2314 = vpop.f32.mrf.mxu0
      %v2315 = vadd.f32 0.0, %v2314
      %2316 = vmatmul.f32.gmra.mxu0 %v2202
      %v2317 = vpop.f32.mrf.mxu0
      %v2318 = vadd.f32 0.0, %v2317
      %2319 = vmatmul.f32.gmra.mxu0 %v2205
      %v2320 = vpop.f32.mrf.mxu0
      %v2321 = vadd.f32 0.0, %v2320
      %2322 = vmatmul.f32.gmra.mxu0 %v2208
      %v2323 = vpop.f32.mrf.mxu0
      %v2324 = vadd.f32 0.0, %v2323
      %2325 = vmatmul.f32.gmra.mxu0 %v2211
      %v2326 = vpop.f32.mrf.mxu0
      %v2327 = vadd.f32 0.0, %v2326
      %2328 = vmatmul.f32.gmra.mxu0 %v2214
      %v2329 = vpop.f32.mrf.mxu0
      %v2330 = vadd.f32 0.0, %v2329
      %2331 = vmatmul.f32.gmra.mxu0 %v2217
      %v2332 = vpop.f32.mrf.mxu0
      %v2333 = vadd.f32 0.0, %v2332
      %2334 = vmatmul.f32.gmra.mxu0 %v2220
      %v2335 = vpop.f32.mrf.mxu0
      %v2336 = vadd.f32 0.0, %v2335
      %2337 = vmatmul.f32.gmra.mxu0 %v2223
      %v2338 = vpop.f32.mrf.mxu0
      %v2339 = vadd.f32 0.0, %v2338
      %2340 = vmatmul.f32.gmra.mxu0 %v2226
      %v2341 = vpop.f32.mrf.mxu0
      %v2342 = vadd.f32 0.0, %v2341
      %2343 = vmatmul.f32.gmra.mxu0 %v2229
      %v2344 = vpop.f32.mrf.mxu0
      %v2345 = vadd.f32 0.0, %v2344
      %2346 = vmatmul.f32.gmra.mxu0 %v2232
      %v2347 = vpop.f32.mrf.mxu0
      %v2348 = vadd.f32 0.0, %v2347
      %2349 = vmatmul.f32.gmra.mxu0 %v2235
      %v2350 = vpop.f32.mrf.mxu0
      %v2351 = vadd.f32 0.0, %v2350
      %2352 = vmatmul.f32.gmra.mxu0 %v2238
      %v2353 = vpop.f32.mrf.mxu0
      %v2354 = vadd.f32 0.0, %v2353
      %2355 = vmatmul.f32.gmra.mxu0 %v2241
      %v2356 = vpop.f32.mrf.mxu0
      %v2357 = vadd.f32 0.0, %v2356
      %2358 = vmatmul.f32.gmra.mxu0 %v2244
      %v2359 = vpop.f32.mrf.mxu0
      %v2360 = vadd.f32 0.0, %v2359
      %2361 = vmatmul.f32.gmra.mxu0 %v2247
      %v2362 = vpop.f32.mrf.mxu0
      %v2363 = vadd.f32 0.0, %v2362
      %2364 = vmatmul.f32.gmra.mxu0 %v2250
      %v2365 = vpop.f32.mrf.mxu0
      %v2366 = vadd.f32 0.0, %v2365
      %2367 = vmatmul.f32.gmra.mxu0 %v2253
      %v2368 = vpop.f32.mrf.mxu0
      %v2369 = vadd.f32 0.0, %v2368
      %2370 = vmatmul.f32.gmra.mxu0 %v2256
      %v2371 = vpop.f32.mrf.mxu0
      %v2372 = vadd.f32 0.0, %v2371
      %2373 = vmatmul.f32.gmra.mxu0 %v2259
      %v2374 = vpop.f32.mrf.mxu0
      %v2375 = vadd.f32 0.0, %v2374
      %2376 = vmatmul.f32.gmra.mxu0 %v2262
      %v2377 = vpop.f32.mrf.mxu0
      %v2378 = vadd.f32 0.0, %v2377
      %2379 = vmatmul.f32.gmra.mxu0 %v2265
      %v2380 = vpop.f32.mrf.mxu0
      %v2381 = vadd.f32 0.0, %v2380
      %2382 = vmatmul.f32.gmra.mxu0 %v2268
      %v2383 = vpop.f32.mrf.mxu0
      %v2384 = vadd.f32 0.0, %v2383
      %2385 = vmatmul.f32.gmra.mxu0 %v2271
      %v2386 = vpop.f32.mrf.mxu0
      %v2387 = vadd.f32 0.0, %v2386
      %2388 = vdwg.mxu0
      %v2389 = vadd.f32 %v2113, %v2294
      %v2390 = vadd.f32 %v2114, %v2297
      %v2391 = vadd.f32 %v2115, %v2300
      %v2392 = vadd.f32 %v2116, %v2303
      %v2393 = vadd.f32 %v2117, %v2306
      %v2394 = vadd.f32 %v2118, %v2309
      %v2395 = vadd.f32 %v2119, %v2312
      %v2396 = vadd.f32 %v2120, %v2315
      %v2397 = vadd.f32 %v2121, %v2318
      %v2398 = vadd.f32 %v2122, %v2321
      %v2399 = vadd.f32 %v2123, %v2324
      %v2400 = vadd.f32 %v2124, %v2327
      %v2401 = vadd.f32 %v2125, %v2330
      %v2402 = vadd.f32 %v2126, %v2333
      %v2403 = vadd.f32 %v2127, %v2336
      %v2404 = vadd.f32 %v2128, %v2339
      %v2405 = vadd.f32 %v2129, %v2342
      %v2406 = vadd.f32 %v2130, %v2345
      %v2407 = vadd.f32 %v2131, %v2348
      %v2408 = vadd.f32 %v2132, %v2351
      %v2409 = vadd.f32 %v2133, %v2354
      %v2410 = vadd.f32 %v2134, %v2357
      %v2411 = vadd.f32 %v2135, %v2360
      %v2412 = vadd.f32 %v2136, %v2363
      %v2413 = vadd.f32 %v2137, %v2366
      %v2414 = vadd.f32 %v2138, %v2369
      %v2415 = vadd.f32 %v2139, %v2372
      %v2416 = vadd.f32 %v2140, %v2375
      %v2417 = vadd.f32 %v2141, %v2378
      %v2418 = vadd.f32 %v2142, %v2381
      %v2419 = vadd.f32 %v2143, %v2384
      %v2420 = vadd.f32 %v2144, %v2387
      %v2421 = vld [vmem:[%s1868 + $0x2] sm:$0xff]
      %v2422 = vld [vmem:[%s1868 + $0xa] sm:$0xff]
      %v2423 = vld [vmem:[%s1868 + $0x1a] sm:$0xff]
      %v2424 = vld [vmem:[%s1868 + $0x22] sm:$0xff]
      %v2425 = vld [vmem:[%s1868 + $0x32] sm:$0xff]
      %v2426 = vld [vmem:[%s1868 + $0x3a] sm:$0xff]
      %v2427 = vld [vmem:[%s1868 + $0x4a] sm:$0xff]
      %v2428 = vld [vmem:[%s1868 + $0x52] sm:$0xff]
      %v2429 = vld [vmem:[%s1868 + $0x62] sm:$0xff]
      %v2430 = vld [vmem:[%s1868 + $0x6a] sm:$0xff]
      %v2431 = vld [vmem:[%s1868 + $0x7a] sm:$0xff]
      %v2432 = vld [vmem:[%s1868 + $0x82] sm:$0xff]
      %v2433 = vld [vmem:[%s1868 + $0x92] sm:$0xff]
      %v2434 = vld [vmem:[%s1868 + $0x9a] sm:$0xff]
      %v2435 = vld [vmem:[%s1868 + $0xaa] sm:$0xff]
      %v2436 = vld [vmem:[%s1868 + $0xb2] sm:$0xff]
      %v2437 = vld [vmem:[%s1868 + $0xc2] sm:$0xff]
      %v2438 = vld [vmem:[%s1868 + $0xca] sm:$0xff]
      %v2439 = vld [vmem:[%s1868 + $0xda] sm:$0xff]
      %v2440 = vld [vmem:[%s1868 + $0xe2] sm:$0xff]
      %v2441 = vld [vmem:[%s1868 + $0xf2] sm:$0xff]
      %v2442 = vld [vmem:[%s1868 + $0xfa] sm:$0xff]
      %v2443 = vld [vmem:[%s1868 + $0x10a] sm:$0xff]
      %v2444 = vld [vmem:[%s1868 + $0x112] sm:$0xff]
      %v2445 = vld [vmem:[%s1868 + $0x122] sm:$0xff]
      %v2446 = vld [vmem:[%s1868 + $0x12a] sm:$0xff]
      %v2447 = vld [vmem:[%s1868 + $0x13a] sm:$0xff]
      %v2448 = vld [vmem:[%s1868 + $0x142] sm:$0xff]
      %v2449 = vld [vmem:[%s1868 + $0x152] sm:$0xff]
      %v2450 = vld [vmem:[%s1868 + $0x15a] sm:$0xff]
      %v2451 = vld [vmem:[%s1868 + $0x16a] sm:$0xff]
      %v2452 = vld [vmem:[%s1868 + $0x172] sm:$0xff]
      %v2454 = vsel %vm241, %v2421, 0
      %v2457 = vsel %vm241, %v2422, 0
      %v2460 = vsel %vm241, %v2423, 0
      %v2463 = vsel %vm241, %v2424, 0
      %v2466 = vsel %vm241, %v2425, 0
      %v2469 = vsel %vm241, %v2426, 0
      %v2472 = vsel %vm241, %v2427, 0
      %v2475 = vsel %vm241, %v2428, 0
      %v2478 = vsel %vm241, %v2429, 0
      %v2481 = vsel %vm241, %v2430, 0
      %v2484 = vsel %vm241, %v2431, 0
      %v2487 = vsel %vm241, %v2432, 0
      %v2490 = vsel %vm241, %v2433, 0
      %v2493 = vsel %vm241, %v2434, 0
      %v2496 = vsel %vm241, %v2435, 0
      %v2499 = vsel %vm241, %v2436, 0
      %v2502 = vsel %vm241, %v2437, 0
      %v2505 = vsel %vm241, %v2438, 0
      %v2508 = vsel %vm241, %v2439, 0
      %v2511 = vsel %vm241, %v2440, 0
      %v2514 = vsel %vm241, %v2441, 0
      %v2517 = vsel %vm241, %v2442, 0
      %v2520 = vsel %vm241, %v2443, 0
      %v2523 = vsel %vm241, %v2444, 0
      %v2526 = vsel %vm241, %v2445, 0
      %v2529 = vsel %vm241, %v2446, 0
      %v2532 = vsel %vm241, %v2447, 0
      %v2535 = vsel %vm241, %v2448, 0
      %v2538 = vsel %vm241, %v2449, 0
      %v2541 = vsel %vm241, %v2450, 0
      %v2544 = vsel %vm241, %v2451, 0
      %v2547 = vsel %vm241, %v2452, 0
      %v2550 = vsel %vm338, %v205, 0
      %2552 = vmatpush.msra.mxu0 0.0
      %2553 = vmatpush.msra.mxu0 0.0
      %2554 = vmatpush.msra.mxu0 0.0
      %2555 = vmatpush.msra.mxu0 0.0
      %2556 = vmatpush.msra.mxu0 0.0
      %2557 = vmatpush.msra.mxu0 0.0
      %2558 = vmatpush.msra.mxu0 0.0
      %2559 = vmatpush.msra.mxu0 0.0
      %2560 = vmatpush.msra.mxu0 0.0
      %2561 = vmatpush.msra.mxu0 0.0
      %2562 = vmatpush.msra.mxu0 0.0
      %2563 = vmatpush.msra.mxu0 0.0
      %2564 = vmatpush.msra.mxu0 0.0
      %2565 = vmatpush.msra.mxu0 0.0
      %2566 = vmatpush.msra.mxu0 0.0
      %2567 = vmatpush.msra.mxu0 %v2550
      %2568 = vmatmul.f32.gmra.mxu0 %v2454
      %v2569 = vpop.f32.mrf.mxu0
      %v2570 = vadd.f32 0.0, %v2569
      %2571 = vmatmul.f32.gmra.mxu0 %v2457
      %v2572 = vpop.f32.mrf.mxu0
      %v2573 = vadd.f32 0.0, %v2572
      %2574 = vmatmul.f32.gmra.mxu0 %v2460
      %v2575 = vpop.f32.mrf.mxu0
      %v2576 = vadd.f32 0.0, %v2575
      %2577 = vmatmul.f32.gmra.mxu0 %v2463
      %v2578 = vpop.f32.mrf.mxu0
      %v2579 = vadd.f32 0.0, %v2578
      %2580 = vmatmul.f32.gmra.mxu0 %v2466
      %v2581 = vpop.f32.mrf.mxu0
      %v2582 = vadd.f32 0.0, %v2581
      %2583 = vmatmul.f32.gmra.mxu0 %v2469
      %v2584 = vpop.f32.mrf.mxu0
      %v2585 = vadd.f32 0.0, %v2584
      %2586 = vmatmul.f32.gmra.mxu0 %v2472
      %v2587 = vpop.f32.mrf.mxu0
      %v2588 = vadd.f32 0.0, %v2587
      %2589 = vmatmul.f32.gmra.mxu0 %v2475
      %v2590 = vpop.f32.mrf.mxu0
      %v2591 = vadd.f32 0.0, %v2590
      %2592 = vmatmul.f32.gmra.mxu0 %v2478
      %v2593 = vpop.f32.mrf.mxu0
      %v2594 = vadd.f32 0.0, %v2593
      %2595 = vmatmul.f32.gmra.mxu0 %v2481
      %v2596 = vpop.f32.mrf.mxu0
      %v2597 = vadd.f32 0.0, %v2596
      %2598 = vmatmul.f32.gmra.mxu0 %v2484
      %v2599 = vpop.f32.mrf.mxu0
      %v2600 = vadd.f32 0.0, %v2599
      %2601 = vmatmul.f32.gmra.mxu0 %v2487
      %v2602 = vpop.f32.mrf.mxu0
      %v2603 = vadd.f32 0.0, %v2602
      %2604 = vmatmul.f32.gmra.mxu0 %v2490
      %v2605 = vpop.f32.mrf.mxu0
      %v2606 = vadd.f32 0.0, %v2605
      %2607 = vmatmul.f32.gmra.mxu0 %v2493
      %v2608 = vpop.f32.mrf.mxu0
      %v2609 = vadd.f32 0.0, %v2608
      %2610 = vmatmul.f32.gmra.mxu0 %v2496
      %v2611 = vpop.f32.mrf.mxu0
      %v2612 = vadd.f32 0.0, %v2611
      %2613 = vmatmul.f32.gmra.mxu0 %v2499
      %v2614 = vpop.f32.mrf.mxu0
      %v2615 = vadd.f32 0.0, %v2614
      %2616 = vmatmul.f32.gmra.mxu0 %v2502
      %v2617 = vpop.f32.mrf.mxu0
      %v2618 = vadd.f32 0.0, %v2617
      %2619 = vmatmul.f32.gmra.mxu0 %v2505
      %v2620 = vpop.f32.mrf.mxu0
      %v2621 = vadd.f32 0.0, %v2620
      %2622 = vmatmul.f32.gmra.mxu0 %v2508
      %v2623 = vpop.f32.mrf.mxu0
      %v2624 = vadd.f32 0.0, %v2623
      %2625 = vmatmul.f32.gmra.mxu0 %v2511
      %v2626 = vpop.f32.mrf.mxu0
      %v2627 = vadd.f32 0.0, %v2626
      %2628 = vmatmul.f32.gmra.mxu0 %v2514
      %v2629 = vpop.f32.mrf.mxu0
      %v2630 = vadd.f32 0.0, %v2629
      %2631 = vmatmul.f32.gmra.mxu0 %v2517
      %v2632 = vpop.f32.mrf.mxu0
      %v2633 = vadd.f32 0.0, %v2632
      %2634 = vmatmul.f32.gmra.mxu0 %v2520
      %v2635 = vpop.f32.mrf.mxu0
      %v2636 = vadd.f32 0.0, %v2635
      %2637 = vmatmul.f32.gmra.mxu0 %v2523
      %v2638 = vpop.f32.mrf.mxu0
      %v2639 = vadd.f32 0.0, %v2638
      %2640 = vmatmul.f32.gmra.mxu0 %v2526
      %v2641 = vpop.f32.mrf.mxu0
      %v2642 = vadd.f32 0.0, %v2641
      %2643 = vmatmul.f32.gmra.mxu0 %v2529
      %v2644 = vpop.f32.mrf.mxu0
      %v2645 = vadd.f32 0.0, %v2644
      %2646 = vmatmul.f32.gmra.mxu0 %v2532
      %v2647 = vpop.f32.mrf.mxu0
      %v2648 = vadd.f32 0.0, %v2647
      %2649 = vmatmul.f32.gmra.mxu0 %v2535
      %v2650 = vpop.f32.mrf.mxu0
      %v2651 = vadd.f32 0.0, %v2650
      %2652 = vmatmul.f32.gmra.mxu0 %v2538
      %v2653 = vpop.f32.mrf.mxu0
      %v2654 = vadd.f32 0.0, %v2653
      %2655 = vmatmul.f32.gmra.mxu0 %v2541
      %v2656 = vpop.f32.mrf.mxu0
      %v2657 = vadd.f32 0.0, %v2656
      %2658 = vmatmul.f32.gmra.mxu0 %v2544
      %v2659 = vpop.f32.mrf.mxu0
      %v2660 = vadd.f32 0.0, %v2659
      %2661 = vmatmul.f32.gmra.mxu0 %v2547
      %v2662 = vpop.f32.mrf.mxu0
      %v2663 = vadd.f32 0.0, %v2662
      %2664 = vdwg.mxu0
      %v2665 = vadd.f32 %v2389, %v2570
      %v2666 = vadd.f32 %v2390, %v2573
      %v2667 = vadd.f32 %v2391, %v2576
      %v2668 = vadd.f32 %v2392, %v2579
      %v2669 = vadd.f32 %v2393, %v2582
      %v2670 = vadd.f32 %v2394, %v2585
      %v2671 = vadd.f32 %v2395, %v2588
      %v2672 = vadd.f32 %v2396, %v2591
      %v2673 = vadd.f32 %v2397, %v2594
      %v2674 = vadd.f32 %v2398, %v2597
      %v2675 = vadd.f32 %v2399, %v2600
      %v2676 = vadd.f32 %v2400, %v2603
      %v2677 = vadd.f32 %v2401, %v2606
      %v2678 = vadd.f32 %v2402, %v2609
      %v2679 = vadd.f32 %v2403, %v2612
      %v2680 = vadd.f32 %v2404, %v2615
      %v2681 = vadd.f32 %v2405, %v2618
      %v2682 = vadd.f32 %v2406, %v2621
      %v2683 = vadd.f32 %v2407, %v2624
      %v2684 = vadd.f32 %v2408, %v2627
      %v2685 = vadd.f32 %v2409, %v2630
      %v2686 = vadd.f32 %v2410, %v2633
      %v2687 = vadd.f32 %v2411, %v2636
      %v2688 = vadd.f32 %v2412, %v2639
      %v2689 = vadd.f32 %v2413, %v2642
      %v2690 = vadd.f32 %v2414, %v2645
      %v2691 = vadd.f32 %v2415, %v2648
      %v2692 = vadd.f32 %v2416, %v2651
      %v2693 = vadd.f32 %v2417, %v2654
      %v2694 = vadd.f32 %v2418, %v2657
      %v2695 = vadd.f32 %v2419, %v2660
      %v2696 = vadd.f32 %v2420, %v2663
      %vm2697 = vcmp.gt.f32.partialorder %v2665, 0.0
      %vm2698 = vcmp.gt.f32.partialorder %v2666, 0.0
      %vm2699 = vcmp.gt.f32.partialorder %v2667, 0.0
      %vm2700 = vcmp.gt.f32.partialorder %v2668, 0.0
      %vm2701 = vcmp.gt.f32.partialorder %v2669, 0.0
      %vm2702 = vcmp.gt.f32.partialorder %v2670, 0.0
      %vm2703 = vcmp.gt.f32.partialorder %v2671, 0.0
      %vm2704 = vcmp.gt.f32.partialorder %v2672, 0.0
      %vm2705 = vcmp.gt.f32.partialorder %v2673, 0.0
      %vm2706 = vcmp.gt.f32.partialorder %v2674, 0.0
      %vm2707 = vcmp.gt.f32.partialorder %v2675, 0.0
      %vm2708 = vcmp.gt.f32.partialorder %v2676, 0.0
      %vm2709 = vcmp.gt.f32.partialorder %v2677, 0.0
      %vm2710 = vcmp.gt.f32.partialorder %v2678, 0.0
      %vm2711 = vcmp.gt.f32.partialorder %v2679, 0.0
      %vm2712 = vcmp.gt.f32.partialorder %v2680, 0.0
      %vm2713 = vcmp.gt.f32.partialorder %v2681, 0.0
      %vm2714 = vcmp.gt.f32.partialorder %v2682, 0.0
      %vm2715 = vcmp.gt.f32.partialorder %v2683, 0.0
      %vm2716 = vcmp.gt.f32.partialorder %v2684, 0.0
      %vm2717 = vcmp.gt.f32.partialorder %v2685, 0.0
      %vm2718 = vcmp.gt.f32.partialorder %v2686, 0.0
      %vm2719 = vcmp.gt.f32.partialorder %v2687, 0.0
      %vm2720 = vcmp.gt.f32.partialorder %v2688, 0.0
      %vm2721 = vcmp.gt.f32.partialorder %v2689, 0.0
      %vm2722 = vcmp.gt.f32.partialorder %v2690, 0.0
      %vm2723 = vcmp.gt.f32.partialorder %v2691, 0.0
      %vm2724 = vcmp.gt.f32.partialorder %v2692, 0.0
      %vm2725 = vcmp.gt.f32.partialorder %v2693, 0.0
      %vm2726 = vcmp.gt.f32.partialorder %v2694, 0.0
      %vm2727 = vcmp.gt.f32.partialorder %v2695, 0.0
      %vm2728 = vcmp.gt.f32.partialorder %v2696, 0.0
      %v2729 = vmul.f32 %v2665, 0.2
      %v2730 = vmul.f32 %v2666, 0.2
      %v2731 = vmul.f32 %v2667, 0.2
      %v2732 = vmul.f32 %v2668, 0.2
      %v2733 = vmul.f32 %v2669, 0.2
      %v2734 = vmul.f32 %v2670, 0.2
      %v2735 = vmul.f32 %v2671, 0.2
      %v2736 = vmul.f32 %v2672, 0.2
      %v2737 = vmul.f32 %v2673, 0.2
      %v2738 = vmul.f32 %v2674, 0.2
      %v2739 = vmul.f32 %v2675, 0.2
      %v2740 = vmul.f32 %v2676, 0.2
      %v2741 = vmul.f32 %v2677, 0.2
      %v2742 = vmul.f32 %v2678, 0.2
      %v2743 = vmul.f32 %v2679, 0.2
      %v2744 = vmul.f32 %v2680, 0.2
      %v2745 = vmul.f32 %v2681, 0.2
      %v2746 = vmul.f32 %v2682, 0.2
      %v2747 = vmul.f32 %v2683, 0.2
      %v2748 = vmul.f32 %v2684, 0.2
      %v2749 = vmul.f32 %v2685, 0.2
      %v2750 = vmul.f32 %v2686, 0.2
      %v2751 = vmul.f32 %v2687, 0.2
      %v2752 = vmul.f32 %v2688, 0.2
      %v2753 = vmul.f32 %v2689, 0.2
      %v2754 = vmul.f32 %v2690, 0.2
      %v2755 = vmul.f32 %v2691, 0.2
      %v2756 = vmul.f32 %v2692, 0.2
      %v2757 = vmul.f32 %v2693, 0.2
      %v2758 = vmul.f32 %v2694, 0.2
      %v2759 = vmul.f32 %v2695, 0.2
      %v2760 = vmul.f32 %v2696, 0.2
      %v2761 = vsel %vm2697, %v2665, %v2729
      %v2762 = vsel %vm2698, %v2666, %v2730
      %v2763 = vsel %vm2699, %v2667, %v2731
      %v2764 = vsel %vm2700, %v2668, %v2732
      %v2765 = vsel %vm2701, %v2669, %v2733
      %v2766 = vsel %vm2702, %v2670, %v2734
      %v2767 = vsel %vm2703, %v2671, %v2735
      %v2768 = vsel %vm2704, %v2672, %v2736
      %v2769 = vsel %vm2705, %v2673, %v2737
      %v2770 = vsel %vm2706, %v2674, %v2738
      %v2771 = vsel %vm2707, %v2675, %v2739
      %v2772 = vsel %vm2708, %v2676, %v2740
      %v2773 = vsel %vm2709, %v2677, %v2741
      %v2774 = vsel %vm2710, %v2678, %v2742
      %v2775 = vsel %vm2711, %v2679, %v2743
      %v2776 = vsel %vm2712, %v2680, %v2744
      %v2777 = vsel %vm2713, %v2681, %v2745
      %v2778 = vsel %vm2714, %v2682, %v2746
      %v2779 = vsel %vm2715, %v2683, %v2747
      %v2780 = vsel %vm2716, %v2684, %v2748
      %v2781 = vsel %vm2717, %v2685, %v2749
      %v2782 = vsel %vm2718, %v2686, %v2750
      %v2783 = vsel %vm2719, %v2687, %v2751
      %v2784 = vsel %vm2720, %v2688, %v2752
      %v2785 = vsel %vm2721, %v2689, %v2753
      %v2786 = vsel %vm2722, %v2690, %v2754
      %v2787 = vsel %vm2723, %v2691, %v2755
      %v2788 = vsel %vm2724, %v2692, %v2756
      %v2789 = vsel %vm2725, %v2693, %v2757
      %v2790 = vsel %vm2726, %v2694, %v2758
      %v2791 = vsel %vm2727, %v2695, %v2759
      %v2792 = vsel %vm2728, %v2696, %v2760
      %v2793 = vmul.f32 %v2761, %v2761
      %v2794 = vmul.f32 %v2762, %v2762
      %v2795 = vmul.f32 %v2763, %v2763
      %v2796 = vmul.f32 %v2764, %v2764
      %v2797 = vmul.f32 %v2765, %v2765
      %v2798 = vmul.f32 %v2766, %v2766
      %v2799 = vmul.f32 %v2767, %v2767
      %v2800 = vmul.f32 %v2768, %v2768
      %v2801 = vmul.f32 %v2769, %v2769
      %v2802 = vmul.f32 %v2770, %v2770
      %v2803 = vmul.f32 %v2771, %v2771
      %v2804 = vmul.f32 %v2772, %v2772
      %v2805 = vmul.f32 %v2773, %v2773
      %v2806 = vmul.f32 %v2774, %v2774
      %v2807 = vmul.f32 %v2775, %v2775
      %v2808 = vmul.f32 %v2776, %v2776
      %v2809 = vmul.f32 %v2777, %v2777
      %v2810 = vmul.f32 %v2778, %v2778
      %v2811 = vmul.f32 %v2779, %v2779
      %v2812 = vmul.f32 %v2780, %v2780
      %v2813 = vmul.f32 %v2781, %v2781
      %v2814 = vmul.f32 %v2782, %v2782
      %v2815 = vmul.f32 %v2783, %v2783
      %v2816 = vmul.f32 %v2784, %v2784
      %v2817 = vmul.f32 %v2785, %v2785
      %v2818 = vmul.f32 %v2786, %v2786
      %v2819 = vmul.f32 %v2787, %v2787
      %v2820 = vmul.f32 %v2788, %v2788
      %v2821 = vmul.f32 %v2789, %v2789
      %v2822 = vmul.f32 %v2790, %v2790
      %v2823 = vmul.f32 %v2791, %v2791
      %v2824 = vmul.f32 %v2792, %v2792
      %vm2825 = vcmask 64512
      %v2826 = vsel %vm2825, %v2793, 0.0
      %2827 = vadd.xlane.f32.xlu0 %v2826
      %v2828 = vpop.xlane.xlu0 %2827
      %v2829 = vsel %vm2825, %v2794, 0.0
      %2830 = vadd.xlane.f32.xlu0 %v2829
      %v2831 = vpop.xlane.xlu0 %2830
      %v2832 = vsel %vm2825, %v2795, 0.0
      %2833 = vadd.xlane.f32.xlu0 %v2832
      %v2834 = vpop.xlane.xlu0 %2833
      %v2835 = vsel %vm2825, %v2796, 0.0
      %2836 = vadd.xlane.f32.xlu0 %v2835
      %v2837 = vpop.xlane.xlu0 %2836
      %v2838 = vsel %vm2825, %v2797, 0.0
      %2839 = vadd.xlane.f32.xlu0 %v2838
      %v2840 = vpop.xlane.xlu0 %2839
      %v2841 = vsel %vm2825, %v2798, 0.0
      %2842 = vadd.xlane.f32.xlu0 %v2841
      %v2843 = vpop.xlane.xlu0 %2842
      %v2844 = vsel %vm2825, %v2799, 0.0
      %2845 = vadd.xlane.f32.xlu0 %v2844
      %v2846 = vpop.xlane.xlu0 %2845
      %v2847 = vsel %vm2825, %v2800, 0.0
      %2848 = vadd.xlane.f32.xlu0 %v2847
      %v2849 = vpop.xlane.xlu0 %2848
      %v2850 = vsel %vm2825, %v2801, 0.0
      %2851 = vadd.xlane.f32.xlu0 %v2850
      %v2852 = vpop.xlane.xlu0 %2851
      %v2853 = vsel %vm2825, %v2802, 0.0
      %2854 = vadd.xlane.f32.xlu0 %v2853
      %v2855 = vpop.xlane.xlu0 %2854
      %v2856 = vsel %vm2825, %v2803, 0.0
      %2857 = vadd.xlane.f32.xlu0 %v2856
      %v2858 = vpop.xlane.xlu0 %2857
      %v2859 = vsel %vm2825, %v2804, 0.0
      %2860 = vadd.xlane.f32.xlu0 %v2859
      %v2861 = vpop.xlane.xlu0 %2860
      %v2862 = vsel %vm2825, %v2805, 0.0
      %2863 = vadd.xlane.f32.xlu0 %v2862
      %v2864 = vpop.xlane.xlu0 %2863
      %v2865 = vsel %vm2825, %v2806, 0.0
      %2866 = vadd.xlane.f32.xlu0 %v2865
      %v2867 = vpop.xlane.xlu0 %2866
      %v2868 = vsel %vm2825, %v2807, 0.0
      %2869 = vadd.xlane.f32.xlu0 %v2868
      %v2870 = vpop.xlane.xlu0 %2869
      %v2871 = vsel %vm2825, %v2808, 0.0
      %2872 = vadd.xlane.f32.xlu0 %v2871
      %v2873 = vpop.xlane.xlu0 %2872
      %v2874 = vsel %vm2825, %v2809, 0.0
      %2875 = vadd.xlane.f32.xlu0 %v2874
      %v2876 = vpop.xlane.xlu0 %2875
      %v2877 = vsel %vm2825, %v2810, 0.0
      %2878 = vadd.xlane.f32.xlu0 %v2877
      %v2879 = vpop.xlane.xlu0 %2878
      %v2880 = vsel %vm2825, %v2811, 0.0
      %2881 = vadd.xlane.f32.xlu0 %v2880
      %v2882 = vpop.xlane.xlu0 %2881
      %v2883 = vsel %vm2825, %v2812, 0.0
      %2884 = vadd.xlane.f32.xlu0 %v2883
      %v2885 = vpop.xlane.xlu0 %2884
      %v2886 = vsel %vm2825, %v2813, 0.0
      %2887 = vadd.xlane.f32.xlu0 %v2886
      %v2888 = vpop.xlane.xlu0 %2887
      %v2889 = vsel %vm2825, %v2814, 0.0
      %2890 = vadd.xlane.f32.xlu0 %v2889
      %v2891 = vpop.xlane.xlu0 %2890
      %v2892 = vsel %vm2825, %v2815, 0.0
      %2893 = vadd.xlane.f32.xlu0 %v2892
      %v2894 = vpop.xlane.xlu0 %2893
      %v2895 = vsel %vm2825, %v2816, 0.0
      %2896 = vadd.xlane.f32.xlu0 %v2895
      %v2897 = vpop.xlane.xlu0 %2896
      %v2898 = vsel %vm2825, %v2817, 0.0
      %2899 = vadd.xlane.f32.xlu0 %v2898
      %v2900 = vpop.xlane.xlu0 %2899
      %v2901 = vsel %vm2825, %v2818, 0.0
      %2902 = vadd.xlane.f32.xlu0 %v2901
      %v2903 = vpop.xlane.xlu0 %2902
      %v2904 = vsel %vm2825, %v2819, 0.0
      %2905 = vadd.xlane.f32.xlu0 %v2904
      %v2906 = vpop.xlane.xlu0 %2905
      %v2907 = vsel %vm2825, %v2820, 0.0
      %2908 = vadd.xlane.f32.xlu0 %v2907
      %v2909 = vpop.xlane.xlu0 %2908
      %v2910 = vsel %vm2825, %v2821, 0.0
      %2911 = vadd.xlane.f32.xlu0 %v2910
      %v2912 = vpop.xlane.xlu0 %2911
      %v2913 = vsel %vm2825, %v2822, 0.0
      %2914 = vadd.xlane.f32.xlu0 %v2913
      %v2915 = vpop.xlane.xlu0 %2914
      %v2916 = vsel %vm2825, %v2823, 0.0
      %2917 = vadd.xlane.f32.xlu0 %v2916
      %v2918 = vpop.xlane.xlu0 %2917
      %v2919 = vsel %vm2825, %v2824, 0.0
      %2920 = vadd.xlane.f32.xlu0 %v2919
      %v2921 = vpop.xlane.xlu0 %2920
      %v2922 = vrcp.pop 8.0
      %v2923 = vmul.f32 8.0, %v2922
      %v2924 = vsub.f32 1.0, %v2923
      %v2925 = vmul.f32 %v2922, %v2924
      %v2926 = vadd.f32 %v2922, %v2925
      %vm2927 = vweird.f32 %v2922
      %v2928 = vsel %vm2927, %v2922, %v2926
      %v2929 = vmul.f32 %v2828, %v2928
      %v2930 = vmul.f32 %v2831, %v2928
      %v2931 = vmul.f32 %v2834, %v2928
      %v2932 = vmul.f32 %v2837, %v2928
      %v2933 = vmul.f32 %v2840, %v2928
      %v2934 = vmul.f32 %v2843, %v2928
      %v2935 = vmul.f32 %v2846, %v2928
      %v2936 = vmul.f32 %v2849, %v2928
      %v2937 = vmul.f32 %v2852, %v2928
      %v2938 = vmul.f32 %v2855, %v2928
      %v2939 = vmul.f32 %v2858, %v2928
      %v2940 = vmul.f32 %v2861, %v2928
      %v2941 = vmul.f32 %v2864, %v2928
      %v2942 = vmul.f32 %v2867, %v2928
      %v2943 = vmul.f32 %v2870, %v2928
      %v2944 = vmul.f32 %v2873, %v2928
      %v2945 = vmul.f32 %v2876, %v2928
      %v2946 = vmul.f32 %v2879, %v2928
      %v2947 = vmul.f32 %v2882, %v2928
      %v2948 = vmul.f32 %v2885, %v2928
      %v2949 = vmul.f32 %v2888, %v2928
      %v2950 = vmul.f32 %v2891, %v2928
      %v2951 = vmul.f32 %v2894, %v2928
      %v2952 = vmul.f32 %v2897, %v2928
      %v2953 = vmul.f32 %v2900, %v2928
      %v2954 = vmul.f32 %v2903, %v2928
      %v2955 = vmul.f32 %v2906, %v2928
      %v2956 = vmul.f32 %v2909, %v2928
      %v2957 = vmul.f32 %v2912, %v2928
      %v2958 = vmul.f32 %v2915, %v2928
      %v2959 = vmul.f32 %v2918, %v2928
      %v2960 = vmul.f32 %v2921, %v2928
      %v2961 = vadd.f32 %v2929, 1e-08
      %v2962 = vadd.f32 %v2930, 1e-08
      %v2963 = vadd.f32 %v2931, 1e-08
      %v2964 = vadd.f32 %v2932, 1e-08
      %v2965 = vadd.f32 %v2933, 1e-08
      %v2966 = vadd.f32 %v2934, 1e-08
      %v2967 = vadd.f32 %v2935, 1e-08
      %v2968 = vadd.f32 %v2936, 1e-08
      %v2969 = vadd.f32 %v2937, 1e-08
      %v2970 = vadd.f32 %v2938, 1e-08
      %v2971 = vadd.f32 %v2939, 1e-08
      %v2972 = vadd.f32 %v2940, 1e-08
      %v2973 = vadd.f32 %v2941, 1e-08
      %v2974 = vadd.f32 %v2942, 1e-08
      %v2975 = vadd.f32 %v2943, 1e-08
      %v2976 = vadd.f32 %v2944, 1e-08
      %v2977 = vadd.f32 %v2945, 1e-08
      %v2978 = vadd.f32 %v2946, 1e-08
      %v2979 = vadd.f32 %v2947, 1e-08
      %v2980 = vadd.f32 %v2948, 1e-08
      %v2981 = vadd.f32 %v2949, 1e-08
      %v2982 = vadd.f32 %v2950, 1e-08
      %v2983 = vadd.f32 %v2951, 1e-08
      %v2984 = vadd.f32 %v2952, 1e-08
      %v2985 = vadd.f32 %v2953, 1e-08
      %v2986 = vadd.f32 %v2954, 1e-08
      %v2987 = vadd.f32 %v2955, 1e-08
      %v2988 = vadd.f32 %v2956, 1e-08
      %v2989 = vadd.f32 %v2957, 1e-08
      %v2990 = vadd.f32 %v2958, 1e-08
      %v2991 = vadd.f32 %v2959, 1e-08
      %v2992 = vadd.f32 %v2960, 1e-08
      %v2993 = vrsqrt.pop %v2961
      %v2994 = vmul.f32 %v2993, %v2961
      %v2995 = vmul.f32 %v2994, %v2993
      %v2996 = vmul.f32 0.5, %v2995
      %v2997 = vsub.f32 1.5, %v2996
      %v2998 = vmul.f32 %v2993, %v2997
      %vm2999 = vweird.f32 %v2961
      %vm3000 = vweird.f32 %v2993
      %vm3001 = vmor %vm2999, %vm3000
      %v3002 = vsel %vm3001, %v2993, %v2998
      %v3003 = vrsqrt.pop %v2962
      %v3004 = vmul.f32 %v3003, %v2962
      %v3005 = vmul.f32 %v3004, %v3003
      %v3006 = vmul.f32 0.5, %v3005
      %v3007 = vsub.f32 1.5, %v3006
      %v3008 = vmul.f32 %v3003, %v3007
      %vm3009 = vweird.f32 %v2962
      %vm3010 = vweird.f32 %v3003
      %vm3011 = vmor %vm3009, %vm3010
      %v3012 = vsel %vm3011, %v3003, %v3008
      %v3013 = vrsqrt.pop %v2963
      %v3014 = vmul.f32 %v3013, %v2963
      %v3015 = vmul.f32 %v3014, %v3013
      %v3016 = vmul.f32 0.5, %v3015
      %v3017 = vsub.f32 1.5, %v3016
      %v3018 = vmul.f32 %v3013, %v3017
      %vm3019 = vweird.f32 %v2963
      %vm3020 = vweird.f32 %v3013
      %vm3021 = vmor %vm3019, %vm3020
      %v3022 = vsel %vm3021, %v3013, %v3018
      %v3023 = vrsqrt.pop %v2964
      %v3024 = vmul.f32 %v3023, %v2964
      %v3025 = vmul.f32 %v3024, %v3023
      %v3026 = vmul.f32 0.5, %v3025
      %v3027 = vsub.f32 1.5, %v3026
      %v3028 = vmul.f32 %v3023, %v3027
      %vm3029 = vweird.f32 %v2964
      %vm3030 = vweird.f32 %v3023
      %vm3031 = vmor %vm3029, %vm3030
      %v3032 = vsel %vm3031, %v3023, %v3028
      %v3033 = vrsqrt.pop %v2965
      %v3034 = vmul.f32 %v3033, %v2965
      %v3035 = vmul.f32 %v3034, %v3033
      %v3036 = vmul.f32 0.5, %v3035
      %v3037 = vsub.f32 1.5, %v3036
      %v3038 = vmul.f32 %v3033, %v3037
      %vm3039 = vweird.f32 %v2965
      %vm3040 = vweird.f32 %v3033
      %vm3041 = vmor %vm3039, %vm3040
      %v3042 = vsel %vm3041, %v3033, %v3038
      %v3043 = vrsqrt.pop %v2966
      %v3044 = vmul.f32 %v3043, %v2966
      %v3045 = vmul.f32 %v3044, %v3043
      %v3046 = vmul.f32 0.5, %v3045
      %v3047 = vsub.f32 1.5, %v3046
      %v3048 = vmul.f32 %v3043, %v3047
      %vm3049 = vweird.f32 %v2966
      %vm3050 = vweird.f32 %v3043
      %vm3051 = vmor %vm3049, %vm3050
      %v3052 = vsel %vm3051, %v3043, %v3048
      %v3053 = vrsqrt.pop %v2967
      %v3054 = vmul.f32 %v3053, %v2967
      %v3055 = vmul.f32 %v3054, %v3053
      %v3056 = vmul.f32 0.5, %v3055
      %v3057 = vsub.f32 1.5, %v3056
      %v3058 = vmul.f32 %v3053, %v3057
      %vm3059 = vweird.f32 %v2967
      %vm3060 = vweird.f32 %v3053
      %vm3061 = vmor %vm3059, %vm3060
      %v3062 = vsel %vm3061, %v3053, %v3058
      %v3063 = vrsqrt.pop %v2968
      %v3064 = vmul.f32 %v3063, %v2968
      %v3065 = vmul.f32 %v3064, %v3063
      %v3066 = vmul.f32 0.5, %v3065
      %v3067 = vsub.f32 1.5, %v3066
      %v3068 = vmul.f32 %v3063, %v3067
      %vm3069 = vweird.f32 %v2968
      %vm3070 = vweird.f32 %v3063
      %vm3071 = vmor %vm3069, %vm3070
      %v3072 = vsel %vm3071, %v3063, %v3068
      %v3073 = vrsqrt.pop %v2969
      %v3074 = vmul.f32 %v3073, %v2969
      %v3075 = vmul.f32 %v3074, %v3073
      %v3076 = vmul.f32 0.5, %v3075
      %v3077 = vsub.f32 1.5, %v3076
      %v3078 = vmul.f32 %v3073, %v3077
      %vm3079 = vweird.f32 %v2969
      %vm3080 = vweird.f32 %v3073
      %vm3081 = vmor %vm3079, %vm3080
      %v3082 = vsel %vm3081, %v3073, %v3078
      %v3083 = vrsqrt.pop %v2970
      %v3084 = vmul.f32 %v3083, %v2970
      %v3085 = vmul.f32 %v3084, %v3083
      %v3086 = vmul.f32 0.5, %v3085
      %v3087 = vsub.f32 1.5, %v3086
      %v3088 = vmul.f32 %v3083, %v3087
      %vm3089 = vweird.f32 %v2970
      %vm3090 = vweird.f32 %v3083
      %vm3091 = vmor %vm3089, %vm3090
      %v3092 = vsel %vm3091, %v3083, %v3088
      %v3093 = vrsqrt.pop %v2971
      %v3094 = vmul.f32 %v3093, %v2971
      %v3095 = vmul.f32 %v3094, %v3093
      %v3096 = vmul.f32 0.5, %v3095
      %v3097 = vsub.f32 1.5, %v3096
      %v3098 = vmul.f32 %v3093, %v3097
      %vm3099 = vweird.f32 %v2971
      %vm3100 = vweird.f32 %v3093
      %vm3101 = vmor %vm3099, %vm3100
      %v3102 = vsel %vm3101, %v3093, %v3098
      %v3103 = vrsqrt.pop %v2972
      %v3104 = vmul.f32 %v3103, %v2972
      %v3105 = vmul.f32 %v3104, %v3103
      %v3106 = vmul.f32 0.5, %v3105
      %v3107 = vsub.f32 1.5, %v3106
      %v3108 = vmul.f32 %v3103, %v3107
      %vm3109 = vweird.f32 %v2972
      %vm3110 = vweird.f32 %v3103
      %vm3111 = vmor %vm3109, %vm3110
      %v3112 = vsel %vm3111, %v3103, %v3108
      %v3113 = vrsqrt.pop %v2973
      %v3114 = vmul.f32 %v3113, %v2973
      %v3115 = vmul.f32 %v3114, %v3113
      %v3116 = vmul.f32 0.5, %v3115
      %v3117 = vsub.f32 1.5, %v3116
      %v3118 = vmul.f32 %v3113, %v3117
      %vm3119 = vweird.f32 %v2973
      %vm3120 = vweird.f32 %v3113
      %vm3121 = vmor %vm3119, %vm3120
      %v3122 = vsel %vm3121, %v3113, %v3118
      %v3123 = vrsqrt.pop %v2974
      %v3124 = vmul.f32 %v3123, %v2974
      %v3125 = vmul.f32 %v3124, %v3123
      %v3126 = vmul.f32 0.5, %v3125
      %v3127 = vsub.f32 1.5, %v3126
      %v3128 = vmul.f32 %v3123, %v3127
      %vm3129 = vweird.f32 %v2974
      %vm3130 = vweird.f32 %v3123
      %vm3131 = vmor %vm3129, %vm3130
      %v3132 = vsel %vm3131, %v3123, %v3128
      %v3133 = vrsqrt.pop %v2975
      %v3134 = vmul.f32 %v3133, %v2975
      %v3135 = vmul.f32 %v3134, %v3133
      %v3136 = vmul.f32 0.5, %v3135
      %v3137 = vsub.f32 1.5, %v3136
      %v3138 = vmul.f32 %v3133, %v3137
      %vm3139 = vweird.f32 %v2975
      %vm3140 = vweird.f32 %v3133
      %vm3141 = vmor %vm3139, %vm3140
      %v3142 = vsel %vm3141, %v3133, %v3138
      %v3143 = vrsqrt.pop %v2976
      %v3144 = vmul.f32 %v3143, %v2976
      %v3145 = vmul.f32 %v3144, %v3143
      %v3146 = vmul.f32 0.5, %v3145
      %v3147 = vsub.f32 1.5, %v3146
      %v3148 = vmul.f32 %v3143, %v3147
      %vm3149 = vweird.f32 %v2976
      %vm3150 = vweird.f32 %v3143
      %vm3151 = vmor %vm3149, %vm3150
      %v3152 = vsel %vm3151, %v3143, %v3148
      %v3153 = vrsqrt.pop %v2977
      %v3154 = vmul.f32 %v3153, %v2977
      %v3155 = vmul.f32 %v3154, %v3153
      %v3156 = vmul.f32 0.5, %v3155
      %v3157 = vsub.f32 1.5, %v3156
      %v3158 = vmul.f32 %v3153, %v3157
      %vm3159 = vweird.f32 %v2977
      %vm3160 = vweird.f32 %v3153
      %vm3161 = vmor %vm3159, %vm3160
      %v3162 = vsel %vm3161, %v3153, %v3158
      %v3163 = vrsqrt.pop %v2978
      %v3164 = vmul.f32 %v3163, %v2978
      %v3165 = vmul.f32 %v3164, %v3163
      %v3166 = vmul.f32 0.5, %v3165
      %v3167 = vsub.f32 1.5, %v3166
      %v3168 = vmul.f32 %v3163, %v3167
      %vm3169 = vweird.f32 %v2978
      %vm3170 = vweird.f32 %v3163
      %vm3171 = vmor %vm3169, %vm3170
      %v3172 = vsel %vm3171, %v3163, %v3168
      %v3173 = vrsqrt.pop %v2979
      %v3174 = vmul.f32 %v3173, %v2979
      %v3175 = vmul.f32 %v3174, %v3173
      %v3176 = vmul.f32 0.5, %v3175
      %v3177 = vsub.f32 1.5, %v3176
      %v3178 = vmul.f32 %v3173, %v3177
      %vm3179 = vweird.f32 %v2979
      %vm3180 = vweird.f32 %v3173
      %vm3181 = vmor %vm3179, %vm3180
      %v3182 = vsel %vm3181, %v3173, %v3178
      %v3183 = vrsqrt.pop %v2980
      %v3184 = vmul.f32 %v3183, %v2980
      %v3185 = vmul.f32 %v3184, %v3183
      %v3186 = vmul.f32 0.5, %v3185
      %v3187 = vsub.f32 1.5, %v3186
      %v3188 = vmul.f32 %v3183, %v3187
      %vm3189 = vweird.f32 %v2980
      %vm3190 = vweird.f32 %v3183
      %vm3191 = vmor %vm3189, %vm3190
      %v3192 = vsel %vm3191, %v3183, %v3188
      %v3193 = vrsqrt.pop %v2981
      %v3194 = vmul.f32 %v3193, %v2981
      %v3195 = vmul.f32 %v3194, %v3193
      %v3196 = vmul.f32 0.5, %v3195
      %v3197 = vsub.f32 1.5, %v3196
      %v3198 = vmul.f32 %v3193, %v3197
      %vm3199 = vweird.f32 %v2981
      %vm3200 = vweird.f32 %v3193
      %vm3201 = vmor %vm3199, %vm3200
      %v3202 = vsel %vm3201, %v3193, %v3198
      %v3203 = vrsqrt.pop %v2982
      %v3204 = vmul.f32 %v3203, %v2982
      %v3205 = vmul.f32 %v3204, %v3203
      %v3206 = vmul.f32 0.5, %v3205
      %v3207 = vsub.f32 1.5, %v3206
      %v3208 = vmul.f32 %v3203, %v3207
      %vm3209 = vweird.f32 %v2982
      %vm3210 = vweird.f32 %v3203
      %vm3211 = vmor %vm3209, %vm3210
      %v3212 = vsel %vm3211, %v3203, %v3208
      %v3213 = vrsqrt.pop %v2983
      %v3214 = vmul.f32 %v3213, %v2983
      %v3215 = vmul.f32 %v3214, %v3213
      %v3216 = vmul.f32 0.5, %v3215
      %v3217 = vsub.f32 1.5, %v3216
      %v3218 = vmul.f32 %v3213, %v3217
      %vm3219 = vweird.f32 %v2983
      %vm3220 = vweird.f32 %v3213
      %vm3221 = vmor %vm3219, %vm3220
      %v3222 = vsel %vm3221, %v3213, %v3218
      %v3223 = vrsqrt.pop %v2984
      %v3224 = vmul.f32 %v3223, %v2984
      %v3225 = vmul.f32 %v3224, %v3223
      %v3226 = vmul.f32 0.5, %v3225
      %v3227 = vsub.f32 1.5, %v3226
      %v3228 = vmul.f32 %v3223, %v3227
      %vm3229 = vweird.f32 %v2984
      %vm3230 = vweird.f32 %v3223
      %vm3231 = vmor %vm3229, %vm3230
      %v3232 = vsel %vm3231, %v3223, %v3228
      %v3233 = vrsqrt.pop %v2985
      %v3234 = vmul.f32 %v3233, %v2985
      %v3235 = vmul.f32 %v3234, %v3233
      %v3236 = vmul.f32 0.5, %v3235
      %v3237 = vsub.f32 1.5, %v3236
      %v3238 = vmul.f32 %v3233, %v3237
      %vm3239 = vweird.f32 %v2985
      %vm3240 = vweird.f32 %v3233
      %vm3241 = vmor %vm3239, %vm3240
      %v3242 = vsel %vm3241, %v3233, %v3238
      %v3243 = vrsqrt.pop %v2986
      %v3244 = vmul.f32 %v3243, %v2986
      %v3245 = vmul.f32 %v3244, %v3243
      %v3246 = vmul.f32 0.5, %v3245
      %v3247 = vsub.f32 1.5, %v3246
      %v3248 = vmul.f32 %v3243, %v3247
      %vm3249 = vweird.f32 %v2986
      %vm3250 = vweird.f32 %v3243
      %vm3251 = vmor %vm3249, %vm3250
      %v3252 = vsel %vm3251, %v3243, %v3248
      %v3253 = vrsqrt.pop %v2987
      %v3254 = vmul.f32 %v3253, %v2987
      %v3255 = vmul.f32 %v3254, %v3253
      %v3256 = vmul.f32 0.5, %v3255
      %v3257 = vsub.f32 1.5, %v3256
      %v3258 = vmul.f32 %v3253, %v3257
      %vm3259 = vweird.f32 %v2987
      %vm3260 = vweird.f32 %v3253
      %vm3261 = vmor %vm3259, %vm3260
      %v3262 = vsel %vm3261, %v3253, %v3258
      %v3263 = vrsqrt.pop %v2988
      %v3264 = vmul.f32 %v3263, %v2988
      %v3265 = vmul.f32 %v3264, %v3263
      %v3266 = vmul.f32 0.5, %v3265
      %v3267 = vsub.f32 1.5, %v3266
      %v3268 = vmul.f32 %v3263, %v3267
      %vm3269 = vweird.f32 %v2988
      %vm3270 = vweird.f32 %v3263
      %vm3271 = vmor %vm3269, %vm3270
      %v3272 = vsel %vm3271, %v3263, %v3268
      %v3273 = vrsqrt.pop %v2989
      %v3274 = vmul.f32 %v3273, %v2989
      %v3275 = vmul.f32 %v3274, %v3273
      %v3276 = vmul.f32 0.5, %v3275
      %v3277 = vsub.f32 1.5, %v3276
      %v3278 = vmul.f32 %v3273, %v3277
      %vm3279 = vweird.f32 %v2989
      %vm3280 = vweird.f32 %v3273
      %vm3281 = vmor %vm3279, %vm3280
      %v3282 = vsel %vm3281, %v3273, %v3278
      %v3283 = vrsqrt.pop %v2990
      %v3284 = vmul.f32 %v3283, %v2990
      %v3285 = vmul.f32 %v3284, %v3283
      %v3286 = vmul.f32 0.5, %v3285
      %v3287 = vsub.f32 1.5, %v3286
      %v3288 = vmul.f32 %v3283, %v3287
      %vm3289 = vweird.f32 %v2990
      %vm3290 = vweird.f32 %v3283
      %vm3291 = vmor %vm3289, %vm3290
      %v3292 = vsel %vm3291, %v3283, %v3288
      %v3293 = vrsqrt.pop %v2991
      %v3294 = vmul.f32 %v3293, %v2991
      %v3295 = vmul.f32 %v3294, %v3293
      %v3296 = vmul.f32 0.5, %v3295
      %v3297 = vsub.f32 1.5, %v3296
      %v3298 = vmul.f32 %v3293, %v3297
      %vm3299 = vweird.f32 %v2991
      %vm3300 = vweird.f32 %v3293
      %vm3301 = vmor %vm3299, %vm3300
      %v3302 = vsel %vm3301, %v3293, %v3298
      %v3303 = vrsqrt.pop %v2992
      %v3304 = vmul.f32 %v3303, %v2992
      %v3305 = vmul.f32 %v3304, %v3303
      %v3306 = vmul.f32 0.5, %v3305
      %v3307 = vsub.f32 1.5, %v3306
      %v3308 = vmul.f32 %v3303, %v3307
      %vm3309 = vweird.f32 %v2992
      %vm3310 = vweird.f32 %v3303
      %vm3311 = vmor %vm3309, %vm3310
      %v3312 = vsel %vm3311, %v3303, %v3308
      %v3313 = vmul.f32 %v2761, %v3002
      %v3314 = vmul.f32 %v2762, %v3012
      %v3315 = vmul.f32 %v2763, %v3022
      %v3316 = vmul.f32 %v2764, %v3032
      %v3317 = vmul.f32 %v2765, %v3042
      %v3318 = vmul.f32 %v2766, %v3052
      %v3319 = vmul.f32 %v2767, %v3062
      %v3320 = vmul.f32 %v2768, %v3072
      %v3321 = vmul.f32 %v2769, %v3082
      %v3322 = vmul.f32 %v2770, %v3092
      %v3323 = vmul.f32 %v2771, %v3102
      %v3324 = vmul.f32 %v2772, %v3112
      %v3325 = vmul.f32 %v2773, %v3122
      %v3326 = vmul.f32 %v2774, %v3132
      %v3327 = vmul.f32 %v2775, %v3142
      %v3328 = vmul.f32 %v2776, %v3152
      %v3329 = vmul.f32 %v2777, %v3162
      %v3330 = vmul.f32 %v2778, %v3172
      %v3331 = vmul.f32 %v2779, %v3182
      %v3332 = vmul.f32 %v2780, %v3192
      %v3333 = vmul.f32 %v2781, %v3202
      %v3334 = vmul.f32 %v2782, %v3212
      %v3335 = vmul.f32 %v2783, %v3222
      %v3336 = vmul.f32 %v2784, %v3232
      %v3337 = vmul.f32 %v2785, %v3242
      %v3338 = vmul.f32 %v2786, %v3252
      %v3339 = vmul.f32 %v2787, %v3262
      %v3340 = vmul.f32 %v2788, %v3272
      %v3341 = vmul.f32 %v2789, %v3282
      %v3342 = vmul.f32 %v2790, %v3292
      %v3343 = vmul.f32 %v2791, %v3302
      %v3344 = vmul.f32 %v2792, %v3312
      %3345 = vst.msk [vmem:[%s194] sm:$0xff] %vm2825, %v3313
      %3346 = vst.msk [vmem:[%s194 + $0x8] sm:$0xff] %vm2825, %v3314
      %3347 = vst.msk [vmem:[%s194 + $0x10] sm:$0xff] %vm2825, %v3315
      %3348 = vst.msk [vmem:[%s194 + $0x18] sm:$0xff] %vm2825, %v3316
      %3349 = vst.msk [vmem:[%s194 + $0x20] sm:$0xff] %vm2825, %v3317
      %3350 = vst.msk [vmem:[%s194 + $0x28] sm:$0xff] %vm2825, %v3318
      %3351 = vst.msk [vmem:[%s194 + $0x30] sm:$0xff] %vm2825, %v3319
      %3352 = vst.msk [vmem:[%s194 + $0x38] sm:$0xff] %vm2825, %v3320
      %3353 = vst.msk [vmem:[%s194 + $0x40] sm:$0xff] %vm2825, %v3321
      %3354 = vst.msk [vmem:[%s194 + $0x48] sm:$0xff] %vm2825, %v3322
      %3355 = vst.msk [vmem:[%s194 + $0x50] sm:$0xff] %vm2825, %v3323
      %3356 = vst.msk [vmem:[%s194 + $0x58] sm:$0xff] %vm2825, %v3324
      %3357 = vst.msk [vmem:[%s194 + $0x60] sm:$0xff] %vm2825, %v3325
      %3358 = vst.msk [vmem:[%s194 + $0x68] sm:$0xff] %vm2825, %v3326
      %3359 = vst.msk [vmem:[%s194 + $0x70] sm:$0xff] %vm2825, %v3327
      %3360 = vst.msk [vmem:[%s194 + $0x78] sm:$0xff] %vm2825, %v3328
      %3361 = vst.msk [vmem:[%s194 + $0x80] sm:$0xff] %vm2825, %v3329
      %3362 = vst.msk [vmem:[%s194 + $0x88] sm:$0xff] %vm2825, %v3330
      %3363 = vst.msk [vmem:[%s194 + $0x90] sm:$0xff] %vm2825, %v3331
      %3364 = vst.msk [vmem:[%s194 + $0x98] sm:$0xff] %vm2825, %v3332
      %3365 = vst.msk [vmem:[%s194 + $0xa0] sm:$0xff] %vm2825, %v3333
      %3366 = vst.msk [vmem:[%s194 + $0xa8] sm:$0xff] %vm2825, %v3334
      %3367 = vst.msk [vmem:[%s194 + $0xb0] sm:$0xff] %vm2825, %v3335
      %3368 = vst.msk [vmem:[%s194 + $0xb8] sm:$0xff] %vm2825, %v3336
      %3369 = vst.msk [vmem:[%s194 + $0xc0] sm:$0xff] %vm2825, %v3337
      %3370 = vst.msk [vmem:[%s194 + $0xc8] sm:$0xff] %vm2825, %v3338
      %3371 = vst.msk [vmem:[%s194 + $0xd0] sm:$0xff] %vm2825, %v3339
      %3372 = vst.msk [vmem:[%s194 + $0xd8] sm:$0xff] %vm2825, %v3340
      %3373 = vst.msk [vmem:[%s194 + $0xe0] sm:$0xff] %vm2825, %v3341
      %3374 = vst.msk [vmem:[%s194 + $0xe8] sm:$0xff] %vm2825, %v3342
      %3375 = vst.msk [vmem:[%s194 + $0xf0] sm:$0xff] %vm2825, %v3343
      %3376 = vst.msk [vmem:[%s194 + $0xf8] sm:$0xff] %vm2825, %v3344
      %s3377 = smul.u32 16, %s19
      %p3378 = scmp.lt.s32.totalorder %s18, 1
      %s3379 = scalar_select %p3378, %s18, 1
      %p3380 = scmp.lt.s32.totalorder %s3377, 15
      %s3381 = scalar_select %p3380, %s3377, 15
      %s3382 = smul.addr %s3381, 2
      %s3383 = smul.addr %s3379, 32
      %s3384 = sadd.s32 %s3382, %s3383
      %s3385 = smul.addr %s3384, 8
      %s3386 = scalar_lea.vmem %s3, %s3385
      // Predicated region
      $region33: #{conv_block_forward.2} parent=31 // pred_check
        %p3387 = pneg %p114
      $region34: #{conv_block_forward.2} parent=31 // pred_check_branch
        %3389 = sbr.rel (%p3387) target = $region36
      $region35: #{conv_block_forward.2} parent=31 // pred_region
        %s3390 = smul.u32 16, %s19
      $region36: #{conv_block_forward.2} parent=31 // pred_fallthru
        _
    $region32: #{conv_block_forward.2} parent=5 // pred_fallthru
      _
    %p3391 = scmp.le.s32.totalorder 2, %s9
    // Predicated region
    $region37: #{conv_block_forward.2} parent=5 // pred_check
      %p3392 = pneg %p3391
    $region38: #{conv_block_forward.2} parent=5 // pred_check_branch
      %3394 = sbr.rel (%p3392) target = $region40
    $region39: #{conv_block_forward.2} parent=5 // pred_region
      %s3395 = ssub.s32 %s9, 2
      // Predicated region
      $region41: #{conv_block_forward.2} parent=39 // pred_check
        %p3396 = pneg %p120
      $region42: #{conv_block_forward.2} parent=39 // pred_check_branch
        %3398 = sbr.rel (%p3396) target = $region44
      $region43: #{conv_block_forward.2} parent=39 // pred_region
        %s3399 = smul.u32 16, %s21
        %p3400 = scmp.lt.s32.totalorder %s20, 1
        %s3401 = scalar_select %p3400, %s20, 1
        %p3402 = scmp.lt.s32.totalorder %s3399, 15
        %s3403 = scalar_select %p3402, %s3399, 15
        %s3404 = smul.addr %s3403, 2
        %s3405 = smul.addr %s3401, 32
        %s3406 = sadd.s32 %s3404, %s3405
        %s3407 = smul.addr %s3406, 8
        %s3408 = scalar_lea.vmem %s3, %s3407
      $region44: #{conv_block_forward.2} parent=39 // pred_fallthru
        _
    $region40: #{conv_block_forward.2} parent=5 // pred_fallthru
      _
  $region6: #{conv_block_forward.2} parent=0 // loop_footer
    %s13 = sadd.s32 1, %s9
  $region7: #{conv_block_forward.2} parent=0 // loop_footer_branch
    %8 = sbr.rel target = $region3
  $region8: #{conv_block_forward.2} parent=0 // loop_exit
    _

// kernel: conv_block_forward.3
$region0: #{conv_block_forward.3}
  #allocation0 [shape = 'u32[]', space=smem, size = 0x4, offset = 0x4, fixed_abs, tag = 'smem constant byte address 0x4 - core index']
  #allocation1 [shape = 'u32[72,128]{1,0:T(1,128)}', space=vmem, size = 0x9000, scoped, tag = 'internal scratch']
  %s0 = inlined_call_operand.vmem [shape: f32[2,18,18,8], index: 0, kind: input, shape index: {}]
  %s1 = inlined_call_operand.vmem [shape: f32[3,3,8,8], index: 1, kind: input, shape index: {}]
  %s2 = inlined_call_operand.vmem [shape: f32[1,8], index: 2, kind: input, shape index: {}]
  %s3 = inlined_call_operand.vmem [shape: f32[2,16,16,8], index: 3, kind: output, shape index: {}]
  %s4 = sld [smem:[#allocation0]]
  $region45: #{conv_block_forward.3} parent=0
    _
  %s6 = ssub.s32 1, %s4
  %s7 = scalar_select 0, %s6, %s4
  loop: start=0, step=1, limit=4
  $region2: #{conv_block_forward.3} parent=0 // loop_pre_header
    _
  $region3: #{conv_block_forward.3} parent=0 // loop_header
    %s9 = sphi 0, %s13
    %p10 = scmp.ge.s32.totalorder %s9, 4
    %s16 = sphi 0, %s28
    %s17 = sphi 0, %s24
    %s18 = sphi 0, %s16
    %s19 = sphi 0, %s17
    %s20 = sphi 0, %s18
    %s21 = sphi 0, %s19
    %s31 = sphi 0, %s33
    %s34 = sphi 0, %s31
    %s35 = sphi 0, %s34
    %s51 = sphi 0, %s35
    %s55 = sphi 0, %s55
    %s57 = sphi 0, %s55
    %s58 = sphi 0, %s57
    %s72 = sphi 0, %s58
    %s76 = sphi 0, %s76
    %s78 = sphi 0, %s76
    %s79 = sphi 0, %s78
    %s93 = sphi 0, %s79
    %s101 = sphi 0, %s103
    %s104 = sphi 0, %s101
    %s105 = sphi 0, %s104
    %s121 = sphi 0, %s105
  $region4: #{conv_block_forward.3} parent=0 // loop_header_branch
    %12 = sbr.rel (%p10) target = $region8
  $region5: #{conv_block_forward.3} parent=0 // loop_body
    %s14 = ssub.s32 %s9, 1
    %s15 = ssub.s32 %s9, 2
    %s22 = sadd.s32 1, %s17
    %p23 = scmp.ge.s32.totalorder %s22, 1
    %s24 = scalar_select %p23, 0, %s22
    %s25 = sadd.s32 1, %s16
    %s26 = scalar_select %p23, %s25, %s16
    %p27 = scmp.ge.s32.totalorder %s26, 2
    %s28 = scalar_select %p27, 0, %s26
    %s29 = ssub.s32 %s16, %s28
    %p30 = scmp.eq.s32.totalorder %s29, 0
    %s32 = sadd.s32 %s31, 1
    %s33 = scalar_select %p30, %s31, %s32
    %p36 = pneg %p30
    %p37 = scmp.eq.s32.totalorder %s9, 1
    %p38 = por %p36, %p37
    %p39 = scmp.ne.s32.totalorder %s31, %s34
    %p40 = scmp.eq.s32.totalorder %s9, 0
    %p41 = por %p39, %p40
    %p42 = scmp.ne.s32.totalorder %s31, %s34
    %p43 = scmp.eq.s32.totalorder %s14, 1
    %p44 = por %p42, %p43
    %p45 = scmp.ne.s32.totalorder %s34, %s35
    %p46 = scmp.eq.s32.totalorder %s14, 0
    %p47 = por %p45, %p46
    %p48 = scmp.ne.s32.totalorder %s34, %s35
    %p49 = scmp.eq.s32.totalorder %s15, 1
    %p50 = por %p48, %p49
    %p52 = scmp.ne.s32.totalorder %s35, %s51
    %p53 = scmp.eq.s32.totalorder %s15, 0
    %p54 = por %p52, %p53
    %s56 = sadd.s32 %s55, 1
    %p59 = scmp.eq.s32.totalorder %s9, 1
    %p60 = scmp.ne.s32.totalorder %s55, %s57
    %p61 = scmp.eq.s32.totalorder %s9, 0
    %p62 = por %p60, %p61
    %p63 = scmp.ne.s32.totalorder %s55, %s57
    %p64 = scmp.eq.s32.totalorder %s14, 1
    %p65 = por %p63, %p64
    %p66 = scmp.ne.s32.totalorder %s57, %s58
    %p67 = scmp.eq.s32.totalorder %s14, 0
    %p68 = por %p66, %p67
    %p69 = scmp.ne.s32.totalorder %s57, %s58
    %p70 = scmp.eq.s32.totalorder %s15, 1
    %p71 = por %p69, %p70
    %p73 = scmp.ne.s32.totalorder %s58, %s72
    %p74 = scmp.eq.s32.totalorder %s15, 0
    %p75 = por %p73, %p74
    %s77 = sadd.s32 %s76, 1
    %p80 = scmp.eq.s32.totalorder %s9, 1
    %p81 = scmp.ne.s32.totalorder %s76, %s78
    %p82 = scmp.eq.s32.totalorder %s9, 0
    %p83 = por %p81, %p82
    %p84 = scmp.ne.s32.totalorder %s76, %s78
    %p85 = scmp.eq.s32.totalorder %s14, 1
    %p86 = por %p84, %p85
    %p87 = scmp.ne.s32.totalorder %s78, %s79
    %p88 = scmp.eq.s32.totalorder %s14, 0
    %p89 = por %p87, %p88
    %p90 = scmp.ne.s32.totalorder %s78, %s79
    %p91 = scmp.eq.s32.totalorder %s15, 1
    %p92 = por %p90, %p91
    %p94 = scmp.ne.s32.totalorder %s79, %s93
    %p95 = scmp.eq.s32.totalorder %s15, 0
    %p96 = por %p94, %p95
    %s97 = ssub.s32 %s16, %s28
    %s98 = ssub.s32 %s17, %s24
    %s99 = sor.u32 %s97, %s98
    %p100 = scmp.eq.s32.totalorder %s99, 0
    %s102 = sadd.s32 %s101, 1
    %s103 = scalar_select %p100, %s101, %s102
    %p106 = pneg %p100
    %p107 = scmp.eq.s32.totalorder %s9, 1
    %p108 = por %p106, %p107
    %p109 = scmp.ne.s32.totalorder %s101, %s104
    %p110 = scmp.eq.s32.totalorder %s9, 0
    %p111 = por %p109, %p110
    %p112 = scmp.ne.s32.totalorder %s101, %s104
    %p113 = scmp.eq.s32.totalorder %s14, 1
    %p114 = por %p112, %p113
    %p115 = scmp.ne.s32.totalorder %s104, %s105
    %p116 = scmp.eq.s32.totalorder %s14, 0
    %p117 = por %p115, %p116
    %p118 = scmp.ne.s32.totalorder %s104, %s105
    %p119 = scmp.eq.s32.totalorder %s15, 1
    %p120 = por %p118, %p119
    %p122 = scmp.ne.s32.totalorder %s105, %s121
    %p123 = scmp.eq.s32.totalorder %s15, 0
    %p124 = por %p122, %p123
    %p125 = scmp.le.s32.totalorder 1, %s9
    %p126 = scmp.lt.s32.totalorder %s9, 3
    %p127 = pnand %p125, %p126
    %p128 = pneg %p127
    // Predicated region
    $region9: #{conv_block_forward.3} parent=5 // pred_check
      _
    $region10: #{conv_block_forward.3} parent=5 // pred_check_branch
      %130 = sbr.rel (%p127) target = $region12
    $region11: #{conv_block_forward.3} parent=5 // pred_region
      %s131 = ssub.s32 %s9, 1
      // Predicated region
      $region13: #{conv_block_forward.3} parent=11 // pred_check
        %p132 = pneg %p68
      $region14: #{conv_block_forward.3} parent=11 // pred_check_branch
        %134 = sbr.rel (%p132) target = $region16
      $region15: #{conv_block_forward.3} parent=11 // pred_region
        _
      $region16: #{conv_block_forward.3} parent=11 // pred_fallthru
        _
      // Predicated region
      $region17: #{conv_block_forward.3} parent=11 // pred_check
        %p135 = pneg %p89
      $region18: #{conv_block_forward.3} parent=11 // pred_check_branch
        %137 = sbr.rel (%p135) target = $region20
      $region19: #{conv_block_forward.3} parent=11 // pred_region
        _
      $region20: #{conv_block_forward.3} parent=11 // pred_fallthru
        _
    $region12: #{conv_block_forward.3} parent=5 // pred_fallthru
      _
    %p138 = scmp.lt.s32.totalorder %s9, 2
    // Predicated region
    $region21: #{conv_block_forward.3} parent=5 // pred_check
      %p139 = pneg %p138
    $region22: #{conv_block_forward.3} parent=5 // pred_check_branch
      %141 = sbr.rel (%p139) target = $region24
    $region23: #{conv_block_forward.3} parent=5 // pred_region
      // Predicated region
      $region25: #{conv_block_forward.3} parent=23 // pred_check
        %p142 = pneg %p41
      $region26: #{conv_block_forward.3} parent=23 // pred_check_branch
        %144 = sbr.rel (%p142) target = $region28
      $region27: #{conv_block_forward.3} parent=23 // pred_region
        %p145 = scmp.lt.s32.totalorder %s16, 1
        %s146 = scalar_select %p145, %s16, 1
        %s147 = smul.addr %s146, 54
        %s148 = smul.addr %s147, 8
        %s149 = scalar_lea.vmem %s0, %s148
      $region28: #{conv_block_forward.3} parent=23 // pred_fallthru
        _
    $region24: #{conv_block_forward.3} parent=5 // pred_fallthru
      _
    %p150 = scmp.le.s32.totalorder 1, %s9
    %p151 = scmp.lt.s32.totalorder %s9, 3
    %p152 = pnand %p150, %p151
    %p153 = pneg %p152
    // Predicated region
    $region29: #{conv_block_forward.3} parent=5 // pred_check
      _
    $region30: #{conv_block_forward.3} parent=5 // pred_check_branch
      %155 = sbr.rel (%p152) target = $region32
    $region31: #{conv_block_forward.3} parent=5 // pred_region
      %s156 = ssub.s32 %s9, 1
      %p157 = scmp.lt.s32.totalorder %s18, 1
      %s158 = scalar_select %p157, %s18, 1
      %s159 = smul.addr %s158, 54
      %s160 = smul.addr %s159, 8
      %s161 = scalar_lea.vmem %s0, %s160
      %p162 = pneg %p47
      %p163 = pneg %p44
      %p164 = pneg %p68
      %p165 = pneg %p65
      %p166 = pneg %p89
      %p167 = pneg %p86
      %p168 = pneg %p117
      %p169 = pneg %p114
      %s170 = smul.u32 16, %s19
      %p171 = scmp.lt.s32.totalorder %s18, 1
      %s172 = scalar_select %p171, %s18, 1
      %p173 = scmp.lt.s32.totalorder %s170, 15
      %s174 = scalar_select %p173, %s170, 15
      %s175 = smul.addr %s174, 2
      %s176 = smul.addr %s172, 32
      %s177 = sadd.s32 %s175, %s176
      %s178 = smul.addr %s177, 8
      %s179 = scalar_lea.vmem %s3, %s178
      %p180 = scmp.lt.s32.totalorder %s18, 1
      %s181 = scalar_select %p180, %s18, 1
      %s182 = smul.addr %s181, 54
      %s183 = smul.addr %s182, 8
      %s184 = scalar_lea.vmem %s0, %s183
      %s185 = smul.u32 16, %s19
      %p186 = scmp.lt.s32.totalorder %s18, 1
      %s187 = scalar_select %p186, %s18, 1
      %p188 = scmp.lt.s32.totalorder %s185, 15
      %s189 = scalar_select %p188, %s185, 15
      %s190 = smul.addr %s189, 2
      %s191 = smul.addr %s187, 32
      %s192 = sadd.s32 %s190, %s191
      %s193 = smul.addr %s192, 8
      %s194 = scalar_lea.vmem %s3, %s193
      %s195 = smul.u32 16, %s19
      %v196 = vld [vmem:[%s2] sm:$0x1]
      %v197 = vld [vmem:[%s1] sm:$0xff]
      %v198 = vld [vmem:[%s1 + $0x8] sm:$0xff]
      %v199 = vld [vmem:[%s1 + $0x10] sm:$0xff]
      %v200 = vld [vmem:[%s1 + $0x18] sm:$0xff]
      %v201 = vld [vmem:[%s1 + $0x20] sm:$0xff]
      %v202 = vld [vmem:[%s1 + $0x28] sm:$0xff]
      %v203 = vld [vmem:[%s1 + $0x30] sm:$0xff]
      %v204 = vld [vmem:[%s1 + $0x38] sm:$0xff]
      %v205 = vld [vmem:[%s1 + $0x40] sm:$0xff]
      %v207 = vperm.slane %v196, 0
      %v209 = vld [vmem:[%s184] sm:$0xff]
      %v210 = vld [vmem:[%s184 + $0x8] sm:$0xff]
      %v211 = vld [vmem:[%s184 + $0x18] sm:$0xff]
      %v212 = vld [vmem:[%s184 + $0x20] sm:$0xff]
      %v213 = vld [vmem:[%s184 + $0x30] sm:$0xff]
      %v214 = vld [vmem:[%s184 + $0x38] sm:$0xff]
      %v215 = vld [vmem:[%s184 + $0x48] sm:$0xff]
      %v216 = vld [vmem:[%s184 + $0x50] sm:$0xff]
      %v217 = vld [vmem:[%s184 + $0x60] sm:$0xff]
      %v218 = vld [vmem:[%s184 + $0x68] sm:$0xff]
      %v219 = vld [vmem:[%s184 + $0x78] sm:$0xff]
      %v220 = vld [vmem:[%s184 + $0x80] sm:$0xff]
      %v221 = vld [vmem:[%s184 + $0x90] sm:$0xff]
      %v222 = vld [vmem:[%s184 + $0x98] sm:$0xff]
      %v223 = vld [vmem:[%s184 + $0xa8] sm:$0xff]
      %v224 = vld [vmem:[%s184 + $0xb0] sm:$0xff]
      %v225 = vld [vmem:[%s184 + $0xc0] sm:$0xff]
      %v226 = vld [vmem:[%s184 + $0xc8] sm:$0xff]
      %v227 = vld [vmem:[%s184 + $0xd8] sm:$0xff]
      %v228 = vld [vmem:[%s184 + $0xe0] sm:$0xff]
      %v229 = vld [vmem:[%s184 + $0xf0] sm:$0xff]
      %v230 = vld [vmem:[%s184 + $0xf8] sm:$0xff]
      %v231 = vld [vmem:[%s184 + $0x108] sm:$0xff]
      %v232 = vld [vmem:[%s184 + $0x110] sm:$0xff]
      %v233 = vld [vmem:[%s184 + $0x120] sm:$0xff]
      %v234 = vld [vmem:[%s184 + $0x128] sm:$0xff]
      %v235 = vld [vmem:[%s184 + $0x138] sm:$0xff]
      %v236 = vld [vmem:[%s184 + $0x140] sm:$0xff]
      %v237 = vld [vmem:[%s184 + $0x150] sm:$0xff]
      %v238 = vld [vmem:[%s184 + $0x158] sm:$0xff]
      %v239 = vld [vmem:[%s184 + $0x168] sm:$0xff]
      %v240 = vld [vmem:[%s184 + $0x170] sm:$0xff]
      %vm241 = vcmask 64512
      %v243 = vsel %vm241, %v209, 0
      %v246 = vsel %vm241, %v210, 0
      %v249 = vsel %vm241, %v211, 0
      %v252 = vsel %vm241, %v212, 0
      %v255 = vsel %vm241, %v213, 0
      %v258 = vsel %vm241, %v214, 0
      %v261 = vsel %vm241, %v215, 0
      %v264 = vsel %vm241, %v216, 0
      %v267 = vsel %vm241, %v217, 0
      %v270 = vsel %vm241, %v218, 0
      %v273 = vsel %vm241, %v219, 0
      %v276 = vsel %vm241, %v220, 0
      %v279 = vsel %vm241, %v221, 0
      %v282 = vsel %vm241, %v222, 0
      %v285 = vsel %vm241, %v223, 0
      %v288 = vsel %vm241, %v224, 0
      %v291 = vsel %vm241, %v225, 0
      %v294 = vsel %vm241, %v226, 0
      %v297 = vsel %vm241, %v227, 0
      %v300 = vsel %vm241, %v228, 0
      %v303 = vsel %vm241, %v229, 0
      %v306 = vsel %vm241, %v230, 0
      %v309 = vsel %vm241, %v231, 0
      %v312 = vsel %vm241, %v232, 0
      %v315 = vsel %vm241, %v233, 0
      %v318 = vsel %vm241, %v234, 0
      %v321 = vsel %vm241, %v235, 0
      %v324 = vsel %vm241, %v236, 0
      %v327 = vsel %vm241, %v237, 0
      %v330 = vsel %vm241, %v238, 0
      %v333 = vsel %vm241, %v239, 0
      %v336 = vsel %vm241, %v240, 0
      %338 = vmatpush.msra.mxu0 0.0
      %339 = vmatpush.msra.mxu0 0.0
      %340 = vmatpush.msra.mxu0 0.0
      %341 = vmatpush.msra.mxu0 0.0
      %342 = vmatpush.msra.mxu0 0.0
      %343 = vmatpush.msra.mxu0 0.0
      %344 = vmatpush.msra.mxu0 0.0
      %345 = vmatpush.msra.mxu0 0.0
      %346 = vmatpush.msra.mxu0 0.0
      %347 = vmatpush.msra.mxu0 0.0
      %348 = vmatpush.msra.mxu0 0.0
      %349 = vmatpush.msra.mxu0 0.0
      %350 = vmatpush.msra.mxu0 0.0
      %351 = vmatpush.msra.mxu0 0.0
      %352 = vmatpush.msra.mxu0 0.0
      %353 = vmatpush.msra.mxu0 %v197
      %354 = vmatmul.f32.gmra.mxu0 %v243
      %v355 = vpop.f32.mrf.mxu0
      %v356 = vadd.f32 0.0, %v355
      %357 = vmatmul.f32.gmra.mxu0 %v246
      %v358 = vpop.f32.mrf.mxu0
      %v359 = vadd.f32 0.0, %v358
      %360 = vmatmul.f32.gmra.mxu0 %v249
      %v361 = vpop.f32.mrf.mxu0
      %v362 = vadd.f32 0.0, %v361
      %363 = vmatmul.f32.gmra.mxu0 %v252
      %v364 = vpop.f32.mrf.mxu0
      %v365 = vadd.f32 0.0, %v364
      %366 = vmatmul.f32.gmra.mxu0 %v255
      %v367 = vpop.f32.mrf.mxu0
      %v368 = vadd.f32 0.0, %v367
      %369 = vmatmul.f32.gmra.mxu0 %v258
      %v370 = vpop.f32.mrf.mxu0
      %v371 = vadd.f32 0.0, %v370
      %372 = vmatmul.f32.gmra.mxu0 %v261
      %v373 = vpop.f32.mrf.mxu0
      %v374 = vadd.f32 0.0, %v373
      %375 = vmatmul.f32.gmra.mxu0 %v264
      %v376 = vpop.f32.mrf.mxu0
      %v377 = vadd.f32 0.0, %v376
      %378 = vmatmul.f32.gmra.mxu0 %v267
      %v379 = vpop.f32.mrf.mxu0
      %v380 = vadd.f32 0.0, %v379
      %381 = vmatmul.f32.gmra.mxu0 %v270
      %v382 = vpop.f32.mrf.mxu0
      %v383 = vadd.f32 0.0, %v382
      %384 = vmatmul.f32.gmra.mxu0 %v273
      %v385 = vpop.f32.mrf.mxu0
      %v386 = vadd.f32 0.0, %v385
      %387 = vmatmul.f32.gmra.mxu0 %v276
      %v388 = vpop.f32.mrf.mxu0
      %v389 = vadd.f32 0.0, %v388
      %390 = vmatmul.f32.gmra.mxu0 %v279
      %v391 = vpop.f32.mrf.mxu0
      %v392 = vadd.f32 0.0, %v391
      %393 = vmatmul.f32.gmra.mxu0 %v282
      %v394 = vpop.f32.mrf.mxu0
      %v395 = vadd.f32 0.0, %v394
      %396 = vmatmul.f32.gmra.mxu0 %v285
      %v397 = vpop.f32.mrf.mxu0
      %v398 = vadd.f32 0.0, %v397
      %399 = vmatmul.f32.gmra.mxu0 %v288
      %v400 = vpop.f32.mrf.mxu0
      %v401 = vadd.f32 0.0, %v400
      %402 = vmatmul.f32.gmra.mxu0 %v291
      %v403 = vpop.f32.mrf.mxu0
      %v404 = vadd.f32 0.0, %v403
      %405 = vmatmul.f32.gmra.mxu0 %v294
      %v406 = vpop.f32.mrf.mxu0
      %v407 = vadd.f32 0.0, %v406
      %408 = vmatmul.f32.gmra.mxu0 %v297
      %v409 = vpop.f32.mrf.mxu0
      %v410 = vadd.f32 0.0, %v409
      %411 = vmatmul.f32.gmra.mxu0 %v300
      %v412 = vpop.f32.mrf.mxu0
      %v413 = vadd.f32 0.0, %v412
      %414 = vmatmul.f32.gmra.mxu0 %v303
      %v415 = vpop.f32.mrf.mxu0
      %v416 = vadd.f32 0.0, %v415
      %417 = vmatmul.f32.gmra.mxu0 %v306
      %v418 = vpop.f32.mrf.mxu0
      %v419 = vadd.f32 0.0, %v418
      %420 = vmatmul.f32.gmra.mxu0 %v309
      %v421 = vpop.f32.mrf.mxu0
      %v422 = vadd.f32 0.0, %v421
      %423 = vmatmul.f32.gmra.mxu0 %v312
      %v424 = vpop.f32.mrf.mxu0
      %v425 = vadd.f32 0.0, %v424
      %426 = vmatmul.f32.gmra.mxu0 %v315
      %v427 = vpop.f32.mrf.mxu0
      %v428 = vadd.f32 0.0, %v427
      %429 = vmatmul.f32.gmra.mxu0 %v318
      %v430 = vpop.f32.mrf.mxu0
      %v431 = vadd.f32 0.0, %v430
      %432 = vmatmul.f32.gmra.mxu0 %v321
      %v433 = vpop.f32.mrf.mxu0
      %v434 = vadd.f32 0.0, %v433
      %435 = vmatmul.f32.gmra.mxu0 %v324
      %v436 = vpop.f32.mrf.mxu0
      %v437 = vadd.f32 0.0, %v436
      %438 = vmatmul.f32.gmra.mxu0 %v327
      %v439 = vpop.f32.mrf.mxu0
      %v440 = vadd.f32 0.0, %v439
      %441 = vmatmul.f32.gmra.mxu0 %v330
      %v442 = vpop.f32.mrf.mxu0
      %v443 = vadd.f32 0.0, %v442
      %444 = vmatmul.f32.gmra.mxu0 %v333
      %v445 = vpop.f32.mrf.mxu0
      %v446 = vadd.f32 0.0, %v445
      %447 = vmatmul.f32.gmra.mxu0 %v336
      %v448 = vpop.f32.mrf.mxu0
      %v449 = vadd.f32 0.0, %v448
      %450 = vdwg.mxu0
      %v451 = vadd.f32 %v207, %v356
      %v452 = vadd.f32 %v207, %v359
      %v453 = vadd.f32 %v207, %v362
      %v454 = vadd.f32 %v207, %v365
      %v455 = vadd.f32 %v207, %v368
      %v456 = vadd.f32 %v207, %v371
      %v457 = vadd.f32 %v207, %v374
      %v458 = vadd.f32 %v207, %v377
      %v459 = vadd.f32 %v207, %v380
      %v460 = vadd.f32 %v207, %v383
      %v461 = vadd.f32 %v207, %v386
      %v462 = vadd.f32 %v207, %v389
      %v463 = vadd.f32 %v207, %v392
      %v464 = vadd.f32 %v207, %v395
      %v465 = vadd.f32 %v207, %v398
      %v466 = vadd.f32 %v207, %v401
      %v467 = vadd.f32 %v207, %v404
      %v468 = vadd.f32 %v207, %v407
      %v469 = vadd.f32 %v207, %v410
      %v470 = vadd.f32 %v207, %v413
      %v471 = vadd.f32 %v207, %v416
      %v472 = vadd.f32 %v207, %v419
      %v473 = vadd.f32 %v207, %v422
      %v474 = vadd.f32 %v207, %v425
      %v475 = vadd.f32 %v207, %v428
      %v476 = vadd.f32 %v207, %v431
      %v477 = vadd.f32 %v207, %v434
      %v478 = vadd.f32 %v207, %v437
      %v479 = vadd.f32 %v207, %v440
      %v480 = vadd.f32 %v207, %v443
      %v481 = vadd.f32 %v207, %v446
      %v482 = vadd.f32 %v207, %v449
      %v483 = vld [vmem:[%s184 + $0x1] sm:$0xff]
      %v484 = vld [vmem:[%s184 + $0x9] sm:$0xff]
      %v485 = vld [vmem:[%s184 + $0x19] sm:$0xff]
      %v486 = vld [vmem:[%s184 + $0x21] sm:$0xff]
      %v487 = vld [vmem:[%s184 + $0x31] sm:$0xff]
      %v488 = vld [vmem:[%s184 + $0x39] sm:$0xff]
      %v489 = vld [vmem:[%s184 + $0x49] sm:$0xff]
      %v490 = vld [vmem:[%s184 + $0x51] sm:$0xff]
      %v491 = vld [vmem:[%s184 + $0x61] sm:$0xff]
      %v492 = vld [vmem:[%s184 + $0x69] sm:$0xff]
      %v493 = vld [vmem:[%s184 + $0x79] sm:$0xff]
      %v494 = vld [vmem:[%s184 + $0x81] sm:$0xff]
      %v495 = vld [vmem:[%s184 + $0x91] sm:$0xff]
      %v496 = vld [vmem:[%s184 + $0x99] sm:$0xff]
      %v497 = vld [vmem:[%s184 + $0xa9] sm:$0xff]
      %v498 = vld [vmem:[%s184 + $0xb1] sm:$0xff]
      %v499 = vld [vmem:[%s184 + $0xc1] sm:$0xff]
      %v500 = vld [vmem:[%s184 + $0xc9] sm:$0xff]
      %v501 = vld [vmem:[%s184 + $0xd9] sm:$0xff]
      %v502 = vld [vmem:[%s184 + $0xe1] sm:$0xff]
      %v503 = vld [vmem:[%s184 + $0xf1] sm:$0xff]
      %v504 = vld [vmem:[%s184 + $0xf9] sm:$0xff]
      %v505 = vld [vmem:[%s184 + $0x109] sm:$0xff]
      %v506 = vld [vmem:[%s184 + $0x111] sm:$0xff]
      %v507 = vld [vmem:[%s184 + $0x121] sm:$0xff]
      %v508 = vld [vmem:[%s184 + $0x129] sm:$0xff]
      %v509 = vld [vmem:[%s184 + $0x139] sm:$0xff]
      %v510 = vld [vmem:[%s184 + $0x141] sm:$0xff]
      %v511 = vld [vmem:[%s184 + $0x151] sm:$0xff]
      %v512 = vld [vmem:[%s184 + $0x159] sm:$0xff]
      %v513 = vld [vmem:[%s184 + $0x169] sm:$0xff]
      %v514 = vld [vmem:[%s184 + $0x171] sm:$0xff]
      %v516 = vsel %vm241, %v483, 0
      %v519 = vsel %vm241, %v484, 0
      %v522 = vsel %vm241, %v485, 0
      %v525 = vsel %vm241, %v486, 0
      %v528 = vsel %vm241, %v487, 0
      %v531 = vsel %vm241, %v488, 0
      %v534 = vsel %vm241, %v489, 0
      %v537 = vsel %vm241, %v490, 0
      %v540 = vsel %vm241, %v491, 0
      %v543 = vsel %vm241, %v492, 0
      %v546 = vsel %vm241, %v493, 0
      %v549 = vsel %vm241, %v494, 0
      %v552 = vsel %vm241, %v495, 0
      %v555 = vsel %vm241, %v496, 0
      %v558 = vsel %vm241, %v497, 0
      %v561 = vsel %vm241, %v498, 0
      %v564 = vsel %vm241, %v499, 0
      %v567 = vsel %vm241, %v500, 0
      %v570 = vsel %vm241, %v501, 0
      %v573 = vsel %vm241, %v502, 0
      %v576 = vsel %vm241, %v503, 0
      %v579 = vsel %vm241, %v504, 0
      %v582 = vsel %vm241, %v505, 0
      %v585 = vsel %vm241, %v506, 0
      %v588 = vsel %vm241, %v507, 0
      %v591 = vsel %vm241, %v508, 0
      %v594 = vsel %vm241, %v509, 0
      %v597 = vsel %vm241, %v510, 0
      %v600 = vsel %vm241, %v511, 0
      %v603 = vsel %vm241, %v512, 0
      %v606 = vsel %vm241, %v513, 0
      %v609 = vsel %vm241, %v514, 0
      %611 = vmatpush.msra.mxu0 0.0
      %612 = vmatpush.msra.mxu0 0.0
      %613 = vmatpush.msra.mxu0 0.0
      %614 = vmatpush.msra.mxu0 0.0
      %615 = vmatpush.msra.mxu0 0.0
      %616 = vmatpush.msra.mxu0 0.0
      %617 = vmatpush.msra.mxu0 0.0
      %618 = vmatpush.msra.mxu0 0.0
      %619 = vmatpush.msra.mxu0 0.0
      %620 = vmatpush.msra.mxu0 0.0
      %621 = vmatpush.msra.mxu0 0.0
      %622 = vmatpush.msra.mxu0 0.0
      %623 = vmatpush.msra.mxu0 0.0
      %624 = vmatpush.msra.mxu0 0.0
      %625 = vmatpush.msra.mxu0 0.0
      %626 = vmatpush.msra.mxu0 %v198
      %627 = vmatmul.f32.gmra.mxu0 %v516
      %v628 = vpop.f32.mrf.mxu0
      %v629 = vadd.f32 0.0, %v628
      %630 = vmatmul.f32.gmra.mxu0 %v519
      %v631 = vpop.f32.mrf.mxu0
      %v632 = vadd.f32 0.0, %v631
      %633 = vmatmul.f32.gmra.mxu0 %v522
      %v634 = vpop.f32.mrf.mxu0
      %v635 = vadd.f32 0.0, %v634
      %636 = vmatmul.f32.gmra.mxu0 %v525
      %v637 = vpop.f32.mrf.mxu0
      %v638 = vadd.f32 0.0, %v637
      %639 = vmatmul.f32.gmra.mxu0 %v528
      %v640 = vpop.f32.mrf.mxu0
      %v641 = vadd.f32 0.0, %v640
      %642 = vmatmul.f32.gmra.mxu0 %v531
      %v643 = vpop.f32.mrf.mxu0
      %v644 = vadd.f32 0.0, %v643
      %645 = vmatmul.f32.gmra.mxu0 %v534
      %v646 = vpop.f32.mrf.mxu0
      %v647 = vadd.f32 0.0, %v646
      %648 = vmatmul.f32.gmra.mxu0 %v537
      %v649 = vpop.f32.mrf.mxu0
      %v650 = vadd.f32 0.0, %v649
      %651 = vmatmul.f32.gmra.mxu0 %v540
      %v652 = vpop.f32.mrf.mxu0
      %v653 = vadd.f32 0.0, %v652
      %654 = vmatmul.f32.gmra.mxu0 %v543
      %v655 = vpop.f32.mrf.mxu0
      %v656 = vadd.f32 0.0, %v655
      %657 = vmatmul.f32.gmra.mxu0 %v546
      %v658 = vpop.f32.mrf.mxu0
      %v659 = vadd.f32 0.0, %v658
      %660 = vmatmul.f32.gmra.mxu0 %v549
      %v661 = vpop.f32.mrf.mxu0
      %v662 = vadd.f32 0.0, %v661
      %663 = vmatmul.f32.gmra.mxu0 %v552
      %v664 = vpop.f32.mrf.mxu0
      %v665 = vadd.f32 0.0, %v664
      %666 = vmatmul.f32.gmra.mxu0 %v555
      %v667 = vpop.f32.mrf.mxu0
      %v668 = vadd.f32 0.0, %v667
      %669 = vmatmul.f32.gmra.mxu0 %v558
      %v670 = vpop.f32.mrf.mxu0
      %v671 = vadd.f32 0.0, %v670
      %672 = vmatmul.f32.gmra.mxu0 %v561
      %v673 = vpop.f32.mrf.mxu0
      %v674 = vadd.f32 0.0, %v673
      %675 = vmatmul.f32.gmra.mxu0 %v564
      %v676 = vpop.f32.mrf.mxu0
      %v677 = vadd.f32 0.0, %v676
      %678 = vmatmul.f32.gmra.mxu0 %v567
      %v679 = vpop.f32.mrf.mxu0
      %v680 = vadd.f32 0.0, %v679
      %681 = vmatmul.f32.gmra.mxu0 %v570
      %v682 = vpop.f32.mrf.mxu0
      %v683 = vadd.f32 0.0, %v682
      %684 = vmatmul.f32.gmra.mxu0 %v573
      %v685 = vpop.f32.mrf.mxu0
      %v686 = vadd.f32 0.0, %v685
      %687 = vmatmul.f32.gmra.mxu0 %v576
      %v688 = vpop.f32.mrf.mxu0
      %v689 = vadd.f32 0.0, %v688
      %690 = vmatmul.f32.gmra.mxu0 %v579
      %v691 = vpop.f32.mrf.mxu0
      %v692 = vadd.f32 0.0, %v691
      %693 = vmatmul.f32.gmra.mxu0 %v582
      %v694 = vpop.f32.mrf.mxu0
      %v695 = vadd.f32 0.0, %v694
      %696 = vmatmul.f32.gmra.mxu0 %v585
      %v697 = vpop.f32.mrf.mxu0
      %v698 = vadd.f32 0.0, %v697
      %699 = vmatmul.f32.gmra.mxu0 %v588
      %v700 = vpop.f32.mrf.mxu0
      %v701 = vadd.f32 0.0, %v700
      %702 = vmatmul.f32.gmra.mxu0 %v591
      %v703 = vpop.f32.mrf.mxu0
      %v704 = vadd.f32 0.0, %v703
      %705 = vmatmul.f32.gmra.mxu0 %v594
      %v706 = vpop.f32.mrf.mxu0
      %v707 = vadd.f32 0.0, %v706
      %708 = vmatmul.f32.gmra.mxu0 %v597
      %v709 = vpop.f32.mrf.mxu0
      %v710 = vadd.f32 0.0, %v709
      %711 = vmatmul.f32.gmra.mxu0 %v600
      %v712 = vpop.f32.mrf.mxu0
      %v713 = vadd.f32 0.0, %v712
      %714 = vmatmul.f32.gmra.mxu0 %v603
      %v715 = vpop.f32.mrf.mxu0
      %v716 = vadd.f32 0.0, %v715
      %717 = vmatmul.f32.gmra.mxu0 %v606
      %v718 = vpop.f32.mrf.mxu0
      %v719 = vadd.f32 0.0, %v718
      %720 = vmatmul.f32.gmra.mxu0 %v609
      %v721 = vpop.f32.mrf.mxu0
      %v722 = vadd.f32 0.0, %v721
      %723 = vdwg.mxu0
      %v724 = vadd.f32 %v451, %v629
      %v725 = vadd.f32 %v452, %v632
      %v726 = vadd.f32 %v453, %v635
      %v727 = vadd.f32 %v454, %v638
      %v728 = vadd.f32 %v455, %v641
      %v729 = vadd.f32 %v456, %v644
      %v730 = vadd.f32 %v457, %v647
      %v731 = vadd.f32 %v458, %v650
      %v732 = vadd.f32 %v459, %v653
      %v733 = vadd.f32 %v460, %v656
      %v734 = vadd.f32 %v461, %v659
      %v735 = vadd.f32 %v462, %v662
      %v736 = vadd.f32 %v463, %v665
      %v737 = vadd.f32 %v464, %v668
      %v738 = vadd.f32 %v465, %v671
      %v739 = vadd.f32 %v466, %v674
      %v740 = vadd.f32 %v467, %v677
      %v741 = vadd.f32 %v468, %v680
      %v742 = vadd.f32 %v469, %v683
      %v743 = vadd.f32 %v470, %v686
      %v744 = vadd.f32 %v471, %v689
      %v745 = vadd.f32 %v472, %v692
      %v746 = vadd.f32 %v473, %v695
      %v747 = vadd.f32 %v474, %v698
      %v748 = vadd.f32 %v475, %v701
      %v749 = vadd.f32 %v476, %v704
      %v750 = vadd.f32 %v477, %v707
      %v751 = vadd.f32 %v478, %v710
      %v752 = vadd.f32 %v479, %v713
      %v753 = vadd.f32 %v480, %v716
      %v754 = vadd.f32 %v481, %v719
      %v755 = vadd.f32 %v482, %v722
      %v756 = vld [vmem:[%s184 + $0x2] sm:$0xff]
      %v757 = vld [vmem:[%s184 + $0xa] sm:$0xff]
      %v758 = vld [vmem:[%s184 + $0x1a] sm:$0xff]
      %v759 = vld [vmem:[%s184 + $0x22] sm:$0xff]
      %v760 = vld [vmem:[%s184 + $0x32] sm:$0xff]
      %v761 = vld [vmem:[%s184 + $0x3a] sm:$0xff]
      %v762 = vld [vmem:[%s184 + $0x4a] sm:$0xff]
      %v763 = vld [vmem:[%s184 + $0x52] sm:$0xff]
      %v764 = vld [vmem:[%s184 + $0x62] sm:$0xff]
      %v765 = vld [vmem:[%s184 + $0x6a] sm:$0xff]
      %v766 = vld [vmem:[%s184 + $0x7a] sm:$0xff]
      %v767 = vld [vmem:[%s184 + $0x82] sm:$0xff]
      %v768 = vld [vmem:[%s184 + $0x92] sm:$0xff]
      %v769 = vld [vmem:[%s184 + $0x9a] sm:$0xff]
      %v770 = vld [vmem:[%s184 + $0xaa] sm:$0xff]
      %v771 = vld [vmem:[%s184 + $0xb2] sm:$0xff]
      %v772 = vld [vmem:[%s184 + $0xc2] sm:$0xff]
      %v773 = vld [vmem:[%s184 + $0xca] sm:$0xff]
      %v774 = vld [vmem:[%s184 + $0xda] sm:$0xff]
      %v775 = vld [vmem:[%s184 + $0xe2] sm:$0xff]
      %v776 = vld [vmem:[%s184 + $0xf2] sm:$0xff]
      %v777 = vld [vmem:[%s184 + $0xfa] sm:$0xff]
      %v778 = vld [vmem:[%s184 + $0x10a] sm:$0xff]
      %v779 = vld [vmem:[%s184 + $0x112] sm:$0xff]
      %v780 = vld [vmem:[%s184 + $0x122] sm:$0xff]
      %v781 = vld [vmem:[%s184 + $0x12a] sm:$0xff]
      %v782 = vld [vmem:[%s184 + $0x13a] sm:$0xff]
      %v783 = vld [vmem:[%s184 + $0x142] sm:$0xff]
      %v784 = vld [vmem:[%s184 + $0x152] sm:$0xff]
      %v785 = vld [vmem:[%s184 + $0x15a] sm:$0xff]
      %v786 = vld [vmem:[%s184 + $0x16a] sm:$0xff]
      %v787 = vld [vmem:[%s184 + $0x172] sm:$0xff]
      %v789 = vsel %vm241, %v756, 0
      %v792 = vsel %vm241, %v757, 0
      %v795 = vsel %vm241, %v758, 0
      %v798 = vsel %vm241, %v759, 0
      %v801 = vsel %vm241, %v760, 0
      %v804 = vsel %vm241, %v761, 0
      %v807 = vsel %vm241, %v762, 0
      %v810 = vsel %vm241, %v763, 0
      %v813 = vsel %vm241, %v764, 0
      %v816 = vsel %vm241, %v765, 0
      %v819 = vsel %vm241, %v766, 0
      %v822 = vsel %vm241, %v767, 0
      %v825 = vsel %vm241, %v768, 0
      %v828 = vsel %vm241, %v769, 0
      %v831 = vsel %vm241, %v770, 0
      %v834 = vsel %vm241, %v771, 0
      %v837 = vsel %vm241, %v772, 0
      %v840 = vsel %vm241, %v773, 0
      %v843 = vsel %vm241, %v774, 0
      %v846 = vsel %vm241, %v775, 0
      %v849 = vsel %vm241, %v776, 0
      %v852 = vsel %vm241, %v777, 0
      %v855 = vsel %vm241, %v778, 0
      %v858 = vsel %vm241, %v779, 0
      %v861 = vsel %vm241, %v780, 0
      %v864 = vsel %vm241, %v781, 0
      %v867 = vsel %vm241, %v782, 0
      %v870 = vsel %vm241, %v783, 0
      %v873 = vsel %vm241, %v784, 0
      %v876 = vsel %vm241, %v785, 0
      %v879 = vsel %vm241, %v786, 0
      %v882 = vsel %vm241, %v787, 0
      %884 = vmatpush.msra.mxu0 0.0
      %885 = vmatpush.msra.mxu0 0.0
      %886 = vmatpush.msra.mxu0 0.0
      %887 = vmatpush.msra.mxu0 0.0
      %888 = vmatpush.msra.mxu0 0.0
      %889 = vmatpush.msra.mxu0 0.0
      %890 = vmatpush.msra.mxu0 0.0
      %891 = vmatpush.msra.mxu0 0.0
      %892 = vmatpush.msra.mxu0 0.0
      %893 = vmatpush.msra.mxu0 0.0
      %894 = vmatpush.msra.mxu0 0.0
      %895 = vmatpush.msra.mxu0 0.0
      %896 = vmatpush.msra.mxu0 0.0
      %897 = vmatpush.msra.mxu0 0.0
      %898 = vmatpush.msra.mxu0 0.0
      %899 = vmatpush.msra.mxu0 %v199
      %900 = vmatmul.f32.gmra.mxu0 %v789
      %v901 = vpop.f32.mrf.mxu0
      %v902 = vadd.f32 0.0, %v901
      %903 = vmatmul.f32.gmra.mxu0 %v792
      %v904 = vpop.f32.mrf.mxu0
      %v905 = vadd.f32 0.0, %v904
      %906 = vmatmul.f32.gmra.mxu0 %v795
      %v907 = vpop.f32.mrf.mxu0
      %v908 = vadd.f32 0.0, %v907
      %909 = vmatmul.f32.gmra.mxu0 %v798
      %v910 = vpop.f32.mrf.mxu0
      %v911 = vadd.f32 0.0, %v910
      %912 = vmatmul.f32.gmra.mxu0 %v801
      %v913 = vpop.f32.mrf.mxu0
      %v914 = vadd.f32 0.0, %v913
      %915 = vmatmul.f32.gmra.mxu0 %v804
      %v916 = vpop.f32.mrf.mxu0
      %v917 = vadd.f32 0.0, %v916
      %918 = vmatmul.f32.gmra.mxu0 %v807
      %v919 = vpop.f32.mrf.mxu0
      %v920 = vadd.f32 0.0, %v919
      %921 = vmatmul.f32.gmra.mxu0 %v810
      %v922 = vpop.f32.mrf.mxu0
      %v923 = vadd.f32 0.0, %v922
      %924 = vmatmul.f32.gmra.mxu0 %v813
      %v925 = vpop.f32.mrf.mxu0
      %v926 = vadd.f32 0.0, %v925
      %927 = vmatmul.f32.gmra.mxu0 %v816
      %v928 = vpop.f32.mrf.mxu0
      %v929 = vadd.f32 0.0, %v928
      %930 = vmatmul.f32.gmra.mxu0 %v819
      %v931 = vpop.f32.mrf.mxu0
      %v932 = vadd.f32 0.0, %v931
      %933 = vmatmul.f32.gmra.mxu0 %v822
      %v934 = vpop.f32.mrf.mxu0
      %v935 = vadd.f32 0.0, %v934
      %936 = vmatmul.f32.gmra.mxu0 %v825
      %v937 = vpop.f32.mrf.mxu0
      %v938 = vadd.f32 0.0, %v937
      %939 = vmatmul.f32.gmra.mxu0 %v828
      %v940 = vpop.f32.mrf.mxu0
      %v941 = vadd.f32 0.0, %v940
      %942 = vmatmul.f32.gmra.mxu0 %v831
      %v943 = vpop.f32.mrf.mxu0
      %v944 = vadd.f32 0.0, %v943
      %945 = vmatmul.f32.gmra.mxu0 %v834
      %v946 = vpop.f32.mrf.mxu0
      %v947 = vadd.f32 0.0, %v946
      %948 = vmatmul.f32.gmra.mxu0 %v837
      %v949 = vpop.f32.mrf.mxu0
      %v950 = vadd.f32 0.0, %v949
      %951 = vmatmul.f32.gmra.mxu0 %v840
      %v952 = vpop.f32.mrf.mxu0
      %v953 = vadd.f32 0.0, %v952
      %954 = vmatmul.f32.gmra.mxu0 %v843
      %v955 = vpop.f32.mrf.mxu0
      %v956 = vadd.f32 0.0, %v955
      %957 = vmatmul.f32.gmra.mxu0 %v846
      %v958 = vpop.f32.mrf.mxu0
      %v959 = vadd.f32 0.0, %v958
      %960 = vmatmul.f32.gmra.mxu0 %v849
      %v961 = vpop.f32.mrf.mxu0
      %v962 = vadd.f32 0.0, %v961
      %963 = vmatmul.f32.gmra.mxu0 %v852
      %v964 = vpop.f32.mrf.mxu0
      %v965 = vadd.f32 0.0, %v964
      %966 = vmatmul.f32.gmra.mxu0 %v855
      %v967 = vpop.f32.mrf.mxu0
      %v968 = vadd.f32 0.0, %v967
      %969 = vmatmul.f32.gmra.mxu0 %v858
      %v970 = vpop.f32.mrf.mxu0
      %v971 = vadd.f32 0.0, %v970
      %972 = vmatmul.f32.gmra.mxu0 %v861
      %v973 = vpop.f32.mrf.mxu0
      %v974 = vadd.f32 0.0, %v973
      %975 = vmatmul.f32.gmra.mxu0 %v864
      %v976 = vpop.f32.mrf.mxu0
      %v977 = vadd.f32 0.0, %v976
      %978 = vmatmul.f32.gmra.mxu0 %v867
      %v979 = vpop.f32.mrf.mxu0
      %v980 = vadd.f32 0.0, %v979
      %981 = vmatmul.f32.gmra.mxu0 %v870
      %v982 = vpop.f32.mrf.mxu0
      %v983 = vadd.f32 0.0, %v982
      %984 = vmatmul.f32.gmra.mxu0 %v873
      %v985 = vpop.f32.mrf.mxu0
      %v986 = vadd.f32 0.0, %v985
      %987 = vmatmul.f32.gmra.mxu0 %v876
      %v988 = vpop.f32.mrf.mxu0
      %v989 = vadd.f32 0.0, %v988
      %990 = vmatmul.f32.gmra.mxu0 %v879
      %v991 = vpop.f32.mrf.mxu0
      %v992 = vadd.f32 0.0, %v991
      %993 = vmatmul.f32.gmra.mxu0 %v882
      %v994 = vpop.f32.mrf.mxu0
      %v995 = vadd.f32 0.0, %v994
      %996 = vdwg.mxu0
      %v997 = vadd.f32 %v724, %v902
      %v998 = vadd.f32 %v725, %v905
      %v999 = vadd.f32 %v726, %v908
      %v1000 = vadd.f32 %v727, %v911
      %v1001 = vadd.f32 %v728, %v914
      %v1002 = vadd.f32 %v729, %v917
      %v1003 = vadd.f32 %v730, %v920
      %v1004 = vadd.f32 %v731, %v923
      %v1005 = vadd.f32 %v732, %v926
      %v1006 = vadd.f32 %v733, %v929
      %v1007 = vadd.f32 %v734, %v932
      %v1008 = vadd.f32 %v735, %v935
      %v1009 = vadd.f32 %v736, %v938
      %v1010 = vadd.f32 %v737, %v941
      %v1011 = vadd.f32 %v738, %v944
      %v1012 = vadd.f32 %v739, %v947
      %v1013 = vadd.f32 %v740, %v950
      %v1014 = vadd.f32 %v741, %v953
      %v1015 = vadd.f32 %v742, %v956
      %v1016 = vadd.f32 %v743, %v959
      %v1017 = vadd.f32 %v744, %v962
      %v1018 = vadd.f32 %v745, %v965
      %v1019 = vadd.f32 %v746, %v968
      %v1020 = vadd.f32 %v747, %v971
      %v1021 = vadd.f32 %v748, %v974
      %v1022 = vadd.f32 %v749, %v977
      %v1023 = vadd.f32 %v750, %v980
      %v1024 = vadd.f32 %v751, %v983
      %v1025 = vadd.f32 %v752, %v986
      %v1026 = vadd.f32 %v753, %v989
      %v1027 = vadd.f32 %v754, %v992
      %v1028 = vadd.f32 %v755, %v995
      %s1029 = scalar_lea.vmem %s184, 24
      %v1030 = vld [vmem:[%s1029] sm:$0xff]
      %v1031 = vld [vmem:[%s1029 + $0x8] sm:$0xff]
      %v1032 = vld [vmem:[%s1029 + $0x18] sm:$0xff]
      %v1033 = vld [vmem:[%s1029 + $0x20] sm:$0xff]
      %v1034 = vld [vmem:[%s1029 + $0x30] sm:$0xff]
      %v1035 = vld [vmem:[%s1029 + $0x38] sm:$0xff]
      %v1036 = vld [vmem:[%s1029 + $0x48] sm:$0xff]
      %v1037 = vld [vmem:[%s1029 + $0x50] sm:$0xff]
      %v1038 = vld [vmem:[%s1029 + $0x60] sm:$0xff]
      %v1039 = vld [vmem:[%s1029 + $0x68] sm:$0xff]
      %v1040 = vld [vmem:[%s1029 + $0x78] sm:$0xff]
      %v1041 = vld [vmem:[%s1029 + $0x80] sm:$0xff]
      %v1042 = vld [vmem:[%s1029 + $0x90] sm:$0xff]
      %v1043 = vld [vmem:[%s1029 + $0x98] sm:$0xff]
      %v1044 = vld [vmem:[%s1029 + $0xa8] sm:$0xff]
      %v1045 = vld [vmem:[%s1029 + $0xb0] sm:$0xff]
      %v1046 = vld [vmem:[%s1029 + $0xc0] sm:$0xff]
      %v1047 = vld [vmem:[%s1029 + $0xc8] sm:$0xff]
      %v1048 = vld [vmem:[%s1029 + $0xd8] sm:$0xff]
      %v1049 = vld [vmem:[%s1029 + $0xe0] sm:$0xff]
      %v1050 = vld [vmem:[%s1029 + $0xf0] sm:$0xff]
      %v1051 = vld [vmem:[%s1029 + $0xf8] sm:$0xff]
      %v1052 = vld [vmem:[%s1029 + $0x108] sm:$0xff]
      %v1053 = vld [vmem:[%s1029 + $0x110] sm:$0xff]
      %v1054 = vld [vmem:[%s1029 + $0x120] sm:$0xff]
      %v1055 = vld [vmem:[%s1029 + $0x128] sm:$0xff]
      %v1056 = vld [vmem:[%s1029 + $0x138] sm:$0xff]
      %v1057 = vld [vmem:[%s1029 + $0x140] sm:$0xff]
      %v1058 = vld [vmem:[%s1029 + $0x150] sm:$0xff]
      %v1059 = vld [vmem:[%s1029 + $0x158] sm:$0xff]
      %v1060 = vld [vmem:[%s1029 + $0x168] sm:$0xff]
      %v1061 = vld [vmem:[%s1029 + $0x170] sm:$0xff]
      %v1063 = vsel %vm241, %v1030, 0
      %v1066 = vsel %vm241, %v1031, 0
      %v1069 = vsel %vm241, %v1032, 0
      %v1072 = vsel %vm241, %v1033, 0
      %v1075 = vsel %vm241, %v1034, 0
      %v1078 = vsel %vm241, %v1035, 0
      %v1081 = vsel %vm241, %v1036, 0
      %v1084 = vsel %vm241, %v1037, 0
      %v1087 = vsel %vm241, %v1038, 0
      %v1090 = vsel %vm241, %v1039, 0
      %v1093 = vsel %vm241, %v1040, 0
      %v1096 = vsel %vm241, %v1041, 0
      %v1099 = vsel %vm241, %v1042, 0
      %v1102 = vsel %vm241, %v1043, 0
      %v1105 = vsel %vm241, %v1044, 0
      %v1108 = vsel %vm241, %v1045, 0
      %v1111 = vsel %vm241, %v1046, 0
      %v1114 = vsel %vm241, %v1047, 0
      %v1117 = vsel %vm241, %v1048, 0
      %v1120 = vsel %vm241, %v1049, 0
      %v1123 = vsel %vm241, %v1050, 0
      %v1126 = vsel %vm241, %v1051, 0
      %v1129 = vsel %vm241, %v1052, 0
      %v1132 = vsel %vm241, %v1053, 0
      %v1135 = vsel %vm241, %v1054, 0
      %v1138 = vsel %vm241, %v1055, 0
      %v1141 = vsel %vm241, %v1056, 0
      %v1144 = vsel %vm241, %v1057, 0
      %v1147 = vsel %vm241, %v1058, 0
      %v1150 = vsel %vm241, %v1059, 0
      %v1153 = vsel %vm241, %v1060, 0
      %v1156 = vsel %vm241, %v1061, 0
      %1158 = vmatpush.msra.mxu0 0.0
      %1159 = vmatpush.msra.mxu0 0.0
      %1160 = vmatpush.msra.mxu0 0.0
      %1161 = vmatpush.msra.mxu0 0.0
      %1162 = vmatpush.msra.mxu0 0.0
      %1163 = vmatpush.msra.mxu0 0.0
      %1164 = vmatpush.msra.mxu0 0.0
      %1165 = vmatpush.msra.mxu0 0.0
      %1166 = vmatpush.msra.mxu0 0.0
      %1167 = vmatpush.msra.mxu0 0.0
      %1168 = vmatpush.msra.mxu0 0.0
      %1169 = vmatpush.msra.mxu0 0.0
      %1170 = vmatpush.msra.mxu0 0.0
      %1171 = vmatpush.msra.mxu0 0.0
      %1172 = vmatpush.msra.mxu0 0.0
      %1173 = vmatpush.msra.mxu0 %v200
      %1174 = vmatmul.f32.gmra.mxu0 %v1063
      %v1175 = vpop.f32.mrf.mxu0
      %v1176 = vadd.f32 0.0, %v1175
      %1177 = vmatmul.f32.gmra.mxu0 %v1066
      %v1178 = vpop.f32.mrf.mxu0
      %v1179 = vadd.f32 0.0, %v1178
      %1180 = vmatmul.f32.gmra.mxu0 %v1069
      %v1181 = vpop.f32.mrf.mxu0
      %v1182 = vadd.f32 0.0, %v1181
      %1183 = vmatmul.f32.gmra.mxu0 %v1072
      %v1184 = vpop.f32.mrf.mxu0
      %v1185 = vadd.f32 0.0, %v1184
      %1186 = vmatmul.f32.gmra.mxu0 %v1075
      %v1187 = vpop.f32.mrf.mxu0
      %v1188 = vadd.f32 0.0, %v1187
      %1189 = vmatmul.f32.gmra.mxu0 %v1078
      %v1190 = vpop.f32.mrf.mxu0
      %v1191 = vadd.f32 0.0, %v1190
      %1192 = vmatmul.f32.gmra.mxu0 %v1081
      %v1193 = vpop.f32.mrf.mxu0
      %v1194 = vadd.f32 0.0, %v1193
      %1195 = vmatmul.f32.gmra.mxu0 %v1084
      %v1196 = vpop.f32.mrf.mxu0
      %v1197 = vadd.f32 0.0, %v1196
      %1198 = vmatmul.f32.gmra.mxu0 %v1087
      %v1199 = vpop.f32.mrf.mxu0
      %v1200 = vadd.f32 0.0, %v1199
      %1201 = vmatmul.f32.gmra.mxu0 %v1090
      %v1202 = vpop.f32.mrf.mxu0
      %v1203 = vadd.f32 0.0, %v1202
      %1204 = vmatmul.f32.gmra.mxu0 %v1093
      %v1205 = vpop.f32.mrf.mxu0
      %v1206 = vadd.f32 0.0, %v1205
      %1207 = vmatmul.f32.gmra.mxu0 %v1096
      %v1208 = vpop.f32.mrf.mxu0
      %v1209 = vadd.f32 0.0, %v1208
      %1210 = vmatmul.f32.gmra.mxu0 %v1099
      %v1211 = vpop.f32.mrf.mxu0
      %v1212 = vadd.f32 0.0, %v1211
      %1213 = vmatmul.f32.gmra.mxu0 %v1102
      %v1214 = vpop.f32.mrf.mxu0
      %v1215 = vadd.f32 0.0, %v1214
      %1216 = vmatmul.f32.gmra.mxu0 %v1105
      %v1217 = vpop.f32.mrf.mxu0
      %v1218 = vadd.f32 0.0, %v1217
      %1219 = vmatmul.f32.gmra.mxu0 %v1108
      %v1220 = vpop.f32.mrf.mxu0
      %v1221 = vadd.f32 0.0, %v1220
      %1222 = vmatmul.f32.gmra.mxu0 %v1111
      %v1223 = vpop.f32.mrf.mxu0
      %v1224 = vadd.f32 0.0, %v1223
      %1225 = vmatmul.f32.gmra.mxu0 %v1114
      %v1226 = vpop.f32.mrf.mxu0
      %v1227 = vadd.f32 0.0, %v1226
      %1228 = vmatmul.f32.gmra.mxu0 %v1117
      %v1229 = vpop.f32.mrf.mxu0
      %v1230 = vadd.f32 0.0, %v1229
      %1231 = vmatmul.f32.gmra.mxu0 %v1120
      %v1232 = vpop.f32.mrf.mxu0
      %v1233 = vadd.f32 0.0, %v1232
      %1234 = vmatmul.f32.gmra.mxu0 %v1123
      %v1235 = vpop.f32.mrf.mxu0
      %v1236 = vadd.f32 0.0, %v1235
      %1237 = vmatmul.f32.gmra.mxu0 %v1126
      %v1238 = vpop.f32.mrf.mxu0
      %v1239 = vadd.f32 0.0, %v1238
      %1240 = vmatmul.f32.gmra.mxu0 %v1129
      %v1241 = vpop.f32.mrf.mxu0
      %v1242 = vadd.f32 0.0, %v1241
      %1243 = vmatmul.f32.gmra.mxu0 %v1132
      %v1244 = vpop.f32.mrf.mxu0
      %v1245 = vadd.f32 0.0, %v1244
      %1246 = vmatmul.f32.gmra.mxu0 %v1135
      %v1247 = vpop.f32.mrf.mxu0
      %v1248 = vadd.f32 0.0, %v1247
      %1249 = vmatmul.f32.gmra.mxu0 %v1138
      %v1250 = vpop.f32.mrf.mxu0
      %v1251 = vadd.f32 0.0, %v1250
      %1252 = vmatmul.f32.gmra.mxu0 %v1141
      %v1253 = vpop.f32.mrf.mxu0
      %v1254 = vadd.f32 0.0, %v1253
      %1255 = vmatmul.f32.gmra.mxu0 %v1144
      %v1256 = vpop.f32.mrf.mxu0
      %v1257 = vadd.f32 0.0, %v1256
      %1258 = vmatmul.f32.gmra.mxu0 %v1147
      %v1259 = vpop.f32.mrf.mxu0
      %v1260 = vadd.f32 0.0, %v1259
      %1261 = vmatmul.f32.gmra.mxu0 %v1150
      %v1262 = vpop.f32.mrf.mxu0
      %v1263 = vadd.f32 0.0, %v1262
      %1264 = vmatmul.f32.gmra.mxu0 %v1153
      %v1265 = vpop.f32.mrf.mxu0
      %v1266 = vadd.f32 0.0, %v1265
      %1267 = vmatmul.f32.gmra.mxu0 %v1156
      %v1268 = vpop.f32.mrf.mxu0
      %v1269 = vadd.f32 0.0, %v1268
      %1270 = vdwg.mxu0
      %v1271 = vadd.f32 %v997, %v1176
      %v1272 = vadd.f32 %v998, %v1179
      %v1273 = vadd.f32 %v999, %v1182
      %v1274 = vadd.f32 %v1000, %v1185
      %v1275 = vadd.f32 %v1001, %v1188
      %v1276 = vadd.f32 %v1002, %v1191
      %v1277 = vadd.f32 %v1003, %v1194
      %v1278 = vadd.f32 %v1004, %v1197
      %v1279 = vadd.f32 %v1005, %v1200
      %v1280 = vadd.f32 %v1006, %v1203
      %v1281 = vadd.f32 %v1007, %v1206
      %v1282 = vadd.f32 %v1008, %v1209
      %v1283 = vadd.f32 %v1009, %v1212
      %v1284 = vadd.f32 %v1010, %v1215
      %v1285 = vadd.f32 %v1011, %v1218
      %v1286 = vadd.f32 %v1012, %v1221
      %v1287 = vadd.f32 %v1013, %v1224
      %v1288 = vadd.f32 %v1014, %v1227
      %v1289 = vadd.f32 %v1015, %v1230
      %v1290 = vadd.f32 %v1016, %v1233
      %v1291 = vadd.f32 %v1017, %v1236
      %v1292 = vadd.f32 %v1018, %v1239
      %v1293 = vadd.f32 %v1019, %v1242
      %v1294 = vadd.f32 %v1020, %v1245
      %v1295 = vadd.f32 %v1021, %v1248
      %v1296 = vadd.f32 %v1022, %v1251
      %v1297 = vadd.f32 %v1023, %v1254
      %v1298 = vadd.f32 %v1024, %v1257
      %v1299 = vadd.f32 %v1025, %v1260
      %v1300 = vadd.f32 %v1026, %v1263
      %v1301 = vadd.f32 %v1027, %v1266
      %v1302 = vadd.f32 %v1028, %v1269
      %v1303 = vld [vmem:[%s1029 + $0x1] sm:$0xff]
      %v1304 = vld [vmem:[%s1029 + $0x9] sm:$0xff]
      %v1305 = vld [vmem:[%s1029 + $0x19] sm:$0xff]
      %v1306 = vld [vmem:[%s1029 + $0x21] sm:$0xff]
      %v1307 = vld [vmem:[%s1029 + $0x31] sm:$0xff]
      %v1308 = vld [vmem:[%s1029 + $0x39] sm:$0xff]
      %v1309 = vld [vmem:[%s1029 + $0x49] sm:$0xff]
      %v1310 = vld [vmem:[%s1029 + $0x51] sm:$0xff]
      %v1311 = vld [vmem:[%s1029 + $0x61] sm:$0xff]
      %v1312 = vld [vmem:[%s1029 + $0x69] sm:$0xff]
      %v1313 = vld [vmem:[%s1029 + $0x79] sm:$0xff]
      %v1314 = vld [vmem:[%s1029 + $0x81] sm:$0xff]
      %v1315 = vld [vmem:[%s1029 + $0x91] sm:$0xff]
      %v1316 = vld [vmem:[%s1029 + $0x99] sm:$0xff]
      %v1317 = vld [vmem:[%s1029 + $0xa9] sm:$0xff]
      %v1318 = vld [vmem:[%s1029 + $0xb1] sm:$0xff]
      %v1319 = vld [vmem:[%s1029 + $0xc1] sm:$0xff]
      %v1320 = vld [vmem:[%s1029 + $0xc9] sm:$0xff]
      %v1321 = vld [vmem:[%s1029 + $0xd9] sm:$0xff]
      %v1322 = vld [vmem:[%s1029 + $0xe1] sm:$0xff]
      %v1323 = vld [vmem:[%s1029 + $0xf1] sm:$0xff]
      %v1324 = vld [vmem:[%s1029 + $0xf9] sm:$0xff]
      %v1325 = vld [vmem:[%s1029 + $0x109] sm:$0xff]
      %v1326 = vld [vmem:[%s1029 + $0x111] sm:$0xff]
      %v1327 = vld [vmem:[%s1029 + $0x121] sm:$0xff]
      %v1328 = vld [vmem:[%s1029 + $0x129] sm:$0xff]
      %v1329 = vld [vmem:[%s1029 + $0x139] sm:$0xff]
      %v1330 = vld [vmem:[%s1029 + $0x141] sm:$0xff]
      %v1331 = vld [vmem:[%s1029 + $0x151] sm:$0xff]
      %v1332 = vld [vmem:[%s1029 + $0x159] sm:$0xff]
      %v1333 = vld [vmem:[%s1029 + $0x169] sm:$0xff]
      %v1334 = vld [vmem:[%s1029 + $0x171] sm:$0xff]
      %v1336 = vsel %vm241, %v1303, 0
      %v1339 = vsel %vm241, %v1304, 0
      %v1342 = vsel %vm241, %v1305, 0
      %v1345 = vsel %vm241, %v1306, 0
      %v1348 = vsel %vm241, %v1307, 0
      %v1351 = vsel %vm241, %v1308, 0
      %v1354 = vsel %vm241, %v1309, 0
      %v1357 = vsel %vm241, %v1310, 0
      %v1360 = vsel %vm241, %v1311, 0
      %v1363 = vsel %vm241, %v1312, 0
      %v1366 = vsel %vm241, %v1313, 0
      %v1369 = vsel %vm241, %v1314, 0
      %v1372 = vsel %vm241, %v1315, 0
      %v1375 = vsel %vm241, %v1316, 0
      %v1378 = vsel %vm241, %v1317, 0
      %v1381 = vsel %vm241, %v1318, 0
      %v1384 = vsel %vm241, %v1319, 0
      %v1387 = vsel %vm241, %v1320, 0
      %v1390 = vsel %vm241, %v1321, 0
      %v1393 = vsel %vm241, %v1322, 0
      %v1396 = vsel %vm241, %v1323, 0
      %v1399 = vsel %vm241, %v1324, 0
      %v1402 = vsel %vm241, %v1325, 0
      %v1405 = vsel %vm241, %v1326, 0
      %v1408 = vsel %vm241, %v1327, 0
      %v1411 = vsel %vm241, %v1328, 0
      %v1414 = vsel %vm241, %v1329, 0
      %v1417 = vsel %vm241, %v1330, 0
      %v1420 = vsel %vm241, %v1331, 0
      %v1423 = vsel %vm241, %v1332, 0
      %v1426 = vsel %vm241, %v1333, 0
      %v1429 = vsel %vm241, %v1334, 0
      %1431 = vmatpush.msra.mxu0 0.0
      %1432 = vmatpush.msra.mxu0 0.0
      %1433 = vmatpush.msra.mxu0 0.0
      %1434 = vmatpush.msra.mxu0 0.0
      %1435 = vmatpush.msra.mxu0 0.0
      %1436 = vmatpush.msra.mxu0 0.0
      %1437 = vmatpush.msra.mxu0 0.0
      %1438 = vmatpush.msra.mxu0 0.0
      %1439 = vmatpush.msra.mxu0 0.0
      %1440 = vmatpush.msra.mxu0 0.0
      %1441 = vmatpush.msra.mxu0 0.0
      %1442 = vmatpush.msra.mxu0 0.0
      %1443 = vmatpush.msra.mxu0 0.0
      %1444 = vmatpush.msra.mxu0 0.0
      %1445 = vmatpush.msra.mxu0 0.0
      %1446 = vmatpush.msra.mxu0 %v201
      %1447 = vmatmul.f32.gmra.mxu0 %v1336
      %v1448 = vpop.f32.mrf.mxu0
      %v1449 = vadd.f32 0.0, %v1448
      %1450 = vmatmul.f32.gmra.mxu0 %v1339
      %v1451 = vpop.f32.mrf.mxu0
      %v1452 = vadd.f32 0.0, %v1451
      %1453 = vmatmul.f32.gmra.mxu0 %v1342
      %v1454 = vpop.f32.mrf.mxu0
      %v1455 = vadd.f32 0.0, %v1454
      %1456 = vmatmul.f32.gmra.mxu0 %v1345
      %v1457 = vpop.f32.mrf.mxu0
      %v1458 = vadd.f32 0.0, %v1457
      %1459 = vmatmul.f32.gmra.mxu0 %v1348
      %v1460 = vpop.f32.mrf.mxu0
      %v1461 = vadd.f32 0.0, %v1460
      %1462 = vmatmul.f32.gmra.mxu0 %v1351
      %v1463 = vpop.f32.mrf.mxu0
      %v1464 = vadd.f32 0.0, %v1463
      %1465 = vmatmul.f32.gmra.mxu0 %v1354
      %v1466 = vpop.f32.mrf.mxu0
      %v1467 = vadd.f32 0.0, %v1466
      %1468 = vmatmul.f32.gmra.mxu0 %v1357
      %v1469 = vpop.f32.mrf.mxu0
      %v1470 = vadd.f32 0.0, %v1469
      %1471 = vmatmul.f32.gmra.mxu0 %v1360
      %v1472 = vpop.f32.mrf.mxu0
      %v1473 = vadd.f32 0.0, %v1472
      %1474 = vmatmul.f32.gmra.mxu0 %v1363
      %v1475 = vpop.f32.mrf.mxu0
      %v1476 = vadd.f32 0.0, %v1475
      %1477 = vmatmul.f32.gmra.mxu0 %v1366
      %v1478 = vpop.f32.mrf.mxu0
      %v1479 = vadd.f32 0.0, %v1478
      %1480 = vmatmul.f32.gmra.mxu0 %v1369
      %v1481 = vpop.f32.mrf.mxu0
      %v1482 = vadd.f32 0.0, %v1481
      %1483 = vmatmul.f32.gmra.mxu0 %v1372
      %v1484 = vpop.f32.mrf.mxu0
      %v1485 = vadd.f32 0.0, %v1484
      %1486 = vmatmul.f32.gmra.mxu0 %v1375
      %v1487 = vpop.f32.mrf.mxu0
      %v1488 = vadd.f32 0.0, %v1487
      %1489 = vmatmul.f32.gmra.mxu0 %v1378
      %v1490 = vpop.f32.mrf.mxu0
      %v1491 = vadd.f32 0.0, %v1490
      %1492 = vmatmul.f32.gmra.mxu0 %v1381
      %v1493 = vpop.f32.mrf.mxu0
      %v1494 = vadd.f32 0.0, %v1493
      %1495 = vmatmul.f32.gmra.mxu0 %v1384
      %v1496 = vpop.f32.mrf.mxu0
      %v1497 = vadd.f32 0.0, %v1496
      %1498 = vmatmul.f32.gmra.mxu0 %v1387
      %v1499 = vpop.f32.mrf.mxu0
      %v1500 = vadd.f32 0.0, %v1499
      %1501 = vmatmul.f32.gmra.mxu0 %v1390
      %v1502 = vpop.f32.mrf.mxu0
      %v1503 = vadd.f32 0.0, %v1502
      %1504 = vmatmul.f32.gmra.mxu0 %v1393
      %v1505 = vpop.f32.mrf.mxu0
      %v1506 = vadd.f32 0.0, %v1505
      %1507 = vmatmul.f32.gmra.mxu0 %v1396
      %v1508 = vpop.f32.mrf.mxu0
      %v1509 = vadd.f32 0.0, %v1508
      %1510 = vmatmul.f32.gmra.mxu0 %v1399
      %v1511 = vpop.f32.mrf.mxu0
      %v1512 = vadd.f32 0.0, %v1511
      %1513 = vmatmul.f32.gmra.mxu0 %v1402
      %v1514 = vpop.f32.mrf.mxu0
      %v1515 = vadd.f32 0.0, %v1514
      %1516 = vmatmul.f32.gmra.mxu0 %v1405
      %v1517 = vpop.f32.mrf.mxu0
      %v1518 = vadd.f32 0.0, %v1517
      %1519 = vmatmul.f32.gmra.mxu0 %v1408
      %v1520 = vpop.f32.mrf.mxu0
      %v1521 = vadd.f32 0.0, %v1520
      %1522 = vmatmul.f32.gmra.mxu0 %v1411
      %v1523 = vpop.f32.mrf.mxu0
      %v1524 = vadd.f32 0.0, %v1523
      %1525 = vmatmul.f32.gmra.mxu0 %v1414
      %v1526 = vpop.f32.mrf.mxu0
      %v1527 = vadd.f32 0.0, %v1526
      %1528 = vmatmul.f32.gmra.mxu0 %v1417
      %v1529 = vpop.f32.mrf.mxu0
      %v1530 = vadd.f32 0.0, %v1529
      %1531 = vmatmul.f32.gmra.mxu0 %v1420
      %v1532 = vpop.f32.mrf.mxu0
      %v1533 = vadd.f32 0.0, %v1532
      %1534 = vmatmul.f32.gmra.mxu0 %v1423
      %v1535 = vpop.f32.mrf.mxu0
      %v1536 = vadd.f32 0.0, %v1535
      %1537 = vmatmul.f32.gmra.mxu0 %v1426
      %v1538 = vpop.f32.mrf.mxu0
      %v1539 = vadd.f32 0.0, %v1538
      %1540 = vmatmul.f32.gmra.mxu0 %v1429
      %v1541 = vpop.f32.mrf.mxu0
      %v1542 = vadd.f32 0.0, %v1541
      %1543 = vdwg.mxu0
      %v1544 = vadd.f32 %v1271, %v1449
      %v1545 = vadd.f32 %v1272, %v1452
      %v1546 = vadd.f32 %v1273, %v1455
      %v1547 = vadd.f32 %v1274, %v1458
      %v1548 = vadd.f32 %v1275, %v1461
      %v1549 = vadd.f32 %v1276, %v1464
      %v1550 = vadd.f32 %v1277, %v1467
      %v1551 = vadd.f32 %v1278, %v1470
      %v1552 = vadd.f32 %v1279, %v1473
      %v1553 = vadd.f32 %v1280, %v1476
      %v1554 = vadd.f32 %v1281, %v1479
      %v1555 = vadd.f32 %v1282, %v1482
      %v1556 = vadd.f32 %v1283, %v1485
      %v1557 = vadd.f32 %v1284, %v1488
      %v1558 = vadd.f32 %v1285, %v1491
      %v1559 = vadd.f32 %v1286, %v1494
      %v1560 = vadd.f32 %v1287, %v1497
      %v1561 = vadd.f32 %v1288, %v1500
      %v1562 = vadd.f32 %v1289, %v1503
      %v1563 = vadd.f32 %v1290, %v1506
      %v1564 = vadd.f32 %v1291, %v1509
      %v1565 = vadd.f32 %v1292, %v1512
      %v1566 = vadd.f32 %v1293, %v1515
      %v1567 = vadd.f32 %v1294, %v1518
      %v1568 = vadd.f32 %v1295, %v1521
      %v1569 = vadd.f32 %v1296, %v1524
      %v1570 = vadd.f32 %v1297, %v1527
      %v1571 = vadd.f32 %v1298, %v1530
      %v1572 = vadd.f32 %v1299, %v1533
      %v1573 = vadd.f32 %v1300, %v1536
      %v1574 = vadd.f32 %v1301, %v1539
      %v1575 = vadd.f32 %v1302, %v1542
      %v1576 = vld [vmem:[%s1029 + $0x2] sm:$0xff]
      %v1577 = vld [vmem:[%s1029 + $0xa] sm:$0xff]
      %v1578 = vld [vmem:[%s1029 + $0x1a] sm:$0xff]
      %v1579 = vld [vmem:[%s1029 + $0x22] sm:$0xff]
      %v1580 = vld [vmem:[%s1029 + $0x32] sm:$0xff]
      %v1581 = vld [vmem:[%s1029 + $0x3a] sm:$0xff]
      %v1582 = vld [vmem:[%s1029 + $0x4a] sm:$0xff]
      %v1583 = vld [vmem:[%s1029 + $0x52] sm:$0xff]
      %v1584 = vld [vmem:[%s1029 + $0x62] sm:$0xff]
      %v1585 = vld [vmem:[%s1029 + $0x6a] sm:$0xff]
      %v1586 = vld [vmem:[%s1029 + $0x7a] sm:$0xff]
      %v1587 = vld [vmem:[%s1029 + $0x82] sm:$0xff]
      %v1588 = vld [vmem:[%s1029 + $0x92] sm:$0xff]
      %v1589 = vld [vmem:[%s1029 + $0x9a] sm:$0xff]
      %v1590 = vld [vmem:[%s1029 + $0xaa] sm:$0xff]
      %v1591 = vld [vmem:[%s1029 + $0xb2] sm:$0xff]
      %v1592 = vld [vmem:[%s1029 + $0xc2] sm:$0xff]
      %v1593 = vld [vmem:[%s1029 + $0xca] sm:$0xff]
      %v1594 = vld [vmem:[%s1029 + $0xda] sm:$0xff]
      %v1595 = vld [vmem:[%s1029 + $0xe2] sm:$0xff]
      %v1596 = vld [vmem:[%s1029 + $0xf2] sm:$0xff]
      %v1597 = vld [vmem:[%s1029 + $0xfa] sm:$0xff]
      %v1598 = vld [vmem:[%s1029 + $0x10a] sm:$0xff]
      %v1599 = vld [vmem:[%s1029 + $0x112] sm:$0xff]
      %v1600 = vld [vmem:[%s1029 + $0x122] sm:$0xff]
      %v1601 = vld [vmem:[%s1029 + $0x12a] sm:$0xff]
      %v1602 = vld [vmem:[%s1029 + $0x13a] sm:$0xff]
      %v1603 = vld [vmem:[%s1029 + $0x142] sm:$0xff]
      %v1604 = vld [vmem:[%s1029 + $0x152] sm:$0xff]
      %v1605 = vld [vmem:[%s1029 + $0x15a] sm:$0xff]
      %v1606 = vld [vmem:[%s1029 + $0x16a] sm:$0xff]
      %v1607 = vld [vmem:[%s1029 + $0x172] sm:$0xff]
      %v1609 = vsel %vm241, %v1576, 0
      %v1612 = vsel %vm241, %v1577, 0
      %v1615 = vsel %vm241, %v1578, 0
      %v1618 = vsel %vm241, %v1579, 0
      %v1621 = vsel %vm241, %v1580, 0
      %v1624 = vsel %vm241, %v1581, 0
      %v1627 = vsel %vm241, %v1582, 0
      %v1630 = vsel %vm241, %v1583, 0
      %v1633 = vsel %vm241, %v1584, 0
      %v1636 = vsel %vm241, %v1585, 0
      %v1639 = vsel %vm241, %v1586, 0
      %v1642 = vsel %vm241, %v1587, 0
      %v1645 = vsel %vm241, %v1588, 0
      %v1648 = vsel %vm241, %v1589, 0
      %v1651 = vsel %vm241, %v1590, 0
      %v1654 = vsel %vm241, %v1591, 0
      %v1657 = vsel %vm241, %v1592, 0
      %v1660 = vsel %vm241, %v1593, 0
      %v1663 = vsel %vm241, %v1594, 0
      %v1666 = vsel %vm241, %v1595, 0
      %v1669 = vsel %vm241, %v1596, 0
      %v1672 = vsel %vm241, %v1597, 0
      %v1675 = vsel %vm241, %v1598, 0
      %v1678 = vsel %vm241, %v1599, 0
      %v1681 = vsel %vm241, %v1600, 0
      %v1684 = vsel %vm241, %v1601, 0
      %v1687 = vsel %vm241, %v1602, 0
      %v1690 = vsel %vm241, %v1603, 0
      %v1693 = vsel %vm241, %v1604, 0
      %v1696 = vsel %vm241, %v1605, 0
      %v1699 = vsel %vm241, %v1606, 0
      %v1702 = vsel %vm241, %v1607, 0
      %1704 = vmatpush.msra.mxu0 0.0
      %1705 = vmatpush.msra.mxu0 0.0
      %1706 = vmatpush.msra.mxu0 0.0
      %1707 = vmatpush.msra.mxu0 0.0
      %1708 = vmatpush.msra.mxu0 0.0
      %1709 = vmatpush.msra.mxu0 0.0
      %1710 = vmatpush.msra.mxu0 0.0
      %1711 = vmatpush.msra.mxu0 0.0
      %1712 = vmatpush.msra.mxu0 0.0
      %1713 = vmatpush.msra.mxu0 0.0
      %1714 = vmatpush.msra.mxu0 0.0
      %1715 = vmatpush.msra.mxu0 0.0
      %1716 = vmatpush.msra.mxu0 0.0
      %1717 = vmatpush.msra.mxu0 0.0
      %1718 = vmatpush.msra.mxu0 0.0
      %1719 = vmatpush.msra.mxu0 %v202
      %1720 = vmatmul.f32.gmra.mxu0 %v1609
      %v1721 = vpop.f32.mrf.mxu0
      %v1722 = vadd.f32 0.0, %v1721
      %1723 = vmatmul.f32.gmra.mxu0 %v1612
      %v1724 = vpop.f32.mrf.mxu0
      %v1725 = vadd.f32 0.0, %v1724
      %1726 = vmatmul.f32.gmra.mxu0 %v1615
      %v1727 = vpop.f32.mrf.mxu0
      %v1728 = vadd.f32 0.0, %v1727
      %1729 = vmatmul.f32.gmra.mxu0 %v1618
      %v1730 = vpop.f32.mrf.mxu0
      %v1731 = vadd.f32 0.0, %v1730
      %1732 = vmatmul.f32.gmra.mxu0 %v1621
      %v1733 = vpop.f32.mrf.mxu0
      %v1734 = vadd.f32 0.0, %v1733
      %1735 = vmatmul.f32.gmra.mxu0 %v1624
      %v1736 = vpop.f32.mrf.mxu0
      %v1737 = vadd.f32 0.0, %v1736
      %1738 = vmatmul.f32.gmra.mxu0 %v1627
      %v1739 = vpop.f32.mrf.mxu0
      %v1740 = vadd.f32 0.0, %v1739
      %1741 = vmatmul.f32.gmra.mxu0 %v1630
      %v1742 = vpop.f32.mrf.mxu0
      %v1743 = vadd.f32 0.0, %v1742
      %1744 = vmatmul.f32.gmra.mxu0 %v1633
      %v1745 = vpop.f32.mrf.mxu0
      %v1746 = vadd.f32 0.0, %v1745
      %1747 = vmatmul.f32.gmra.mxu0 %v1636
      %v1748 = vpop.f32.mrf.mxu0
      %v1749 = vadd.f32 0.0, %v1748
      %1750 = vmatmul.f32.gmra.mxu0 %v1639
      %v1751 = vpop.f32.mrf.mxu0
      %v1752 = vadd.f32 0.0, %v1751
      %1753 = vmatmul.f32.gmra.mxu0 %v1642
      %v1754 = vpop.f32.mrf.mxu0
      %v1755 = vadd.f32 0.0, %v1754
      %1756 = vmatmul.f32.gmra.mxu0 %v1645
      %v1757 = vpop.f32.mrf.mxu0
      %v1758 = vadd.f32 0.0, %v1757
      %1759 = vmatmul.f32.gmra.mxu0 %v1648
      %v1760 = vpop.f32.mrf.mxu0
      %v1761 = vadd.f32 0.0, %v1760
      %1762 = vmatmul.f32.gmra.mxu0 %v1651
      %v1763 = vpop.f32.mrf.mxu0
      %v1764 = vadd.f32 0.0, %v1763
      %1765 = vmatmul.f32.gmra.mxu0 %v1654
      %v1766 = vpop.f32.mrf.mxu0
      %v1767 = vadd.f32 0.0, %v1766
      %1768 = vmatmul.f32.gmra.mxu0 %v1657
      %v1769 = vpop.f32.mrf.mxu0
      %v1770 = vadd.f32 0.0, %v1769
      %1771 = vmatmul.f32.gmra.mxu0 %v1660
      %v1772 = vpop.f32.mrf.mxu0
      %v1773 = vadd.f32 0.0, %v1772
      %1774 = vmatmul.f32.gmra.mxu0 %v1663
      %v1775 = vpop.f32.mrf.mxu0
      %v1776 = vadd.f32 0.0, %v1775
      %1777 = vmatmul.f32.gmra.mxu0 %v1666
      %v1778 = vpop.f32.mrf.mxu0
      %v1779 = vadd.f32 0.0, %v1778
      %1780 = vmatmul.f32.gmra.mxu0 %v1669
      %v1781 = vpop.f32.mrf.mxu0
      %v1782 = vadd.f32 0.0, %v1781
      %1783 = vmatmul.f32.gmra.mxu0 %v1672
      %v1784 = vpop.f32.mrf.mxu0
      %v1785 = vadd.f32 0.0, %v1784
      %1786 = vmatmul.f32.gmra.mxu0 %v1675
      %v1787 = vpop.f32.mrf.mxu0
      %v1788 = vadd.f32 0.0, %v1787
      %1789 = vmatmul.f32.gmra.mxu0 %v1678
      %v1790 = vpop.f32.mrf.mxu0
      %v1791 = vadd.f32 0.0, %v1790
      %1792 = vmatmul.f32.gmra.mxu0 %v1681
      %v1793 = vpop.f32.mrf.mxu0
      %v1794 = vadd.f32 0.0, %v1793
      %1795 = vmatmul.f32.gmra.mxu0 %v1684
      %v1796 = vpop.f32.mrf.mxu0
      %v1797 = vadd.f32 0.0, %v1796
      %1798 = vmatmul.f32.gmra.mxu0 %v1687
      %v1799 = vpop.f32.mrf.mxu0
      %v1800 = vadd.f32 0.0, %v1799
      %1801 = vmatmul.f32.gmra.mxu0 %v1690
      %v1802 = vpop.f32.mrf.mxu0
      %v1803 = vadd.f32 0.0, %v1802
      %1804 = vmatmul.f32.gmra.mxu0 %v1693
      %v1805 = vpop.f32.mrf.mxu0
      %v1806 = vadd.f32 0.0, %v1805
      %1807 = vmatmul.f32.gmra.mxu0 %v1696
      %v1808 = vpop.f32.mrf.mxu0
      %v1809 = vadd.f32 0.0, %v1808
      %1810 = vmatmul.f32.gmra.mxu0 %v1699
      %v1811 = vpop.f32.mrf.mxu0
      %v1812 = vadd.f32 0.0, %v1811
      %1813 = vmatmul.f32.gmra.mxu0 %v1702
      %v1814 = vpop.f32.mrf.mxu0
      %v1815 = vadd.f32 0.0, %v1814
      %1816 = vdwg.mxu0
      %v1817 = vadd.f32 %v1544, %v1722
      %v1818 = vadd.f32 %v1545, %v1725
      %v1819 = vadd.f32 %v1546, %v1728
      %v1820 = vadd.f32 %v1547, %v1731
      %v1821 = vadd.f32 %v1548, %v1734
      %v1822 = vadd.f32 %v1549, %v1737
      %v1823 = vadd.f32 %v1550, %v1740
      %v1824 = vadd.f32 %v1551, %v1743
      %v1825 = vadd.f32 %v1552, %v1746
      %v1826 = vadd.f32 %v1553, %v1749
      %v1827 = vadd.f32 %v1554, %v1752
      %v1828 = vadd.f32 %v1555, %v1755
      %v1829 = vadd.f32 %v1556, %v1758
      %v1830 = vadd.f32 %v1557, %v1761
      %v1831 = vadd.f32 %v1558, %v1764
      %v1832 = vadd.f32 %v1559, %v1767
      %v1833 = vadd.f32 %v1560, %v1770
      %v1834 = vadd.f32 %v1561, %v1773
      %v1835 = vadd.f32 %v1562, %v1776
      %v1836 = vadd.f32 %v1563, %v1779
      %v1837 = vadd.f32 %v1564, %v1782
      %v1838 = vadd.f32 %v1565, %v1785
      %v1839 = vadd.f32 %v1566, %v1788
      %v1840 = vadd.f32 %v1567, %v1791
      %v1841 = vadd.f32 %v1568, %v1794
      %v1842 = vadd.f32 %v1569, %v1797
      %v1843 = vadd.f32 %v1570, %v1800
      %v1844 = vadd.f32 %v1571, %v1803
      %v1845 = vadd.f32 %v1572, %v1806
      %v1846 = vadd.f32 %v1573, %v1809
      %v1847 = vadd.f32 %v1574, %v1812
      %v1848 = vadd.f32 %v1575, %v1815
      %s1849 = scalar_lea.vmem %s184, 48
      %v1850 = vld [vmem:[%s1849] sm:$0xff]
      %v1851 = vld [vmem:[%s1849 + $0x8] sm:$0xff]
      %v1852 = vld [vmem:[%s1849 + $0x18] sm:$0xff]
      %v1853 = vld [vmem:[%s1849 + $0x20] sm:$0xff]
      %v1854 = vld [vmem:[%s1849 + $0x30] sm:$0xff]
      %v1855 = vld [vmem:[%s1849 + $0x38] sm:$0xff]
      %v1856 = vld [vmem:[%s1849 + $0x48] sm:$0xff]
      %v1857 = vld [vmem:[%s1849 + $0x50] sm:$0xff]
      %v1858 = vld [vmem:[%s1849 + $0x60] sm:$0xff]
      %v1859 = vld [vmem:[%s1849 + $0x68] sm:$0xff]
      %v1860 = vld [vmem:[%s1849 + $0x78] sm:$0xff]
      %v1861 = vld [vmem:[%s1849 + $0x80] sm:$0xff]
      %v1862 = vld [vmem:[%s1849 + $0x90] sm:$0xff]
      %v1863 = vld [vmem:[%s1849 + $0x98] sm:$0xff]
      %v1864 = vld [vmem:[%s1849 + $0xa8] sm:$0xff]
      %v1865 = vld [vmem:[%s1849 + $0xb0] sm:$0xff]
      %v1866 = vld [vmem:[%s1849 + $0xc0] sm:$0xff]
      %v1867 = vld [vmem:[%s1849 + $0xc8] sm:$0xff]
      %v1868 = vld [vmem:[%s1849 + $0xd8] sm:$0xff]
      %v1869 = vld [vmem:[%s1849 + $0xe0] sm:$0xff]
      %v1870 = vld [vmem:[%s1849 + $0xf0] sm:$0xff]
      %v1871 = vld [vmem:[%s1849 + $0xf8] sm:$0xff]
      %v1872 = vld [vmem:[%s1849 + $0x108] sm:$0xff]
      %v1873 = vld [vmem:[%s1849 + $0x110] sm:$0xff]
      %v1874 = vld [vmem:[%s1849 + $0x120] sm:$0xff]
      %v1875 = vld [vmem:[%s1849 + $0x128] sm:$0xff]
      %v1876 = vld [vmem:[%s1849 + $0x138] sm:$0xff]
      %v1877 = vld [vmem:[%s1849 + $0x140] sm:$0xff]
      %v1878 = vld [vmem:[%s1849 + $0x150] sm:$0xff]
      %v1879 = vld [vmem:[%s1849 + $0x158] sm:$0xff]
      %v1880 = vld [vmem:[%s1849 + $0x168] sm:$0xff]
      %v1881 = vld [vmem:[%s1849 + $0x170] sm:$0xff]
      %v1883 = vsel %vm241, %v1850, 0
      %v1886 = vsel %vm241, %v1851, 0
      %v1889 = vsel %vm241, %v1852, 0
      %v1892 = vsel %vm241, %v1853, 0
      %v1895 = vsel %vm241, %v1854, 0
      %v1898 = vsel %vm241, %v1855, 0
      %v1901 = vsel %vm241, %v1856, 0
      %v1904 = vsel %vm241, %v1857, 0
      %v1907 = vsel %vm241, %v1858, 0
      %v1910 = vsel %vm241, %v1859, 0
      %v1913 = vsel %vm241, %v1860, 0
      %v1916 = vsel %vm241, %v1861, 0
      %v1919 = vsel %vm241, %v1862, 0
      %v1922 = vsel %vm241, %v1863, 0
      %v1925 = vsel %vm241, %v1864, 0
      %v1928 = vsel %vm241, %v1865, 0
      %v1931 = vsel %vm241, %v1866, 0
      %v1934 = vsel %vm241, %v1867, 0
      %v1937 = vsel %vm241, %v1868, 0
      %v1940 = vsel %vm241, %v1869, 0
      %v1943 = vsel %vm241, %v1870, 0
      %v1946 = vsel %vm241, %v1871, 0
      %v1949 = vsel %vm241, %v1872, 0
      %v1952 = vsel %vm241, %v1873, 0
      %v1955 = vsel %vm241, %v1874, 0
      %v1958 = vsel %vm241, %v1875, 0
      %v1961 = vsel %vm241, %v1876, 0
      %v1964 = vsel %vm241, %v1877, 0
      %v1967 = vsel %vm241, %v1878, 0
      %v1970 = vsel %vm241, %v1879, 0
      %v1973 = vsel %vm241, %v1880, 0
      %v1976 = vsel %vm241, %v1881, 0
      %1978 = vmatpush.msra.mxu0 0.0
      %1979 = vmatpush.msra.mxu0 0.0
      %1980 = vmatpush.msra.mxu0 0.0
      %1981 = vmatpush.msra.mxu0 0.0
      %1982 = vmatpush.msra.mxu0 0.0
      %1983 = vmatpush.msra.mxu0 0.0
      %1984 = vmatpush.msra.mxu0 0.0
      %1985 = vmatpush.msra.mxu0 0.0
      %1986 = vmatpush.msra.mxu0 0.0
      %1987 = vmatpush.msra.mxu0 0.0
      %1988 = vmatpush.msra.mxu0 0.0
      %1989 = vmatpush.msra.mxu0 0.0
      %1990 = vmatpush.msra.mxu0 0.0
      %1991 = vmatpush.msra.mxu0 0.0
      %1992 = vmatpush.msra.mxu0 0.0
      %1993 = vmatpush.msra.mxu0 %v203
      %1994 = vmatmul.f32.gmra.mxu0 %v1883
      %v1995 = vpop.f32.mrf.mxu0
      %v1996 = vadd.f32 0.0, %v1995
      %1997 = vmatmul.f32.gmra.mxu0 %v1886
      %v1998 = vpop.f32.mrf.mxu0
      %v1999 = vadd.f32 0.0, %v1998
      %2000 = vmatmul.f32.gmra.mxu0 %v1889
      %v2001 = vpop.f32.mrf.mxu0
      %v2002 = vadd.f32 0.0, %v2001
      %2003 = vmatmul.f32.gmra.mxu0 %v1892
      %v2004 = vpop.f32.mrf.mxu0
      %v2005 = vadd.f32 0.0, %v2004
      %2006 = vmatmul.f32.gmra.mxu0 %v1895
      %v2007 = vpop.f32.mrf.mxu0
      %v2008 = vadd.f32 0.0, %v2007
      %2009 = vmatmul.f32.gmra.mxu0 %v1898
      %v2010 = vpop.f32.mrf.mxu0
      %v2011 = vadd.f32 0.0, %v2010
      %2012 = vmatmul.f32.gmra.mxu0 %v1901
      %v2013 = vpop.f32.mrf.mxu0
      %v2014 = vadd.f32 0.0, %v2013
      %2015 = vmatmul.f32.gmra.mxu0 %v1904
      %v2016 = vpop.f32.mrf.mxu0
      %v2017 = vadd.f32 0.0, %v2016
      %2018 = vmatmul.f32.gmra.mxu0 %v1907
      %v2019 = vpop.f32.mrf.mxu0
      %v2020 = vadd.f32 0.0, %v2019
      %2021 = vmatmul.f32.gmra.mxu0 %v1910
      %v2022 = vpop.f32.mrf.mxu0
      %v2023 = vadd.f32 0.0, %v2022
      %2024 = vmatmul.f32.gmra.mxu0 %v1913
      %v2025 = vpop.f32.mrf.mxu0
      %v2026 = vadd.f32 0.0, %v2025
      %2027 = vmatmul.f32.gmra.mxu0 %v1916
      %v2028 = vpop.f32.mrf.mxu0
      %v2029 = vadd.f32 0.0, %v2028
      %2030 = vmatmul.f32.gmra.mxu0 %v1919
      %v2031 = vpop.f32.mrf.mxu0
      %v2032 = vadd.f32 0.0, %v2031
      %2033 = vmatmul.f32.gmra.mxu0 %v1922
      %v2034 = vpop.f32.mrf.mxu0
      %v2035 = vadd.f32 0.0, %v2034
      %2036 = vmatmul.f32.gmra.mxu0 %v1925
      %v2037 = vpop.f32.mrf.mxu0
      %v2038 = vadd.f32 0.0, %v2037
      %2039 = vmatmul.f32.gmra.mxu0 %v1928
      %v2040 = vpop.f32.mrf.mxu0
      %v2041 = vadd.f32 0.0, %v2040
      %2042 = vmatmul.f32.gmra.mxu0 %v1931
      %v2043 = vpop.f32.mrf.mxu0
      %v2044 = vadd.f32 0.0, %v2043
      %2045 = vmatmul.f32.gmra.mxu0 %v1934
      %v2046 = vpop.f32.mrf.mxu0
      %v2047 = vadd.f32 0.0, %v2046
      %2048 = vmatmul.f32.gmra.mxu0 %v1937
      %v2049 = vpop.f32.mrf.mxu0
      %v2050 = vadd.f32 0.0, %v2049
      %2051 = vmatmul.f32.gmra.mxu0 %v1940
      %v2052 = vpop.f32.mrf.mxu0
      %v2053 = vadd.f32 0.0, %v2052
      %2054 = vmatmul.f32.gmra.mxu0 %v1943
      %v2055 = vpop.f32.mrf.mxu0
      %v2056 = vadd.f32 0.0, %v2055
      %2057 = vmatmul.f32.gmra.mxu0 %v1946
      %v2058 = vpop.f32.mrf.mxu0
      %v2059 = vadd.f32 0.0, %v2058
      %2060 = vmatmul.f32.gmra.mxu0 %v1949
      %v2061 = vpop.f32.mrf.mxu0
      %v2062 = vadd.f32 0.0, %v2061
      %2063 = vmatmul.f32.gmra.mxu0 %v1952
      %v2064 = vpop.f32.mrf.mxu0
      %v2065 = vadd.f32 0.0, %v2064
      %2066 = vmatmul.f32.gmra.mxu0 %v1955
      %v2067 = vpop.f32.mrf.mxu0
      %v2068 = vadd.f32 0.0, %v2067
      %2069 = vmatmul.f32.gmra.mxu0 %v1958
      %v2070 = vpop.f32.mrf.mxu0
      %v2071 = vadd.f32 0.0, %v2070
      %2072 = vmatmul.f32.gmra.mxu0 %v1961
      %v2073 = vpop.f32.mrf.mxu0
      %v2074 = vadd.f32 0.0, %v2073
      %2075 = vmatmul.f32.gmra.mxu0 %v1964
      %v2076 = vpop.f32.mrf.mxu0
      %v2077 = vadd.f32 0.0, %v2076
      %2078 = vmatmul.f32.gmra.mxu0 %v1967
      %v2079 = vpop.f32.mrf.mxu0
      %v2080 = vadd.f32 0.0, %v2079
      %2081 = vmatmul.f32.gmra.mxu0 %v1970
      %v2082 = vpop.f32.mrf.mxu0
      %v2083 = vadd.f32 0.0, %v2082
      %2084 = vmatmul.f32.gmra.mxu0 %v1973
      %v2085 = vpop.f32.mrf.mxu0
      %v2086 = vadd.f32 0.0, %v2085
      %2087 = vmatmul.f32.gmra.mxu0 %v1976
      %v2088 = vpop.f32.mrf.mxu0
      %v2089 = vadd.f32 0.0, %v2088
      %2090 = vdwg.mxu0
      %v2091 = vadd.f32 %v1817, %v1996
      %v2092 = vadd.f32 %v1818, %v1999
      %v2093 = vadd.f32 %v1819, %v2002
      %v2094 = vadd.f32 %v1820, %v2005
      %v2095 = vadd.f32 %v1821, %v2008
      %v2096 = vadd.f32 %v1822, %v2011
      %v2097 = vadd.f32 %v1823, %v2014
      %v2098 = vadd.f32 %v1824, %v2017
      %v2099 = vadd.f32 %v1825, %v2020
      %v2100 = vadd.f32 %v1826, %v2023
      %v2101 = vadd.f32 %v1827, %v2026
      %v2102 = vadd.f32 %v1828, %v2029
      %v2103 = vadd.f32 %v1829, %v2032
      %v2104 = vadd.f32 %v1830, %v2035
      %v2105 = vadd.f32 %v1831, %v2038
      %v2106 = vadd.f32 %v1832, %v2041
      %v2107 = vadd.f32 %v1833, %v2044
      %v2108 = vadd.f32 %v1834, %v2047
      %v2109 = vadd.f32 %v1835, %v2050
      %v2110 = vadd.f32 %v1836, %v2053
      %v2111 = vadd.f32 %v1837, %v2056
      %v2112 = vadd.f32 %v1838, %v2059
      %v2113 = vadd.f32 %v1839, %v2062
      %v2114 = vadd.f32 %v1840, %v2065
      %v2115 = vadd.f32 %v1841, %v2068
      %v2116 = vadd.f32 %v1842, %v2071
      %v2117 = vadd.f32 %v1843, %v2074
      %v2118 = vadd.f32 %v1844, %v2077
      %v2119 = vadd.f32 %v1845, %v2080
      %v2120 = vadd.f32 %v1846, %v2083
      %v2121 = vadd.f32 %v1847, %v2086
      %v2122 = vadd.f32 %v1848, %v2089
      %v2123 = vld [vmem:[%s1849 + $0x1] sm:$0xff]
      %v2124 = vld [vmem:[%s1849 + $0x9] sm:$0xff]
      %v2125 = vld [vmem:[%s1849 + $0x19] sm:$0xff]
      %v2126 = vld [vmem:[%s1849 + $0x21] sm:$0xff]
      %v2127 = vld [vmem:[%s1849 + $0x31] sm:$0xff]
      %v2128 = vld [vmem:[%s1849 + $0x39] sm:$0xff]
      %v2129 = vld [vmem:[%s1849 + $0x49] sm:$0xff]
      %v2130 = vld [vmem:[%s1849 + $0x51] sm:$0xff]
      %v2131 = vld [vmem:[%s1849 + $0x61] sm:$0xff]
      %v2132 = vld [vmem:[%s1849 + $0x69] sm:$0xff]
      %v2133 = vld [vmem:[%s1849 + $0x79] sm:$0xff]
      %v2134 = vld [vmem:[%s1849 + $0x81] sm:$0xff]
      %v2135 = vld [vmem:[%s1849 + $0x91] sm:$0xff]
      %v2136 = vld [vmem:[%s1849 + $0x99] sm:$0xff]
      %v2137 = vld [vmem:[%s1849 + $0xa9] sm:$0xff]
      %v2138 = vld [vmem:[%s1849 + $0xb1] sm:$0xff]
      %v2139 = vld [vmem:[%s1849 + $0xc1] sm:$0xff]
      %v2140 = vld [vmem:[%s1849 + $0xc9] sm:$0xff]
      %v2141 = vld [vmem:[%s1849 + $0xd9] sm:$0xff]
      %v2142 = vld [vmem:[%s1849 + $0xe1] sm:$0xff]
      %v2143 = vld [vmem:[%s1849 + $0xf1] sm:$0xff]
      %v2144 = vld [vmem:[%s1849 + $0xf9] sm:$0xff]
      %v2145 = vld [vmem:[%s1849 + $0x109] sm:$0xff]
      %v2146 = vld [vmem:[%s1849 + $0x111] sm:$0xff]
      %v2147 = vld [vmem:[%s1849 + $0x121] sm:$0xff]
      %v2148 = vld [vmem:[%s1849 + $0x129] sm:$0xff]
      %v2149 = vld [vmem:[%s1849 + $0x139] sm:$0xff]
      %v2150 = vld [vmem:[%s1849 + $0x141] sm:$0xff]
      %v2151 = vld [vmem:[%s1849 + $0x151] sm:$0xff]
      %v2152 = vld [vmem:[%s1849 + $0x159] sm:$0xff]
      %v2153 = vld [vmem:[%s1849 + $0x169] sm:$0xff]
      %v2154 = vld [vmem:[%s1849 + $0x171] sm:$0xff]
      %v2156 = vsel %vm241, %v2123, 0
      %v2159 = vsel %vm241, %v2124, 0
      %v2162 = vsel %vm241, %v2125, 0
      %v2165 = vsel %vm241, %v2126, 0
      %v2168 = vsel %vm241, %v2127, 0
      %v2171 = vsel %vm241, %v2128, 0
      %v2174 = vsel %vm241, %v2129, 0
      %v2177 = vsel %vm241, %v2130, 0
      %v2180 = vsel %vm241, %v2131, 0
      %v2183 = vsel %vm241, %v2132, 0
      %v2186 = vsel %vm241, %v2133, 0
      %v2189 = vsel %vm241, %v2134, 0
      %v2192 = vsel %vm241, %v2135, 0
      %v2195 = vsel %vm241, %v2136, 0
      %v2198 = vsel %vm241, %v2137, 0
      %v2201 = vsel %vm241, %v2138, 0
      %v2204 = vsel %vm241, %v2139, 0
      %v2207 = vsel %vm241, %v2140, 0
      %v2210 = vsel %vm241, %v2141, 0
      %v2213 = vsel %vm241, %v2142, 0
      %v2216 = vsel %vm241, %v2143, 0
      %v2219 = vsel %vm241, %v2144, 0
      %v2222 = vsel %vm241, %v2145, 0
      %v2225 = vsel %vm241, %v2146, 0
      %v2228 = vsel %vm241, %v2147, 0
      %v2231 = vsel %vm241, %v2148, 0
      %v2234 = vsel %vm241, %v2149, 0
      %v2237 = vsel %vm241, %v2150, 0
      %v2240 = vsel %vm241, %v2151, 0
      %v2243 = vsel %vm241, %v2152, 0
      %v2246 = vsel %vm241, %v2153, 0
      %v2249 = vsel %vm241, %v2154, 0
      %2251 = vmatpush.msra.mxu0 0.0
      %2252 = vmatpush.msra.mxu0 0.0
      %2253 = vmatpush.msra.mxu0 0.0
      %2254 = vmatpush.msra.mxu0 0.0
      %2255 = vmatpush.msra.mxu0 0.0
      %2256 = vmatpush.msra.mxu0 0.0
      %2257 = vmatpush.msra.mxu0 0.0
      %2258 = vmatpush.msra.mxu0 0.0
      %2259 = vmatpush.msra.mxu0 0.0
      %2260 = vmatpush.msra.mxu0 0.0
      %2261 = vmatpush.msra.mxu0 0.0
      %2262 = vmatpush.msra.mxu0 0.0
      %2263 = vmatpush.msra.mxu0 0.0
      %2264 = vmatpush.msra.mxu0 0.0
      %2265 = vmatpush.msra.mxu0 0.0
      %2266 = vmatpush.msra.mxu0 %v204
      %2267 = vmatmul.f32.gmra.mxu0 %v2156
      %v2268 = vpop.f32.mrf.mxu0
      %v2269 = vadd.f32 0.0, %v2268
      %2270 = vmatmul.f32.gmra.mxu0 %v2159
      %v2271 = vpop.f32.mrf.mxu0
      %v2272 = vadd.f32 0.0, %v2271
      %2273 = vmatmul.f32.gmra.mxu0 %v2162
      %v2274 = vpop.f32.mrf.mxu0
      %v2275 = vadd.f32 0.0, %v2274
      %2276 = vmatmul.f32.gmra.mxu0 %v2165
      %v2277 = vpop.f32.mrf.mxu0
      %v2278 = vadd.f32 0.0, %v2277
      %2279 = vmatmul.f32.gmra.mxu0 %v2168
      %v2280 = vpop.f32.mrf.mxu0
      %v2281 = vadd.f32 0.0, %v2280
      %2282 = vmatmul.f32.gmra.mxu0 %v2171
      %v2283 = vpop.f32.mrf.mxu0
      %v2284 = vadd.f32 0.0, %v2283
      %2285 = vmatmul.f32.gmra.mxu0 %v2174
      %v2286 = vpop.f32.mrf.mxu0
      %v2287 = vadd.f32 0.0, %v2286
      %2288 = vmatmul.f32.gmra.mxu0 %v2177
      %v2289 = vpop.f32.mrf.mxu0
      %v2290 = vadd.f32 0.0, %v2289
      %2291 = vmatmul.f32.gmra.mxu0 %v2180
      %v2292 = vpop.f32.mrf.mxu0
      %v2293 = vadd.f32 0.0, %v2292
      %2294 = vmatmul.f32.gmra.mxu0 %v2183
      %v2295 = vpop.f32.mrf.mxu0
      %v2296 = vadd.f32 0.0, %v2295
      %2297 = vmatmul.f32.gmra.mxu0 %v2186
      %v2298 = vpop.f32.mrf.mxu0
      %v2299 = vadd.f32 0.0, %v2298
      %2300 = vmatmul.f32.gmra.mxu0 %v2189
      %v2301 = vpop.f32.mrf.mxu0
      %v2302 = vadd.f32 0.0, %v2301
      %2303 = vmatmul.f32.gmra.mxu0 %v2192
      %v2304 = vpop.f32.mrf.mxu0
      %v2305 = vadd.f32 0.0, %v2304
      %2306 = vmatmul.f32.gmra.mxu0 %v2195
      %v2307 = vpop.f32.mrf.mxu0
      %v2308 = vadd.f32 0.0, %v2307
      %2309 = vmatmul.f32.gmra.mxu0 %v2198
      %v2310 = vpop.f32.mrf.mxu0
      %v2311 = vadd.f32 0.0, %v2310
      %2312 = vmatmul.f32.gmra.mxu0 %v2201
      %v2313 = vpop.f32.mrf.mxu0
      %v2314 = vadd.f32 0.0, %v2313
      %2315 = vmatmul.f32.gmra.mxu0 %v2204
      %v2316 = vpop.f32.mrf.mxu0
      %v2317 = vadd.f32 0.0, %v2316
      %2318 = vmatmul.f32.gmra.mxu0 %v2207
      %v2319 = vpop.f32.mrf.mxu0
      %v2320 = vadd.f32 0.0, %v2319
      %2321 = vmatmul.f32.gmra.mxu0 %v2210
      %v2322 = vpop.f32.mrf.mxu0
      %v2323 = vadd.f32 0.0, %v2322
      %2324 = vmatmul.f32.gmra.mxu0 %v2213
      %v2325 = vpop.f32.mrf.mxu0
      %v2326 = vadd.f32 0.0, %v2325
      %2327 = vmatmul.f32.gmra.mxu0 %v2216
      %v2328 = vpop.f32.mrf.mxu0
      %v2329 = vadd.f32 0.0, %v2328
      %2330 = vmatmul.f32.gmra.mxu0 %v2219
      %v2331 = vpop.f32.mrf.mxu0
      %v2332 = vadd.f32 0.0, %v2331
      %2333 = vmatmul.f32.gmra.mxu0 %v2222
      %v2334 = vpop.f32.mrf.mxu0
      %v2335 = vadd.f32 0.0, %v2334
      %2336 = vmatmul.f32.gmra.mxu0 %v2225
      %v2337 = vpop.f32.mrf.mxu0
      %v2338 = vadd.f32 0.0, %v2337
      %2339 = vmatmul.f32.gmra.mxu0 %v2228
      %v2340 = vpop.f32.mrf.mxu0
      %v2341 = vadd.f32 0.0, %v2340
      %2342 = vmatmul.f32.gmra.mxu0 %v2231
      %v2343 = vpop.f32.mrf.mxu0
      %v2344 = vadd.f32 0.0, %v2343
      %2345 = vmatmul.f32.gmra.mxu0 %v2234
      %v2346 = vpop.f32.mrf.mxu0
      %v2347 = vadd.f32 0.0, %v2346
      %2348 = vmatmul.f32.gmra.mxu0 %v2237
      %v2349 = vpop.f32.mrf.mxu0
      %v2350 = vadd.f32 0.0, %v2349
      %2351 = vmatmul.f32.gmra.mxu0 %v2240
      %v2352 = vpop.f32.mrf.mxu0
      %v2353 = vadd.f32 0.0, %v2352
      %2354 = vmatmul.f32.gmra.mxu0 %v2243
      %v2355 = vpop.f32.mrf.mxu0
      %v2356 = vadd.f32 0.0, %v2355
      %2357 = vmatmul.f32.gmra.mxu0 %v2246
      %v2358 = vpop.f32.mrf.mxu0
      %v2359 = vadd.f32 0.0, %v2358
      %2360 = vmatmul.f32.gmra.mxu0 %v2249
      %v2361 = vpop.f32.mrf.mxu0
      %v2362 = vadd.f32 0.0, %v2361
      %2363 = vdwg.mxu0
      %v2364 = vadd.f32 %v2091, %v2269
      %v2365 = vadd.f32 %v2092, %v2272
      %v2366 = vadd.f32 %v2093, %v2275
      %v2367 = vadd.f32 %v2094, %v2278
      %v2368 = vadd.f32 %v2095, %v2281
      %v2369 = vadd.f32 %v2096, %v2284
      %v2370 = vadd.f32 %v2097, %v2287
      %v2371 = vadd.f32 %v2098, %v2290
      %v2372 = vadd.f32 %v2099, %v2293
      %v2373 = vadd.f32 %v2100, %v2296
      %v2374 = vadd.f32 %v2101, %v2299
      %v2375 = vadd.f32 %v2102, %v2302
      %v2376 = vadd.f32 %v2103, %v2305
      %v2377 = vadd.f32 %v2104, %v2308
      %v2378 = vadd.f32 %v2105, %v2311
      %v2379 = vadd.f32 %v2106, %v2314
      %v2380 = vadd.f32 %v2107, %v2317
      %v2381 = vadd.f32 %v2108, %v2320
      %v2382 = vadd.f32 %v2109, %v2323
      %v2383 = vadd.f32 %v2110, %v2326
      %v2384 = vadd.f32 %v2111, %v2329
      %v2385 = vadd.f32 %v2112, %v2332
      %v2386 = vadd.f32 %v2113, %v2335
      %v2387 = vadd.f32 %v2114, %v2338
      %v2388 = vadd.f32 %v2115, %v2341
      %v2389 = vadd.f32 %v2116, %v2344
      %v2390 = vadd.f32 %v2117, %v2347
      %v2391 = vadd.f32 %v2118, %v2350
      %v2392 = vadd.f32 %v2119, %v2353
      %v2393 = vadd.f32 %v2120, %v2356
      %v2394 = vadd.f32 %v2121, %v2359
      %v2395 = vadd.f32 %v2122, %v2362
      %v2396 = vld [vmem:[%s1849 + $0x2] sm:$0xff]
      %v2397 = vld [vmem:[%s1849 + $0xa] sm:$0xff]
      %v2398 = vld [vmem:[%s1849 + $0x1a] sm:$0xff]
      %v2399 = vld [vmem:[%s1849 + $0x22] sm:$0xff]
      %v2400 = vld [vmem:[%s1849 + $0x32] sm:$0xff]
      %v2401 = vld [vmem:[%s1849 + $0x3a] sm:$0xff]
      %v2402 = vld [vmem:[%s1849 + $0x4a] sm:$0xff]
      %v2403 = vld [vmem:[%s1849 + $0x52] sm:$0xff]
      %v2404 = vld [vmem:[%s1849 + $0x62] sm:$0xff]
      %v2405 = vld [vmem:[%s1849 + $0x6a] sm:$0xff]
      %v2406 = vld [vmem:[%s1849 + $0x7a] sm:$0xff]
      %v2407 = vld [vmem:[%s1849 + $0x82] sm:$0xff]
      %v2408 = vld [vmem:[%s1849 + $0x92] sm:$0xff]
      %v2409 = vld [vmem:[%s1849 + $0x9a] sm:$0xff]
      %v2410 = vld [vmem:[%s1849 + $0xaa] sm:$0xff]
      %v2411 = vld [vmem:[%s1849 + $0xb2] sm:$0xff]
      %v2412 = vld [vmem:[%s1849 + $0xc2] sm:$0xff]
      %v2413 = vld [vmem:[%s1849 + $0xca] sm:$0xff]
      %v2414 = vld [vmem:[%s1849 + $0xda] sm:$0xff]
      %v2415 = vld [vmem:[%s1849 + $0xe2] sm:$0xff]
      %v2416 = vld [vmem:[%s1849 + $0xf2] sm:$0xff]
      %v2417 = vld [vmem:[%s1849 + $0xfa] sm:$0xff]
      %v2418 = vld [vmem:[%s1849 + $0x10a] sm:$0xff]
      %v2419 = vld [vmem:[%s1849 + $0x112] sm:$0xff]
      %v2420 = vld [vmem:[%s1849 + $0x122] sm:$0xff]
      %v2421 = vld [vmem:[%s1849 + $0x12a] sm:$0xff]
      %v2422 = vld [vmem:[%s1849 + $0x13a] sm:$0xff]
      %v2423 = vld [vmem:[%s1849 + $0x142] sm:$0xff]
      %v2424 = vld [vmem:[%s1849 + $0x152] sm:$0xff]
      %v2425 = vld [vmem:[%s1849 + $0x15a] sm:$0xff]
      %v2426 = vld [vmem:[%s1849 + $0x16a] sm:$0xff]
      %v2427 = vld [vmem:[%s1849 + $0x172] sm:$0xff]
      %v2429 = vsel %vm241, %v2396, 0
      %v2432 = vsel %vm241, %v2397, 0
      %v2435 = vsel %vm241, %v2398, 0
      %v2438 = vsel %vm241, %v2399, 0
      %v2441 = vsel %vm241, %v2400, 0
      %v2444 = vsel %vm241, %v2401, 0
      %v2447 = vsel %vm241, %v2402, 0
      %v2450 = vsel %vm241, %v2403, 0
      %v2453 = vsel %vm241, %v2404, 0
      %v2456 = vsel %vm241, %v2405, 0
      %v2459 = vsel %vm241, %v2406, 0
      %v2462 = vsel %vm241, %v2407, 0
      %v2465 = vsel %vm241, %v2408, 0
      %v2468 = vsel %vm241, %v2409, 0
      %v2471 = vsel %vm241, %v2410, 0
      %v2474 = vsel %vm241, %v2411, 0
      %v2477 = vsel %vm241, %v2412, 0
      %v2480 = vsel %vm241, %v2413, 0
      %v2483 = vsel %vm241, %v2414, 0
      %v2486 = vsel %vm241, %v2415, 0
      %v2489 = vsel %vm241, %v2416, 0
      %v2492 = vsel %vm241, %v2417, 0
      %v2495 = vsel %vm241, %v2418, 0
      %v2498 = vsel %vm241, %v2419, 0
      %v2501 = vsel %vm241, %v2420, 0
      %v2504 = vsel %vm241, %v2421, 0
      %v2507 = vsel %vm241, %v2422, 0
      %v2510 = vsel %vm241, %v2423, 0
      %v2513 = vsel %vm241, %v2424, 0
      %v2516 = vsel %vm241, %v2425, 0
      %v2519 = vsel %vm241, %v2426, 0
      %v2522 = vsel %vm241, %v2427, 0
      %2524 = vmatpush.msra.mxu0 0.0
      %2525 = vmatpush.msra.mxu0 0.0
      %2526 = vmatpush.msra.mxu0 0.0
      %2527 = vmatpush.msra.mxu0 0.0
      %2528 = vmatpush.msra.mxu0 0.0
      %2529 = vmatpush.msra.mxu0 0.0
      %2530 = vmatpush.msra.mxu0 0.0
      %2531 = vmatpush.msra.mxu0 0.0
      %2532 = vmatpush.msra.mxu0 0.0
      %2533 = vmatpush.msra.mxu0 0.0
      %2534 = vmatpush.msra.mxu0 0.0
      %2535 = vmatpush.msra.mxu0 0.0
      %2536 = vmatpush.msra.mxu0 0.0
      %2537 = vmatpush.msra.mxu0 0.0
      %2538 = vmatpush.msra.mxu0 0.0
      %2539 = vmatpush.msra.mxu0 %v205
      %2540 = vmatmul.f32.gmra.mxu0 %v2429
      %v2541 = vpop.f32.mrf.mxu0
      %v2542 = vadd.f32 0.0, %v2541
      %2543 = vmatmul.f32.gmra.mxu0 %v2432
      %v2544 = vpop.f32.mrf.mxu0
      %v2545 = vadd.f32 0.0, %v2544
      %2546 = vmatmul.f32.gmra.mxu0 %v2435
      %v2547 = vpop.f32.mrf.mxu0
      %v2548 = vadd.f32 0.0, %v2547
      %2549 = vmatmul.f32.gmra.mxu0 %v2438
      %v2550 = vpop.f32.mrf.mxu0
      %v2551 = vadd.f32 0.0, %v2550
      %2552 = vmatmul.f32.gmra.mxu0 %v2441
      %v2553 = vpop.f32.mrf.mxu0
      %v2554 = vadd.f32 0.0, %v2553
      %2555 = vmatmul.f32.gmra.mxu0 %v2444
      %v2556 = vpop.f32.mrf.mxu0
      %v2557 = vadd.f32 0.0, %v2556
      %2558 = vmatmul.f32.gmra.mxu0 %v2447
      %v2559 = vpop.f32.mrf.mxu0
      %v2560 = vadd.f32 0.0, %v2559
      %2561 = vmatmul.f32.gmra.mxu0 %v2450
      %v2562 = vpop.f32.mrf.mxu0
      %v2563 = vadd.f32 0.0, %v2562
      %2564 = vmatmul.f32.gmra.mxu0 %v2453
      %v2565 = vpop.f32.mrf.mxu0
      %v2566 = vadd.f32 0.0, %v2565
      %2567 = vmatmul.f32.gmra.mxu0 %v2456
      %v2568 = vpop.f32.mrf.mxu0
      %v2569 = vadd.f32 0.0, %v2568
      %2570 = vmatmul.f32.gmra.mxu0 %v2459
      %v2571 = vpop.f32.mrf.mxu0
      %v2572 = vadd.f32 0.0, %v2571
      %2573 = vmatmul.f32.gmra.mxu0 %v2462
      %v2574 = vpop.f32.mrf.mxu0
      %v2575 = vadd.f32 0.0, %v2574
      %2576 = vmatmul.f32.gmra.mxu0 %v2465
      %v2577 = vpop.f32.mrf.mxu0
      %v2578 = vadd.f32 0.0, %v2577
      %2579 = vmatmul.f32.gmra.mxu0 %v2468
      %v2580 = vpop.f32.mrf.mxu0
      %v2581 = vadd.f32 0.0, %v2580
      %2582 = vmatmul.f32.gmra.mxu0 %v2471
      %v2583 = vpop.f32.mrf.mxu0
      %v2584 = vadd.f32 0.0, %v2583
      %2585 = vmatmul.f32.gmra.mxu0 %v2474
      %v2586 = vpop.f32.mrf.mxu0
      %v2587 = vadd.f32 0.0, %v2586
      %2588 = vmatmul.f32.gmra.mxu0 %v2477
      %v2589 = vpop.f32.mrf.mxu0
      %v2590 = vadd.f32 0.0, %v2589
      %2591 = vmatmul.f32.gmra.mxu0 %v2480
      %v2592 = vpop.f32.mrf.mxu0
      %v2593 = vadd.f32 0.0, %v2592
      %2594 = vmatmul.f32.gmra.mxu0 %v2483
      %v2595 = vpop.f32.mrf.mxu0
      %v2596 = vadd.f32 0.0, %v2595
      %2597 = vmatmul.f32.gmra.mxu0 %v2486
      %v2598 = vpop.f32.mrf.mxu0
      %v2599 = vadd.f32 0.0, %v2598
      %2600 = vmatmul.f32.gmra.mxu0 %v2489
      %v2601 = vpop.f32.mrf.mxu0
      %v2602 = vadd.f32 0.0, %v2601
      %2603 = vmatmul.f32.gmra.mxu0 %v2492
      %v2604 = vpop.f32.mrf.mxu0
      %v2605 = vadd.f32 0.0, %v2604
      %2606 = vmatmul.f32.gmra.mxu0 %v2495
      %v2607 = vpop.f32.mrf.mxu0
      %v2608 = vadd.f32 0.0, %v2607
      %2609 = vmatmul.f32.gmra.mxu0 %v2498
      %v2610 = vpop.f32.mrf.mxu0
      %v2611 = vadd.f32 0.0, %v2610
      %2612 = vmatmul.f32.gmra.mxu0 %v2501
      %v2613 = vpop.f32.mrf.mxu0
      %v2614 = vadd.f32 0.0, %v2613
      %2615 = vmatmul.f32.gmra.mxu0 %v2504
      %v2616 = vpop.f32.mrf.mxu0
      %v2617 = vadd.f32 0.0, %v2616
      %2618 = vmatmul.f32.gmra.mxu0 %v2507
      %v2619 = vpop.f32.mrf.mxu0
      %v2620 = vadd.f32 0.0, %v2619
      %2621 = vmatmul.f32.gmra.mxu0 %v2510
      %v2622 = vpop.f32.mrf.mxu0
      %v2623 = vadd.f32 0.0, %v2622
      %2624 = vmatmul.f32.gmra.mxu0 %v2513
      %v2625 = vpop.f32.mrf.mxu0
      %v2626 = vadd.f32 0.0, %v2625
      %2627 = vmatmul.f32.gmra.mxu0 %v2516
      %v2628 = vpop.f32.mrf.mxu0
      %v2629 = vadd.f32 0.0, %v2628
      %2630 = vmatmul.f32.gmra.mxu0 %v2519
      %v2631 = vpop.f32.mrf.mxu0
      %v2632 = vadd.f32 0.0, %v2631
      %2633 = vmatmul.f32.gmra.mxu0 %v2522
      %v2634 = vpop.f32.mrf.mxu0
      %v2635 = vadd.f32 0.0, %v2634
      %2636 = vdwg.mxu0
      %v2637 = vadd.f32 %v2364, %v2542
      %v2638 = vadd.f32 %v2365, %v2545
      %v2639 = vadd.f32 %v2366, %v2548
      %v2640 = vadd.f32 %v2367, %v2551
      %v2641 = vadd.f32 %v2368, %v2554
      %v2642 = vadd.f32 %v2369, %v2557
      %v2643 = vadd.f32 %v2370, %v2560
      %v2644 = vadd.f32 %v2371, %v2563
      %v2645 = vadd.f32 %v2372, %v2566
      %v2646 = vadd.f32 %v2373, %v2569
      %v2647 = vadd.f32 %v2374, %v2572
      %v2648 = vadd.f32 %v2375, %v2575
      %v2649 = vadd.f32 %v2376, %v2578
      %v2650 = vadd.f32 %v2377, %v2581
      %v2651 = vadd.f32 %v2378, %v2584
      %v2652 = vadd.f32 %v2379, %v2587
      %v2653 = vadd.f32 %v2380, %v2590
      %v2654 = vadd.f32 %v2381, %v2593
      %v2655 = vadd.f32 %v2382, %v2596
      %v2656 = vadd.f32 %v2383, %v2599
      %v2657 = vadd.f32 %v2384, %v2602
      %v2658 = vadd.f32 %v2385, %v2605
      %v2659 = vadd.f32 %v2386, %v2608
      %v2660 = vadd.f32 %v2387, %v2611
      %v2661 = vadd.f32 %v2388, %v2614
      %v2662 = vadd.f32 %v2389, %v2617
      %v2663 = vadd.f32 %v2390, %v2620
      %v2664 = vadd.f32 %v2391, %v2623
      %v2665 = vadd.f32 %v2392, %v2626
      %v2666 = vadd.f32 %v2393, %v2629
      %v2667 = vadd.f32 %v2394, %v2632
      %v2668 = vadd.f32 %v2395, %v2635
      %vm2669 = vcmp.gt.f32.partialorder %v2637, 0.0
      %vm2670 = vcmp.gt.f32.partialorder %v2638, 0.0
      %vm2671 = vcmp.gt.f32.partialorder %v2639, 0.0
      %vm2672 = vcmp.gt.f32.partialorder %v2640, 0.0
      %vm2673 = vcmp.gt.f32.partialorder %v2641, 0.0
      %vm2674 = vcmp.gt.f32.partialorder %v2642, 0.0
      %vm2675 = vcmp.gt.f32.partialorder %v2643, 0.0
      %vm2676 = vcmp.gt.f32.partialorder %v2644, 0.0
      %vm2677 = vcmp.gt.f32.partialorder %v2645, 0.0
      %vm2678 = vcmp.gt.f32.partialorder %v2646, 0.0
      %vm2679 = vcmp.gt.f32.partialorder %v2647, 0.0
      %vm2680 = vcmp.gt.f32.partialorder %v2648, 0.0
      %vm2681 = vcmp.gt.f32.partialorder %v2649, 0.0
      %vm2682 = vcmp.gt.f32.partialorder %v2650, 0.0
      %vm2683 = vcmp.gt.f32.partialorder %v2651, 0.0
      %vm2684 = vcmp.gt.f32.partialorder %v2652, 0.0
      %vm2685 = vcmp.gt.f32.partialorder %v2653, 0.0
      %vm2686 = vcmp.gt.f32.partialorder %v2654, 0.0
      %vm2687 = vcmp.gt.f32.partialorder %v2655, 0.0
      %vm2688 = vcmp.gt.f32.partialorder %v2656, 0.0
      %vm2689 = vcmp.gt.f32.partialorder %v2657, 0.0
      %vm2690 = vcmp.gt.f32.partialorder %v2658, 0.0
      %vm2691 = vcmp.gt.f32.partialorder %v2659, 0.0
      %vm2692 = vcmp.gt.f32.partialorder %v2660, 0.0
      %vm2693 = vcmp.gt.f32.partialorder %v2661, 0.0
      %vm2694 = vcmp.gt.f32.partialorder %v2662, 0.0
      %vm2695 = vcmp.gt.f32.partialorder %v2663, 0.0
      %vm2696 = vcmp.gt.f32.partialorder %v2664, 0.0
      %vm2697 = vcmp.gt.f32.partialorder %v2665, 0.0
      %vm2698 = vcmp.gt.f32.partialorder %v2666, 0.0
      %vm2699 = vcmp.gt.f32.partialorder %v2667, 0.0
      %vm2700 = vcmp.gt.f32.partialorder %v2668, 0.0
      %v2701 = vmul.f32 %v2637, 0.2
      %v2702 = vmul.f32 %v2638, 0.2
      %v2703 = vmul.f32 %v2639, 0.2
      %v2704 = vmul.f32 %v2640, 0.2
      %v2705 = vmul.f32 %v2641, 0.2
      %v2706 = vmul.f32 %v2642, 0.2
      %v2707 = vmul.f32 %v2643, 0.2
      %v2708 = vmul.f32 %v2644, 0.2
      %v2709 = vmul.f32 %v2645, 0.2
      %v2710 = vmul.f32 %v2646, 0.2
      %v2711 = vmul.f32 %v2647, 0.2
      %v2712 = vmul.f32 %v2648, 0.2
      %v2713 = vmul.f32 %v2649, 0.2
      %v2714 = vmul.f32 %v2650, 0.2
      %v2715 = vmul.f32 %v2651, 0.2
      %v2716 = vmul.f32 %v2652, 0.2
      %v2717 = vmul.f32 %v2653, 0.2
      %v2718 = vmul.f32 %v2654, 0.2
      %v2719 = vmul.f32 %v2655, 0.2
      %v2720 = vmul.f32 %v2656, 0.2
      %v2721 = vmul.f32 %v2657, 0.2
      %v2722 = vmul.f32 %v2658, 0.2
      %v2723 = vmul.f32 %v2659, 0.2
      %v2724 = vmul.f32 %v2660, 0.2
      %v2725 = vmul.f32 %v2661, 0.2
      %v2726 = vmul.f32 %v2662, 0.2
      %v2727 = vmul.f32 %v2663, 0.2
      %v2728 = vmul.f32 %v2664, 0.2
      %v2729 = vmul.f32 %v2665, 0.2
      %v2730 = vmul.f32 %v2666, 0.2
      %v2731 = vmul.f32 %v2667, 0.2
      %v2732 = vmul.f32 %v2668, 0.2
      %v2733 = vsel %vm2669, %v2637, %v2701
      %v2734 = vsel %vm2670, %v2638, %v2702
      %v2735 = vsel %vm2671, %v2639, %v2703
      %v2736 = vsel %vm2672, %v2640, %v2704
      %v2737 = vsel %vm2673, %v2641, %v2705
      %v2738 = vsel %vm2674, %v2642, %v2706
      %v2739 = vsel %vm2675, %v2643, %v2707
      %v2740 = vsel %vm2676, %v2644, %v2708
      %v2741 = vsel %vm2677, %v2645, %v2709
      %v2742 = vsel %vm2678, %v2646, %v2710
      %v2743 = vsel %vm2679, %v2647, %v2711
      %v2744 = vsel %vm2680, %v2648, %v2712
      %v2745 = vsel %vm2681, %v2649, %v2713
      %v2746 = vsel %vm2682, %v2650, %v2714
      %v2747 = vsel %vm2683, %v2651, %v2715
      %v2748 = vsel %vm2684, %v2652, %v2716
      %v2749 = vsel %vm2685, %v2653, %v2717
      %v2750 = vsel %vm2686, %v2654, %v2718
      %v2751 = vsel %vm2687, %v2655, %v2719
      %v2752 = vsel %vm2688, %v2656, %v2720
      %v2753 = vsel %vm2689, %v2657, %v2721
      %v2754 = vsel %vm2690, %v2658, %v2722
      %v2755 = vsel %vm2691, %v2659, %v2723
      %v2756 = vsel %vm2692, %v2660, %v2724
      %v2757 = vsel %vm2693, %v2661, %v2725
      %v2758 = vsel %vm2694, %v2662, %v2726
      %v2759 = vsel %vm2695, %v2663, %v2727
      %v2760 = vsel %vm2696, %v2664, %v2728
      %v2761 = vsel %vm2697, %v2665, %v2729
      %v2762 = vsel %vm2698, %v2666, %v2730
      %v2763 = vsel %vm2699, %v2667, %v2731
      %v2764 = vsel %vm2700, %v2668, %v2732
      %v2765 = vmul.f32 %v2733, %v2733
      %v2766 = vmul.f32 %v2734, %v2734
      %v2767 = vmul.f32 %v2735, %v2735
      %v2768 = vmul.f32 %v2736, %v2736
      %v2769 = vmul.f32 %v2737, %v2737
      %v2770 = vmul.f32 %v2738, %v2738
      %v2771 = vmul.f32 %v2739, %v2739
      %v2772 = vmul.f32 %v2740, %v2740
      %v2773 = vmul.f32 %v2741, %v2741
      %v2774 = vmul.f32 %v2742, %v2742
      %v2775 = vmul.f32 %v2743, %v2743
      %v2776 = vmul.f32 %v2744, %v2744
      %v2777 = vmul.f32 %v2745, %v2745
      %v2778 = vmul.f32 %v2746, %v2746
      %v2779 = vmul.f32 %v2747, %v2747
      %v2780 = vmul.f32 %v2748, %v2748
      %v2781 = vmul.f32 %v2749, %v2749
      %v2782 = vmul.f32 %v2750, %v2750
      %v2783 = vmul.f32 %v2751, %v2751
      %v2784 = vmul.f32 %v2752, %v2752
      %v2785 = vmul.f32 %v2753, %v2753
      %v2786 = vmul.f32 %v2754, %v2754
      %v2787 = vmul.f32 %v2755, %v2755
      %v2788 = vmul.f32 %v2756, %v2756
      %v2789 = vmul.f32 %v2757, %v2757
      %v2790 = vmul.f32 %v2758, %v2758
      %v2791 = vmul.f32 %v2759, %v2759
      %v2792 = vmul.f32 %v2760, %v2760
      %v2793 = vmul.f32 %v2761, %v2761
      %v2794 = vmul.f32 %v2762, %v2762
      %v2795 = vmul.f32 %v2763, %v2763
      %v2796 = vmul.f32 %v2764, %v2764
      %v2797 = vsel %vm241, %v2765, 0.0
      %2798 = vadd.xlane.f32.xlu0 %v2797
      %v2799 = vpop.xlane.xlu0 %2798
      %v2800 = vsel %vm241, %v2766, 0.0
      %2801 = vadd.xlane.f32.xlu0 %v2800
      %v2802 = vpop.xlane.xlu0 %2801
      %v2803 = vsel %vm241, %v2767, 0.0
      %2804 = vadd.xlane.f32.xlu0 %v2803
      %v2805 = vpop.xlane.xlu0 %2804
      %v2806 = vsel %vm241, %v2768, 0.0
      %2807 = vadd.xlane.f32.xlu0 %v2806
      %v2808 = vpop.xlane.xlu0 %2807
      %v2809 = vsel %vm241, %v2769, 0.0
      %2810 = vadd.xlane.f32.xlu0 %v2809
      %v2811 = vpop.xlane.xlu0 %2810
      %v2812 = vsel %vm241, %v2770, 0.0
      %2813 = vadd.xlane.f32.xlu0 %v2812
      %v2814 = vpop.xlane.xlu0 %2813
      %v2815 = vsel %vm241, %v2771, 0.0
      %2816 = vadd.xlane.f32.xlu0 %v2815
      %v2817 = vpop.xlane.xlu0 %2816
      %v2818 = vsel %vm241, %v2772, 0.0
      %2819 = vadd.xlane.f32.xlu0 %v2818
      %v2820 = vpop.xlane.xlu0 %2819
      %v2821 = vsel %vm241, %v2773, 0.0
      %2822 = vadd.xlane.f32.xlu0 %v2821
      %v2823 = vpop.xlane.xlu0 %2822
      %v2824 = vsel %vm241, %v2774, 0.0
      %2825 = vadd.xlane.f32.xlu0 %v2824
      %v2826 = vpop.xlane.xlu0 %2825
      %v2827 = vsel %vm241, %v2775, 0.0
      %2828 = vadd.xlane.f32.xlu0 %v2827
      %v2829 = vpop.xlane.xlu0 %2828
      %v2830 = vsel %vm241, %v2776, 0.0
      %2831 = vadd.xlane.f32.xlu0 %v2830
      %v2832 = vpop.xlane.xlu0 %2831
      %v2833 = vsel %vm241, %v2777, 0.0
      %2834 = vadd.xlane.f32.xlu0 %v2833
      %v2835 = vpop.xlane.xlu0 %2834
      %v2836 = vsel %vm241, %v2778, 0.0
      %2837 = vadd.xlane.f32.xlu0 %v2836
      %v2838 = vpop.xlane.xlu0 %2837
      %v2839 = vsel %vm241, %v2779, 0.0
      %2840 = vadd.xlane.f32.xlu0 %v2839
      %v2841 = vpop.xlane.xlu0 %2840
      %v2842 = vsel %vm241, %v2780, 0.0
      %2843 = vadd.xlane.f32.xlu0 %v2842
      %v2844 = vpop.xlane.xlu0 %2843
      %v2845 = vsel %vm241, %v2781, 0.0
      %2846 = vadd.xlane.f32.xlu0 %v2845
      %v2847 = vpop.xlane.xlu0 %2846
      %v2848 = vsel %vm241, %v2782, 0.0
      %2849 = vadd.xlane.f32.xlu0 %v2848
      %v2850 = vpop.xlane.xlu0 %2849
      %v2851 = vsel %vm241, %v2783, 0.0
      %2852 = vadd.xlane.f32.xlu0 %v2851
      %v2853 = vpop.xlane.xlu0 %2852
      %v2854 = vsel %vm241, %v2784, 0.0
      %2855 = vadd.xlane.f32.xlu0 %v2854
      %v2856 = vpop.xlane.xlu0 %2855
      %v2857 = vsel %vm241, %v2785, 0.0
      %2858 = vadd.xlane.f32.xlu0 %v2857
      %v2859 = vpop.xlane.xlu0 %2858
      %v2860 = vsel %vm241, %v2786, 0.0
      %2861 = vadd.xlane.f32.xlu0 %v2860
      %v2862 = vpop.xlane.xlu0 %2861
      %v2863 = vsel %vm241, %v2787, 0.0
      %2864 = vadd.xlane.f32.xlu0 %v2863
      %v2865 = vpop.xlane.xlu0 %2864
      %v2866 = vsel %vm241, %v2788, 0.0
      %2867 = vadd.xlane.f32.xlu0 %v2866
      %v2868 = vpop.xlane.xlu0 %2867
      %v2869 = vsel %vm241, %v2789, 0.0
      %2870 = vadd.xlane.f32.xlu0 %v2869
      %v2871 = vpop.xlane.xlu0 %2870
      %v2872 = vsel %vm241, %v2790, 0.0
      %2873 = vadd.xlane.f32.xlu0 %v2872
      %v2874 = vpop.xlane.xlu0 %2873
      %v2875 = vsel %vm241, %v2791, 0.0
      %2876 = vadd.xlane.f32.xlu0 %v2875
      %v2877 = vpop.xlane.xlu0 %2876
      %v2878 = vsel %vm241, %v2792, 0.0
      %2879 = vadd.xlane.f32.xlu0 %v2878
      %v2880 = vpop.xlane.xlu0 %2879
      %v2881 = vsel %vm241, %v2793, 0.0
      %2882 = vadd.xlane.f32.xlu0 %v2881
      %v2883 = vpop.xlane.xlu0 %2882
      %v2884 = vsel %vm241, %v2794, 0.0
      %2885 = vadd.xlane.f32.xlu0 %v2884
      %v2886 = vpop.xlane.xlu0 %2885
      %v2887 = vsel %vm241, %v2795, 0.0
      %2888 = vadd.xlane.f32.xlu0 %v2887
      %v2889 = vpop.xlane.xlu0 %2888
      %v2890 = vsel %vm241, %v2796, 0.0
      %2891 = vadd.xlane.f32.xlu0 %v2890
      %v2892 = vpop.xlane.xlu0 %2891
      %v2893 = vrcp.pop 8.0
      %v2894 = vmul.f32 8.0, %v2893
      %v2895 = vsub.f32 1.0, %v2894
      %v2896 = vmul.f32 %v2893, %v2895
      %v2897 = vadd.f32 %v2893, %v2896
      %vm2898 = vweird.f32 %v2893
      %v2899 = vsel %vm2898, %v2893, %v2897
      %v2900 = vmul.f32 %v2799, %v2899
      %v2901 = vmul.f32 %v2802, %v2899
      %v2902 = vmul.f32 %v2805, %v2899
      %v2903 = vmul.f32 %v2808, %v2899
      %v2904 = vmul.f32 %v2811, %v2899
      %v2905 = vmul.f32 %v2814, %v2899
      %v2906 = vmul.f32 %v2817, %v2899
      %v2907 = vmul.f32 %v2820, %v2899
      %v2908 = vmul.f32 %v2823, %v2899
      %v2909 = vmul.f32 %v2826, %v2899
      %v2910 = vmul.f32 %v2829, %v2899
      %v2911 = vmul.f32 %v2832, %v2899
      %v2912 = vmul.f32 %v2835, %v2899
      %v2913 = vmul.f32 %v2838, %v2899
      %v2914 = vmul.f32 %v2841, %v2899
      %v2915 = vmul.f32 %v2844, %v2899
      %v2916 = vmul.f32 %v2847, %v2899
      %v2917 = vmul.f32 %v2850, %v2899
      %v2918 = vmul.f32 %v2853, %v2899
      %v2919 = vmul.f32 %v2856, %v2899
      %v2920 = vmul.f32 %v2859, %v2899
      %v2921 = vmul.f32 %v2862, %v2899
      %v2922 = vmul.f32 %v2865, %v2899
      %v2923 = vmul.f32 %v2868, %v2899
      %v2924 = vmul.f32 %v2871, %v2899
      %v2925 = vmul.f32 %v2874, %v2899
      %v2926 = vmul.f32 %v2877, %v2899
      %v2927 = vmul.f32 %v2880, %v2899
      %v2928 = vmul.f32 %v2883, %v2899
      %v2929 = vmul.f32 %v2886, %v2899
      %v2930 = vmul.f32 %v2889, %v2899
      %v2931 = vmul.f32 %v2892, %v2899
      %v2932 = vadd.f32 %v2900, 1e-08
      %v2933 = vadd.f32 %v2901, 1e-08
      %v2934 = vadd.f32 %v2902, 1e-08
      %v2935 = vadd.f32 %v2903, 1e-08
      %v2936 = vadd.f32 %v2904, 1e-08
      %v2937 = vadd.f32 %v2905, 1e-08
      %v2938 = vadd.f32 %v2906, 1e-08
      %v2939 = vadd.f32 %v2907, 1e-08
      %v2940 = vadd.f32 %v2908, 1e-08
      %v2941 = vadd.f32 %v2909, 1e-08
      %v2942 = vadd.f32 %v2910, 1e-08
      %v2943 = vadd.f32 %v2911, 1e-08
      %v2944 = vadd.f32 %v2912, 1e-08
      %v2945 = vadd.f32 %v2913, 1e-08
      %v2946 = vadd.f32 %v2914, 1e-08
      %v2947 = vadd.f32 %v2915, 1e-08
      %v2948 = vadd.f32 %v2916, 1e-08
      %v2949 = vadd.f32 %v2917, 1e-08
      %v2950 = vadd.f32 %v2918, 1e-08
      %v2951 = vadd.f32 %v2919, 1e-08
      %v2952 = vadd.f32 %v2920, 1e-08
      %v2953 = vadd.f32 %v2921, 1e-08
      %v2954 = vadd.f32 %v2922, 1e-08
      %v2955 = vadd.f32 %v2923, 1e-08
      %v2956 = vadd.f32 %v2924, 1e-08
      %v2957 = vadd.f32 %v2925, 1e-08
      %v2958 = vadd.f32 %v2926, 1e-08
      %v2959 = vadd.f32 %v2927, 1e-08
      %v2960 = vadd.f32 %v2928, 1e-08
      %v2961 = vadd.f32 %v2929, 1e-08
      %v2962 = vadd.f32 %v2930, 1e-08
      %v2963 = vadd.f32 %v2931, 1e-08
      %v2964 = vrsqrt.pop %v2932
      %v2965 = vmul.f32 %v2964, %v2932
      %v2966 = vmul.f32 %v2965, %v2964
      %v2967 = vmul.f32 0.5, %v2966
      %v2968 = vsub.f32 1.5, %v2967
      %v2969 = vmul.f32 %v2964, %v2968
      %vm2970 = vweird.f32 %v2932
      %vm2971 = vweird.f32 %v2964
      %vm2972 = vmor %vm2970, %vm2971
      %v2973 = vsel %vm2972, %v2964, %v2969
      %v2974 = vrsqrt.pop %v2933
      %v2975 = vmul.f32 %v2974, %v2933
      %v2976 = vmul.f32 %v2975, %v2974
      %v2977 = vmul.f32 0.5, %v2976
      %v2978 = vsub.f32 1.5, %v2977
      %v2979 = vmul.f32 %v2974, %v2978
      %vm2980 = vweird.f32 %v2933
      %vm2981 = vweird.f32 %v2974
      %vm2982 = vmor %vm2980, %vm2981
      %v2983 = vsel %vm2982, %v2974, %v2979
      %v2984 = vrsqrt.pop %v2934
      %v2985 = vmul.f32 %v2984, %v2934
      %v2986 = vmul.f32 %v2985, %v2984
      %v2987 = vmul.f32 0.5, %v2986
      %v2988 = vsub.f32 1.5, %v2987
      %v2989 = vmul.f32 %v2984, %v2988
      %vm2990 = vweird.f32 %v2934
      %vm2991 = vweird.f32 %v2984
      %vm2992 = vmor %vm2990, %vm2991
      %v2993 = vsel %vm2992, %v2984, %v2989
      %v2994 = vrsqrt.pop %v2935
      %v2995 = vmul.f32 %v2994, %v2935
      %v2996 = vmul.f32 %v2995, %v2994
      %v2997 = vmul.f32 0.5, %v2996
      %v2998 = vsub.f32 1.5, %v2997
      %v2999 = vmul.f32 %v2994, %v2998
      %vm3000 = vweird.f32 %v2935
      %vm3001 = vweird.f32 %v2994
      %vm3002 = vmor %vm3000, %vm3001
      %v3003 = vsel %vm3002, %v2994, %v2999
      %v3004 = vrsqrt.pop %v2936
      %v3005 = vmul.f32 %v3004, %v2936
      %v3006 = vmul.f32 %v3005, %v3004
      %v3007 = vmul.f32 0.5, %v3006
      %v3008 = vsub.f32 1.5, %v3007
      %v3009 = vmul.f32 %v3004, %v3008
      %vm3010 = vweird.f32 %v2936
      %vm3011 = vweird.f32 %v3004
      %vm3012 = vmor %vm3010, %vm3011
      %v3013 = vsel %vm3012, %v3004, %v3009
      %v3014 = vrsqrt.pop %v2937
      %v3015 = vmul.f32 %v3014, %v2937
      %v3016 = vmul.f32 %v3015, %v3014
      %v3017 = vmul.f32 0.5, %v3016
      %v3018 = vsub.f32 1.5, %v3017
      %v3019 = vmul.f32 %v3014, %v3018
      %vm3020 = vweird.f32 %v2937
      %vm3021 = vweird.f32 %v3014
      %vm3022 = vmor %vm3020, %vm3021
      %v3023 = vsel %vm3022, %v3014, %v3019
      %v3024 = vrsqrt.pop %v2938
      %v3025 = vmul.f32 %v3024, %v2938
      %v3026 = vmul.f32 %v3025, %v3024
      %v3027 = vmul.f32 0.5, %v3026
      %v3028 = vsub.f32 1.5, %v3027
      %v3029 = vmul.f32 %v3024, %v3028
      %vm3030 = vweird.f32 %v2938
      %vm3031 = vweird.f32 %v3024
      %vm3032 = vmor %vm3030, %vm3031
      %v3033 = vsel %vm3032, %v3024, %v3029
      %v3034 = vrsqrt.pop %v2939
      %v3035 = vmul.f32 %v3034, %v2939
      %v3036 = vmul.f32 %v3035, %v3034
      %v3037 = vmul.f32 0.5, %v3036
      %v3038 = vsub.f32 1.5, %v3037
      %v3039 = vmul.f32 %v3034, %v3038
      %vm3040 = vweird.f32 %v2939
      %vm3041 = vweird.f32 %v3034
      %vm3042 = vmor %vm3040, %vm3041
      %v3043 = vsel %vm3042, %v3034, %v3039
      %v3044 = vrsqrt.pop %v2940
      %v3045 = vmul.f32 %v3044, %v2940
      %v3046 = vmul.f32 %v3045, %v3044
      %v3047 = vmul.f32 0.5, %v3046
      %v3048 = vsub.f32 1.5, %v3047
      %v3049 = vmul.f32 %v3044, %v3048
      %vm3050 = vweird.f32 %v2940
      %vm3051 = vweird.f32 %v3044
      %vm3052 = vmor %vm3050, %vm3051
      %v3053 = vsel %vm3052, %v3044, %v3049
      %v3054 = vrsqrt.pop %v2941
      %v3055 = vmul.f32 %v3054, %v2941
      %v3056 = vmul.f32 %v3055, %v3054
      %v3057 = vmul.f32 0.5, %v3056
      %v3058 = vsub.f32 1.5, %v3057
      %v3059 = vmul.f32 %v3054, %v3058
      %vm3060 = vweird.f32 %v2941
      %vm3061 = vweird.f32 %v3054
      %vm3062 = vmor %vm3060, %vm3061
      %v3063 = vsel %vm3062, %v3054, %v3059
      %v3064 = vrsqrt.pop %v2942
      %v3065 = vmul.f32 %v3064, %v2942
      %v3066 = vmul.f32 %v3065, %v3064
      %v3067 = vmul.f32 0.5, %v3066
      %v3068 = vsub.f32 1.5, %v3067
      %v3069 = vmul.f32 %v3064, %v3068
      %vm3070 = vweird.f32 %v2942
      %vm3071 = vweird.f32 %v3064
      %vm3072 = vmor %vm3070, %vm3071
      %v3073 = vsel %vm3072, %v3064, %v3069
      %v3074 = vrsqrt.pop %v2943
      %v3075 = vmul.f32 %v3074, %v2943
      %v3076 = vmul.f32 %v3075, %v3074
      %v3077 = vmul.f32 0.5, %v3076
      %v3078 = vsub.f32 1.5, %v3077
      %v3079 = vmul.f32 %v3074, %v3078
      %vm3080 = vweird.f32 %v2943
      %vm3081 = vweird.f32 %v3074
      %vm3082 = vmor %vm3080, %vm3081
      %v3083 = vsel %vm3082, %v3074, %v3079
      %v3084 = vrsqrt.pop %v2944
      %v3085 = vmul.f32 %v3084, %v2944
      %v3086 = vmul.f32 %v3085, %v3084
      %v3087 = vmul.f32 0.5, %v3086
      %v3088 = vsub.f32 1.5, %v3087
      %v3089 = vmul.f32 %v3084, %v3088
      %vm3090 = vweird.f32 %v2944
      %vm3091 = vweird.f32 %v3084
      %vm3092 = vmor %vm3090, %vm3091
      %v3093 = vsel %vm3092, %v3084, %v3089
      %v3094 = vrsqrt.pop %v2945
      %v3095 = vmul.f32 %v3094, %v2945
      %v3096 = vmul.f32 %v3095, %v3094
      %v3097 = vmul.f32 0.5, %v3096
      %v3098 = vsub.f32 1.5, %v3097
      %v3099 = vmul.f32 %v3094, %v3098
      %vm3100 = vweird.f32 %v2945
      %vm3101 = vweird.f32 %v3094
      %vm3102 = vmor %vm3100, %vm3101
      %v3103 = vsel %vm3102, %v3094, %v3099
      %v3104 = vrsqrt.pop %v2946
      %v3105 = vmul.f32 %v3104, %v2946
      %v3106 = vmul.f32 %v3105, %v3104
      %v3107 = vmul.f32 0.5, %v3106
      %v3108 = vsub.f32 1.5, %v3107
      %v3109 = vmul.f32 %v3104, %v3108
      %vm3110 = vweird.f32 %v2946
      %vm3111 = vweird.f32 %v3104
      %vm3112 = vmor %vm3110, %vm3111
      %v3113 = vsel %vm3112, %v3104, %v3109
      %v3114 = vrsqrt.pop %v2947
      %v3115 = vmul.f32 %v3114, %v2947
      %v3116 = vmul.f32 %v3115, %v3114
      %v3117 = vmul.f32 0.5, %v3116
      %v3118 = vsub.f32 1.5, %v3117
      %v3119 = vmul.f32 %v3114, %v3118
      %vm3120 = vweird.f32 %v2947
      %vm3121 = vweird.f32 %v3114
      %vm3122 = vmor %vm3120, %vm3121
      %v3123 = vsel %vm3122, %v3114, %v3119
      %v3124 = vrsqrt.pop %v2948
      %v3125 = vmul.f32 %v3124, %v2948
      %v3126 = vmul.f32 %v3125, %v3124
      %v3127 = vmul.f32 0.5, %v3126
      %v3128 = vsub.f32 1.5, %v3127
      %v3129 = vmul.f32 %v3124, %v3128
      %vm3130 = vweird.f32 %v2948
      %vm3131 = vweird.f32 %v3124
      %vm3132 = vmor %vm3130, %vm3131
      %v3133 = vsel %vm3132, %v3124, %v3129
      %v3134 = vrsqrt.pop %v2949
      %v3135 = vmul.f32 %v3134, %v2949
      %v3136 = vmul.f32 %v3135, %v3134
      %v3137 = vmul.f32 0.5, %v3136
      %v3138 = vsub.f32 1.5, %v3137
      %v3139 = vmul.f32 %v3134, %v3138
      %vm3140 = vweird.f32 %v2949
      %vm3141 = vweird.f32 %v3134
      %vm3142 = vmor %vm3140, %vm3141
      %v3143 = vsel %vm3142, %v3134, %v3139
      %v3144 = vrsqrt.pop %v2950
      %v3145 = vmul.f32 %v3144, %v2950
      %v3146 = vmul.f32 %v3145, %v3144
      %v3147 = vmul.f32 0.5, %v3146
      %v3148 = vsub.f32 1.5, %v3147
      %v3149 = vmul.f32 %v3144, %v3148
      %vm3150 = vweird.f32 %v2950
      %vm3151 = vweird.f32 %v3144
      %vm3152 = vmor %vm3150, %vm3151
      %v3153 = vsel %vm3152, %v3144, %v3149
      %v3154 = vrsqrt.pop %v2951
      %v3155 = vmul.f32 %v3154, %v2951
      %v3156 = vmul.f32 %v3155, %v3154
      %v3157 = vmul.f32 0.5, %v3156
      %v3158 = vsub.f32 1.5, %v3157
      %v3159 = vmul.f32 %v3154, %v3158
      %vm3160 = vweird.f32 %v2951
      %vm3161 = vweird.f32 %v3154
      %vm3162 = vmor %vm3160, %vm3161
      %v3163 = vsel %vm3162, %v3154, %v3159
      %v3164 = vrsqrt.pop %v2952
      %v3165 = vmul.f32 %v3164, %v2952
      %v3166 = vmul.f32 %v3165, %v3164
      %v3167 = vmul.f32 0.5, %v3166
      %v3168 = vsub.f32 1.5, %v3167
      %v3169 = vmul.f32 %v3164, %v3168
      %vm3170 = vweird.f32 %v2952
      %vm3171 = vweird.f32 %v3164
      %vm3172 = vmor %vm3170, %vm3171
      %v3173 = vsel %vm3172, %v3164, %v3169
      %v3174 = vrsqrt.pop %v2953
      %v3175 = vmul.f32 %v3174, %v2953
      %v3176 = vmul.f32 %v3175, %v3174
      %v3177 = vmul.f32 0.5, %v3176
      %v3178 = vsub.f32 1.5, %v3177
      %v3179 = vmul.f32 %v3174, %v3178
      %vm3180 = vweird.f32 %v2953
      %vm3181 = vweird.f32 %v3174
      %vm3182 = vmor %vm3180, %vm3181
      %v3183 = vsel %vm3182, %v3174, %v3179
      %v3184 = vrsqrt.pop %v2954
      %v3185 = vmul.f32 %v3184, %v2954
      %v3186 = vmul.f32 %v3185, %v3184
      %v3187 = vmul.f32 0.5, %v3186
      %v3188 = vsub.f32 1.5, %v3187
      %v3189 = vmul.f32 %v3184, %v3188
      %vm3190 = vweird.f32 %v2954
      %vm3191 = vweird.f32 %v3184
      %vm3192 = vmor %vm3190, %vm3191
      %v3193 = vsel %vm3192, %v3184, %v3189
      %v3194 = vrsqrt.pop %v2955
      %v3195 = vmul.f32 %v3194, %v2955
      %v3196 = vmul.f32 %v3195, %v3194
      %v3197 = vmul.f32 0.5, %v3196
      %v3198 = vsub.f32 1.5, %v3197
      %v3199 = vmul.f32 %v3194, %v3198
      %vm3200 = vweird.f32 %v2955
      %vm3201 = vweird.f32 %v3194
      %vm3202 = vmor %vm3200, %vm3201
      %v3203 = vsel %vm3202, %v3194, %v3199
      %v3204 = vrsqrt.pop %v2956
      %v3205 = vmul.f32 %v3204, %v2956
      %v3206 = vmul.f32 %v3205, %v3204
      %v3207 = vmul.f32 0.5, %v3206
      %v3208 = vsub.f32 1.5, %v3207
      %v3209 = vmul.f32 %v3204, %v3208
      %vm3210 = vweird.f32 %v2956
      %vm3211 = vweird.f32 %v3204
      %vm3212 = vmor %vm3210, %vm3211
      %v3213 = vsel %vm3212, %v3204, %v3209
      %v3214 = vrsqrt.pop %v2957
      %v3215 = vmul.f32 %v3214, %v2957
      %v3216 = vmul.f32 %v3215, %v3214
      %v3217 = vmul.f32 0.5, %v3216
      %v3218 = vsub.f32 1.5, %v3217
      %v3219 = vmul.f32 %v3214, %v3218
      %vm3220 = vweird.f32 %v2957
      %vm3221 = vweird.f32 %v3214
      %vm3222 = vmor %vm3220, %vm3221
      %v3223 = vsel %vm3222, %v3214, %v3219
      %v3224 = vrsqrt.pop %v2958
      %v3225 = vmul.f32 %v3224, %v2958
      %v3226 = vmul.f32 %v3225, %v3224
      %v3227 = vmul.f32 0.5, %v3226
      %v3228 = vsub.f32 1.5, %v3227
      %v3229 = vmul.f32 %v3224, %v3228
      %vm3230 = vweird.f32 %v2958
      %vm3231 = vweird.f32 %v3224
      %vm3232 = vmor %vm3230, %vm3231
      %v3233 = vsel %vm3232, %v3224, %v3229
      %v3234 = vrsqrt.pop %v2959
      %v3235 = vmul.f32 %v3234, %v2959
      %v3236 = vmul.f32 %v3235, %v3234
      %v3237 = vmul.f32 0.5, %v3236
      %v3238 = vsub.f32 1.5, %v3237
      %v3239 = vmul.f32 %v3234, %v3238
      %vm3240 = vweird.f32 %v2959
      %vm3241 = vweird.f32 %v3234
      %vm3242 = vmor %vm3240, %vm3241
      %v3243 = vsel %vm3242, %v3234, %v3239
      %v3244 = vrsqrt.pop %v2960
      %v3245 = vmul.f32 %v3244, %v2960
      %v3246 = vmul.f32 %v3245, %v3244
      %v3247 = vmul.f32 0.5, %v3246
      %v3248 = vsub.f32 1.5, %v3247
      %v3249 = vmul.f32 %v3244, %v3248
      %vm3250 = vweird.f32 %v2960
      %vm3251 = vweird.f32 %v3244
      %vm3252 = vmor %vm3250, %vm3251
      %v3253 = vsel %vm3252, %v3244, %v3249
      %v3254 = vrsqrt.pop %v2961
      %v3255 = vmul.f32 %v3254, %v2961
      %v3256 = vmul.f32 %v3255, %v3254
      %v3257 = vmul.f32 0.5, %v3256
      %v3258 = vsub.f32 1.5, %v3257
      %v3259 = vmul.f32 %v3254, %v3258
      %vm3260 = vweird.f32 %v2961
      %vm3261 = vweird.f32 %v3254
      %vm3262 = vmor %vm3260, %vm3261
      %v3263 = vsel %vm3262, %v3254, %v3259
      %v3264 = vrsqrt.pop %v2962
      %v3265 = vmul.f32 %v3264, %v2962
      %v3266 = vmul.f32 %v3265, %v3264
      %v3267 = vmul.f32 0.5, %v3266
      %v3268 = vsub.f32 1.5, %v3267
      %v3269 = vmul.f32 %v3264, %v3268
      %vm3270 = vweird.f32 %v2962
      %vm3271 = vweird.f32 %v3264
      %vm3272 = vmor %vm3270, %vm3271
      %v3273 = vsel %vm3272, %v3264, %v3269
      %v3274 = vrsqrt.pop %v2963
      %v3275 = vmul.f32 %v3274, %v2963
      %v3276 = vmul.f32 %v3275, %v3274
      %v3277 = vmul.f32 0.5, %v3276
      %v3278 = vsub.f32 1.5, %v3277
      %v3279 = vmul.f32 %v3274, %v3278
      %vm3280 = vweird.f32 %v2963
      %vm3281 = vweird.f32 %v3274
      %vm3282 = vmor %vm3280, %vm3281
      %v3283 = vsel %vm3282, %v3274, %v3279
      %v3284 = vmul.f32 %v2733, %v2973
      %v3285 = vmul.f32 %v2734, %v2983
      %v3286 = vmul.f32 %v2735, %v2993
      %v3287 = vmul.f32 %v2736, %v3003
      %v3288 = vmul.f32 %v2737, %v3013
      %v3289 = vmul.f32 %v2738, %v3023
      %v3290 = vmul.f32 %v2739, %v3033
      %v3291 = vmul.f32 %v2740, %v3043
      %v3292 = vmul.f32 %v2741, %v3053
      %v3293 = vmul.f32 %v2742, %v3063
      %v3294 = vmul.f32 %v2743, %v3073
      %v3295 = vmul.f32 %v2744, %v3083
      %v3296 = vmul.f32 %v2745, %v3093
      %v3297 = vmul.f32 %v2746, %v3103
      %v3298 = vmul.f32 %v2747, %v3113
      %v3299 = vmul.f32 %v2748, %v3123
      %v3300 = vmul.f32 %v2749, %v3133
      %v3301 = vmul.f32 %v2750, %v3143
      %v3302 = vmul.f32 %v2751, %v3153
      %v3303 = vmul.f32 %v2752, %v3163
      %v3304 = vmul.f32 %v2753, %v3173
      %v3305 = vmul.f32 %v2754, %v3183
      %v3306 = vmul.f32 %v2755, %v3193
      %v3307 = vmul.f32 %v2756, %v3203
      %v3308 = vmul.f32 %v2757, %v3213
      %v3309 = vmul.f32 %v2758, %v3223
      %v3310 = vmul.f32 %v2759, %v3233
      %v3311 = vmul.f32 %v2760, %v3243
      %v3312 = vmul.f32 %v2761, %v3253
      %v3313 = vmul.f32 %v2762, %v3263
      %v3314 = vmul.f32 %v2763, %v3273
      %v3315 = vmul.f32 %v2764, %v3283
      %3316 = vst.msk [vmem:[%s194] sm:$0xff] %vm241, %v3284
      %3317 = vst.msk [vmem:[%s194 + $0x8] sm:$0xff] %vm241, %v3285
      %3318 = vst.msk [vmem:[%s194 + $0x10] sm:$0xff] %vm241, %v3286
      %3319 = vst.msk [vmem:[%s194 + $0x18] sm:$0xff] %vm241, %v3287
      %3320 = vst.msk [vmem:[%s194 + $0x20] sm:$0xff] %vm241, %v3288
      %3321 = vst.msk [vmem:[%s194 + $0x28] sm:$0xff] %vm241, %v3289
      %3322 = vst.msk [vmem:[%s194 + $0x30] sm:$0xff] %vm241, %v3290
      %3323 = vst.msk [vmem:[%s194 + $0x38] sm:$0xff] %vm241, %v3291
      %3324 = vst.msk [vmem:[%s194 + $0x40] sm:$0xff] %vm241, %v3292
      %3325 = vst.msk [vmem:[%s194 + $0x48] sm:$0xff] %vm241, %v3293
      %3326 = vst.msk [vmem:[%s194 + $0x50] sm:$0xff] %vm241, %v3294
      %3327 = vst.msk [vmem:[%s194 + $0x58] sm:$0xff] %vm241, %v3295
      %3328 = vst.msk [vmem:[%s194 + $0x60] sm:$0xff] %vm241, %v3296
      %3329 = vst.msk [vmem:[%s194 + $0x68] sm:$0xff] %vm241, %v3297
      %3330 = vst.msk [vmem:[%s194 + $0x70] sm:$0xff] %vm241, %v3298
      %3331 = vst.msk [vmem:[%s194 + $0x78] sm:$0xff] %vm241, %v3299
      %3332 = vst.msk [vmem:[%s194 + $0x80] sm:$0xff] %vm241, %v3300
      %3333 = vst.msk [vmem:[%s194 + $0x88] sm:$0xff] %vm241, %v3301
      %3334 = vst.msk [vmem:[%s194 + $0x90] sm:$0xff] %vm241, %v3302
      %3335 = vst.msk [vmem:[%s194 + $0x98] sm:$0xff] %vm241, %v3303
      %3336 = vst.msk [vmem:[%s194 + $0xa0] sm:$0xff] %vm241, %v3304
      %3337 = vst.msk [vmem:[%s194 + $0xa8] sm:$0xff] %vm241, %v3305
      %3338 = vst.msk [vmem:[%s194 + $0xb0] sm:$0xff] %vm241, %v3306
      %3339 = vst.msk [vmem:[%s194 + $0xb8] sm:$0xff] %vm241, %v3307
      %3340 = vst.msk [vmem:[%s194 + $0xc0] sm:$0xff] %vm241, %v3308
      %3341 = vst.msk [vmem:[%s194 + $0xc8] sm:$0xff] %vm241, %v3309
      %3342 = vst.msk [vmem:[%s194 + $0xd0] sm:$0xff] %vm241, %v3310
      %3343 = vst.msk [vmem:[%s194 + $0xd8] sm:$0xff] %vm241, %v3311
      %3344 = vst.msk [vmem:[%s194 + $0xe0] sm:$0xff] %vm241, %v3312
      %3345 = vst.msk [vmem:[%s194 + $0xe8] sm:$0xff] %vm241, %v3313
      %3346 = vst.msk [vmem:[%s194 + $0xf0] sm:$0xff] %vm241, %v3314
      %3347 = vst.msk [vmem:[%s194 + $0xf8] sm:$0xff] %vm241, %v3315
      %s3348 = smul.u32 16, %s19
      %p3349 = scmp.lt.s32.totalorder %s18, 1
      %s3350 = scalar_select %p3349, %s18, 1
      %p3351 = scmp.lt.s32.totalorder %s3348, 15
      %s3352 = scalar_select %p3351, %s3348, 15
      %s3353 = smul.addr %s3352, 2
      %s3354 = smul.addr %s3350, 32
      %s3355 = sadd.s32 %s3353, %s3354
      %s3356 = smul.addr %s3355, 8
      %s3357 = scalar_lea.vmem %s3, %s3356
      // Predicated region
      $region33: #{conv_block_forward.3} parent=31 // pred_check
        %p3358 = pneg %p114
      $region34: #{conv_block_forward.3} parent=31 // pred_check_branch
        %3360 = sbr.rel (%p3358) target = $region36
      $region35: #{conv_block_forward.3} parent=31 // pred_region
        %s3361 = smul.u32 16, %s19
      $region36: #{conv_block_forward.3} parent=31 // pred_fallthru
        _
    $region32: #{conv_block_forward.3} parent=5 // pred_fallthru
      _
    %p3362 = scmp.le.s32.totalorder 2, %s9
    // Predicated region
    $region37: #{conv_block_forward.3} parent=5 // pred_check
      %p3363 = pneg %p3362
    $region38: #{conv_block_forward.3} parent=5 // pred_check_branch
      %3365 = sbr.rel (%p3363) target = $region40
    $region39: #{conv_block_forward.3} parent=5 // pred_region
      %s3366 = ssub.s32 %s9, 2
      // Predicated region
      $region41: #{conv_block_forward.3} parent=39 // pred_check
        %p3367 = pneg %p120
      $region42: #{conv_block_forward.3} parent=39 // pred_check_branch
        %3369 = sbr.rel (%p3367) target = $region44
      $region43: #{conv_block_forward.3} parent=39 // pred_region
        %s3370 = smul.u32 16, %s21
        %p3371 = scmp.lt.s32.totalorder %s20, 1
        %s3372 = scalar_select %p3371, %s20, 1
        %p3373 = scmp.lt.s32.totalorder %s3370, 15
        %s3374 = scalar_select %p3373, %s3370, 15
        %s3375 = smul.addr %s3374, 2
        %s3376 = smul.addr %s3372, 32
        %s3377 = sadd.s32 %s3375, %s3376
        %s3378 = smul.addr %s3377, 8
        %s3379 = scalar_lea.vmem %s3, %s3378
      $region44: #{conv_block_forward.3} parent=39 // pred_fallthru
        _
    $region40: #{conv_block_forward.3} parent=5 // pred_fallthru
      _
  $region6: #{conv_block_forward.3} parent=0 // loop_footer
    %s13 = sadd.s32 1, %s9
  $region7: #{conv_block_forward.3} parent=0 // loop_footer_branch
    %8 = sbr.rel target = $region3
  $region8: #{conv_block_forward.3} parent=0 // loop_exit
    _

</llo_original>
